<compile_context>
chip_gen: v7x
topology: tpu7x:2x2x1
jax: 0.10.0
libtpu: 0.0.40
codegen_flags: <defaults>
</compile_context>

<pallas_src>
import functools
import math

import jax
import jax.numpy as jnp
from jax import lax
from jax.experimental import pallas as pl
from jax.experimental.pallas import tpu as pltpu

_BF16 = jnp.bfloat16
_LN_EPS = 1e-5


# ----------------------------------------------------------------------------
# generation-aware VMEM budgeting
# ----------------------------------------------------------------------------
def _derive_vmem_budgets():
    cap = None
    try:
        cap = getattr(pltpu.get_tpu_info(), "vmem_capacity_bytes", None)
    except Exception:
        cap = None
    if not cap:
        cap = 64 * 1024 * 1024            # conservative: v7x physical VMEM
    limit = min(int(cap) * 3 // 4, 96 * 1024 * 1024)
    return limit, limit // 2


_VMEM_LIMIT, _TILE_BUDGET = _derive_vmem_budgets()


def _cparams(ngrid=1):
    return pltpu.CompilerParams(dimension_semantics=("parallel",) * ngrid,
                                vmem_limit_bytes=_VMEM_LIMIT)


def _pick_tile_m(M, row_bytes, resident_bytes, budget=None):
    """Pick a row-tile size.

    row_bytes:      per-row bytes of the row-tiled (pipelined) operands plus
                    live f32 temporaries (factor 2 below = double buffering).
    resident_bytes: bytes of operands whose block index never changes (Pallas
                    still double-buffers them, hence the extra 2x).
    Prefers the largest multiple-of-8 divisor of M that fits the budget and
    leaves a grid of length >= 2 (v7x has 2 TensorCores)."""
    budget = _TILE_BUDGET if budget is None else budget
    cands = sorted({d for d in range(8, M, 8) if M % d == 0} | {M}, reverse=True)
    fits = [t for t in cands if 2 * resident_bytes + 2 * t * row_bytes <= budget]
    pool = fits if fits else [cands[-1]]
    multi = [t for t in pool if M // t >= 2]
    return (multi or pool)[0]


def _bias2d(b, N):
    if b is None:
        return jnp.zeros((1, N), jnp.float32)
    return b.reshape(1, N).astype(jnp.float32)


# ----------------------------------------------------------------------------
# in-kernel helpers (f32 elementwise math, bf16 storage)
# ----------------------------------------------------------------------------
def _ln_f32(x, g, b):
    mean = jnp.mean(x, axis=-1, keepdims=True)
    var = jnp.mean(jnp.square(x - mean), axis=-1, keepdims=True)
    return (x - mean) * lax.rsqrt(var + _LN_EPS) * g + b


def _gelu_tanh(x):
    # TODO(synk): tanh-approx GELU (EUP friendly); torch.nn.GELU defaults to
    # the exact erf form (~1e-3 level deviation).
    c = 0.7978845608028654  # sqrt(2/pi)
    return 0.5 * x * (1.0 + jnp.tanh(c * (x + 0.044715 * x * x * x)))


# ----------------------------------------------------------------------------
# matmul-family kernels (bf16 inputs, f32 MXU accumulation, fused epilogues)
# ----------------------------------------------------------------------------
def _mm_kernel(x_ref, w_ref, b_ref, o_ref):
    acc = jnp.dot(x_ref[...], w_ref[...], preferred_element_type=jnp.float32)
    o_ref[...] = (acc + b_ref[...]).astype(o_ref.dtype)


def _mm_res_kernel(x_ref, w_ref, b_ref, r_ref, o_ref):
    acc = jnp.dot(x_ref[...], w_ref[...], preferred_element_type=jnp.float32)
    acc = acc + b_ref[...] + r_ref[...].astype(jnp.float32)
    o_ref[...] = acc.astype(o_ref.dtype)


def _mm_ln_kernel(x_ref, w_ref, b_ref, g_ref, bb_ref, o_ref):
    acc = jnp.dot(x_ref[...], w_ref[...], preferred_element_type=jnp.float32)
    o_ref[...] = _ln_f32(acc + b_ref[...], g_ref[...], bb_ref[...]).astype(o_ref.dtype)


def _ln_mm_kernel(x_ref, g_ref, bb_ref, w_ref, b_ref, o_ref):
    y = _ln_f32(x_ref[...].astype(jnp.float32), g_ref[...], bb_ref[...])
    acc = jnp.dot(y.astype(_BF16), w_ref[...], preferred_element_type=jnp.float32)
    o_ref[...] = (acc + b_ref[...]).astype(o_ref.dtype)


def _ln_kernel(x_ref, g_ref, bb_ref, o_ref):
    o_ref[...] = _ln_f32(x_ref[...].astype(jnp.float32),
                         g_ref[...], bb_ref[...]).astype(o_ref.dtype)


def _mm_call(kernel, M, N, args, in_specs, tm):
    return pl.pallas_call(
        kernel,
        out_shape=jax.ShapeDtypeStruct((M, N), _BF16),
        grid=(M // tm,),
        in_specs=in_specs,
        out_specs=pl.BlockSpec((tm, N), lambda i: (i, 0)),
        compiler_params=_cparams(1),
    )(*args)


def matmul_bias(x, w, b=None, residual=None):
    M, K = x.shape
    N = w.shape[1]
    row_bytes = 2 * K + 2 * N + 4 * N + (2 * N if residual is not None else 0)
    resident = 2 * K * N + 4 * N
    tm = _pick_tile_m(M, row_bytes, resident)
    in_specs = [pl.BlockSpec((tm, K), lambda i: (i, 0)),
                pl.BlockSpec((K, N), lambda i: (0, 0)),
                pl.BlockSpec((1, N), lambda i: (0, 0))]
    args = [x.astype(_BF16), w.astype(_BF16), _bias2d(b, N)]
    kernel = _mm_kernel
    if residual is not None:
        in_specs.append(pl.BlockSpec((tm, N), lambda i: (i, 0)))
        args.append(residual.astype(_BF16))
        kernel = _mm_res_kernel
    return _mm_call(kernel, M, N, args, in_specs, tm)


def matmul_bias_ln(x, w, b, gamma, beta):
    M, K = x.shape
    N = w.shape[1]
    tm = _pick_tile_m(M, 2 * K + 2 * N + 8 * N, 2 * K * N + 12 * N)
    in_specs = [pl.BlockSpec((tm, K), lambda i: (i, 0)),
                pl.BlockSpec((K, N), lambda i: (0, 0)),
                pl.BlockSpec((1, N), lambda i: (0, 0)),
                pl.BlockSpec((1, N), lambda i: (0, 0)),
                pl.BlockSpec((1, N), lambda i: (0, 0))]
    args = [x.astype(_BF16), w.astype(_BF16), _bias2d(b, N),
            gamma.reshape(1, N).astype(jnp.float32),
            beta.reshape(1, N).astype(jnp.float32)]
    return _mm_call(_mm_ln_kernel, M, N, args, in_specs, tm)


def ln_matmul_bias(x, gamma, beta, w, b):
    M, K = x.shape
    N = w.shape[1]
    tm = _pick_tile_m(M, 2 * K + 6 * K + 2 * N + 4 * N, 2 * K * N + 4 * N + 8 * K)
    in_specs = [pl.BlockSpec((tm, K), lambda i: (i, 0)),
                pl.BlockSpec((1, K), lambda i: (0, 0)),
                pl.BlockSpec((1, K), lambda i: (0, 0)),
                pl.BlockSpec((K, N), lambda i: (0, 0)),
                pl.BlockSpec((1, N), lambda i: (0, 0))]
    args = [x.astype(_BF16),
            gamma.reshape(1, K).astype(jnp.float32),
            beta.reshape(1, K).astype(jnp.float32),
            w.astype(_BF16), _bias2d(b, N)]
    return _mm_call(_ln_mm_kernel, M, N, args, in_specs, tm)


def layernorm_lastdim(x, gamma, beta):
    M, C = x.shape
    tm = _pick_tile_m(M, 2 * C + 6 * C, 8 * C)
    return pl.pallas_call(
        _ln_kernel,
        out_shape=jax.ShapeDtypeStruct((M, C), _BF16),
        grid=(M // tm,),
        in_specs=[pl.BlockSpec((tm, C), lambda i: (i, 0)),
                  pl.BlockSpec((1, C), lambda i: (0, 0)),
                  pl.BlockSpec((1, C), lambda i: (0, 0))],
        out_specs=pl.BlockSpec((tm, C), lambda i: (i, 0)),
        compiler_params=_cparams(1),
    )(x.astype(_BF16),
      gamma.reshape(1, C).astype(jnp.float32),
      beta.reshape(1, C).astype(jnp.float32))


# ----------------------------------------------------------------------------
# attention kernel: grid over (batch, Lq tiles), heads iterated inside,
# lane-dense (tq, C) output, pre-transposed K, full softmax over reduced Lk
# ----------------------------------------------------------------------------
def _attention_kernel(q_ref, kt_ref, v_ref, o_ref, *, num_heads, scale):
    q = q_ref[...]                       # (tq, C)  bf16
    kt = kt_ref[...]                     # (C, Lk)  bf16  (pre-transposed K)
    v = v_ref[...]                       # (Lk, C)  bf16
    C = q.shape[-1]
    hd = C // num_heads
    outs = []
    for h in range(num_heads):
        qh = q[:, h * hd:(h + 1) * hd]               # (tq, hd)
        kh = kt[h * hd:(h + 1) * hd, :]              # (hd, Lk)
        vh = v[:, h * hd:(h + 1) * hd]               # (Lk, hd)
        s = jnp.dot(qh, kh, preferred_element_type=jnp.float32) * scale
        m = jnp.max(s, axis=-1, keepdims=True)
        p = jnp.exp(s - m)
        inv = pl.reciprocal(jnp.sum(p, axis=-1, keepdims=True), approx=True)
        p = (p * inv).astype(v.dtype)
        outs.append(jnp.dot(p, vh, preferred_element_type=jnp.float32))
    o_ref[...] = jnp.concatenate(outs, axis=-1).astype(o_ref.dtype)


def _pick_tq(Lq, Lk, C, B):
    cands = sorted({d for d in range(8, Lq, 8) if Lq % d == 0} | {Lq}, reverse=True)
    kv_bytes = 2 * (C * Lk * 2 + Lk * C * 2)           # kT + v, bf16, dbl-buffered

    def fits(tq):
        per = (2 * (tq * C * 2 + tq * C * 2)            # q + out, bf16, dbl-buffered
               + kv_bytes
               + tq * C * 4                             # per-head f32 outputs at concat
               + 3 * tq * Lk * 4 + tq * Lk * 2)         # score / exp / p temporaries
        return int(per * 1.5) <= _TILE_BUDGET

    pool = [t for t in cands if fits(t)] or [cands[-1]]
    multi = [t for t in pool if B * (Lq // t) >= 2]     # keep both v7x cores busy
    return (multi or pool)[0]


def efficient_attention(q_flat, kT, v3, B, Lq, Lk, num_heads, scale):
    C = q_flat.shape[-1]
    tq = _pick_tq(Lq, Lk, C, B)
    nq = Lq // tq
    q3 = q_flat.astype(_BF16).reshape(B, Lq, C)
    out = pl.pallas_call(
        functools.partial(_attention_kernel, num_heads=num_heads, scale=scale),
        out_shape=jax.ShapeDtypeStruct((B, Lq, C), _BF16),
        grid=(B, nq),
        in_specs=[pl.BlockSpec((None, tq, C), lambda b, i: (b, i, 0)),
                  pl.BlockSpec((None, C, Lk), lambda b, i: (b, 0, 0)),
                  pl.BlockSpec((None, Lk, C), lambda b, i: (b, 0, 0))],
        out_specs=pl.BlockSpec((None, tq, C), lambda b, i: (b, i, 0)),
        compiler_params=_cparams(2),
    )(q3, kT.astype(_BF16), v3.astype(_BF16))
    return out.reshape(B * Lq, C)


# ----------------------------------------------------------------------------
# fused MixFFN tail: 3x3 depthwise (9 shifted VPU MACs per expansion slice)
# + GELU + 1x1 conv (re-packed as `exp` MXU matmuls) + bias + residual
# ----------------------------------------------------------------------------
def _mixffn_kernel(xpad_ref, res_ref, wt_ref, bdw_ref, w3_ref, b3_ref, o_ref,
                   *, H, W, exp):
    C = o_ref.shape[-1]
    wt = wt_ref[...]                  # (exp, 9, C) f32  depthwise taps
    bdw = bdw_ref[...]                # (exp, C)   f32  depthwise bias
    w3 = w3_ref[...]                  # (exp, C, C) bf16 re-packed 1x1 conv
    out = res_ref[...].astype(jnp.float32) + b3_ref[...]       # residual + bias
    for e in range(exp):
        acc = jnp.zeros((H, W, C), jnp.float32) + bdw[e]
        t = 0
        for dy in range(3):
            for dx in range(3):
                acc = acc + xpad_ref[dy:dy + H, dx:dx + W, :] * wt[e, t]
                t += 1
        g = _gelu_tanh(acc).astype(_BF16).reshape(H * W, C)
        out = out + jnp.dot(g, w3[e], preferred_element_type=jnp.float32)
    o_ref[...] = out.astype(o_ref.dtype)


def mixffn_forward(h_flat, res_flat, B, H, W, bp, exp):
    C = h_flat.shape[-1]
    hp = jnp.pad(h_flat.reshape(B, H, W, C), ((0, 0), (1, 1), (1, 1), (0, 0)))
    res3 = res_flat.astype(_BF16).reshape(B, H * W, C)
    out = pl.pallas_call(
        functools.partial(_mixffn_kernel, H=H, W=W, exp=exp),
        out_shape=jax.ShapeDtypeStruct((B, H * W, C), _BF16),
        grid=(B,),
        in_specs=[
            pl.BlockSpec((None, H + 2, W + 2, C), lambda b: (b, 0, 0, 0)),
            pl.BlockSpec((None, H * W, C), lambda b: (b, 0, 0)),
            pl.BlockSpec((exp, 9, C), lambda b: (0, 0, 0)),
            pl.BlockSpec((exp, C), lambda b: (0, 0)),
            pl.BlockSpec((exp, C, C), lambda b: (0, 0, 0)),
            pl.BlockSpec((1, C), lambda b: (0, 0)),
        ],
        out_specs=pl.BlockSpec((None, H * W, C), lambda b: (b, 0, 0)),
        compiler_params=_cparams(1),
    )(hp, res3, bp['mlp_wdw_taps'], bp['mlp_bdw_r'], bp['mlp_w3_r'],
      _bias2d(bp['mlp_b3'], C))
    return out.reshape(B * H * W, C)


# ----------------------------------------------------------------------------
# plain-JAX glue
# ----------------------------------------------------------------------------
def space_to_patch(x_nhwc, r):
    # reducer conv has kernel=r, stride=r, pad=0 -> non-overlapping patches,
    # i.e. a pure reshape/transpose (no im2col duplication).
    # TODO(synk): assumes H % r == 0 and W % r == 0 (true for SegFormer sizes).
    B, H, W, C = x_nhwc.shape
    Hr, Wr = H // r, W // r
    p = x_nhwc.reshape(B, Hr, r, Wr, r, C).transpose(0, 1, 3, 2, 4, 5)
    return p.reshape(B * Hr * Wr, r * r * C), Hr, Wr


# ----------------------------------------------------------------------------
# module forward (composed of Pallas kernels)
# ----------------------------------------------------------------------------
def block_forward(x_flat, B, H, W, bp, r, num_heads, expansion):
    C = x_flat.shape[-1]
    Lq = H * W
    # --- ResidualAdd( LayerNorm2d -> EfficientMultiHeadAttention ) ---------
    # ln1 fused into the Q projection; standalone LN kept for the reducer input.
    q = ln_matmul_bias(x_flat, bp['ln1_g'], bp['ln1_b'], bp['wq'], bp['bq'])
    h1 = layernorm_lastdim(x_flat, bp['ln1_g'], bp['ln1_b'])
    red_p, Hr, Wr = space_to_patch(h1.reshape(B, H, W, C), r)
    # reducer Conv(r, r, stride=r) + LayerNorm2d fused into one matmul+LN kernel
    red = matmul_bias_ln(red_p, bp['red_w'], bp['red_b'],
                         bp['red_ln_g'], bp['red_ln_b'])
    Lk = Hr * Wr
    kv = matmul_bias(red, bp['wkv'], bp['bkv'])              # fused K,V projection
    kT = jnp.transpose(kv[:, :C].reshape(B, Lk, C), (0, 2, 1))   # (B, C, Lk)
    v3 = kv[:, C:].reshape(B, Lk, C)
    o = efficient_attention(q, kT, v3, B, Lq, Lk, num_heads,
                            1.0 / math.sqrt(C // num_heads))
    # output projection with the residual add fused into the matmul epilogue
    x_flat = matmul_bias(o, bp['wo'], bp['bo'], residual=x_flat)

    # --- ResidualAdd( LayerNorm2d -> MixMLP -> StochasticDepth ) -----------
    # LayerNorm fused into the first 1x1-conv matmul.
    h = ln_matmul_bias(x_flat, bp['ln2_g'], bp['ln2_b'],
                       bp['mlp_w1'], bp['mlp_b1'])
    # TODO(synk): StochasticDepth is identity (drop_prob=0.0 / eval mode).
    x_flat = mixffn_forward(h, x_flat, B, H, W, bp, expansion)
    return x_flat


def stage_forward(x_nhwc, sp, patch_size, stride, r, num_heads, expansion):
    B = x_nhwc.shape[0]
    pad = patch_size // 2
    # OverlapPatchMerging: overlapping strided conv on the MXU via XLA
    # (no k^2 im2col blow-up), then Pallas LayerNorm.
    y = lax.conv_general_dilated(
        x_nhwc.astype(_BF16), sp['patch_w'],
        window_strides=(stride, stride),
        padding=((pad, pad), (pad, pad)),
        dimension_numbers=('NHWC', 'HWIO', 'NHWC'),
        preferred_element_type=jnp.float32)
    _, Hout, Wout, C = y.shape
    x_flat = layernorm_lastdim(y.reshape(B * Hout * Wout, C).astype(_BF16),
                               sp['patch_ln_g'], sp['patch_ln_b'])
    for bp in sp['blocks']:
        x_flat = block_forward(x_flat, B, Hout, Wout, bp, r, num_heads, expansion)
    x_flat = layernorm_lastdim(x_flat, sp['norm_g'], sp['norm_b'])
    return x_flat.reshape(B, Hout, Wout, C)


def segformer_encoder_forward(x_nchw, params, cfg):
    # input NCHW (PyTorch convention) -> internal NHWC bf16 -> outputs NCHW f32
    x = jnp.transpose(x_nchw, (0, 2, 3, 1)).astype(_BF16)
    features = []
    for s, sp in enumerate(params):
        x = stage_forward(x, sp, cfg['patch_sizes'][s], cfg['overlap_sizes'][s],
                          cfg['reduction_ratios'][s], cfg['all_num_heads'][s],
                          cfg['mlp_expansions'][s])
        features.append(jnp.transpose(x, (0, 3, 1, 2)).astype(jnp.float32))
    return features


# ----------------------------------------------------------------------------
# deterministic parameter init (synthetic; shapes follow the torch module).
# Matmul weights stored in bf16 once; LN params / biases stay f32.
# ----------------------------------------------------------------------------
def init_params(key, cfg):
    params = []
    prev_c = cfg['in_channels']
    skeys = jax.random.split(key, len(cfg['widths']))
    for s, c in enumerate(cfg['widths']):
        ks = iter(jax.random.split(skeys[s], 16 + cfg['depths'][s] * 32))

        def nrm(shape, scale=0.05, dtype=jnp.float32):
            return (scale * jax.random.normal(next(ks), shape,
                                              jnp.float32)).astype(dtype)

        kps = cfg['patch_sizes'][s]
        r = cfg['reduction_ratios'][s]
        exp = cfg['mlp_expansions'][s]
        sp = {
            'patch_w': nrm((kps, kps, prev_c, c), dtype=_BF16),      # HWIO, bias-free
            'patch_ln_g': 1.0 + nrm((c,), 0.02), 'patch_ln_b': nrm((c,), 0.02),
            'norm_g': 1.0 + nrm((c,), 0.02), 'norm_b': nrm((c,), 0.02),
            'blocks': [],
        }
        for _ in range(cfg['depths'][s]):
            # torch layout: depthwise Conv2d(C, C*exp, 3, groups=C) weight
            # (C*exp, 1, 3, 3); out channel ce sees input channel ce // exp.
            wdw = 0.05 * jax.random.normal(next(ks), (c * exp, 3, 3), jnp.float32)
            bdw = 0.02 * jax.random.normal(next(ks), (c * exp,), jnp.float32)
            w3 = 0.05 * jax.random.normal(next(ks), (c * exp, c), jnp.float32)
            bp = {
                'ln1_g': 1.0 + nrm((c,), 0.02), 'ln1_b': nrm((c,), 0.02),
                'red_w': nrm((r * r * c, c), dtype=_BF16), 'red_b': nrm((c,), 0.02),
                'red_ln_g': 1.0 + nrm((c,), 0.02), 'red_ln_b': nrm((c,), 0.02),
                'wq': nrm((c, c), dtype=_BF16), 'bq': nrm((c,), 0.02),
                'wkv': nrm((c, 2 * c), dtype=_BF16), 'bkv': nrm((2 * c,), 0.02),
                'wo': nrm((c, c), dtype=_BF16), 'bo': nrm((c,), 0.02),
                'ln2_g': 1.0 + nrm((c,), 0.02), 'ln2_b': nrm((c,), 0.02),
                'mlp_w1': nrm((c, c), dtype=_BF16), 'mlp_b1': nrm((c,), 0.02),
                # re-packed depthwise taps: wt[e, 3*dy+dx, ch] = wdw[ch*exp+e, dy, dx]
                'mlp_wdw_taps': wdw.reshape(c, exp, 3, 3)
                                   .transpose(1, 2, 3, 0).reshape(exp, 9, c),
                'mlp_bdw_r': bdw.reshape(c, exp).T,                    # (exp, C)
                # re-packed 1x1 conv: w3_r[e, ch, :] = w3[ch*exp+e, :]
                'mlp_w3_r': w3.reshape(c, exp, c).transpose(1, 0, 2).astype(_BF16),
                'mlp_b3': nrm((c,), 0.02),
            }
            sp['blocks'].append(bp)
        params.append(sp)
        prev_c = c
    return params


# ----------------------------------------------------------------------------
# main
# ----------------------------------------------------------------------------
if __name__ == "__main__":
    cfg = dict(
        in_channels=3,
        widths=[16, 32],
        depths=[1, 1],
        all_num_heads=[2, 4],
        patch_sizes=[7, 3],
        overlap_sizes=[4, 2],
        reduction_ratios=[4, 2],
        mlp_expansions=[2, 2],
        drop_prob=0.0,
    )
    key = jax.random.PRNGKey(0)
    kx, kp = jax.random.split(key)
    x = jax.random.normal(kx, (2, 3, 32, 32), jnp.float32)   # NCHW like PyTorch
    params = init_params(kp, cfg)

    fwd = jax.jit(lambda inp: segformer_encoder_forward(inp, params, cfg))
    feats = fwd(x)
    for f in feats:
        jax.block_until_ready(f)
    # expected feature shapes: (2,16,8,8) and (2,32,4,4)
    assert feats[0].shape == (2, 16, 8, 8) and feats[1].shape == (2, 32, 4, 4)
    print("KERNEL_OK")
</pallas_src>

<mosaic_0001>
module attributes {stable_mosaic.version = 11 : i64} {
  func.func @_ln_kernel(%arg0: i32, %arg1: memref<64x16xbf16, #tpu.memory_space<vmem>>, %arg2: memref<1x16xf32, #tpu.memory_space<vmem>>, %arg3: memref<1x16xf32, #tpu.memory_space<vmem>>, %arg4: memref<64x16xbf16, #tpu.memory_space<vmem>>) attributes {dimension_semantics = [#tpu.dimension_semantics<parallel>], iteration_bounds = array<i64: 2>, scalar_prefetch = 0 : i64, scratch_operands = 0 : i64, tpu.core_type = #tpu.core_type<tc>, window_params = [{transform_indices = @transform_0, window_bounds = array<i64: 64, 16>}, {pipeline_mode = #tpu.pipeline_mode<synchronous>, transform_indices = @transform_1, window_bounds = array<i64: 1, 16>}, {pipeline_mode = #tpu.pipeline_mode<synchronous>, transform_indices = @transform_2, window_bounds = array<i64: 1, 16>}, {transform_indices = @transform_3, window_bounds = array<i64: 64, 16>}]} {
    %c0 = arith.constant 0 : index
    %c0_0 = arith.constant 0 : index
    %0 = vector.load %arg1[%c0, %c0_0] : memref<64x16xbf16, #tpu.memory_space<vmem>>, vector<64x16xbf16>
    %1 = arith.extf %0 : vector<64x16xbf16> to vector<64x16xf32>
    %c0_1 = arith.constant 0 : index
    %c0_2 = arith.constant 0 : index
    %2 = vector.load %arg2[%c0_1, %c0_2] : memref<1x16xf32, #tpu.memory_space<vmem>>, vector<1x16xf32>
    %c0_3 = arith.constant 0 : index
    %c0_4 = arith.constant 0 : index
    %3 = vector.load %arg3[%c0_3, %c0_4] : memref<1x16xf32, #tpu.memory_space<vmem>>, vector<1x16xf32>
    %cst = arith.constant dense<0.000000e+00> : vector<64xf32>
    %4 = vector.multi_reduction <add>, %1, %cst [1] : vector<64x16xf32> to vector<64xf32>
    %5 = vector.shape_cast %4 : vector<64xf32> to vector<64x1xf32>
    %cst_5 = arith.constant 1.600000e+01 : f32
    %6 = vector.broadcast %cst_5 : f32 to vector<64x1xf32>
    %7 = arith.divf %5, %6 : vector<64x1xf32>
    %8 = vector.broadcast %7 : vector<64x1xf32> to vector<64x16xf32>
    %9 = arith.subf %1, %8 : vector<64x16xf32>
    %10 = arith.mulf %9, %9 : vector<64x16xf32>
    %cst_6 = arith.constant dense<0.000000e+00> : vector<64xf32>
    %11 = vector.multi_reduction <add>, %10, %cst_6 [1] : vector<64x16xf32> to vector<64xf32>
    %12 = vector.shape_cast %11 : vector<64xf32> to vector<64x1xf32>
    %cst_7 = arith.constant 1.600000e+01 : f32
    %13 = vector.broadcast %cst_7 : f32 to vector<64x1xf32>
    %14 = arith.divf %12, %13 : vector<64x1xf32>
    %15 = vector.broadcast %7 : vector<64x1xf32> to vector<64x16xf32>
    %16 = arith.subf %1, %15 : vector<64x16xf32>
    %cst_8 = arith.constant 9.99999974E-6 : f32
    %17 = vector.broadcast %cst_8 : f32 to vector<64x1xf32>
    %18 = arith.addf %14, %17 : vector<64x1xf32>
    %19 = math.rsqrt %18 : vector<64x1xf32>
    %20 = vector.broadcast %19 : vector<64x1xf32> to vector<64x16xf32>
    %21 = arith.mulf %16, %20 : vector<64x16xf32>
    %22 = vector.broadcast %2 : vector<1x16xf32> to vector<64x16xf32>
    %23 = arith.mulf %21, %22 : vector<64x16xf32>
    %24 = vector.broadcast %3 : vector<1x16xf32> to vector<64x16xf32>
    %25 = arith.addf %23, %24 : vector<64x16xf32>
    %26 = arith.truncf %25 : vector<64x16xf32> to vector<64x16xbf16>
    %c0_9 = arith.constant 0 : index
    %c0_10 = arith.constant 0 : index
    %27 = vector.load %arg4[%c0_9, %c0_10] : memref<64x16xbf16, #tpu.memory_space<vmem>>, vector<64x16xbf16>
    tpu.vector_store %arg4[%c0_9, %c0_10], %26 {strides = array<i32>} : memref<64x16xbf16, #tpu.memory_space<vmem>>, vector<64x16xbf16>,
    return
  }
  func.func @transform_0(%arg0: i32) -> (i32, i32) {
    %c0_i32 = arith.constant 0 : i32
    %c0_i32_0 = arith.constant 0 : i32
    return %arg0, %c0_i32 : i32, i32
  }
  func.func @transform_1(%arg0: i32) -> (i32, i32) {
    %c0_i32 = arith.constant 0 : i32
    %c0_i32_0 = arith.constant 0 : i32
    %c0_i32_1 = arith.constant 0 : i32
    return %c0_i32, %c0_i32_0 : i32, i32
  }
  func.func @transform_2(%arg0: i32) -> (i32, i32) {
    %c0_i32 = arith.constant 0 : i32
    %c0_i32_0 = arith.constant 0 : i32
    %c0_i32_1 = arith.constant 0 : i32
    return %c0_i32, %c0_i32_0 : i32, i32
  }
  func.func @transform_3(%arg0: i32) -> (i32, i32) {
    %c0_i32 = arith.constant 0 : i32
    %c0_i32_0 = arith.constant 0 : i32
    return %arg0, %c0_i32 : i32, i32
  }
}

module attributes {stable_mosaic.version = 11 : i64} {
  func.func @_mm_kernel(%arg0: i32, %arg1: memref<8x16xbf16, #tpu.memory_space<vmem>>, %arg2: memref<16x32xbf16, #tpu.memory_space<vmem>>, %arg3: memref<1x32xf32, #tpu.memory_space<vmem>>, %arg4: memref<8x32xbf16, #tpu.memory_space<vmem>>) attributes {dimension_semantics = [#tpu.dimension_semantics<parallel>], iteration_bounds = array<i64: 1>, scalar_prefetch = 0 : i64, scratch_operands = 0 : i64, tpu.core_type = #tpu.core_type<tc>, window_params = [{transform_indices = @transform_0, window_bounds = array<i64: 8, 16>}, {pipeline_mode = #tpu.pipeline_mode<synchronous>, transform_indices = @transform_1, window_bounds = array<i64: 16, 32>}, {pipeline_mode = #tpu.pipeline_mode<synchronous>, transform_indices = @transform_2, window_bounds = array<i64: 1, 32>}, {transform_indices = @transform_3, window_bounds = array<i64: 8, 32>}]} {
    %c0 = arith.constant 0 : index
    %c0_0 = arith.constant 0 : index
    %0 = vector.load %arg1[%c0, %c0_0] : memref<8x16xbf16, #tpu.memory_space<vmem>>, vector<8x16xbf16>
    %c0_1 = arith.constant 0 : index
    %c0_2 = arith.constant 0 : index
    %1 = vector.load %arg2[%c0_1, %c0_2] : memref<16x32xbf16, #tpu.memory_space<vmem>>, vector<16x32xbf16>
    %cst = arith.constant dense<0.000000e+00> : vector<8x32xf32>
    %2 = tpu.matmul %0, %1, %cst {dimension_numbers = #tpu.dot_dimension_numbers<[1], [0], [0], [1], [0, 0, 1, 1], [], []>} : vector<8x16xbf16>, vector<16x32xbf16>, vector<8x32xf32> -> vector<8x32xf32>
    %c0_3 = arith.constant 0 : index
    %c0_4 = arith.constant 0 : index
    %3 = vector.load %arg3[%c0_3, %c0_4] : memref<1x32xf32, #tpu.memory_space<vmem>>, vector<1x32xf32>
    %4 = vector.broadcast %3 : vector<1x32xf32> to vector<8x32xf32>
    %5 = arith.addf %2, %4 : vector<8x32xf32>
    %6 = arith.truncf %5 : vector<8x32xf32> to vector<8x32xbf16>
    %c0_5 = arith.constant 0 : index
    %c0_6 = arith.constant 0 : index
    %7 = vector.load %arg4[%c0_5, %c0_6] : memref<8x32xbf16, #tpu.memory_space<vmem>>, vector<8x32xbf16>
    tpu.vector_store %arg4[%c0_5, %c0_6], %6 {strides = array<i32>} : memref<8x32xbf16, #tpu.memory_space<vmem>>, vector<8x32xbf16>,
    return
  }
  func.func @transform_0(%arg0: i32) -> (i32, i32) {
    %c0_i32 = arith.constant 0 : i32
    %c0_i32_0 = arith.constant 0 : i32
    return %arg0, %c0_i32 : i32, i32
  }
  func.func @transform_1(%arg0: i32) -> (i32, i32) {
    %c0_i32 = arith.constant 0 : i32
    %c0_i32_0 = arith.constant 0 : i32
    %c0_i32_1 = arith.constant 0 : i32
    return %c0_i32, %c0_i32_0 : i32, i32
  }
  func.func @transform_2(%arg0: i32) -> (i32, i32) {
    %c0_i32 = arith.constant 0 : i32
    %c0_i32_0 = arith.constant 0 : i32
    %c0_i32_1 = arith.constant 0 : i32
    return %c0_i32, %c0_i32_0 : i32, i32
  }
  func.func @transform_3(%arg0: i32) -> (i32, i32) {
    %c0_i32 = arith.constant 0 : i32
    %c0_i32_0 = arith.constant 0 : i32
    return %arg0, %c0_i32 : i32, i32
  }
}

module attributes {stable_mosaic.version = 11 : i64} {
  func.func @_mm_ln_kernel(%arg0: i32, %arg1: memref<8x256xbf16, #tpu.memory_space<vmem>>, %arg2: memref<256x16xbf16, #tpu.memory_space<vmem>>, %arg3: memref<1x16xf32, #tpu.memory_space<vmem>>, %arg4: memref<1x16xf32, #tpu.memory_space<vmem>>, %arg5: memref<1x16xf32, #tpu.memory_space<vmem>>, %arg6: memref<8x16xbf16, #tpu.memory_space<vmem>>) attributes {dimension_semantics = [#tpu.dimension_semantics<parallel>], iteration_bounds = array<i64: 1>, scalar_prefetch = 0 : i64, scratch_operands = 0 : i64, tpu.core_type = #tpu.core_type<tc>, window_params = [{transform_indices = @transform_0, window_bounds = array<i64: 8, 256>}, {pipeline_mode = #tpu.pipeline_mode<synchronous>, transform_indices = @transform_1, window_bounds = array<i64: 256, 16>}, {pipeline_mode = #tpu.pipeline_mode<synchronous>, transform_indices = @transform_2, window_bounds = array<i64: 1, 16>}, {pipeline_mode = #tpu.pipeline_mode<synchronous>, transform_indices = @transform_3, window_bounds = array<i64: 1, 16>}, {pipeline_mode = #tpu.pipeline_mode<synchronous>, transform_indices = @transform_4, window_bounds = array<i64: 1, 16>}, {transform_indices = @transform_5, window_bounds = array<i64: 8, 16>}]} {
    %c0 = arith.constant 0 : index
    %c0_0 = arith.constant 0 : index
    %0 = vector.load %arg1[%c0, %c0_0] : memref<8x256xbf16, #tpu.memory_space<vmem>>, vector<8x256xbf16>
    %c0_1 = arith.constant 0 : index
    %c0_2 = arith.constant 0 : index
    %1 = vector.load %arg2[%c0_1, %c0_2] : memref<256x16xbf16, #tpu.memory_space<vmem>>, vector<256x16xbf16>
    %cst = arith.constant dense<0.000000e+00> : vector<8x16xf32>
    %2 = tpu.matmul %0, %1, %cst {dimension_numbers = #tpu.dot_dimension_numbers<[1], [0], [0], [1], [0, 0, 1, 1], [], []>} : vector<8x256xbf16>, vector<256x16xbf16>, vector<8x16xf32> -> vector<8x16xf32>
    %c0_3 = arith.constant 0 : index
    %c0_4 = arith.constant 0 : index
    %3 = vector.load %arg3[%c0_3, %c0_4] : memref<1x16xf32, #tpu.memory_space<vmem>>, vector<1x16xf32>
    %4 = vector.broadcast %3 : vector<1x16xf32> to vector<8x16xf32>
    %5 = arith.addf %2, %4 : vector<8x16xf32>
    %c0_5 = arith.constant 0 : index
    %c0_6 = arith.constant 0 : index
    %6 = vector.load %arg4[%c0_5, %c0_6] : memref<1x16xf32, #tpu.memory_space<vmem>>, vector<1x16xf32>
    %c0_7 = arith.constant 0 : index
    %c0_8 = arith.constant 0 : index
    %7 = vector.load %arg5[%c0_7, %c0_8] : memref<1x16xf32, #tpu.memory_space<vmem>>, vector<1x16xf32>
    %cst_9 = arith.constant dense<0.000000e+00> : vector<8xf32>
    %8 = vector.multi_reduction <add>, %5, %cst_9 [1] : vector<8x16xf32> to vector<8xf32>
    %9 = vector.shape_cast %8 : vector<8xf32> to vector<8x1xf32>
    %cst_10 = arith.constant 1.600000e+01 : f32
    %10 = vector.broadcast %cst_10 : f32 to vector<8x1xf32>
    %11 = arith.divf %9, %10 : vector<8x1xf32>
    %12 = vector.broadcast %11 : vector<8x1xf32> to vector<8x16xf32>
    %13 = arith.subf %5, %12 : vector<8x16xf32>
    %14 = arith.mulf %13, %13 : vector<8x16xf32>
    %cst_11 = arith.constant dense<0.000000e+00> : vector<8xf32>
    %15 = vector.multi_reduction <add>, %14, %cst_11 [1] : vector<8x16xf32> to vector<8xf32>
    %16 = vector.shape_cast %15 : vector<8xf32> to vector<8x1xf32>
    %cst_12 = arith.constant 1.600000e+01 : f32
    %17 = vector.broadcast %cst_12 : f32 to vector<8x1xf32>
    %18 = arith.divf %16, %17 : vector<8x1xf32>
    %19 = vector.broadcast %11 : vector<8x1xf32> to vector<8x16xf32>
    %20 = arith.subf %5, %19 : vector<8x16xf32>
    %cst_13 = arith.constant 9.99999974E-6 : f32
    %21 = vector.broadcast %cst_13 : f32 to vector<8x1xf32>
    %22 = arith.addf %18, %21 : vector<8x1xf32>
    %23 = math.rsqrt %22 : vector<8x1xf32>
    %24 = vector.broadcast %23 : vector<8x1xf32> to vector<8x16xf32>
    %25 = arith.mulf %20, %24 : vector<8x16xf32>
    %26 = vector.broadcast %6 : vector<1x16xf32> to vector<8x16xf32>
    %27 = arith.mulf %25, %26 : vector<8x16xf32>
    %28 = vector.broadcast %7 : vector<1x16xf32> to vector<8x16xf32>
    %29 = arith.addf %27, %28 : vector<8x16xf32>
    %30 = arith.truncf %29 : vector<8x16xf32> to vector<8x16xbf16>
    %c0_14 = arith.constant 0 : index
    %c0_15 = arith.constant 0 : index
    %31 = vector.load %arg6[%c0_14, %c0_15] : memref<8x16xbf16, #tpu.memory_space<vmem>>, vector<8x16xbf16>
    tpu.vector_store %arg6[%c0_14, %c0_15], %30 {strides = array<i32>} : memref<8x16xbf16, #tpu.memory_space<vmem>>, vector<8x16xbf16>,
    return
  }
  func.func @transform_0(%arg0: i32) -> (i32, i32) {
    %c0_i32 = arith.constant 0 : i32
    %c0_i32_0 = arith.constant 0 : i32
    return %arg0, %c0_i32 : i32, i32
  }
  func.func @transform_1(%arg0: i32) -> (i32, i32) {
    %c0_i32 = arith.constant 0 : i32
    %c0_i32_0 = arith.constant 0 : i32
    %c0_i32_1 = arith.constant 0 : i32
    return %c0_i32, %c0_i32_0 : i32, i32
  }
  func.func @transform_2(%arg0: i32) -> (i32, i32) {
    %c0_i32 = arith.constant 0 : i32
    %c0_i32_0 = arith.constant 0 : i32
    %c0_i32_1 = arith.constant 0 : i32
    return %c0_i32, %c0_i32_0 : i32, i32
  }
  func.func @transform_3(%arg0: i32) -> (i32, i32) {
    %c0_i32 = arith.constant 0 : i32
    %c0_i32_0 = arith.constant 0 : i32
    %c0_i32_1 = arith.constant 0 : i32
    return %c0_i32, %c0_i32_0 : i32, i32
  }
  func.func @transform_4(%arg0: i32) -> (i32, i32) {
    %c0_i32 = arith.constant 0 : i32
    %c0_i32_0 = arith.constant 0 : i32
    %c0_i32_1 = arith.constant 0 : i32
    return %c0_i32, %c0_i32_0 : i32, i32
  }
  func.func @transform_5(%arg0: i32) -> (i32, i32) {
    %c0_i32 = arith.constant 0 : i32
    %c0_i32_0 = arith.constant 0 : i32
    return %arg0, %c0_i32 : i32, i32
  }
}

module attributes {stable_mosaic.version = 11 : i64} {
  func.func @_ln_mm_kernel(%arg0: i32, %arg1: memref<64x16xbf16, #tpu.memory_space<vmem>>, %arg2: memref<1x16xf32, #tpu.memory_space<vmem>>, %arg3: memref<1x16xf32, #tpu.memory_space<vmem>>, %arg4: memref<16x16xbf16, #tpu.memory_space<vmem>>, %arg5: memref<1x16xf32, #tpu.memory_space<vmem>>, %arg6: memref<64x16xbf16, #tpu.memory_space<vmem>>) attributes {dimension_semantics = [#tpu.dimension_semantics<parallel>], iteration_bounds = array<i64: 2>, scalar_prefetch = 0 : i64, scratch_operands = 0 : i64, tpu.core_type = #tpu.core_type<tc>, window_params = [{transform_indices = @transform_0, window_bounds = array<i64: 64, 16>}, {pipeline_mode = #tpu.pipeline_mode<synchronous>, transform_indices = @transform_1, window_bounds = array<i64: 1, 16>}, {pipeline_mode = #tpu.pipeline_mode<synchronous>, transform_indices = @transform_2, window_bounds = array<i64: 1, 16>}, {pipeline_mode = #tpu.pipeline_mode<synchronous>, transform_indices = @transform_3, window_bounds = array<i64: 16, 16>}, {pipeline_mode = #tpu.pipeline_mode<synchronous>, transform_indices = @transform_4, window_bounds = array<i64: 1, 16>}, {transform_indices = @transform_5, window_bounds = array<i64: 64, 16>}]} {
    %c0 = arith.constant 0 : index
    %c0_0 = arith.constant 0 : index
    %0 = vector.load %arg1[%c0, %c0_0] : memref<64x16xbf16, #tpu.memory_space<vmem>>, vector<64x16xbf16>
    %1 = arith.extf %0 : vector<64x16xbf16> to vector<64x16xf32>
    %c0_1 = arith.constant 0 : index
    %c0_2 = arith.constant 0 : index
    %2 = vector.load %arg2[%c0_1, %c0_2] : memref<1x16xf32, #tpu.memory_space<vmem>>, vector<1x16xf32>
    %c0_3 = arith.constant 0 : index
    %c0_4 = arith.constant 0 : index
    %3 = vector.load %arg3[%c0_3, %c0_4] : memref<1x16xf32, #tpu.memory_space<vmem>>, vector<1x16xf32>
    %cst = arith.constant dense<0.000000e+00> : vector<64xf32>
    %4 = vector.multi_reduction <add>, %1, %cst [1] : vector<64x16xf32> to vector<64xf32>
    %5 = vector.shape_cast %4 : vector<64xf32> to vector<64x1xf32>
    %cst_5 = arith.constant 1.600000e+01 : f32
    %6 = vector.broadcast %cst_5 : f32 to vector<64x1xf32>
    %7 = arith.divf %5, %6 : vector<64x1xf32>
    %8 = vector.broadcast %7 : vector<64x1xf32> to vector<64x16xf32>
    %9 = arith.subf %1, %8 : vector<64x16xf32>
    %10 = arith.mulf %9, %9 : vector<64x16xf32>
    %cst_6 = arith.constant dense<0.000000e+00> : vector<64xf32>
    %11 = vector.multi_reduction <add>, %10, %cst_6 [1] : vector<64x16xf32> to vector<64xf32>
    %12 = vector.shape_cast %11 : vector<64xf32> to vector<64x1xf32>
    %cst_7 = arith.constant 1.600000e+01 : f32
    %13 = vector.broadcast %cst_7 : f32 to vector<64x1xf32>
    %14 = arith.divf %12, %13 : vector<64x1xf32>
    %15 = vector.broadcast %7 : vector<64x1xf32> to vector<64x16xf32>
    %16 = arith.subf %1, %15 : vector<64x16xf32>
    %cst_8 = arith.constant 9.99999974E-6 : f32
    %17 = vector.broadcast %cst_8 : f32 to vector<64x1xf32>
    %18 = arith.addf %14, %17 : vector<64x1xf32>
    %19 = math.rsqrt %18 : vector<64x1xf32>
    %20 = vector.broadcast %19 : vector<64x1xf32> to vector<64x16xf32>
    %21 = arith.mulf %16, %20 : vector<64x16xf32>
    %22 = vector.broadcast %2 : vector<1x16xf32> to vector<64x16xf32>
    %23 = arith.mulf %21, %22 : vector<64x16xf32>
    %24 = vector.broadcast %3 : vector<1x16xf32> to vector<64x16xf32>
    %25 = arith.addf %23, %24 : vector<64x16xf32>
    %26 = arith.truncf %25 : vector<64x16xf32> to vector<64x16xbf16>
    %c0_9 = arith.constant 0 : index
    %c0_10 = arith.constant 0 : index
    %27 = vector.load %arg4[%c0_9, %c0_10] : memref<16x16xbf16, #tpu.memory_space<vmem>>, vector<16x16xbf16>
    %cst_11 = arith.constant dense<0.000000e+00> : vector<64x16xf32>
    %28 = tpu.matmul %26, %27, %cst_11 {dimension_numbers = #tpu.dot_dimension_numbers<[1], [0], [0], [1], [0, 0, 1, 1], [], []>} : vector<64x16xbf16>, vector<16x16xbf16>, vector<64x16xf32> -> vector<64x16xf32>
    %c0_12 = arith.constant 0 : index
    %c0_13 = arith.constant 0 : index
    %29 = vector.load %arg5[%c0_12, %c0_13] : memref<1x16xf32, #tpu.memory_space<vmem>>, vector<1x16xf32>
    %30 = vector.broadcast %29 : vector<1x16xf32> to vector<64x16xf32>
    %31 = arith.addf %28, %30 : vector<64x16xf32>
    %32 = arith.truncf %31 : vector<64x16xf32> to vector<64x16xbf16>
    %c0_14 = arith.constant 0 : index
    %c0_15 = arith.constant 0 : index
    %33 = vector.load %arg6[%c0_14, %c0_15] : memref<64x16xbf16, #tpu.memory_space<vmem>>, vector<64x16xbf16>
    tpu.vector_store %arg6[%c0_14, %c0_15], %32 {strides = array<i32>} : memref<64x16xbf16, #tpu.memory_space<vmem>>, vector<64x16xbf16>,
    return
  }
  func.func @transform_0(%arg0: i32) -> (i32, i32) {
    %c0_i32 = arith.constant 0 : i32
    %c0_i32_0 = arith.constant 0 : i32
    return %arg0, %c0_i32 : i32, i32
  }
  func.func @transform_1(%arg0: i32) -> (i32, i32) {
    %c0_i32 = arith.constant 0 : i32
    %c0_i32_0 = arith.constant 0 : i32
    %c0_i32_1 = arith.constant 0 : i32
    return %c0_i32, %c0_i32_0 : i32, i32
  }
  func.func @transform_2(%arg0: i32) -> (i32, i32) {
    %c0_i32 = arith.constant 0 : i32
    %c0_i32_0 = arith.constant 0 : i32
    %c0_i32_1 = arith.constant 0 : i32
    return %c0_i32, %c0_i32_0 : i32, i32
  }
  func.func @transform_3(%arg0: i32) -> (i32, i32) {
    %c0_i32 = arith.constant 0 : i32
    %c0_i32_0 = arith.constant 0 : i32
    %c0_i32_1 = arith.constant 0 : i32
    return %c0_i32, %c0_i32_0 : i32, i32
  }
  func.func @transform_4(%arg0: i32) -> (i32, i32) {
    %c0_i32 = arith.constant 0 : i32
    %c0_i32_0 = arith.constant 0 : i32
    %c0_i32_1 = arith.constant 0 : i32
    return %c0_i32, %c0_i32_0 : i32, i32
  }
  func.func @transform_5(%arg0: i32) -> (i32, i32) {
    %c0_i32 = arith.constant 0 : i32
    %c0_i32_0 = arith.constant 0 : i32
    return %arg0, %c0_i32 : i32, i32
  }
}

module attributes {stable_mosaic.version = 11 : i64} {
  func.func @_attention_kernel(%arg0: i32, %arg1: i32, %arg2: memref<1x64x16xbf16, #tpu.memory_space<vmem>>, %arg3: memref<1x16x4xbf16, #tpu.memory_space<vmem>>, %arg4: memref<1x4x16xbf16, #tpu.memory_space<vmem>>, %arg5: memref<1x64x16xbf16, #tpu.memory_space<vmem>>) attributes {dimension_semantics = [#tpu.dimension_semantics<parallel>, #tpu.dimension_semantics<parallel>], iteration_bounds = array<i64: 2, 1>, scalar_prefetch = 0 : i64, scratch_operands = 0 : i64, tpu.core_type = #tpu.core_type<tc>, window_params = [{transform_indices = @transform_0, window_bounds = array<i64: 1, 64, 16>}, {transform_indices = @transform_1, window_bounds = array<i64: 1, 16, 4>}, {transform_indices = @transform_2, window_bounds = array<i64: 1, 4, 16>}, {transform_indices = @transform_3, window_bounds = array<i64: 1, 64, 16>}]} {
    %c0 = arith.constant 0 : index
    %c0_0 = arith.constant 0 : index
    %c0_1 = arith.constant 0 : index
    %0 = vector.load %arg2[%c0, %c0_0, %c0_1] : memref<1x64x16xbf16, #tpu.memory_space<vmem>>, vector<1x64x16xbf16>
    %1 = vector.shape_cast %0 : vector<1x64x16xbf16> to vector<64x16xbf16>
    %c0_2 = arith.constant 0 : index
    %c0_3 = arith.constant 0 : index
    %c0_4 = arith.constant 0 : index
    %2 = vector.load %arg3[%c0_2, %c0_3, %c0_4] : memref<1x16x4xbf16, #tpu.memory_space<vmem>>, vector<1x16x4xbf16>
    %3 = vector.shape_cast %2 : vector<1x16x4xbf16> to vector<16x4xbf16>
    %c0_5 = arith.constant 0 : index
    %c0_6 = arith.constant 0 : index
    %c0_7 = arith.constant 0 : index
    %4 = vector.load %arg4[%c0_5, %c0_6, %c0_7] : memref<1x4x16xbf16, #tpu.memory_space<vmem>>, vector<1x4x16xbf16>
    %5 = vector.shape_cast %4 : vector<1x4x16xbf16> to vector<4x16xbf16>
    %6 = vector.extract_strided_slice %1 {offsets = [0, 0], sizes = [64, 8], strides = [1, 1]} : vector<64x16xbf16> to vector<64x8xbf16>
    %7 = vector.extract_strided_slice %3 {offsets = [0, 0], sizes = [8, 4], strides = [1, 1]} : vector<16x4xbf16> to vector<8x4xbf16>
    %8 = vector.extract_strided_slice %5 {offsets = [0, 0], sizes = [4, 8], strides = [1, 1]} : vector<4x16xbf16> to vector<4x8xbf16>
    %cst = arith.constant dense<0.000000e+00> : vector<64x4xf32>
    %9 = tpu.matmul %6, %7, %cst {dimension_numbers = #tpu.dot_dimension_numbers<[1], [0], [0], [1], [0, 0, 1, 1], [], []>} : vector<64x8xbf16>, vector<8x4xbf16>, vector<64x4xf32> -> vector<64x4xf32>
    %cst_8 = arith.constant 0.353553385 : f32
    %10 = vector.broadcast %cst_8 : f32 to vector<64x4xf32>
    %11 = arith.mulf %9, %10 : vector<64x4xf32>
    %cst_9 = arith.constant dense<0xFF800000> : vector<64xf32>
    %12 = vector.multi_reduction <maximumf>, %11, %cst_9 [1] : vector<64x4xf32> to vector<64xf32>
    %13 = vector.shape_cast %12 : vector<64xf32> to vector<64x1xf32>
    %14 = vector.broadcast %13 : vector<64x1xf32> to vector<64x4xf32>
    %15 = arith.subf %11, %14 : vector<64x4xf32>
    %16 = math.exp %15 : vector<64x4xf32>
    %cst_10 = arith.constant dense<0.000000e+00> : vector<64xf32>
    %17 = vector.multi_reduction <add>, %16, %cst_10 [1] : vector<64x4xf32> to vector<64xf32>
    %18 = vector.shape_cast %17 : vector<64xf32> to vector<64x1xf32>
    %19 = tpu.reciprocal %18 {approx = true} : vector<64x1xf32> -> vector<64x1xf32>
    %20 = vector.broadcast %19 : vector<64x1xf32> to vector<64x4xf32>
    %21 = arith.mulf %16, %20 : vector<64x4xf32>
    %22 = arith.truncf %21 : vector<64x4xf32> to vector<64x4xbf16>
    %cst_11 = arith.constant dense<0.000000e+00> : vector<64x8xf32>
    %23 = tpu.matmul %22, %8, %cst_11 {dimension_numbers = #tpu.dot_dimension_numbers<[1], [0], [0], [1], [0, 0, 1, 1], [], []>} : vector<64x4xbf16>, vector<4x8xbf16>, vector<64x8xf32> -> vector<64x8xf32>
    %24 = vector.extract_strided_slice %1 {offsets = [0, 8], sizes = [64, 8], strides = [1, 1]} : vector<64x16xbf16> to vector<64x8xbf16>
    %25 = vector.extract_strided_slice %3 {offsets = [8, 0], sizes = [8, 4], strides = [1, 1]} : vector<16x4xbf16> to vector<8x4xbf16>
    %26 = vector.extract_strided_slice %5 {offsets = [0, 8], sizes = [4, 8], strides = [1, 1]} : vector<4x16xbf16> to vector<4x8xbf16>
    %cst_12 = arith.constant dense<0.000000e+00> : vector<64x4xf32>
    %27 = tpu.matmul %24, %25, %cst_12 {dimension_numbers = #tpu.dot_dimension_numbers<[1], [0], [0], [1], [0, 0, 1, 1], [], []>} : vector<64x8xbf16>, vector<8x4xbf16>, vector<64x4xf32> -> vector<64x4xf32>
    %cst_13 = arith.constant 0.353553385 : f32
    %28 = vector.broadcast %cst_13 : f32 to vector<64x4xf32>
    %29 = arith.mulf %27, %28 : vector<64x4xf32>
    %cst_14 = arith.constant dense<0xFF800000> : vector<64xf32>
    %30 = vector.multi_reduction <maximumf>, %29, %cst_14 [1] : vector<64x4xf32> to vector<64xf32>
    %31 = vector.shape_cast %30 : vector<64xf32> to vector<64x1xf32>
    %32 = vector.broadcast %31 : vector<64x1xf32> to vector<64x4xf32>
    %33 = arith.subf %29, %32 : vector<64x4xf32>
    %34 = math.exp %33 : vector<64x4xf32>
    %cst_15 = arith.constant dense<0.000000e+00> : vector<64xf32>
    %35 = vector.multi_reduction <add>, %34, %cst_15 [1] : vector<64x4xf32> to vector<64xf32>
    %36 = vector.shape_cast %35 : vector<64xf32> to vector<64x1xf32>
    %37 = tpu.reciprocal %36 {approx = true} : vector<64x1xf32> -> vector<64x1xf32>
    %38 = vector.broadcast %37 : vector<64x1xf32> to vector<64x4xf32>
    %39 = arith.mulf %34, %38 : vector<64x4xf32>
    %40 = arith.truncf %39 : vector<64x4xf32> to vector<64x4xbf16>
    %cst_16 = arith.constant dense<0.000000e+00> : vector<64x8xf32>
    %41 = tpu.matmul %40, %26, %cst_16 {dimension_numbers = #tpu.dot_dimension_numbers<[1], [0], [0], [1], [0, 0, 1, 1], [], []>} : vector<64x4xbf16>, vector<4x8xbf16>, vector<64x8xf32> -> vector<64x8xf32>
    %42 = tpu.concatenate %23, %41 in 1 : vector<64x8xf32>, vector<64x8xf32> -> vector<64x16xf32>
    %43 = arith.truncf %42 : vector<64x16xf32> to vector<64x16xbf16>
    %c0_17 = arith.constant 0 : index
    %c0_18 = arith.constant 0 : index
    %c0_19 = arith.constant 0 : index
    %44 = vector.load %arg5[%c0_17, %c0_18, %c0_19] : memref<1x64x16xbf16, #tpu.memory_space<vmem>>, vector<1x64x16xbf16>
    %45 = vector.shape_cast %44 : vector<1x64x16xbf16> to vector<64x16xbf16>
    %46 = vector.shape_cast %43 : vector<64x16xbf16> to vector<1x64x16xbf16>
    tpu.vector_store %arg5[%c0_17, %c0_18, %c0_19], %46 {strides = array<i32>} : memref<1x64x16xbf16, #tpu.memory_space<vmem>>, vector<1x64x16xbf16>,
    return
  }
  func.func @transform_0(%arg0: i32, %arg1: i32) -> (i32, i32, i32) {
    %c0_i32 = arith.constant 0 : i32
    %c0_i32_0 = arith.constant 0 : i32
    return %arg0, %arg1, %c0_i32 : i32, i32, i32
  }
  func.func @transform_1(%arg0: i32, %arg1: i32) -> (i32, i32, i32) {
    %c0_i32 = arith.constant 0 : i32
    %c0_i32_0 = arith.constant 0 : i32
    %c0_i32_1 = arith.constant 0 : i32
    return %arg0, %c0_i32, %c0_i32_0 : i32, i32, i32
  }
  func.func @transform_2(%arg0: i32, %arg1: i32) -> (i32, i32, i32) {
    %c0_i32 = arith.constant 0 : i32
    %c0_i32_0 = arith.constant 0 : i32
    %c0_i32_1 = arith.constant 0 : i32
    return %arg0, %c0_i32, %c0_i32_0 : i32, i32, i32
  }
  func.func @transform_3(%arg0: i32, %arg1: i32) -> (i32, i32, i32) {
    %c0_i32 = arith.constant 0 : i32
    %c0_i32_0 = arith.constant 0 : i32
    return %arg0, %arg1, %c0_i32 : i32, i32, i32
  }
}

module attributes {stable_mosaic.version = 11 : i64} {
  func.func @_mm_res_kernel(%arg0: i32, %arg1: memref<64x16xbf16, #tpu.memory_space<vmem>>, %arg2: memref<16x16xbf16, #tpu.memory_space<vmem>>, %arg3: memref<1x16xf32, #tpu.memory_space<vmem>>, %arg4: memref<64x16xbf16, #tpu.memory_space<vmem>>, %arg5: memref<64x16xbf16, #tpu.memory_space<vmem>>) attributes {dimension_semantics = [#tpu.dimension_semantics<parallel>], iteration_bounds = array<i64: 2>, scalar_prefetch = 0 : i64, scratch_operands = 0 : i64, tpu.core_type = #tpu.core_type<tc>, window_params = [{transform_indices = @transform_0, window_bounds = array<i64: 64, 16>}, {pipeline_mode = #tpu.pipeline_mode<synchronous>, transform_indices = @transform_1, window_bounds = array<i64: 16, 16>}, {pipeline_mode = #tpu.pipeline_mode<synchronous>, transform_indices = @transform_2, window_bounds = array<i64: 1, 16>}, {transform_indices = @transform_3, window_bounds = array<i64: 64, 16>}, {transform_indices = @transform_4, window_bounds = array<i64: 64, 16>}]} {
    %c0 = arith.constant 0 : index
    %c0_0 = arith.constant 0 : index
    %0 = vector.load %arg1[%c0, %c0_0] : memref<64x16xbf16, #tpu.memory_space<vmem>>, vector<64x16xbf16>
    %c0_1 = arith.constant 0 : index
    %c0_2 = arith.constant 0 : index
    %1 = vector.load %arg2[%c0_1, %c0_2] : memref<16x16xbf16, #tpu.memory_space<vmem>>, vector<16x16xbf16>
    %cst = arith.constant dense<0.000000e+00> : vector<64x16xf32>
    %2 = tpu.matmul %0, %1, %cst {dimension_numbers = #tpu.dot_dimension_numbers<[1], [0], [0], [1], [0, 0, 1, 1], [], []>} : vector<64x16xbf16>, vector<16x16xbf16>, vector<64x16xf32> -> vector<64x16xf32>
    %c0_3 = arith.constant 0 : index
    %c0_4 = arith.constant 0 : index
    %3 = vector.load %arg3[%c0_3, %c0_4] : memref<1x16xf32, #tpu.memory_space<vmem>>, vector<1x16xf32>
    %4 = vector.broadcast %3 : vector<1x16xf32> to vector<64x16xf32>
    %5 = arith.addf %2, %4 : vector<64x16xf32>
    %c0_5 = arith.constant 0 : index
    %c0_6 = arith.constant 0 : index
    %6 = vector.load %arg4[%c0_5, %c0_6] : memref<64x16xbf16, #tpu.memory_space<vmem>>, vector<64x16xbf16>
    %7 = arith.extf %6 : vector<64x16xbf16> to vector<64x16xf32>
    %8 = arith.addf %5, %7 : vector<64x16xf32>
    %9 = arith.truncf %8 : vector<64x16xf32> to vector<64x16xbf16>
    %c0_7 = arith.constant 0 : index
    %c0_8 = arith.constant 0 : index
    %10 = vector.load %arg5[%c0_7, %c0_8] : memref<64x16xbf16, #tpu.memory_space<vmem>>, vector<64x16xbf16>
    tpu.vector_store %arg5[%c0_7, %c0_8], %9 {strides = array<i32>} : memref<64x16xbf16, #tpu.memory_space<vmem>>, vector<64x16xbf16>,
    return
  }
  func.func @transform_0(%arg0: i32) -> (i32, i32) {
    %c0_i32 = arith.constant 0 : i32
    %c0_i32_0 = arith.constant 0 : i32
    return %arg0, %c0_i32 : i32, i32
  }
  func.func @transform_1(%arg0: i32) -> (i32, i32) {
    %c0_i32 = arith.constant 0 : i32
    %c0_i32_0 = arith.constant 0 : i32
    %c0_i32_1 = arith.constant 0 : i32
    return %c0_i32, %c0_i32_0 : i32, i32
  }
  func.func @transform_2(%arg0: i32) -> (i32, i32) {
    %c0_i32 = arith.constant 0 : i32
    %c0_i32_0 = arith.constant 0 : i32
    %c0_i32_1 = arith.constant 0 : i32
    return %c0_i32, %c0_i32_0 : i32, i32
  }
  func.func @transform_3(%arg0: i32) -> (i32, i32) {
    %c0_i32 = arith.constant 0 : i32
    %c0_i32_0 = arith.constant 0 : i32
    return %arg0, %c0_i32 : i32, i32
  }
  func.func @transform_4(%arg0: i32) -> (i32, i32) {
    %c0_i32 = arith.constant 0 : i32
    %c0_i32_0 = arith.constant 0 : i32
    return %arg0, %c0_i32 : i32, i32
  }
}

module attributes {stable_mosaic.version = 11 : i64} {
  func.func @_mixffn_kernel(%arg0: i32, %arg1: memref<1x10x10x16xbf16, #tpu.memory_space<vmem>>, %arg2: memref<1x64x16xbf16, #tpu.memory_space<vmem>>, %arg3: memref<2x9x16xf32, #tpu.memory_space<vmem>>, %arg4: memref<2x16xf32, #tpu.memory_space<vmem>>, %arg5: memref<2x16x16xbf16, #tpu.memory_space<vmem>>, %arg6: memref<1x16xf32, #tpu.memory_space<vmem>>, %arg7: memref<1x64x16xbf16, #tpu.memory_space<vmem>>) attributes {dimension_semantics = [#tpu.dimension_semantics<parallel>], iteration_bounds = array<i64: 2>, scalar_prefetch = 0 : i64, scratch_operands = 0 : i64, tpu.core_type = #tpu.core_type<tc>, window_params = [{transform_indices = @transform_0, window_bounds = array<i64: 1, 10, 10, 16>}, {transform_indices = @transform_1, window_bounds = array<i64: 1, 64, 16>}, {pipeline_mode = #tpu.pipeline_mode<synchronous>, transform_indices = @transform_2, window_bounds = array<i64: 2, 9, 16>}, {pipeline_mode = #tpu.pipeline_mode<synchronous>, transform_indices = @transform_3, window_bounds = array<i64: 2, 16>}, {pipeline_mode = #tpu.pipeline_mode<synchronous>, transform_indices = @transform_4, window_bounds = array<i64: 2, 16, 16>}, {pipeline_mode = #tpu.pipeline_mode<synchronous>, transform_indices = @transform_5, window_bounds = array<i64: 1, 16>}, {transform_indices = @transform_6, window_bounds = array<i64: 1, 64, 16>}]} {
    %c0 = arith.constant 0 : index
    %c0_0 = arith.constant 0 : index
    %c0_1 = arith.constant 0 : index
    %0 = vector.load %arg3[%c0, %c0_0, %c0_1] : memref<2x9x16xf32, #tpu.memory_space<vmem>>, vector<2x9x16xf32>
    %c0_2 = arith.constant 0 : index
    %c0_3 = arith.constant 0 : index
    %1 = vector.load %arg4[%c0_2, %c0_3] : memref<2x16xf32, #tpu.memory_space<vmem>>, vector<2x16xf32>
    %c0_4 = arith.constant 0 : index
    %c0_5 = arith.constant 0 : index
    %c0_6 = arith.constant 0 : index
    %2 = vector.load %arg5[%c0_4, %c0_5, %c0_6] : memref<2x16x16xbf16, #tpu.memory_space<vmem>>, vector<2x16x16xbf16>
    %c0_7 = arith.constant 0 : index
    %c0_8 = arith.constant 0 : index
    %c0_9 = arith.constant 0 : index
    %3 = vector.load %arg2[%c0_7, %c0_8, %c0_9] : memref<1x64x16xbf16, #tpu.memory_space<vmem>>, vector<1x64x16xbf16>
    %4 = vector.shape_cast %3 : vector<1x64x16xbf16> to vector<64x16xbf16>
    %5 = arith.extf %4 : vector<64x16xbf16> to vector<64x16xf32>
    %c0_10 = arith.constant 0 : index
    %c0_11 = arith.constant 0 : index
    %6 = vector.load %arg6[%c0_10, %c0_11] : memref<1x16xf32, #tpu.memory_space<vmem>>, vector<1x16xf32>
    %7 = vector.broadcast %6 : vector<1x16xf32> to vector<64x16xf32>
    %8 = arith.addf %5, %7 : vector<64x16xf32>
    %cst = arith.constant 0.000000e+00 : f32
    %9 = vector.broadcast %cst : f32 to vector<8x8x16xf32>
    %10 = vector.extract_strided_slice %1 {offsets = [0, 0], sizes = [1, 16], strides = [1, 1]} : vector<2x16xf32> to vector<1x16xf32>
    %11 = vector.shape_cast %10 : vector<1x16xf32> to vector<16xf32>
    %12 = vector.shape_cast %11 : vector<16xf32> to vector<1x1x16xf32>
    %13 = vector.broadcast %12 : vector<1x1x16xf32> to vector<8x8x16xf32>
    %14 = arith.addf %9, %13 : vector<8x8x16xf32>
    %c0_12 = arith.constant 0 : index
    %c0_13 = arith.constant 0 : index
    %c0_14 = arith.constant 0 : index
    %c0_15 = arith.constant 0 : index
    %15 = vector.load %arg1[%c0_12, %c0_13, %c0_14, %c0_15] : memref<1x10x10x16xbf16, #tpu.memory_space<vmem>>, vector<1x8x8x16xbf16>
    %16 = vector.shape_cast %15 : vector<1x8x8x16xbf16> to vector<8x8x16xbf16>
    %17 = vector.extract_strided_slice %0 {offsets = [0, 0, 0], sizes = [1, 1, 16], strides = [1, 1, 1]} : vector<2x9x16xf32> to vector<1x1x16xf32>
    %18 = vector.shape_cast %17 : vector<1x1x16xf32> to vector<16xf32>
    %19 = arith.extf %16 : vector<8x8x16xbf16> to vector<8x8x16xf32>
    %20 = vector.shape_cast %18 : vector<16xf32> to vector<1x1x16xf32>
    %21 = vector.broadcast %20 : vector<1x1x16xf32> to vector<8x8x16xf32>
    %22 = arith.mulf %19, %21 : vector<8x8x16xf32>
    %23 = arith.addf %14, %22 : vector<8x8x16xf32>
    %c0_16 = arith.constant 0 : index
    %c0_17 = arith.constant 0 : index
    %c1 = arith.constant 1 : index
    %c0_18 = arith.constant 0 : index
    %24 = vector.load %arg1[%c0_16, %c0_17, %c1, %c0_18] : memref<1x10x10x16xbf16, #tpu.memory_space<vmem>>, vector<1x8x8x16xbf16>
    %25 = vector.shape_cast %24 : vector<1x8x8x16xbf16> to vector<8x8x16xbf16>
    %26 = vector.extract_strided_slice %0 {offsets = [0, 1, 0], sizes = [1, 1, 16], strides = [1, 1, 1]} : vector<2x9x16xf32> to vector<1x1x16xf32>
    %27 = vector.shape_cast %26 : vector<1x1x16xf32> to vector<16xf32>
    %28 = arith.extf %25 : vector<8x8x16xbf16> to vector<8x8x16xf32>
    %29 = vector.shape_cast %27 : vector<16xf32> to vector<1x1x16xf32>
    %30 = vector.broadcast %29 : vector<1x1x16xf32> to vector<8x8x16xf32>
    %31 = arith.mulf %28, %30 : vector<8x8x16xf32>
    %32 = arith.addf %23, %31 : vector<8x8x16xf32>
    %c0_19 = arith.constant 0 : index
    %c0_20 = arith.constant 0 : index
    %c2 = arith.constant 2 : index
    %c0_21 = arith.constant 0 : index
    %33 = vector.load %arg1[%c0_19, %c0_20, %c2, %c0_21] : memref<1x10x10x16xbf16, #tpu.memory_space<vmem>>, vector<1x8x8x16xbf16>
    %34 = vector.shape_cast %33 : vector<1x8x8x16xbf16> to vector<8x8x16xbf16>
    %35 = vector.extract_strided_slice %0 {offsets = [0, 2, 0], sizes = [1, 1, 16], strides = [1, 1, 1]} : vector<2x9x16xf32> to vector<1x1x16xf32>
    %36 = vector.shape_cast %35 : vector<1x1x16xf32> to vector<16xf32>
    %37 = arith.extf %34 : vector<8x8x16xbf16> to vector<8x8x16xf32>
    %38 = vector.shape_cast %36 : vector<16xf32> to vector<1x1x16xf32>
    %39 = vector.broadcast %38 : vector<1x1x16xf32> to vector<8x8x16xf32>
    %40 = arith.mulf %37, %39 : vector<8x8x16xf32>
    %41 = arith.addf %32, %40 : vector<8x8x16xf32>
    %c0_22 = arith.constant 0 : index
    %c1_23 = arith.constant 1 : index
    %c0_24 = arith.constant 0 : index
    %c0_25 = arith.constant 0 : index
    %42 = vector.load %arg1[%c0_22, %c1_23, %c0_24, %c0_25] : memref<1x10x10x16xbf16, #tpu.memory_space<vmem>>, vector<1x8x8x16xbf16>
    %43 = vector.shape_cast %42 : vector<1x8x8x16xbf16> to vector<8x8x16xbf16>
    %44 = vector.extract_strided_slice %0 {offsets = [0, 3, 0], sizes = [1, 1, 16], strides = [1, 1, 1]} : vector<2x9x16xf32> to vector<1x1x16xf32>
    %45 = vector.shape_cast %44 : vector<1x1x16xf32> to vector<16xf32>
    %46 = arith.extf %43 : vector<8x8x16xbf16> to vector<8x8x16xf32>
    %47 = vector.shape_cast %45 : vector<16xf32> to vector<1x1x16xf32>
    %48 = vector.broadcast %47 : vector<1x1x16xf32> to vector<8x8x16xf32>
    %49 = arith.mulf %46, %48 : vector<8x8x16xf32>
    %50 = arith.addf %41, %49 : vector<8x8x16xf32>
    %c0_26 = arith.constant 0 : index
    %c1_27 = arith.constant 1 : index
    %c1_28 = arith.constant 1 : index
    %c0_29 = arith.constant 0 : index
    %51 = vector.load %arg1[%c0_26, %c1_27, %c1_28, %c0_29] : memref<1x10x10x16xbf16, #tpu.memory_space<vmem>>, vector<1x8x8x16xbf16>
    %52 = vector.shape_cast %51 : vector<1x8x8x16xbf16> to vector<8x8x16xbf16>
    %53 = vector.extract_strided_slice %0 {offsets = [0, 4, 0], sizes = [1, 1, 16], strides = [1, 1, 1]} : vector<2x9x16xf32> to vector<1x1x16xf32>
    %54 = vector.shape_cast %53 : vector<1x1x16xf32> to vector<16xf32>
    %55 = arith.extf %52 : vector<8x8x16xbf16> to vector<8x8x16xf32>
    %56 = vector.shape_cast %54 : vector<16xf32> to vector<1x1x16xf32>
    %57 = vector.broadcast %56 : vector<1x1x16xf32> to vector<8x8x16xf32>
    %58 = arith.mulf %55, %57 : vector<8x8x16xf32>
    %59 = arith.addf %50, %58 : vector<8x8x16xf32>
    %c0_30 = arith.constant 0 : index
    %c1_31 = arith.constant 1 : index
    %c2_32 = arith.constant 2 : index
    %c0_33 = arith.constant 0 : index
    %60 = vector.load %arg1[%c0_30, %c1_31, %c2_32, %c0_33] : memref<1x10x10x16xbf16, #tpu.memory_space<vmem>>, vector<1x8x8x16xbf16>
    %61 = vector.shape_cast %60 : vector<1x8x8x16xbf16> to vector<8x8x16xbf16>
    %62 = vector.extract_strided_slice %0 {offsets = [0, 5, 0], sizes = [1, 1, 16], strides = [1, 1, 1]} : vector<2x9x16xf32> to vector<1x1x16xf32>
    %63 = vector.shape_cast %62 : vector<1x1x16xf32> to vector<16xf32>
    %64 = arith.extf %61 : vector<8x8x16xbf16> to vector<8x8x16xf32>
    %65 = vector.shape_cast %63 : vector<16xf32> to vector<1x1x16xf32>
    %66 = vector.broadcast %65 : vector<1x1x16xf32> to vector<8x8x16xf32>
    %67 = arith.mulf %64, %66 : vector<8x8x16xf32>
    %68 = arith.addf %59, %67 : vector<8x8x16xf32>
    %c0_34 = arith.constant 0 : index
    %c2_35 = arith.constant 2 : index
    %c0_36 = arith.constant 0 : index
    %c0_37 = arith.constant 0 : index
    %69 = vector.load %arg1[%c0_34, %c2_35, %c0_36, %c0_37] : memref<1x10x10x16xbf16, #tpu.memory_space<vmem>>, vector<1x8x8x16xbf16>
    %70 = vector.shape_cast %69 : vector<1x8x8x16xbf16> to vector<8x8x16xbf16>
    %71 = vector.extract_strided_slice %0 {offsets = [0, 6, 0], sizes = [1, 1, 16], strides = [1, 1, 1]} : vector<2x9x16xf32> to vector<1x1x16xf32>
    %72 = vector.shape_cast %71 : vector<1x1x16xf32> to vector<16xf32>
    %73 = arith.extf %70 : vector<8x8x16xbf16> to vector<8x8x16xf32>
    %74 = vector.shape_cast %72 : vector<16xf32> to vector<1x1x16xf32>
    %75 = vector.broadcast %74 : vector<1x1x16xf32> to vector<8x8x16xf32>
    %76 = arith.mulf %73, %75 : vector<8x8x16xf32>
    %77 = arith.addf %68, %76 : vector<8x8x16xf32>
    %c0_38 = arith.constant 0 : index
    %c2_39 = arith.constant 2 : index
    %c1_40 = arith.constant 1 : index
    %c0_41 = arith.constant 0 : index
    %78 = vector.load %arg1[%c0_38, %c2_39, %c1_40, %c0_41] : memref<1x10x10x16xbf16, #tpu.memory_space<vmem>>, vector<1x8x8x16xbf16>
    %79 = vector.shape_cast %78 : vector<1x8x8x16xbf16> to vector<8x8x16xbf16>
    %80 = vector.extract_strided_slice %0 {offsets = [0, 7, 0], sizes = [1, 1, 16], strides = [1, 1, 1]} : vector<2x9x16xf32> to vector<1x1x16xf32>
    %81 = vector.shape_cast %80 : vector<1x1x16xf32> to vector<16xf32>
    %82 = arith.extf %79 : vector<8x8x16xbf16> to vector<8x8x16xf32>
    %83 = vector.shape_cast %81 : vector<16xf32> to vector<1x1x16xf32>
    %84 = vector.broadcast %83 : vector<1x1x16xf32> to vector<8x8x16xf32>
    %85 = arith.mulf %82, %84 : vector<8x8x16xf32>
    %86 = arith.addf %77, %85 : vector<8x8x16xf32>
    %c0_42 = arith.constant 0 : index
    %c2_43 = arith.constant 2 : index
    %c2_44 = arith.constant 2 : index
    %c0_45 = arith.constant 0 : index
    %87 = vector.load %arg1[%c0_42, %c2_43, %c2_44, %c0_45] : memref<1x10x10x16xbf16, #tpu.memory_space<vmem>>, vector<1x8x8x16xbf16>
    %88 = vector.shape_cast %87 : vector<1x8x8x16xbf16> to vector<8x8x16xbf16>
    %89 = vector.extract_strided_slice %0 {offsets = [0, 8, 0], sizes = [1, 1, 16], strides = [1, 1, 1]} : vector<2x9x16xf32> to vector<1x1x16xf32>
    %90 = vector.shape_cast %89 : vector<1x1x16xf32> to vector<16xf32>
    %91 = arith.extf %88 : vector<8x8x16xbf16> to vector<8x8x16xf32>
    %92 = vector.shape_cast %90 : vector<16xf32> to vector<1x1x16xf32>
    %93 = vector.broadcast %92 : vector<1x1x16xf32> to vector<8x8x16xf32>
    %94 = arith.mulf %91, %93 : vector<8x8x16xf32>
    %95 = arith.addf %86, %94 : vector<8x8x16xf32>
    %cst_46 = arith.constant 5.000000e-01 : f32
    %96 = vector.broadcast %cst_46 : f32 to vector<8x8x16xf32>
    %97 = arith.mulf %96, %95 : vector<8x8x16xf32>
    %cst_47 = arith.constant 4.471500e-02 : f32
    %98 = vector.broadcast %cst_47 : f32 to vector<8x8x16xf32>
    %99 = arith.mulf %98, %95 : vector<8x8x16xf32>
    %100 = arith.mulf %99, %95 : vector<8x8x16xf32>
    %101 = arith.mulf %100, %95 : vector<8x8x16xf32>
    %102 = arith.addf %95, %101 : vector<8x8x16xf32>
    %cst_48 = arith.constant 0.797884583 : f32
    %103 = vector.broadcast %cst_48 : f32 to vector<8x8x16xf32>
    %104 = arith.mulf %103, %102 : vector<8x8x16xf32>
    %105 = math.tanh %104 : vector<8x8x16xf32>
    %cst_49 = arith.constant 1.000000e+00 : f32
    %106 = vector.broadcast %cst_49 : f32 to vector<8x8x16xf32>
    %107 = arith.addf %106, %105 : vector<8x8x16xf32>
    %108 = arith.mulf %97, %107 : vector<8x8x16xf32>
    %109 = arith.truncf %108 : vector<8x8x16xf32> to vector<8x8x16xbf16>
    %110 = vector.shape_cast %109 : vector<8x8x16xbf16> to vector<64x16xbf16>
    %111 = vector.extract_strided_slice %2 {offsets = [0, 0, 0], sizes = [1, 16, 16], strides = [1, 1, 1]} : vector<2x16x16xbf16> to vector<1x16x16xbf16>
    %112 = vector.shape_cast %111 : vector<1x16x16xbf16> to vector<16x16xbf16>
    %cst_50 = arith.constant dense<0.000000e+00> : vector<64x16xf32>
    %113 = tpu.matmul %110, %112, %cst_50 {dimension_numbers = #tpu.dot_dimension_numbers<[1], [0], [0], [1], [0, 0, 1, 1], [], []>} : vector<64x16xbf16>, vector<16x16xbf16>, vector<64x16xf32> -> vector<64x16xf32>
    %114 = arith.addf %8, %113 : vector<64x16xf32>
    %cst_51 = arith.constant 0.000000e+00 : f32
    %115 = vector.broadcast %cst_51 : f32 to vector<8x8x16xf32>
    %116 = vector.extract_strided_slice %1 {offsets = [1, 0], sizes = [1, 16], strides = [1, 1]} : vector<2x16xf32> to vector<1x16xf32>
    %117 = vector.shape_cast %116 : vector<1x16xf32> to vector<16xf32>
    %118 = vector.shape_cast %117 : vector<16xf32> to vector<1x1x16xf32>
    %119 = vector.broadcast %118 : vector<1x1x16xf32> to vector<8x8x16xf32>
    %120 = arith.addf %115, %119 : vector<8x8x16xf32>
    %c0_52 = arith.constant 0 : index
    %c0_53 = arith.constant 0 : index
    %c0_54 = arith.constant 0 : index
    %c0_55 = arith.constant 0 : index
    %121 = vector.load %arg1[%c0_52, %c0_53, %c0_54, %c0_55] : memref<1x10x10x16xbf16, #tpu.memory_space<vmem>>, vector<1x8x8x16xbf16>
    %122 = vector.shape_cast %121 : vector<1x8x8x16xbf16> to vector<8x8x16xbf16>
    %123 = vector.extract_strided_slice %0 {offsets = [1, 0, 0], sizes = [1, 1, 16], strides = [1, 1, 1]} : vector<2x9x16xf32> to vector<1x1x16xf32>
    %124 = vector.shape_cast %123 : vector<1x1x16xf32> to vector<16xf32>
    %125 = arith.extf %122 : vector<8x8x16xbf16> to vector<8x8x16xf32>
    %126 = vector.shape_cast %124 : vector<16xf32> to vector<1x1x16xf32>
    %127 = vector.broadcast %126 : vector<1x1x16xf32> to vector<8x8x16xf32>
    %128 = arith.mulf %125, %127 : vector<8x8x16xf32>
    %129 = arith.addf %120, %128 : vector<8x8x16xf32>
    %c0_56 = arith.constant 0 : index
    %c0_57 = arith.constant 0 : index
    %c1_58 = arith.constant 1 : index
    %c0_59 = arith.constant 0 : index
    %130 = vector.load %arg1[%c0_56, %c0_57, %c1_58, %c0_59] : memref<1x10x10x16xbf16, #tpu.memory_space<vmem>>, vector<1x8x8x16xbf16>
    %131 = vector.shape_cast %130 : vector<1x8x8x16xbf16> to vector<8x8x16xbf16>
    %132 = vector.extract_strided_slice %0 {offsets = [1, 1, 0], sizes = [1, 1, 16], strides = [1, 1, 1]} : vector<2x9x16xf32> to vector<1x1x16xf32>
    %133 = vector.shape_cast %132 : vector<1x1x16xf32> to vector<16xf32>
    %134 = arith.extf %131 : vector<8x8x16xbf16> to vector<8x8x16xf32>
    %135 = vector.shape_cast %133 : vector<16xf32> to vector<1x1x16xf32>
    %136 = vector.broadcast %135 : vector<1x1x16xf32> to vector<8x8x16xf32>
    %137 = arith.mulf %134, %136 : vector<8x8x16xf32>
    %138 = arith.addf %129, %137 : vector<8x8x16xf32>
    %c0_60 = arith.constant 0 : index
    %c0_61 = arith.constant 0 : index
    %c2_62 = arith.constant 2 : index
    %c0_63 = arith.constant 0 : index
    %139 = vector.load %arg1[%c0_60, %c0_61, %c2_62, %c0_63] : memref<1x10x10x16xbf16, #tpu.memory_space<vmem>>, vector<1x8x8x16xbf16>
    %140 = vector.shape_cast %139 : vector<1x8x8x16xbf16> to vector<8x8x16xbf16>
    %141 = vector.extract_strided_slice %0 {offsets = [1, 2, 0], sizes = [1, 1, 16], strides = [1, 1, 1]} : vector<2x9x16xf32> to vector<1x1x16xf32>
    %142 = vector.shape_cast %141 : vector<1x1x16xf32> to vector<16xf32>
    %143 = arith.extf %140 : vector<8x8x16xbf16> to vector<8x8x16xf32>
    %144 = vector.shape_cast %142 : vector<16xf32> to vector<1x1x16xf32>
    %145 = vector.broadcast %144 : vector<1x1x16xf32> to vector<8x8x16xf32>
    %146 = arith.mulf %143, %145 : vector<8x8x16xf32>
    %147 = arith.addf %138, %146 : vector<8x8x16xf32>
    %c0_64 = arith.constant 0 : index
    %c1_65 = arith.constant 1 : index
    %c0_66 = arith.constant 0 : index
    %c0_67 = arith.constant 0 : index
    %148 = vector.load %arg1[%c0_64, %c1_65, %c0_66, %c0_67] : memref<1x10x10x16xbf16, #tpu.memory_space<vmem>>, vector<1x8x8x16xbf16>
    %149 = vector.shape_cast %148 : vector<1x8x8x16xbf16> to vector<8x8x16xbf16>
    %150 = vector.extract_strided_slice %0 {offsets = [1, 3, 0], sizes = [1, 1, 16], strides = [1, 1, 1]} : vector<2x9x16xf32> to vector<1x1x16xf32>
    %151 = vector.shape_cast %150 : vector<1x1x16xf32> to vector<16xf32>
    %152 = arith.extf %149 : vector<8x8x16xbf16> to vector<8x8x16xf32>
    %153 = vector.shape_cast %151 : vector<16xf32> to vector<1x1x16xf32>
    %154 = vector.broadcast %153 : vector<1x1x16xf32> to vector<8x8x16xf32>
    %155 = arith.mulf %152, %154 : vector<8x8x16xf32>
    %156 = arith.addf %147, %155 : vector<8x8x16xf32>
    %c0_68 = arith.constant 0 : index
    %c1_69 = arith.constant 1 : index
    %c1_70 = arith.constant 1 : index
    %c0_71 = arith.constant 0 : index
    %157 = vector.load %arg1[%c0_68, %c1_69, %c1_70, %c0_71] : memref<1x10x10x16xbf16, #tpu.memory_space<vmem>>, vector<1x8x8x16xbf16>
    %158 = vector.shape_cast %157 : vector<1x8x8x16xbf16> to vector<8x8x16xbf16>
    %159 = vector.extract_strided_slice %0 {offsets = [1, 4, 0], sizes = [1, 1, 16], strides = [1, 1, 1]} : vector<2x9x16xf32> to vector<1x1x16xf32>
    %160 = vector.shape_cast %159 : vector<1x1x16xf32> to vector<16xf32>
    %161 = arith.extf %158 : vector<8x8x16xbf16> to vector<8x8x16xf32>
    %162 = vector.shape_cast %160 : vector<16xf32> to vector<1x1x16xf32>
    %163 = vector.broadcast %162 : vector<1x1x16xf32> to vector<8x8x16xf32>
    %164 = arith.mulf %161, %163 : vector<8x8x16xf32>
    %165 = arith.addf %156, %164 : vector<8x8x16xf32>
    %c0_72 = arith.constant 0 : index
    %c1_73 = arith.constant 1 : index
    %c2_74 = arith.constant 2 : index
    %c0_75 = arith.constant 0 : index
    %166 = vector.load %arg1[%c0_72, %c1_73, %c2_74, %c0_75] : memref<1x10x10x16xbf16, #tpu.memory_space<vmem>>, vector<1x8x8x16xbf16>
    %167 = vector.shape_cast %166 : vector<1x8x8x16xbf16> to vector<8x8x16xbf16>
    %168 = vector.extract_strided_slice %0 {offsets = [1, 5, 0], sizes = [1, 1, 16], strides = [1, 1, 1]} : vector<2x9x16xf32> to vector<1x1x16xf32>
    %169 = vector.shape_cast %168 : vector<1x1x16xf32> to vector<16xf32>
    %170 = arith.extf %167 : vector<8x8x16xbf16> to vector<8x8x16xf32>
    %171 = vector.shape_cast %169 : vector<16xf32> to vector<1x1x16xf32>
    %172 = vector.broadcast %171 : vector<1x1x16xf32> to vector<8x8x16xf32>
    %173 = arith.mulf %170, %172 : vector<8x8x16xf32>
    %174 = arith.addf %165, %173 : vector<8x8x16xf32>
    %c0_76 = arith.constant 0 : index
    %c2_77 = arith.constant 2 : index
    %c0_78 = arith.constant 0 : index
    %c0_79 = arith.constant 0 : index
    %175 = vector.load %arg1[%c0_76, %c2_77, %c0_78, %c0_79] : memref<1x10x10x16xbf16, #tpu.memory_space<vmem>>, vector<1x8x8x16xbf16>
    %176 = vector.shape_cast %175 : vector<1x8x8x16xbf16> to vector<8x8x16xbf16>
    %177 = vector.extract_strided_slice %0 {offsets = [1, 6, 0], sizes = [1, 1, 16], strides = [1, 1, 1]} : vector<2x9x16xf32> to vector<1x1x16xf32>
    %178 = vector.shape_cast %177 : vector<1x1x16xf32> to vector<16xf32>
    %179 = arith.extf %176 : vector<8x8x16xbf16> to vector<8x8x16xf32>
    %180 = vector.shape_cast %178 : vector<16xf32> to vector<1x1x16xf32>
    %181 = vector.broadcast %180 : vector<1x1x16xf32> to vector<8x8x16xf32>
    %182 = arith.mulf %179, %181 : vector<8x8x16xf32>
    %183 = arith.addf %174, %182 : vector<8x8x16xf32>
    %c0_80 = arith.constant 0 : index
    %c2_81 = arith.constant 2 : index
    %c1_82 = arith.constant 1 : index
    %c0_83 = arith.constant 0 : index
    %184 = vector.load %arg1[%c0_80, %c2_81, %c1_82, %c0_83] : memref<1x10x10x16xbf16, #tpu.memory_space<vmem>>, vector<1x8x8x16xbf16>
    %185 = vector.shape_cast %184 : vector<1x8x8x16xbf16> to vector<8x8x16xbf16>
    %186 = vector.extract_strided_slice %0 {offsets = [1, 7, 0], sizes = [1, 1, 16], strides = [1, 1, 1]} : vector<2x9x16xf32> to vector<1x1x16xf32>
    %187 = vector.shape_cast %186 : vector<1x1x16xf32> to vector<16xf32>
    %188 = arith.extf %185 : vector<8x8x16xbf16> to vector<8x8x16xf32>
    %189 = vector.shape_cast %187 : vector<16xf32> to vector<1x1x16xf32>
    %190 = vector.broadcast %189 : vector<1x1x16xf32> to vector<8x8x16xf32>
    %191 = arith.mulf %188, %190 : vector<8x8x16xf32>
    %192 = arith.addf %183, %191 : vector<8x8x16xf32>
    %c0_84 = arith.constant 0 : index
    %c2_85 = arith.constant 2 : index
    %c2_86 = arith.constant 2 : index
    %c0_87 = arith.constant 0 : index
    %193 = vector.load %arg1[%c0_84, %c2_85, %c2_86, %c0_87] : memref<1x10x10x16xbf16, #tpu.memory_space<vmem>>, vector<1x8x8x16xbf16>
    %194 = vector.shape_cast %193 : vector<1x8x8x16xbf16> to vector<8x8x16xbf16>
    %195 = vector.extract_strided_slice %0 {offsets = [1, 8, 0], sizes = [1, 1, 16], strides = [1, 1, 1]} : vector<2x9x16xf32> to vector<1x1x16xf32>
    %196 = vector.shape_cast %195 : vector<1x1x16xf32> to vector<16xf32>
    %197 = arith.extf %194 : vector<8x8x16xbf16> to vector<8x8x16xf32>
    %198 = vector.shape_cast %196 : vector<16xf32> to vector<1x1x16xf32>
    %199 = vector.broadcast %198 : vector<1x1x16xf32> to vector<8x8x16xf32>
    %200 = arith.mulf %197, %199 : vector<8x8x16xf32>
    %201 = arith.addf %192, %200 : vector<8x8x16xf32>
    %cst_88 = arith.constant 5.000000e-01 : f32
    %202 = vector.broadcast %cst_88 : f32 to vector<8x8x16xf32>
    %203 = arith.mulf %202, %201 : vector<8x8x16xf32>
    %cst_89 = arith.constant 4.471500e-02 : f32
    %204 = vector.broadcast %cst_89 : f32 to vector<8x8x16xf32>
    %205 = arith.mulf %204, %201 : vector<8x8x16xf32>
    %206 = arith.mulf %205, %201 : vector<8x8x16xf32>
    %207 = arith.mulf %206, %201 : vector<8x8x16xf32>
    %208 = arith.addf %201, %207 : vector<8x8x16xf32>
    %cst_90 = arith.constant 0.797884583 : f32
    %209 = vector.broadcast %cst_90 : f32 to vector<8x8x16xf32>
    %210 = arith.mulf %209, %208 : vector<8x8x16xf32>
    %211 = math.tanh %210 : vector<8x8x16xf32>
    %cst_91 = arith.constant 1.000000e+00 : f32
    %212 = vector.broadcast %cst_91 : f32 to vector<8x8x16xf32>
    %213 = arith.addf %212, %211 : vector<8x8x16xf32>
    %214 = arith.mulf %203, %213 : vector<8x8x16xf32>
    %215 = arith.truncf %214 : vector<8x8x16xf32> to vector<8x8x16xbf16>
    %216 = vector.shape_cast %215 : vector<8x8x16xbf16> to vector<64x16xbf16>
    %217 = vector.extract_strided_slice %2 {offsets = [1, 0, 0], sizes = [1, 16, 16], strides = [1, 1, 1]} : vector<2x16x16xbf16> to vector<1x16x16xbf16>
    %218 = vector.shape_cast %217 : vector<1x16x16xbf16> to vector<16x16xbf16>
    %cst_92 = arith.constant dense<0.000000e+00> : vector<64x16xf32>
    %219 = tpu.matmul %216, %218, %cst_92 {dimension_numbers = #tpu.dot_dimension_numbers<[1], [0], [0], [1], [0, 0, 1, 1], [], []>} : vector<64x16xbf16>, vector<16x16xbf16>, vector<64x16xf32> -> vector<64x16xf32>
    %220 = arith.addf %114, %219 : vector<64x16xf32>
    %221 = arith.truncf %220 : vector<64x16xf32> to vector<64x16xbf16>
    %c0_93 = arith.constant 0 : index
    %c0_94 = arith.constant 0 : index
    %c0_95 = arith.constant 0 : index
    %222 = vector.load %arg7[%c0_93, %c0_94, %c0_95] : memref<1x64x16xbf16, #tpu.memory_space<vmem>>, vector<1x64x16xbf16>
    %223 = vector.shape_cast %222 : vector<1x64x16xbf16> to vector<64x16xbf16>
    %224 = vector.shape_cast %221 : vector<64x16xbf16> to vector<1x64x16xbf16>
    tpu.vector_store %arg7[%c0_93, %c0_94, %c0_95], %224 {strides = array<i32>} : memref<1x64x16xbf16, #tpu.memory_space<vmem>>, vector<1x64x16xbf16>,
    return
  }
  func.func @transform_0(%arg0: i32) -> (i32, i32, i32, i32) {
    %c0_i32 = arith.constant 0 : i32
    %c0_i32_0 = arith.constant 0 : i32
    %c0_i32_1 = arith.constant 0 : i32
    %c0_i32_2 = arith.constant 0 : i32
    return %arg0, %c0_i32, %c0_i32_0, %c0_i32_1 : i32, i32, i32, i32
  }
  func.func @transform_1(%arg0: i32) -> (i32, i32, i32) {
    %c0_i32 = arith.constant 0 : i32
    %c0_i32_0 = arith.constant 0 : i32
    %c0_i32_1 = arith.constant 0 : i32
    return %arg0, %c0_i32, %c0_i32_0 : i32, i32, i32
  }
  func.func @transform_2(%arg0: i32) -> (i32, i32, i32) {
    %c0_i32 = arith.constant 0 : i32
    %c0_i32_0 = arith.constant 0 : i32
    %c0_i32_1 = arith.constant 0 : i32
    %c0_i32_2 = arith.constant 0 : i32
    return %c0_i32, %c0_i32_0, %c0_i32_1 : i32, i32, i32
  }
  func.func @transform_3(%arg0: i32) -> (i32, i32) {
    %c0_i32 = arith.constant 0 : i32
    %c0_i32_0 = arith.constant 0 : i32
    %c0_i32_1 = arith.constant 0 : i32
    return %c0_i32, %c0_i32_0 : i32, i32
  }
  func.func @transform_4(%arg0: i32) -> (i32, i32, i32) {
    %c0_i32 = arith.constant 0 : i32
    %c0_i32_0 = arith.constant 0 : i32
    %c0_i32_1 = arith.constant 0 : i32
    %c0_i32_2 = arith.constant 0 : i32
    return %c0_i32, %c0_i32_0, %c0_i32_1 : i32, i32, i32
  }
  func.func @transform_5(%arg0: i32) -> (i32, i32) {
    %c0_i32 = arith.constant 0 : i32
    %c0_i32_0 = arith.constant 0 : i32
    %c0_i32_1 = arith.constant 0 : i32
    return %c0_i32, %c0_i32_0 : i32, i32
  }
  func.func @transform_6(%arg0: i32) -> (i32, i32, i32) {
    %c0_i32 = arith.constant 0 : i32
    %c0_i32_0 = arith.constant 0 : i32
    %c0_i32_1 = arith.constant 0 : i32
    return %arg0, %c0_i32, %c0_i32_0 : i32, i32, i32
  }
}

module attributes {stable_mosaic.version = 11 : i64} {
  func.func @_ln_kernel(%arg0: i32, %arg1: memref<16x32xbf16, #tpu.memory_space<vmem>>, %arg2: memref<1x32xf32, #tpu.memory_space<vmem>>, %arg3: memref<1x32xf32, #tpu.memory_space<vmem>>, %arg4: memref<16x32xbf16, #tpu.memory_space<vmem>>) attributes {dimension_semantics = [#tpu.dimension_semantics<parallel>], iteration_bounds = array<i64: 2>, scalar_prefetch = 0 : i64, scratch_operands = 0 : i64, tpu.core_type = #tpu.core_type<tc>, window_params = [{transform_indices = @transform_0, window_bounds = array<i64: 16, 32>}, {pipeline_mode = #tpu.pipeline_mode<synchronous>, transform_indices = @transform_1, window_bounds = array<i64: 1, 32>}, {pipeline_mode = #tpu.pipeline_mode<synchronous>, transform_indices = @transform_2, window_bounds = array<i64: 1, 32>}, {transform_indices = @transform_3, window_bounds = array<i64: 16, 32>}]} {
    %c0 = arith.constant 0 : index
    %c0_0 = arith.constant 0 : index
    %0 = vector.load %arg1[%c0, %c0_0] : memref<16x32xbf16, #tpu.memory_space<vmem>>, vector<16x32xbf16>
    %1 = arith.extf %0 : vector<16x32xbf16> to vector<16x32xf32>
    %c0_1 = arith.constant 0 : index
    %c0_2 = arith.constant 0 : index
    %2 = vector.load %arg2[%c0_1, %c0_2] : memref<1x32xf32, #tpu.memory_space<vmem>>, vector<1x32xf32>
    %c0_3 = arith.constant 0 : index
    %c0_4 = arith.constant 0 : index
    %3 = vector.load %arg3[%c0_3, %c0_4] : memref<1x32xf32, #tpu.memory_space<vmem>>, vector<1x32xf32>
    %cst = arith.constant dense<0.000000e+00> : vector<16xf32>
    %4 = vector.multi_reduction <add>, %1, %cst [1] : vector<16x32xf32> to vector<16xf32>
    %5 = vector.shape_cast %4 : vector<16xf32> to vector<16x1xf32>
    %cst_5 = arith.constant 3.200000e+01 : f32
    %6 = vector.broadcast %cst_5 : f32 to vector<16x1xf32>
    %7 = arith.divf %5, %6 : vector<16x1xf32>
    %8 = vector.broadcast %7 : vector<16x1xf32> to vector<16x32xf32>
    %9 = arith.subf %1, %8 : vector<16x32xf32>
    %10 = arith.mulf %9, %9 : vector<16x32xf32>
    %cst_6 = arith.constant dense<0.000000e+00> : vector<16xf32>
    %11 = vector.multi_reduction <add>, %10, %cst_6 [1] : vector<16x32xf32> to vector<16xf32>
    %12 = vector.shape_cast %11 : vector<16xf32> to vector<16x1xf32>
    %cst_7 = arith.constant 3.200000e+01 : f32
    %13 = vector.broadcast %cst_7 : f32 to vector<16x1xf32>
    %14 = arith.divf %12, %13 : vector<16x1xf32>
    %15 = vector.broadcast %7 : vector<16x1xf32> to vector<16x32xf32>
    %16 = arith.subf %1, %15 : vector<16x32xf32>
    %cst_8 = arith.constant 9.99999974E-6 : f32
    %17 = vector.broadcast %cst_8 : f32 to vector<16x1xf32>
    %18 = arith.addf %14, %17 : vector<16x1xf32>
    %19 = math.rsqrt %18 : vector<16x1xf32>
    %20 = vector.broadcast %19 : vector<16x1xf32> to vector<16x32xf32>
    %21 = arith.mulf %16, %20 : vector<16x32xf32>
    %22 = vector.broadcast %2 : vector<1x32xf32> to vector<16x32xf32>
    %23 = arith.mulf %21, %22 : vector<16x32xf32>
    %24 = vector.broadcast %3 : vector<1x32xf32> to vector<16x32xf32>
    %25 = arith.addf %23, %24 : vector<16x32xf32>
    %26 = arith.truncf %25 : vector<16x32xf32> to vector<16x32xbf16>
    %c0_9 = arith.constant 0 : index
    %c0_10 = arith.constant 0 : index
    %27 = vector.load %arg4[%c0_9, %c0_10] : memref<16x32xbf16, #tpu.memory_space<vmem>>, vector<16x32xbf16>
    tpu.vector_store %arg4[%c0_9, %c0_10], %26 {strides = array<i32>} : memref<16x32xbf16, #tpu.memory_space<vmem>>, vector<16x32xbf16>,
    return
  }
  func.func @transform_0(%arg0: i32) -> (i32, i32) {
    %c0_i32 = arith.constant 0 : i32
    %c0_i32_0 = arith.constant 0 : i32
    return %arg0, %c0_i32 : i32, i32
  }
  func.func @transform_1(%arg0: i32) -> (i32, i32) {
    %c0_i32 = arith.constant 0 : i32
    %c0_i32_0 = arith.constant 0 : i32
    %c0_i32_1 = arith.constant 0 : i32
    return %c0_i32, %c0_i32_0 : i32, i32
  }
  func.func @transform_2(%arg0: i32) -> (i32, i32) {
    %c0_i32 = arith.constant 0 : i32
    %c0_i32_0 = arith.constant 0 : i32
    %c0_i32_1 = arith.constant 0 : i32
    return %c0_i32, %c0_i32_0 : i32, i32
  }
  func.func @transform_3(%arg0: i32) -> (i32, i32) {
    %c0_i32 = arith.constant 0 : i32
    %c0_i32_0 = arith.constant 0 : i32
    return %arg0, %c0_i32 : i32, i32
  }
}

module attributes {stable_mosaic.version = 11 : i64} {
  func.func @_mm_ln_kernel(%arg0: i32, %arg1: memref<8x128xbf16, #tpu.memory_space<vmem>>, %arg2: memref<128x32xbf16, #tpu.memory_space<vmem>>, %arg3: memref<1x32xf32, #tpu.memory_space<vmem>>, %arg4: memref<1x32xf32, #tpu.memory_space<vmem>>, %arg5: memref<1x32xf32, #tpu.memory_space<vmem>>, %arg6: memref<8x32xbf16, #tpu.memory_space<vmem>>) attributes {dimension_semantics = [#tpu.dimension_semantics<parallel>], iteration_bounds = array<i64: 1>, scalar_prefetch = 0 : i64, scratch_operands = 0 : i64, tpu.core_type = #tpu.core_type<tc>, window_params = [{transform_indices = @transform_0, window_bounds = array<i64: 8, 128>}, {pipeline_mode = #tpu.pipeline_mode<synchronous>, transform_indices = @transform_1, window_bounds = array<i64: 128, 32>}, {pipeline_mode = #tpu.pipeline_mode<synchronous>, transform_indices = @transform_2, window_bounds = array<i64: 1, 32>}, {pipeline_mode = #tpu.pipeline_mode<synchronous>, transform_indices = @transform_3, window_bounds = array<i64: 1, 32>}, {pipeline_mode = #tpu.pipeline_mode<synchronous>, transform_indices = @transform_4, window_bounds = array<i64: 1, 32>}, {transform_indices = @transform_5, window_bounds = array<i64: 8, 32>}]} {
    %c0 = arith.constant 0 : index
    %c0_0 = arith.constant 0 : index
    %0 = vector.load %arg1[%c0, %c0_0] : memref<8x128xbf16, #tpu.memory_space<vmem>>, vector<8x128xbf16>
    %c0_1 = arith.constant 0 : index
    %c0_2 = arith.constant 0 : index
    %1 = vector.load %arg2[%c0_1, %c0_2] : memref<128x32xbf16, #tpu.memory_space<vmem>>, vector<128x32xbf16>
    %cst = arith.constant dense<0.000000e+00> : vector<8x32xf32>
    %2 = tpu.matmul %0, %1, %cst {dimension_numbers = #tpu.dot_dimension_numbers<[1], [0], [0], [1], [0, 0, 1, 1], [], []>} : vector<8x128xbf16>, vector<128x32xbf16>, vector<8x32xf32> -> vector<8x32xf32>
    %c0_3 = arith.constant 0 : index
    %c0_4 = arith.constant 0 : index
    %3 = vector.load %arg3[%c0_3, %c0_4] : memref<1x32xf32, #tpu.memory_space<vmem>>, vector<1x32xf32>
    %4 = vector.broadcast %3 : vector<1x32xf32> to vector<8x32xf32>
    %5 = arith.addf %2, %4 : vector<8x32xf32>
    %c0_5 = arith.constant 0 : index
    %c0_6 = arith.constant 0 : index
    %6 = vector.load %arg4[%c0_5, %c0_6] : memref<1x32xf32, #tpu.memory_space<vmem>>, vector<1x32xf32>
    %c0_7 = arith.constant 0 : index
    %c0_8 = arith.constant 0 : index
    %7 = vector.load %arg5[%c0_7, %c0_8] : memref<1x32xf32, #tpu.memory_space<vmem>>, vector<1x32xf32>
    %cst_9 = arith.constant dense<0.000000e+00> : vector<8xf32>
    %8 = vector.multi_reduction <add>, %5, %cst_9 [1] : vector<8x32xf32> to vector<8xf32>
    %9 = vector.shape_cast %8 : vector<8xf32> to vector<8x1xf32>
    %cst_10 = arith.constant 3.200000e+01 : f32
    %10 = vector.broadcast %cst_10 : f32 to vector<8x1xf32>
    %11 = arith.divf %9, %10 : vector<8x1xf32>
    %12 = vector.broadcast %11 : vector<8x1xf32> to vector<8x32xf32>
    %13 = arith.subf %5, %12 : vector<8x32xf32>
    %14 = arith.mulf %13, %13 : vector<8x32xf32>
    %cst_11 = arith.constant dense<0.000000e+00> : vector<8xf32>
    %15 = vector.multi_reduction <add>, %14, %cst_11 [1] : vector<8x32xf32> to vector<8xf32>
    %16 = vector.shape_cast %15 : vector<8xf32> to vector<8x1xf32>
    %cst_12 = arith.constant 3.200000e+01 : f32
    %17 = vector.broadcast %cst_12 : f32 to vector<8x1xf32>
    %18 = arith.divf %16, %17 : vector<8x1xf32>
    %19 = vector.broadcast %11 : vector<8x1xf32> to vector<8x32xf32>
    %20 = arith.subf %5, %19 : vector<8x32xf32>
    %cst_13 = arith.constant 9.99999974E-6 : f32
    %21 = vector.broadcast %cst_13 : f32 to vector<8x1xf32>
    %22 = arith.addf %18, %21 : vector<8x1xf32>
    %23 = math.rsqrt %22 : vector<8x1xf32>
    %24 = vector.broadcast %23 : vector<8x1xf32> to vector<8x32xf32>
    %25 = arith.mulf %20, %24 : vector<8x32xf32>
    %26 = vector.broadcast %6 : vector<1x32xf32> to vector<8x32xf32>
    %27 = arith.mulf %25, %26 : vector<8x32xf32>
    %28 = vector.broadcast %7 : vector<1x32xf32> to vector<8x32xf32>
    %29 = arith.addf %27, %28 : vector<8x32xf32>
    %30 = arith.truncf %29 : vector<8x32xf32> to vector<8x32xbf16>
    %c0_14 = arith.constant 0 : index
    %c0_15 = arith.constant 0 : index
    %31 = vector.load %arg6[%c0_14, %c0_15] : memref<8x32xbf16, #tpu.memory_space<vmem>>, vector<8x32xbf16>
    tpu.vector_store %arg6[%c0_14, %c0_15], %30 {strides = array<i32>} : memref<8x32xbf16, #tpu.memory_space<vmem>>, vector<8x32xbf16>,
    return
  }
  func.func @transform_0(%arg0: i32) -> (i32, i32) {
    %c0_i32 = arith.constant 0 : i32
    %c0_i32_0 = arith.constant 0 : i32
    return %arg0, %c0_i32 : i32, i32
  }
  func.func @transform_1(%arg0: i32) -> (i32, i32) {
    %c0_i32 = arith.constant 0 : i32
    %c0_i32_0 = arith.constant 0 : i32
    %c0_i32_1 = arith.constant 0 : i32
    return %c0_i32, %c0_i32_0 : i32, i32
  }
  func.func @transform_2(%arg0: i32) -> (i32, i32) {
    %c0_i32 = arith.constant 0 : i32
    %c0_i32_0 = arith.constant 0 : i32
    %c0_i32_1 = arith.constant 0 : i32
    return %c0_i32, %c0_i32_0 : i32, i32
  }
  func.func @transform_3(%arg0: i32) -> (i32, i32) {
    %c0_i32 = arith.constant 0 : i32
    %c0_i32_0 = arith.constant 0 : i32
    %c0_i32_1 = arith.constant 0 : i32
    return %c0_i32, %c0_i32_0 : i32, i32
  }
  func.func @transform_4(%arg0: i32) -> (i32, i32) {
    %c0_i32 = arith.constant 0 : i32
    %c0_i32_0 = arith.constant 0 : i32
    %c0_i32_1 = arith.constant 0 : i32
    return %c0_i32, %c0_i32_0 : i32, i32
  }
  func.func @transform_5(%arg0: i32) -> (i32, i32) {
    %c0_i32 = arith.constant 0 : i32
    %c0_i32_0 = arith.constant 0 : i32
    return %arg0, %c0_i32 : i32, i32
  }
}

module attributes {stable_mosaic.version = 11 : i64} {
  func.func @_mm_kernel(%arg0: i32, %arg1: memref<8x32xbf16, #tpu.memory_space<vmem>>, %arg2: memref<32x64xbf16, #tpu.memory_space<vmem>>, %arg3: memref<1x64xf32, #tpu.memory_space<vmem>>, %arg4: memref<8x64xbf16, #tpu.memory_space<vmem>>) attributes {dimension_semantics = [#tpu.dimension_semantics<parallel>], iteration_bounds = array<i64: 1>, scalar_prefetch = 0 : i64, scratch_operands = 0 : i64, tpu.core_type = #tpu.core_type<tc>, window_params = [{transform_indices = @transform_0, window_bounds = array<i64: 8, 32>}, {pipeline_mode = #tpu.pipeline_mode<synchronous>, transform_indices = @transform_1, window_bounds = array<i64: 32, 64>}, {pipeline_mode = #tpu.pipeline_mode<synchronous>, transform_indices = @transform_2, window_bounds = array<i64: 1, 64>}, {transform_indices = @transform_3, window_bounds = array<i64: 8, 64>}]} {
    %c0 = arith.constant 0 : index
    %c0_0 = arith.constant 0 : index
    %0 = vector.load %arg1[%c0, %c0_0] : memref<8x32xbf16, #tpu.memory_space<vmem>>, vector<8x32xbf16>
    %c0_1 = arith.constant 0 : index
    %c0_2 = arith.constant 0 : index
    %1 = vector.load %arg2[%c0_1, %c0_2] : memref<32x64xbf16, #tpu.memory_space<vmem>>, vector<32x64xbf16>
    %cst = arith.constant dense<0.000000e+00> : vector<8x64xf32>
    %2 = tpu.matmul %0, %1, %cst {dimension_numbers = #tpu.dot_dimension_numbers<[1], [0], [0], [1], [0, 0, 1, 1], [], []>} : vector<8x32xbf16>, vector<32x64xbf16>, vector<8x64xf32> -> vector<8x64xf32>
    %c0_3 = arith.constant 0 : index
    %c0_4 = arith.constant 0 : index
    %3 = vector.load %arg3[%c0_3, %c0_4] : memref<1x64xf32, #tpu.memory_space<vmem>>, vector<1x64xf32>
    %4 = vector.broadcast %3 : vector<1x64xf32> to vector<8x64xf32>
    %5 = arith.addf %2, %4 : vector<8x64xf32>
    %6 = arith.truncf %5 : vector<8x64xf32> to vector<8x64xbf16>
    %c0_5 = arith.constant 0 : index
    %c0_6 = arith.constant 0 : index
    %7 = vector.load %arg4[%c0_5, %c0_6] : memref<8x64xbf16, #tpu.memory_space<vmem>>, vector<8x64xbf16>
    tpu.vector_store %arg4[%c0_5, %c0_6], %6 {strides = array<i32>} : memref<8x64xbf16, #tpu.memory_space<vmem>>, vector<8x64xbf16>,
    return
  }
  func.func @transform_0(%arg0: i32) -> (i32, i32) {
    %c0_i32 = arith.constant 0 : i32
    %c0_i32_0 = arith.constant 0 : i32
    return %arg0, %c0_i32 : i32, i32
  }
  func.func @transform_1(%arg0: i32) -> (i32, i32) {
    %c0_i32 = arith.constant 0 : i32
    %c0_i32_0 = arith.constant 0 : i32
    %c0_i32_1 = arith.constant 0 : i32
    return %c0_i32, %c0_i32_0 : i32, i32
  }
  func.func @transform_2(%arg0: i32) -> (i32, i32) {
    %c0_i32 = arith.constant 0 : i32
    %c0_i32_0 = arith.constant 0 : i32
    %c0_i32_1 = arith.constant 0 : i32
    return %c0_i32, %c0_i32_0 : i32, i32
  }
  func.func @transform_3(%arg0: i32) -> (i32, i32) {
    %c0_i32 = arith.constant 0 : i32
    %c0_i32_0 = arith.constant 0 : i32
    return %arg0, %c0_i32 : i32, i32
  }
}

module attributes {stable_mosaic.version = 11 : i64} {
  func.func @_ln_mm_kernel(%arg0: i32, %arg1: memref<16x32xbf16, #tpu.memory_space<vmem>>, %arg2: memref<1x32xf32, #tpu.memory_space<vmem>>, %arg3: memref<1x32xf32, #tpu.memory_space<vmem>>, %arg4: memref<32x32xbf16, #tpu.memory_space<vmem>>, %arg5: memref<1x32xf32, #tpu.memory_space<vmem>>, %arg6: memref<16x32xbf16, #tpu.memory_space<vmem>>) attributes {dimension_semantics = [#tpu.dimension_semantics<parallel>], iteration_bounds = array<i64: 2>, scalar_prefetch = 0 : i64, scratch_operands = 0 : i64, tpu.core_type = #tpu.core_type<tc>, window_params = [{transform_indices = @transform_0, window_bounds = array<i64: 16, 32>}, {pipeline_mode = #tpu.pipeline_mode<synchronous>, transform_indices = @transform_1, window_bounds = array<i64: 1, 32>}, {pipeline_mode = #tpu.pipeline_mode<synchronous>, transform_indices = @transform_2, window_bounds = array<i64: 1, 32>}, {pipeline_mode = #tpu.pipeline_mode<synchronous>, transform_indices = @transform_3, window_bounds = array<i64: 32, 32>}, {pipeline_mode = #tpu.pipeline_mode<synchronous>, transform_indices = @transform_4, window_bounds = array<i64: 1, 32>}, {transform_indices = @transform_5, window_bounds = array<i64: 16, 32>}]} {
    %c0 = arith.constant 0 : index
    %c0_0 = arith.constant 0 : index
    %0 = vector.load %arg1[%c0, %c0_0] : memref<16x32xbf16, #tpu.memory_space<vmem>>, vector<16x32xbf16>
    %1 = arith.extf %0 : vector<16x32xbf16> to vector<16x32xf32>
    %c0_1 = arith.constant 0 : index
    %c0_2 = arith.constant 0 : index
    %2 = vector.load %arg2[%c0_1, %c0_2] : memref<1x32xf32, #tpu.memory_space<vmem>>, vector<1x32xf32>
    %c0_3 = arith.constant 0 : index
    %c0_4 = arith.constant 0 : index
    %3 = vector.load %arg3[%c0_3, %c0_4] : memref<1x32xf32, #tpu.memory_space<vmem>>, vector<1x32xf32>
    %cst = arith.constant dense<0.000000e+00> : vector<16xf32>
    %4 = vector.multi_reduction <add>, %1, %cst [1] : vector<16x32xf32> to vector<16xf32>
    %5 = vector.shape_cast %4 : vector<16xf32> to vector<16x1xf32>
    %cst_5 = arith.constant 3.200000e+01 : f32
    %6 = vector.broadcast %cst_5 : f32 to vector<16x1xf32>
    %7 = arith.divf %5, %6 : vector<16x1xf32>
    %8 = vector.broadcast %7 : vector<16x1xf32> to vector<16x32xf32>
    %9 = arith.subf %1, %8 : vector<16x32xf32>
    %10 = arith.mulf %9, %9 : vector<16x32xf32>
    %cst_6 = arith.constant dense<0.000000e+00> : vector<16xf32>
    %11 = vector.multi_reduction <add>, %10, %cst_6 [1] : vector<16x32xf32> to vector<16xf32>
    %12 = vector.shape_cast %11 : vector<16xf32> to vector<16x1xf32>
    %cst_7 = arith.constant 3.200000e+01 : f32
    %13 = vector.broadcast %cst_7 : f32 to vector<16x1xf32>
    %14 = arith.divf %12, %13 : vector<16x1xf32>
    %15 = vector.broadcast %7 : vector<16x1xf32> to vector<16x32xf32>
    %16 = arith.subf %1, %15 : vector<16x32xf32>
    %cst_8 = arith.constant 9.99999974E-6 : f32
    %17 = vector.broadcast %cst_8 : f32 to vector<16x1xf32>
    %18 = arith.addf %14, %17 : vector<16x1xf32>
    %19 = math.rsqrt %18 : vector<16x1xf32>
    %20 = vector.broadcast %19 : vector<16x1xf32> to vector<16x32xf32>
    %21 = arith.mulf %16, %20 : vector<16x32xf32>
    %22 = vector.broadcast %2 : vector<1x32xf32> to vector<16x32xf32>
    %23 = arith.mulf %21, %22 : vector<16x32xf32>
    %24 = vector.broadcast %3 : vector<1x32xf32> to vector<16x32xf32>
    %25 = arith.addf %23, %24 : vector<16x32xf32>
    %26 = arith.truncf %25 : vector<16x32xf32> to vector<16x32xbf16>
    %c0_9 = arith.constant 0 : index
    %c0_10 = arith.constant 0 : index
    %27 = vector.load %arg4[%c0_9, %c0_10] : memref<32x32xbf16, #tpu.memory_space<vmem>>, vector<32x32xbf16>
    %cst_11 = arith.constant dense<0.000000e+00> : vector<16x32xf32>
    %28 = tpu.matmul %26, %27, %cst_11 {dimension_numbers = #tpu.dot_dimension_numbers<[1], [0], [0], [1], [0, 0, 1, 1], [], []>} : vector<16x32xbf16>, vector<32x32xbf16>, vector<16x32xf32> -> vector<16x32xf32>
    %c0_12 = arith.constant 0 : index
    %c0_13 = arith.constant 0 : index
    %29 = vector.load %arg5[%c0_12, %c0_13] : memref<1x32xf32, #tpu.memory_space<vmem>>, vector<1x32xf32>
    %30 = vector.broadcast %29 : vector<1x32xf32> to vector<16x32xf32>
    %31 = arith.addf %28, %30 : vector<16x32xf32>
    %32 = arith.truncf %31 : vector<16x32xf32> to vector<16x32xbf16>
    %c0_14 = arith.constant 0 : index
    %c0_15 = arith.constant 0 : index
    %33 = vector.load %arg6[%c0_14, %c0_15] : memref<16x32xbf16, #tpu.memory_space<vmem>>, vector<16x32xbf16>
    tpu.vector_store %arg6[%c0_14, %c0_15], %32 {strides = array<i32>} : memref<16x32xbf16, #tpu.memory_space<vmem>>, vector<16x32xbf16>,
    return
  }
  func.func @transform_0(%arg0: i32) -> (i32, i32) {
    %c0_i32 = arith.constant 0 : i32
    %c0_i32_0 = arith.constant 0 : i32
    return %arg0, %c0_i32 : i32, i32
  }
  func.func @transform_1(%arg0: i32) -> (i32, i32) {
    %c0_i32 = arith.constant 0 : i32
    %c0_i32_0 = arith.constant 0 : i32
    %c0_i32_1 = arith.constant 0 : i32
    return %c0_i32, %c0_i32_0 : i32, i32
  }
  func.func @transform_2(%arg0: i32) -> (i32, i32) {
    %c0_i32 = arith.constant 0 : i32
    %c0_i32_0 = arith.constant 0 : i32
    %c0_i32_1 = arith.constant 0 : i32
    return %c0_i32, %c0_i32_0 : i32, i32
  }
  func.func @transform_3(%arg0: i32) -> (i32, i32) {
    %c0_i32 = arith.constant 0 : i32
    %c0_i32_0 = arith.constant 0 : i32
    %c0_i32_1 = arith.constant 0 : i32
    return %c0_i32, %c0_i32_0 : i32, i32
  }
  func.func @transform_4(%arg0: i32) -> (i32, i32) {
    %c0_i32 = arith.constant 0 : i32
    %c0_i32_0 = arith.constant 0 : i32
    %c0_i32_1 = arith.constant 0 : i32
    return %c0_i32, %c0_i32_0 : i32, i32
  }
  func.func @transform_5(%arg0: i32) -> (i32, i32) {
    %c0_i32 = arith.constant 0 : i32
    %c0_i32_0 = arith.constant 0 : i32
    return %arg0, %c0_i32 : i32, i32
  }
}

module attributes {stable_mosaic.version = 11 : i64} {
  func.func @_attention_kernel(%arg0: i32, %arg1: i32, %arg2: memref<1x16x32xbf16, #tpu.memory_space<vmem>>, %arg3: memref<1x32x4xbf16, #tpu.memory_space<vmem>>, %arg4: memref<1x4x32xbf16, #tpu.memory_space<vmem>>, %arg5: memref<1x16x32xbf16, #tpu.memory_space<vmem>>) attributes {dimension_semantics = [#tpu.dimension_semantics<parallel>, #tpu.dimension_semantics<parallel>], iteration_bounds = array<i64: 2, 1>, scalar_prefetch = 0 : i64, scratch_operands = 0 : i64, tpu.core_type = #tpu.core_type<tc>, window_params = [{transform_indices = @transform_0, window_bounds = array<i64: 1, 16, 32>}, {transform_indices = @transform_1, window_bounds = array<i64: 1, 32, 4>}, {transform_indices = @transform_2, window_bounds = array<i64: 1, 4, 32>}, {transform_indices = @transform_3, window_bounds = array<i64: 1, 16, 32>}]} {
    %c0 = arith.constant 0 : index
    %c0_0 = arith.constant 0 : index
    %c0_1 = arith.constant 0 : index
    %0 = vector.load %arg2[%c0, %c0_0, %c0_1] : memref<1x16x32xbf16, #tpu.memory_space<vmem>>, vector<1x16x32xbf16>
    %1 = vector.shape_cast %0 : vector<1x16x32xbf16> to vector<16x32xbf16>
    %c0_2 = arith.constant 0 : index
    %c0_3 = arith.constant 0 : index
    %c0_4 = arith.constant 0 : index
    %2 = vector.load %arg3[%c0_2, %c0_3, %c0_4] : memref<1x32x4xbf16, #tpu.memory_space<vmem>>, vector<1x32x4xbf16>
    %3 = vector.shape_cast %2 : vector<1x32x4xbf16> to vector<32x4xbf16>
    %c0_5 = arith.constant 0 : index
    %c0_6 = arith.constant 0 : index
    %c0_7 = arith.constant 0 : index
    %4 = vector.load %arg4[%c0_5, %c0_6, %c0_7] : memref<1x4x32xbf16, #tpu.memory_space<vmem>>, vector<1x4x32xbf16>
    %5 = vector.shape_cast %4 : vector<1x4x32xbf16> to vector<4x32xbf16>
    %6 = vector.extract_strided_slice %1 {offsets = [0, 0], sizes = [16, 8], strides = [1, 1]} : vector<16x32xbf16> to vector<16x8xbf16>
    %7 = vector.extract_strided_slice %3 {offsets = [0, 0], sizes = [8, 4], strides = [1, 1]} : vector<32x4xbf16> to vector<8x4xbf16>
    %8 = vector.extract_strided_slice %5 {offsets = [0, 0], sizes = [4, 8], strides = [1, 1]} : vector<4x32xbf16> to vector<4x8xbf16>
    %cst = arith.constant dense<0.000000e+00> : vector<16x4xf32>
    %9 = tpu.matmul %6, %7, %cst {dimension_numbers = #tpu.dot_dimension_numbers<[1], [0], [0], [1], [0, 0, 1, 1], [], []>} : vector<16x8xbf16>, vector<8x4xbf16>, vector<16x4xf32> -> vector<16x4xf32>
    %cst_8 = arith.constant 0.353553385 : f32
    %10 = vector.broadcast %cst_8 : f32 to vector<16x4xf32>
    %11 = arith.mulf %9, %10 : vector<16x4xf32>
    %cst_9 = arith.constant dense<0xFF800000> : vector<16xf32>
    %12 = vector.multi_reduction <maximumf>, %11, %cst_9 [1] : vector<16x4xf32> to vector<16xf32>
    %13 = vector.shape_cast %12 : vector<16xf32> to vector<16x1xf32>
    %14 = vector.broadcast %13 : vector<16x1xf32> to vector<16x4xf32>
    %15 = arith.subf %11, %14 : vector<16x4xf32>
    %16 = math.exp %15 : vector<16x4xf32>
    %cst_10 = arith.constant dense<0.000000e+00> : vector<16xf32>
    %17 = vector.multi_reduction <add>, %16, %cst_10 [1] : vector<16x4xf32> to vector<16xf32>
    %18 = vector.shape_cast %17 : vector<16xf32> to vector<16x1xf32>
    %19 = tpu.reciprocal %18 {approx = true} : vector<16x1xf32> -> vector<16x1xf32>
    %20 = vector.broadcast %19 : vector<16x1xf32> to vector<16x4xf32>
    %21 = arith.mulf %16, %20 : vector<16x4xf32>
    %22 = arith.truncf %21 : vector<16x4xf32> to vector<16x4xbf16>
    %cst_11 = arith.constant dense<0.000000e+00> : vector<16x8xf32>
    %23 = tpu.matmul %22, %8, %cst_11 {dimension_numbers = #tpu.dot_dimension_numbers<[1], [0], [0], [1], [0, 0, 1, 1], [], []>} : vector<16x4xbf16>, vector<4x8xbf16>, vector<16x8xf32> -> vector<16x8xf32>
    %24 = vector.extract_strided_slice %1 {offsets = [0, 8], sizes = [16, 8], strides = [1, 1]} : vector<16x32xbf16> to vector<16x8xbf16>
    %25 = vector.extract_strided_slice %3 {offsets = [8, 0], sizes = [8, 4], strides = [1, 1]} : vector<32x4xbf16> to vector<8x4xbf16>
    %26 = vector.extract_strided_slice %5 {offsets = [0, 8], sizes = [4, 8], strides = [1, 1]} : vector<4x32xbf16> to vector<4x8xbf16>
    %cst_12 = arith.constant dense<0.000000e+00> : vector<16x4xf32>
    %27 = tpu.matmul %24, %25, %cst_12 {dimension_numbers = #tpu.dot_dimension_numbers<[1], [0], [0], [1], [0, 0, 1, 1], [], []>} : vector<16x8xbf16>, vector<8x4xbf16>, vector<16x4xf32> -> vector<16x4xf32>
    %cst_13 = arith.constant 0.353553385 : f32
    %28 = vector.broadcast %cst_13 : f32 to vector<16x4xf32>
    %29 = arith.mulf %27, %28 : vector<16x4xf32>
    %cst_14 = arith.constant dense<0xFF800000> : vector<16xf32>
    %30 = vector.multi_reduction <maximumf>, %29, %cst_14 [1] : vector<16x4xf32> to vector<16xf32>
    %31 = vector.shape_cast %30 : vector<16xf32> to vector<16x1xf32>
    %32 = vector.broadcast %31 : vector<16x1xf32> to vector<16x4xf32>
    %33 = arith.subf %29, %32 : vector<16x4xf32>
    %34 = math.exp %33 : vector<16x4xf32>
    %cst_15 = arith.constant dense<0.000000e+00> : vector<16xf32>
    %35 = vector.multi_reduction <add>, %34, %cst_15 [1] : vector<16x4xf32> to vector<16xf32>
    %36 = vector.shape_cast %35 : vector<16xf32> to vector<16x1xf32>
    %37 = tpu.reciprocal %36 {approx = true} : vector<16x1xf32> -> vector<16x1xf32>
    %38 = vector.broadcast %37 : vector<16x1xf32> to vector<16x4xf32>
    %39 = arith.mulf %34, %38 : vector<16x4xf32>
    %40 = arith.truncf %39 : vector<16x4xf32> to vector<16x4xbf16>
    %cst_16 = arith.constant dense<0.000000e+00> : vector<16x8xf32>
    %41 = tpu.matmul %40, %26, %cst_16 {dimension_numbers = #tpu.dot_dimension_numbers<[1], [0], [0], [1], [0, 0, 1, 1], [], []>} : vector<16x4xbf16>, vector<4x8xbf16>, vector<16x8xf32> -> vector<16x8xf32>
    %42 = vector.extract_strided_slice %1 {offsets = [0, 16], sizes = [16, 8], strides = [1, 1]} : vector<16x32xbf16> to vector<16x8xbf16>
    %43 = vector.extract_strided_slice %3 {offsets = [16, 0], sizes = [8, 4], strides = [1, 1]} : vector<32x4xbf16> to vector<8x4xbf16>
    %44 = vector.extract_strided_slice %5 {offsets = [0, 16], sizes = [4, 8], strides = [1, 1]} : vector<4x32xbf16> to vector<4x8xbf16>
    %cst_17 = arith.constant dense<0.000000e+00> : vector<16x4xf32>
    %45 = tpu.matmul %42, %43, %cst_17 {dimension_numbers = #tpu.dot_dimension_numbers<[1], [0], [0], [1], [0, 0, 1, 1], [], []>} : vector<16x8xbf16>, vector<8x4xbf16>, vector<16x4xf32> -> vector<16x4xf32>
    %cst_18 = arith.constant 0.353553385 : f32
    %46 = vector.broadcast %cst_18 : f32 to vector<16x4xf32>
    %47 = arith.mulf %45, %46 : vector<16x4xf32>
    %cst_19 = arith.constant dense<0xFF800000> : vector<16xf32>
    %48 = vector.multi_reduction <maximumf>, %47, %cst_19 [1] : vector<16x4xf32> to vector<16xf32>
    %49 = vector.shape_cast %48 : vector<16xf32> to vector<16x1xf32>
    %50 = vector.broadcast %49 : vector<16x1xf32> to vector<16x4xf32>
    %51 = arith.subf %47, %50 : vector<16x4xf32>
    %52 = math.exp %51 : vector<16x4xf32>
    %cst_20 = arith.constant dense<0.000000e+00> : vector<16xf32>
    %53 = vector.multi_reduction <add>, %52, %cst_20 [1] : vector<16x4xf32> to vector<16xf32>
    %54 = vector.shape_cast %53 : vector<16xf32> to vector<16x1xf32>
    %55 = tpu.reciprocal %54 {approx = true} : vector<16x1xf32> -> vector<16x1xf32>
    %56 = vector.broadcast %55 : vector<16x1xf32> to vector<16x4xf32>
    %57 = arith.mulf %52, %56 : vector<16x4xf32>
    %58 = arith.truncf %57 : vector<16x4xf32> to vector<16x4xbf16>
    %cst_21 = arith.constant dense<0.000000e+00> : vector<16x8xf32>
    %59 = tpu.matmul %58, %44, %cst_21 {dimension_numbers = #tpu.dot_dimension_numbers<[1], [0], [0], [1], [0, 0, 1, 1], [], []>} : vector<16x4xbf16>, vector<4x8xbf16>, vector<16x8xf32> -> vector<16x8xf32>
    %60 = vector.extract_strided_slice %1 {offsets = [0, 24], sizes = [16, 8], strides = [1, 1]} : vector<16x32xbf16> to vector<16x8xbf16>
    %61 = vector.extract_strided_slice %3 {offsets = [24, 0], sizes = [8, 4], strides = [1, 1]} : vector<32x4xbf16> to vector<8x4xbf16>
    %62 = vector.extract_strided_slice %5 {offsets = [0, 24], sizes = [4, 8], strides = [1, 1]} : vector<4x32xbf16> to vector<4x8xbf16>
    %cst_22 = arith.constant dense<0.000000e+00> : vector<16x4xf32>
    %63 = tpu.matmul %60, %61, %cst_22 {dimension_numbers = #tpu.dot_dimension_numbers<[1], [0], [0], [1], [0, 0, 1, 1], [], []>} : vector<16x8xbf16>, vector<8x4xbf16>, vector<16x4xf32> -> vector<16x4xf32>
    %cst_23 = arith.constant 0.353553385 : f32
    %64 = vector.broadcast %cst_23 : f32 to vector<16x4xf32>
    %65 = arith.mulf %63, %64 : vector<16x4xf32>
    %cst_24 = arith.constant dense<0xFF800000> : vector<16xf32>
    %66 = vector.multi_reduction <maximumf>, %65, %cst_24 [1] : vector<16x4xf32> to vector<16xf32>
    %67 = vector.shape_cast %66 : vector<16xf32> to vector<16x1xf32>
    %68 = vector.broadcast %67 : vector<16x1xf32> to vector<16x4xf32>
    %69 = arith.subf %65, %68 : vector<16x4xf32>
    %70 = math.exp %69 : vector<16x4xf32>
    %cst_25 = arith.constant dense<0.000000e+00> : vector<16xf32>
    %71 = vector.multi_reduction <add>, %70, %cst_25 [1] : vector<16x4xf32> to vector<16xf32>
    %72 = vector.shape_cast %71 : vector<16xf32> to vector<16x1xf32>
    %73 = tpu.reciprocal %72 {approx = true} : vector<16x1xf32> -> vector<16x1xf32>
    %74 = vector.broadcast %73 : vector<16x1xf32> to vector<16x4xf32>
    %75 = arith.mulf %70, %74 : vector<16x4xf32>
    %76 = arith.truncf %75 : vector<16x4xf32> to vector<16x4xbf16>
    %cst_26 = arith.constant dense<0.000000e+00> : vector<16x8xf32>
    %77 = tpu.matmul %76, %62, %cst_26 {dimension_numbers = #tpu.dot_dimension_numbers<[1], [0], [0], [1], [0, 0, 1, 1], [], []>} : vector<16x4xbf16>, vector<4x8xbf16>, vector<16x8xf32> -> vector<16x8xf32>
    %78 = tpu.concatenate %23, %41, %59, %77 in 1 : vector<16x8xf32>, vector<16x8xf32>, vector<16x8xf32>, vector<16x8xf32> -> vector<16x32xf32>
    %79 = arith.truncf %78 : vector<16x32xf32> to vector<16x32xbf16>
    %c0_27 = arith.constant 0 : index
    %c0_28 = arith.constant 0 : index
    %c0_29 = arith.constant 0 : index
    %80 = vector.load %arg5[%c0_27, %c0_28, %c0_29] : memref<1x16x32xbf16, #tpu.memory_space<vmem>>, vector<1x16x32xbf16>
    %81 = vector.shape_cast %80 : vector<1x16x32xbf16> to vector<16x32xbf16>
    %82 = vector.shape_cast %79 : vector<16x32xbf16> to vector<1x16x32xbf16>
    tpu.vector_store %arg5[%c0_27, %c0_28, %c0_29], %82 {strides = array<i32>} : memref<1x16x32xbf16, #tpu.memory_space<vmem>>, vector<1x16x32xbf16>,
    return
  }
  func.func @transform_0(%arg0: i32, %arg1: i32) -> (i32, i32, i32) {
    %c0_i32 = arith.constant 0 : i32
    %c0_i32_0 = arith.constant 0 : i32
    return %arg0, %arg1, %c0_i32 : i32, i32, i32
  }
  func.func @transform_1(%arg0: i32, %arg1: i32) -> (i32, i32, i32) {
    %c0_i32 = arith.constant 0 : i32
    %c0_i32_0 = arith.constant 0 : i32
    %c0_i32_1 = arith.constant 0 : i32
    return %arg0, %c0_i32, %c0_i32_0 : i32, i32, i32
  }
  func.func @transform_2(%arg0: i32, %arg1: i32) -> (i32, i32, i32) {
    %c0_i32 = arith.constant 0 : i32
    %c0_i32_0 = arith.constant 0 : i32
    %c0_i32_1 = arith.constant 0 : i32
    return %arg0, %c0_i32, %c0_i32_0 : i32, i32, i32
  }
  func.func @transform_3(%arg0: i32, %arg1: i32) -> (i32, i32, i32) {
    %c0_i32 = arith.constant 0 : i32
    %c0_i32_0 = arith.constant 0 : i32
    return %arg0, %arg1, %c0_i32 : i32, i32, i32
  }
}

module attributes {stable_mosaic.version = 11 : i64} {
  func.func @_mm_res_kernel(%arg0: i32, %arg1: memref<16x32xbf16, #tpu.memory_space<vmem>>, %arg2: memref<32x32xbf16, #tpu.memory_space<vmem>>, %arg3: memref<1x32xf32, #tpu.memory_space<vmem>>, %arg4: memref<16x32xbf16, #tpu.memory_space<vmem>>, %arg5: memref<16x32xbf16, #tpu.memory_space<vmem>>) attributes {dimension_semantics = [#tpu.dimension_semantics<parallel>], iteration_bounds = array<i64: 2>, scalar_prefetch = 0 : i64, scratch_operands = 0 : i64, tpu.core_type = #tpu.core_type<tc>, window_params = [{transform_indices = @transform_0, window_bounds = array<i64: 16, 32>}, {pipeline_mode = #tpu.pipeline_mode<synchronous>, transform_indices = @transform_1, window_bounds = array<i64: 32, 32>}, {pipeline_mode = #tpu.pipeline_mode<synchronous>, transform_indices = @transform_2, window_bounds = array<i64: 1, 32>}, {transform_indices = @transform_3, window_bounds = array<i64: 16, 32>}, {transform_indices = @transform_4, window_bounds = array<i64: 16, 32>}]} {
    %c0 = arith.constant 0 : index
    %c0_0 = arith.constant 0 : index
    %0 = vector.load %arg1[%c0, %c0_0] : memref<16x32xbf16, #tpu.memory_space<vmem>>, vector<16x32xbf16>
    %c0_1 = arith.constant 0 : index
    %c0_2 = arith.constant 0 : index
    %1 = vector.load %arg2[%c0_1, %c0_2] : memref<32x32xbf16, #tpu.memory_space<vmem>>, vector<32x32xbf16>
    %cst = arith.constant dense<0.000000e+00> : vector<16x32xf32>
    %2 = tpu.matmul %0, %1, %cst {dimension_numbers = #tpu.dot_dimension_numbers<[1], [0], [0], [1], [0, 0, 1, 1], [], []>} : vector<16x32xbf16>, vector<32x32xbf16>, vector<16x32xf32> -> vector<16x32xf32>
    %c0_3 = arith.constant 0 : index
    %c0_4 = arith.constant 0 : index
    %3 = vector.load %arg3[%c0_3, %c0_4] : memref<1x32xf32, #tpu.memory_space<vmem>>, vector<1x32xf32>
    %4 = vector.broadcast %3 : vector<1x32xf32> to vector<16x32xf32>
    %5 = arith.addf %2, %4 : vector<16x32xf32>
    %c0_5 = arith.constant 0 : index
    %c0_6 = arith.constant 0 : index
    %6 = vector.load %arg4[%c0_5, %c0_6] : memref<16x32xbf16, #tpu.memory_space<vmem>>, vector<16x32xbf16>
    %7 = arith.extf %6 : vector<16x32xbf16> to vector<16x32xf32>
    %8 = arith.addf %5, %7 : vector<16x32xf32>
    %9 = arith.truncf %8 : vector<16x32xf32> to vector<16x32xbf16>
    %c0_7 = arith.constant 0 : index
    %c0_8 = arith.constant 0 : index
    %10 = vector.load %arg5[%c0_7, %c0_8] : memref<16x32xbf16, #tpu.memory_space<vmem>>, vector<16x32xbf16>
    tpu.vector_store %arg5[%c0_7, %c0_8], %9 {strides = array<i32>} : memref<16x32xbf16, #tpu.memory_space<vmem>>, vector<16x32xbf16>,
    return
  }
  func.func @transform_0(%arg0: i32) -> (i32, i32) {
    %c0_i32 = arith.constant 0 : i32
    %c0_i32_0 = arith.constant 0 : i32
    return %arg0, %c0_i32 : i32, i32
  }
  func.func @transform_1(%arg0: i32) -> (i32, i32) {
    %c0_i32 = arith.constant 0 : i32
    %c0_i32_0 = arith.constant 0 : i32
    %c0_i32_1 = arith.constant 0 : i32
    return %c0_i32, %c0_i32_0 : i32, i32
  }
  func.func @transform_2(%arg0: i32) -> (i32, i32) {
    %c0_i32 = arith.constant 0 : i32
    %c0_i32_0 = arith.constant 0 : i32
    %c0_i32_1 = arith.constant 0 : i32
    return %c0_i32, %c0_i32_0 : i32, i32
  }
  func.func @transform_3(%arg0: i32) -> (i32, i32) {
    %c0_i32 = arith.constant 0 : i32
    %c0_i32_0 = arith.constant 0 : i32
    return %arg0, %c0_i32 : i32, i32
  }
  func.func @transform_4(%arg0: i32) -> (i32, i32) {
    %c0_i32 = arith.constant 0 : i32
    %c0_i32_0 = arith.constant 0 : i32
    return %arg0, %c0_i32 : i32, i32
  }
}

module attributes {stable_mosaic.version = 11 : i64} {
  func.func @_mixffn_kernel(%arg0: i32, %arg1: memref<1x6x6x32xbf16, #tpu.memory_space<vmem>>, %arg2: memref<1x16x32xbf16, #tpu.memory_space<vmem>>, %arg3: memref<2x9x32xf32, #tpu.memory_space<vmem>>, %arg4: memref<2x32xf32, #tpu.memory_space<vmem>>, %arg5: memref<2x32x32xbf16, #tpu.memory_space<vmem>>, %arg6: memref<1x32xf32, #tpu.memory_space<vmem>>, %arg7: memref<1x16x32xbf16, #tpu.memory_space<vmem>>) attributes {dimension_semantics = [#tpu.dimension_semantics<parallel>], iteration_bounds = array<i64: 2>, scalar_prefetch = 0 : i64, scratch_operands = 0 : i64, tpu.core_type = #tpu.core_type<tc>, window_params = [{transform_indices = @transform_0, window_bounds = array<i64: 1, 6, 6, 32>}, {transform_indices = @transform_1, window_bounds = array<i64: 1, 16, 32>}, {pipeline_mode = #tpu.pipeline_mode<synchronous>, transform_indices = @transform_2, window_bounds = array<i64: 2, 9, 32>}, {pipeline_mode = #tpu.pipeline_mode<synchronous>, transform_indices = @transform_3, window_bounds = array<i64: 2, 32>}, {pipeline_mode = #tpu.pipeline_mode<synchronous>, transform_indices = @transform_4, window_bounds = array<i64: 2, 32, 32>}, {pipeline_mode = #tpu.pipeline_mode<synchronous>, transform_indices = @transform_5, window_bounds = array<i64: 1, 32>}, {transform_indices = @transform_6, window_bounds = array<i64: 1, 16, 32>}]} {
    %c0 = arith.constant 0 : index
    %c0_0 = arith.constant 0 : index
    %c0_1 = arith.constant 0 : index
    %0 = vector.load %arg3[%c0, %c0_0, %c0_1] : memref<2x9x32xf32, #tpu.memory_space<vmem>>, vector<2x9x32xf32>
    %c0_2 = arith.constant 0 : index
    %c0_3 = arith.constant 0 : index
    %1 = vector.load %arg4[%c0_2, %c0_3] : memref<2x32xf32, #tpu.memory_space<vmem>>, vector<2x32xf32>
    %c0_4 = arith.constant 0 : index
    %c0_5 = arith.constant 0 : index
    %c0_6 = arith.constant 0 : index
    %2 = vector.load %arg5[%c0_4, %c0_5, %c0_6] : memref<2x32x32xbf16, #tpu.memory_space<vmem>>, vector<2x32x32xbf16>
    %c0_7 = arith.constant 0 : index
    %c0_8 = arith.constant 0 : index
    %c0_9 = arith.constant 0 : index
    %3 = vector.load %arg2[%c0_7, %c0_8, %c0_9] : memref<1x16x32xbf16, #tpu.memory_space<vmem>>, vector<1x16x32xbf16>
    %4 = vector.shape_cast %3 : vector<1x16x32xbf16> to vector<16x32xbf16>
    %5 = arith.extf %4 : vector<16x32xbf16> to vector<16x32xf32>
    %c0_10 = arith.constant 0 : index
    %c0_11 = arith.constant 0 : index
    %6 = vector.load %arg6[%c0_10, %c0_11] : memref<1x32xf32, #tpu.memory_space<vmem>>, vector<1x32xf32>
    %7 = vector.broadcast %6 : vector<1x32xf32> to vector<16x32xf32>
    %8 = arith.addf %5, %7 : vector<16x32xf32>
    %cst = arith.constant 0.000000e+00 : f32
    %9 = vector.broadcast %cst : f32 to vector<4x4x32xf32>
    %10 = vector.extract_strided_slice %1 {offsets = [0, 0], sizes = [1, 32], strides = [1, 1]} : vector<2x32xf32> to vector<1x32xf32>
    %11 = vector.shape_cast %10 : vector<1x32xf32> to vector<32xf32>
    %12 = vector.shape_cast %11 : vector<32xf32> to vector<1x1x32xf32>
    %13 = vector.broadcast %12 : vector<1x1x32xf32> to vector<4x4x32xf32>
    %14 = arith.addf %9, %13 : vector<4x4x32xf32>
    %c0_12 = arith.constant 0 : index
    %c0_13 = arith.constant 0 : index
    %c0_14 = arith.constant 0 : index
    %c0_15 = arith.constant 0 : index
    %15 = vector.load %arg1[%c0_12, %c0_13, %c0_14, %c0_15] : memref<1x6x6x32xbf16, #tpu.memory_space<vmem>>, vector<1x4x4x32xbf16>
    %16 = vector.shape_cast %15 : vector<1x4x4x32xbf16> to vector<4x4x32xbf16>
    %17 = vector.extract_strided_slice %0 {offsets = [0, 0, 0], sizes = [1, 1, 32], strides = [1, 1, 1]} : vector<2x9x32xf32> to vector<1x1x32xf32>
    %18 = vector.shape_cast %17 : vector<1x1x32xf32> to vector<32xf32>
    %19 = arith.extf %16 : vector<4x4x32xbf16> to vector<4x4x32xf32>
    %20 = vector.shape_cast %18 : vector<32xf32> to vector<1x1x32xf32>
    %21 = vector.broadcast %20 : vector<1x1x32xf32> to vector<4x4x32xf32>
    %22 = arith.mulf %19, %21 : vector<4x4x32xf32>
    %23 = arith.addf %14, %22 : vector<4x4x32xf32>
    %c0_16 = arith.constant 0 : index
    %c0_17 = arith.constant 0 : index
    %c1 = arith.constant 1 : index
    %c0_18 = arith.constant 0 : index
    %24 = vector.load %arg1[%c0_16, %c0_17, %c1, %c0_18] : memref<1x6x6x32xbf16, #tpu.memory_space<vmem>>, vector<1x4x4x32xbf16>
    %25 = vector.shape_cast %24 : vector<1x4x4x32xbf16> to vector<4x4x32xbf16>
    %26 = vector.extract_strided_slice %0 {offsets = [0, 1, 0], sizes = [1, 1, 32], strides = [1, 1, 1]} : vector<2x9x32xf32> to vector<1x1x32xf32>
    %27 = vector.shape_cast %26 : vector<1x1x32xf32> to vector<32xf32>
    %28 = arith.extf %25 : vector<4x4x32xbf16> to vector<4x4x32xf32>
    %29 = vector.shape_cast %27 : vector<32xf32> to vector<1x1x32xf32>
    %30 = vector.broadcast %29 : vector<1x1x32xf32> to vector<4x4x32xf32>
    %31 = arith.mulf %28, %30 : vector<4x4x32xf32>
    %32 = arith.addf %23, %31 : vector<4x4x32xf32>
    %c0_19 = arith.constant 0 : index
    %c0_20 = arith.constant 0 : index
    %c2 = arith.constant 2 : index
    %c0_21 = arith.constant 0 : index
    %33 = vector.load %arg1[%c0_19, %c0_20, %c2, %c0_21] : memref<1x6x6x32xbf16, #tpu.memory_space<vmem>>, vector<1x4x4x32xbf16>
    %34 = vector.shape_cast %33 : vector<1x4x4x32xbf16> to vector<4x4x32xbf16>
    %35 = vector.extract_strided_slice %0 {offsets = [0, 2, 0], sizes = [1, 1, 32], strides = [1, 1, 1]} : vector<2x9x32xf32> to vector<1x1x32xf32>
    %36 = vector.shape_cast %35 : vector<1x1x32xf32> to vector<32xf32>
    %37 = arith.extf %34 : vector<4x4x32xbf16> to vector<4x4x32xf32>
    %38 = vector.shape_cast %36 : vector<32xf32> to vector<1x1x32xf32>
    %39 = vector.broadcast %38 : vector<1x1x32xf32> to vector<4x4x32xf32>
    %40 = arith.mulf %37, %39 : vector<4x4x32xf32>
    %41 = arith.addf %32, %40 : vector<4x4x32xf32>
    %c0_22 = arith.constant 0 : index
    %c1_23 = arith.constant 1 : index
    %c0_24 = arith.constant 0 : index
    %c0_25 = arith.constant 0 : index
    %42 = vector.load %arg1[%c0_22, %c1_23, %c0_24, %c0_25] : memref<1x6x6x32xbf16, #tpu.memory_space<vmem>>, vector<1x4x4x32xbf16>
    %43 = vector.shape_cast %42 : vector<1x4x4x32xbf16> to vector<4x4x32xbf16>
    %44 = vector.extract_strided_slice %0 {offsets = [0, 3, 0], sizes = [1, 1, 32], strides = [1, 1, 1]} : vector<2x9x32xf32> to vector<1x1x32xf32>
    %45 = vector.shape_cast %44 : vector<1x1x32xf32> to vector<32xf32>
    %46 = arith.extf %43 : vector<4x4x32xbf16> to vector<4x4x32xf32>
    %47 = vector.shape_cast %45 : vector<32xf32> to vector<1x1x32xf32>
    %48 = vector.broadcast %47 : vector<1x1x32xf32> to vector<4x4x32xf32>
    %49 = arith.mulf %46, %48 : vector<4x4x32xf32>
    %50 = arith.addf %41, %49 : vector<4x4x32xf32>
    %c0_26 = arith.constant 0 : index
    %c1_27 = arith.constant 1 : index
    %c1_28 = arith.constant 1 : index
    %c0_29 = arith.constant 0 : index
    %51 = vector.load %arg1[%c0_26, %c1_27, %c1_28, %c0_29] : memref<1x6x6x32xbf16, #tpu.memory_space<vmem>>, vector<1x4x4x32xbf16>
    %52 = vector.shape_cast %51 : vector<1x4x4x32xbf16> to vector<4x4x32xbf16>
    %53 = vector.extract_strided_slice %0 {offsets = [0, 4, 0], sizes = [1, 1, 32], strides = [1, 1, 1]} : vector<2x9x32xf32> to vector<1x1x32xf32>
    %54 = vector.shape_cast %53 : vector<1x1x32xf32> to vector<32xf32>
    %55 = arith.extf %52 : vector<4x4x32xbf16> to vector<4x4x32xf32>
    %56 = vector.shape_cast %54 : vector<32xf32> to vector<1x1x32xf32>
    %57 = vector.broadcast %56 : vector<1x1x32xf32> to vector<4x4x32xf32>
    %58 = arith.mulf %55, %57 : vector<4x4x32xf32>
    %59 = arith.addf %50, %58 : vector<4x4x32xf32>
    %c0_30 = arith.constant 0 : index
    %c1_31 = arith.constant 1 : index
    %c2_32 = arith.constant 2 : index
    %c0_33 = arith.constant 0 : index
    %60 = vector.load %arg1[%c0_30, %c1_31, %c2_32, %c0_33] : memref<1x6x6x32xbf16, #tpu.memory_space<vmem>>, vector<1x4x4x32xbf16>
    %61 = vector.shape_cast %60 : vector<1x4x4x32xbf16> to vector<4x4x32xbf16>
    %62 = vector.extract_strided_slice %0 {offsets = [0, 5, 0], sizes = [1, 1, 32], strides = [1, 1, 1]} : vector<2x9x32xf32> to vector<1x1x32xf32>
    %63 = vector.shape_cast %62 : vector<1x1x32xf32> to vector<32xf32>
    %64 = arith.extf %61 : vector<4x4x32xbf16> to vector<4x4x32xf32>
    %65 = vector.shape_cast %63 : vector<32xf32> to vector<1x1x32xf32>
    %66 = vector.broadcast %65 : vector<1x1x32xf32> to vector<4x4x32xf32>
    %67 = arith.mulf %64, %66 : vector<4x4x32xf32>
    %68 = arith.addf %59, %67 : vector<4x4x32xf32>
    %c0_34 = arith.constant 0 : index
    %c2_35 = arith.constant 2 : index
    %c0_36 = arith.constant 0 : index
    %c0_37 = arith.constant 0 : index
    %69 = vector.load %arg1[%c0_34, %c2_35, %c0_36, %c0_37] : memref<1x6x6x32xbf16, #tpu.memory_space<vmem>>, vector<1x4x4x32xbf16>
    %70 = vector.shape_cast %69 : vector<1x4x4x32xbf16> to vector<4x4x32xbf16>
    %71 = vector.extract_strided_slice %0 {offsets = [0, 6, 0], sizes = [1, 1, 32], strides = [1, 1, 1]} : vector<2x9x32xf32> to vector<1x1x32xf32>
    %72 = vector.shape_cast %71 : vector<1x1x32xf32> to vector<32xf32>
    %73 = arith.extf %70 : vector<4x4x32xbf16> to vector<4x4x32xf32>
    %74 = vector.shape_cast %72 : vector<32xf32> to vector<1x1x32xf32>
    %75 = vector.broadcast %74 : vector<1x1x32xf32> to vector<4x4x32xf32>
    %76 = arith.mulf %73, %75 : vector<4x4x32xf32>
    %77 = arith.addf %68, %76 : vector<4x4x32xf32>
    %c0_38 = arith.constant 0 : index
    %c2_39 = arith.constant 2 : index
    %c1_40 = arith.constant 1 : index
    %c0_41 = arith.constant 0 : index
    %78 = vector.load %arg1[%c0_38, %c2_39, %c1_40, %c0_41] : memref<1x6x6x32xbf16, #tpu.memory_space<vmem>>, vector<1x4x4x32xbf16>
    %79 = vector.shape_cast %78 : vector<1x4x4x32xbf16> to vector<4x4x32xbf16>
    %80 = vector.extract_strided_slice %0 {offsets = [0, 7, 0], sizes = [1, 1, 32], strides = [1, 1, 1]} : vector<2x9x32xf32> to vector<1x1x32xf32>
    %81 = vector.shape_cast %80 : vector<1x1x32xf32> to vector<32xf32>
    %82 = arith.extf %79 : vector<4x4x32xbf16> to vector<4x4x32xf32>
    %83 = vector.shape_cast %81 : vector<32xf32> to vector<1x1x32xf32>
    %84 = vector.broadcast %83 : vector<1x1x32xf32> to vector<4x4x32xf32>
    %85 = arith.mulf %82, %84 : vector<4x4x32xf32>
    %86 = arith.addf %77, %85 : vector<4x4x32xf32>
    %c0_42 = arith.constant 0 : index
    %c2_43 = arith.constant 2 : index
    %c2_44 = arith.constant 2 : index
    %c0_45 = arith.constant 0 : index
    %87 = vector.load %arg1[%c0_42, %c2_43, %c2_44, %c0_45] : memref<1x6x6x32xbf16, #tpu.memory_space<vmem>>, vector<1x4x4x32xbf16>
    %88 = vector.shape_cast %87 : vector<1x4x4x32xbf16> to vector<4x4x32xbf16>
    %89 = vector.extract_strided_slice %0 {offsets = [0, 8, 0], sizes = [1, 1, 32], strides = [1, 1, 1]} : vector<2x9x32xf32> to vector<1x1x32xf32>
    %90 = vector.shape_cast %89 : vector<1x1x32xf32> to vector<32xf32>
    %91 = arith.extf %88 : vector<4x4x32xbf16> to vector<4x4x32xf32>
    %92 = vector.shape_cast %90 : vector<32xf32> to vector<1x1x32xf32>
    %93 = vector.broadcast %92 : vector<1x1x32xf32> to vector<4x4x32xf32>
    %94 = arith.mulf %91, %93 : vector<4x4x32xf32>
    %95 = arith.addf %86, %94 : vector<4x4x32xf32>
    %cst_46 = arith.constant 5.000000e-01 : f32
    %96 = vector.broadcast %cst_46 : f32 to vector<4x4x32xf32>
    %97 = arith.mulf %96, %95 : vector<4x4x32xf32>
    %cst_47 = arith.constant 4.471500e-02 : f32
    %98 = vector.broadcast %cst_47 : f32 to vector<4x4x32xf32>
    %99 = arith.mulf %98, %95 : vector<4x4x32xf32>
    %100 = arith.mulf %99, %95 : vector<4x4x32xf32>
    %101 = arith.mulf %100, %95 : vector<4x4x32xf32>
    %102 = arith.addf %95, %101 : vector<4x4x32xf32>
    %cst_48 = arith.constant 0.797884583 : f32
    %103 = vector.broadcast %cst_48 : f32 to vector<4x4x32xf32>
    %104 = arith.mulf %103, %102 : vector<4x4x32xf32>
    %105 = math.tanh %104 : vector<4x4x32xf32>
    %cst_49 = arith.constant 1.000000e+00 : f32
    %106 = vector.broadcast %cst_49 : f32 to vector<4x4x32xf32>
    %107 = arith.addf %106, %105 : vector<4x4x32xf32>
    %108 = arith.mulf %97, %107 : vector<4x4x32xf32>
    %109 = arith.truncf %108 : vector<4x4x32xf32> to vector<4x4x32xbf16>
    %110 = vector.shape_cast %109 : vector<4x4x32xbf16> to vector<16x32xbf16>
    %111 = vector.extract_strided_slice %2 {offsets = [0, 0, 0], sizes = [1, 32, 32], strides = [1, 1, 1]} : vector<2x32x32xbf16> to vector<1x32x32xbf16>
    %112 = vector.shape_cast %111 : vector<1x32x32xbf16> to vector<32x32xbf16>
    %cst_50 = arith.constant dense<0.000000e+00> : vector<16x32xf32>
    %113 = tpu.matmul %110, %112, %cst_50 {dimension_numbers = #tpu.dot_dimension_numbers<[1], [0], [0], [1], [0, 0, 1, 1], [], []>} : vector<16x32xbf16>, vector<32x32xbf16>, vector<16x32xf32> -> vector<16x32xf32>
    %114 = arith.addf %8, %113 : vector<16x32xf32>
    %cst_51 = arith.constant 0.000000e+00 : f32
    %115 = vector.broadcast %cst_51 : f32 to vector<4x4x32xf32>
    %116 = vector.extract_strided_slice %1 {offsets = [1, 0], sizes = [1, 32], strides = [1, 1]} : vector<2x32xf32> to vector<1x32xf32>
    %117 = vector.shape_cast %116 : vector<1x32xf32> to vector<32xf32>
    %118 = vector.shape_cast %117 : vector<32xf32> to vector<1x1x32xf32>
    %119 = vector.broadcast %118 : vector<1x1x32xf32> to vector<4x4x32xf32>
    %120 = arith.addf %115, %119 : vector<4x4x32xf32>
    %c0_52 = arith.constant 0 : index
    %c0_53 = arith.constant 0 : index
    %c0_54 = arith.constant 0 : index
    %c0_55 = arith.constant 0 : index
    %121 = vector.load %arg1[%c0_52, %c0_53, %c0_54, %c0_55] : memref<1x6x6x32xbf16, #tpu.memory_space<vmem>>, vector<1x4x4x32xbf16>
    %122 = vector.shape_cast %121 : vector<1x4x4x32xbf16> to vector<4x4x32xbf16>
    %123 = vector.extract_strided_slice %0 {offsets = [1, 0, 0], sizes = [1, 1, 32], strides = [1, 1, 1]} : vector<2x9x32xf32> to vector<1x1x32xf32>
    %124 = vector.shape_cast %123 : vector<1x1x32xf32> to vector<32xf32>
    %125 = arith.extf %122 : vector<4x4x32xbf16> to vector<4x4x32xf32>
    %126 = vector.shape_cast %124 : vector<32xf32> to vector<1x1x32xf32>
    %127 = vector.broadcast %126 : vector<1x1x32xf32> to vector<4x4x32xf32>
    %128 = arith.mulf %125, %127 : vector<4x4x32xf32>
    %129 = arith.addf %120, %128 : vector<4x4x32xf32>
    %c0_56 = arith.constant 0 : index
    %c0_57 = arith.constant 0 : index
    %c1_58 = arith.constant 1 : index
    %c0_59 = arith.constant 0 : index
    %130 = vector.load %arg1[%c0_56, %c0_57, %c1_58, %c0_59] : memref<1x6x6x32xbf16, #tpu.memory_space<vmem>>, vector<1x4x4x32xbf16>
    %131 = vector.shape_cast %130 : vector<1x4x4x32xbf16> to vector<4x4x32xbf16>
    %132 = vector.extract_strided_slice %0 {offsets = [1, 1, 0], sizes = [1, 1, 32], strides = [1, 1, 1]} : vector<2x9x32xf32> to vector<1x1x32xf32>
    %133 = vector.shape_cast %132 : vector<1x1x32xf32> to vector<32xf32>
    %134 = arith.extf %131 : vector<4x4x32xbf16> to vector<4x4x32xf32>
    %135 = vector.shape_cast %133 : vector<32xf32> to vector<1x1x32xf32>
    %136 = vector.broadcast %135 : vector<1x1x32xf32> to vector<4x4x32xf32>
    %137 = arith.mulf %134, %136 : vector<4x4x32xf32>
    %138 = arith.addf %129, %137 : vector<4x4x32xf32>
    %c0_60 = arith.constant 0 : index
    %c0_61 = arith.constant 0 : index
    %c2_62 = arith.constant 2 : index
    %c0_63 = arith.constant 0 : index
    %139 = vector.load %arg1[%c0_60, %c0_61, %c2_62, %c0_63] : memref<1x6x6x32xbf16, #tpu.memory_space<vmem>>, vector<1x4x4x32xbf16>
    %140 = vector.shape_cast %139 : vector<1x4x4x32xbf16> to vector<4x4x32xbf16>
    %141 = vector.extract_strided_slice %0 {offsets = [1, 2, 0], sizes = [1, 1, 32], strides = [1, 1, 1]} : vector<2x9x32xf32> to vector<1x1x32xf32>
    %142 = vector.shape_cast %141 : vector<1x1x32xf32> to vector<32xf32>
    %143 = arith.extf %140 : vector<4x4x32xbf16> to vector<4x4x32xf32>
    %144 = vector.shape_cast %142 : vector<32xf32> to vector<1x1x32xf32>
    %145 = vector.broadcast %144 : vector<1x1x32xf32> to vector<4x4x32xf32>
    %146 = arith.mulf %143, %145 : vector<4x4x32xf32>
    %147 = arith.addf %138, %146 : vector<4x4x32xf32>
    %c0_64 = arith.constant 0 : index
    %c1_65 = arith.constant 1 : index
    %c0_66 = arith.constant 0 : index
    %c0_67 = arith.constant 0 : index
    %148 = vector.load %arg1[%c0_64, %c1_65, %c0_66, %c0_67] : memref<1x6x6x32xbf16, #tpu.memory_space<vmem>>, vector<1x4x4x32xbf16>
    %149 = vector.shape_cast %148 : vector<1x4x4x32xbf16> to vector<4x4x32xbf16>
    %150 = vector.extract_strided_slice %0 {offsets = [1, 3, 0], sizes = [1, 1, 32], strides = [1, 1, 1]} : vector<2x9x32xf32> to vector<1x1x32xf32>
    %151 = vector.shape_cast %150 : vector<1x1x32xf32> to vector<32xf32>
    %152 = arith.extf %149 : vector<4x4x32xbf16> to vector<4x4x32xf32>
    %153 = vector.shape_cast %151 : vector<32xf32> to vector<1x1x32xf32>
    %154 = vector.broadcast %153 : vector<1x1x32xf32> to vector<4x4x32xf32>
    %155 = arith.mulf %152, %154 : vector<4x4x32xf32>
    %156 = arith.addf %147, %155 : vector<4x4x32xf32>
    %c0_68 = arith.constant 0 : index
    %c1_69 = arith.constant 1 : index
    %c1_70 = arith.constant 1 : index
    %c0_71 = arith.constant 0 : index
    %157 = vector.load %arg1[%c0_68, %c1_69, %c1_70, %c0_71] : memref<1x6x6x32xbf16, #tpu.memory_space<vmem>>, vector<1x4x4x32xbf16>
    %158 = vector.shape_cast %157 : vector<1x4x4x32xbf16> to vector<4x4x32xbf16>
    %159 = vector.extract_strided_slice %0 {offsets = [1, 4, 0], sizes = [1, 1, 32], strides = [1, 1, 1]} : vector<2x9x32xf32> to vector<1x1x32xf32>
    %160 = vector.shape_cast %159 : vector<1x1x32xf32> to vector<32xf32>
    %161 = arith.extf %158 : vector<4x4x32xbf16> to vector<4x4x32xf32>
    %162 = vector.shape_cast %160 : vector<32xf32> to vector<1x1x32xf32>
    %163 = vector.broadcast %162 : vector<1x1x32xf32> to vector<4x4x32xf32>
    %164 = arith.mulf %161, %163 : vector<4x4x32xf32>
    %165 = arith.addf %156, %164 : vector<4x4x32xf32>
    %c0_72 = arith.constant 0 : index
    %c1_73 = arith.constant 1 : index
    %c2_74 = arith.constant 2 : index
    %c0_75 = arith.constant 0 : index
    %166 = vector.load %arg1[%c0_72, %c1_73, %c2_74, %c0_75] : memref<1x6x6x32xbf16, #tpu.memory_space<vmem>>, vector<1x4x4x32xbf16>
    %167 = vector.shape_cast %166 : vector<1x4x4x32xbf16> to vector<4x4x32xbf16>
    %168 = vector.extract_strided_slice %0 {offsets = [1, 5, 0], sizes = [1, 1, 32], strides = [1, 1, 1]} : vector<2x9x32xf32> to vector<1x1x32xf32>
    %169 = vector.shape_cast %168 : vector<1x1x32xf32> to vector<32xf32>
    %170 = arith.extf %167 : vector<4x4x32xbf16> to vector<4x4x32xf32>
    %171 = vector.shape_cast %169 : vector<32xf32> to vector<1x1x32xf32>
    %172 = vector.broadcast %171 : vector<1x1x32xf32> to vector<4x4x32xf32>
    %173 = arith.mulf %170, %172 : vector<4x4x32xf32>
    %174 = arith.addf %165, %173 : vector<4x4x32xf32>
    %c0_76 = arith.constant 0 : index
    %c2_77 = arith.constant 2 : index
    %c0_78 = arith.constant 0 : index
    %c0_79 = arith.constant 0 : index
    %175 = vector.load %arg1[%c0_76, %c2_77, %c0_78, %c0_79] : memref<1x6x6x32xbf16, #tpu.memory_space<vmem>>, vector<1x4x4x32xbf16>
    %176 = vector.shape_cast %175 : vector<1x4x4x32xbf16> to vector<4x4x32xbf16>
    %177 = vector.extract_strided_slice %0 {offsets = [1, 6, 0], sizes = [1, 1, 32], strides = [1, 1, 1]} : vector<2x9x32xf32> to vector<1x1x32xf32>
    %178 = vector.shape_cast %177 : vector<1x1x32xf32> to vector<32xf32>
    %179 = arith.extf %176 : vector<4x4x32xbf16> to vector<4x4x32xf32>
    %180 = vector.shape_cast %178 : vector<32xf32> to vector<1x1x32xf32>
    %181 = vector.broadcast %180 : vector<1x1x32xf32> to vector<4x4x32xf32>
    %182 = arith.mulf %179, %181 : vector<4x4x32xf32>
    %183 = arith.addf %174, %182 : vector<4x4x32xf32>
    %c0_80 = arith.constant 0 : index
    %c2_81 = arith.constant 2 : index
    %c1_82 = arith.constant 1 : index
    %c0_83 = arith.constant 0 : index
    %184 = vector.load %arg1[%c0_80, %c2_81, %c1_82, %c0_83] : memref<1x6x6x32xbf16, #tpu.memory_space<vmem>>, vector<1x4x4x32xbf16>
    %185 = vector.shape_cast %184 : vector<1x4x4x32xbf16> to vector<4x4x32xbf16>
    %186 = vector.extract_strided_slice %0 {offsets = [1, 7, 0], sizes = [1, 1, 32], strides = [1, 1, 1]} : vector<2x9x32xf32> to vector<1x1x32xf32>
    %187 = vector.shape_cast %186 : vector<1x1x32xf32> to vector<32xf32>
    %188 = arith.extf %185 : vector<4x4x32xbf16> to vector<4x4x32xf32>
    %189 = vector.shape_cast %187 : vector<32xf32> to vector<1x1x32xf32>
    %190 = vector.broadcast %189 : vector<1x1x32xf32> to vector<4x4x32xf32>
    %191 = arith.mulf %188, %190 : vector<4x4x32xf32>
    %192 = arith.addf %183, %191 : vector<4x4x32xf32>
    %c0_84 = arith.constant 0 : index
    %c2_85 = arith.constant 2 : index
    %c2_86 = arith.constant 2 : index
    %c0_87 = arith.constant 0 : index
    %193 = vector.load %arg1[%c0_84, %c2_85, %c2_86, %c0_87] : memref<1x6x6x32xbf16, #tpu.memory_space<vmem>>, vector<1x4x4x32xbf16>
    %194 = vector.shape_cast %193 : vector<1x4x4x32xbf16> to vector<4x4x32xbf16>
    %195 = vector.extract_strided_slice %0 {offsets = [1, 8, 0], sizes = [1, 1, 32], strides = [1, 1, 1]} : vector<2x9x32xf32> to vector<1x1x32xf32>
    %196 = vector.shape_cast %195 : vector<1x1x32xf32> to vector<32xf32>
    %197 = arith.extf %194 : vector<4x4x32xbf16> to vector<4x4x32xf32>
    %198 = vector.shape_cast %196 : vector<32xf32> to vector<1x1x32xf32>
    %199 = vector.broadcast %198 : vector<1x1x32xf32> to vector<4x4x32xf32>
    %200 = arith.mulf %197, %199 : vector<4x4x32xf32>
    %201 = arith.addf %192, %200 : vector<4x4x32xf32>
    %cst_88 = arith.constant 5.000000e-01 : f32
    %202 = vector.broadcast %cst_88 : f32 to vector<4x4x32xf32>
    %203 = arith.mulf %202, %201 : vector<4x4x32xf32>
    %cst_89 = arith.constant 4.471500e-02 : f32
    %204 = vector.broadcast %cst_89 : f32 to vector<4x4x32xf32>
    %205 = arith.mulf %204, %201 : vector<4x4x32xf32>
    %206 = arith.mulf %205, %201 : vector<4x4x32xf32>
    %207 = arith.mulf %206, %201 : vector<4x4x32xf32>
    %208 = arith.addf %201, %207 : vector<4x4x32xf32>
    %cst_90 = arith.constant 0.797884583 : f32
    %209 = vector.broadcast %cst_90 : f32 to vector<4x4x32xf32>
    %210 = arith.mulf %209, %208 : vector<4x4x32xf32>
    %211 = math.tanh %210 : vector<4x4x32xf32>
    %cst_91 = arith.constant 1.000000e+00 : f32
    %212 = vector.broadcast %cst_91 : f32 to vector<4x4x32xf32>
    %213 = arith.addf %212, %211 : vector<4x4x32xf32>
    %214 = arith.mulf %203, %213 : vector<4x4x32xf32>
    %215 = arith.truncf %214 : vector<4x4x32xf32> to vector<4x4x32xbf16>
    %216 = vector.shape_cast %215 : vector<4x4x32xbf16> to vector<16x32xbf16>
    %217 = vector.extract_strided_slice %2 {offsets = [1, 0, 0], sizes = [1, 32, 32], strides = [1, 1, 1]} : vector<2x32x32xbf16> to vector<1x32x32xbf16>
    %218 = vector.shape_cast %217 : vector<1x32x32xbf16> to vector<32x32xbf16>
    %cst_92 = arith.constant dense<0.000000e+00> : vector<16x32xf32>
    %219 = tpu.matmul %216, %218, %cst_92 {dimension_numbers = #tpu.dot_dimension_numbers<[1], [0], [0], [1], [0, 0, 1, 1], [], []>} : vector<16x32xbf16>, vector<32x32xbf16>, vector<16x32xf32> -> vector<16x32xf32>
    %220 = arith.addf %114, %219 : vector<16x32xf32>
    %221 = arith.truncf %220 : vector<16x32xf32> to vector<16x32xbf16>
    %c0_93 = arith.constant 0 : index
    %c0_94 = arith.constant 0 : index
    %c0_95 = arith.constant 0 : index
    %222 = vector.load %arg7[%c0_93, %c0_94, %c0_95] : memref<1x16x32xbf16, #tpu.memory_space<vmem>>, vector<1x16x32xbf16>
    %223 = vector.shape_cast %222 : vector<1x16x32xbf16> to vector<16x32xbf16>
    %224 = vector.shape_cast %221 : vector<16x32xbf16> to vector<1x16x32xbf16>
    tpu.vector_store %arg7[%c0_93, %c0_94, %c0_95], %224 {strides = array<i32>} : memref<1x16x32xbf16, #tpu.memory_space<vmem>>, vector<1x16x32xbf16>,
    return
  }
  func.func @transform_0(%arg0: i32) -> (i32, i32, i32, i32) {
    %c0_i32 = arith.constant 0 : i32
    %c0_i32_0 = arith.constant 0 : i32
    %c0_i32_1 = arith.constant 0 : i32
    %c0_i32_2 = arith.constant 0 : i32
    return %arg0, %c0_i32, %c0_i32_0, %c0_i32_1 : i32, i32, i32, i32
  }
  func.func @transform_1(%arg0: i32) -> (i32, i32, i32) {
    %c0_i32 = arith.constant 0 : i32
    %c0_i32_0 = arith.constant 0 : i32
    %c0_i32_1 = arith.constant 0 : i32
    return %arg0, %c0_i32, %c0_i32_0 : i32, i32, i32
  }
  func.func @transform_2(%arg0: i32) -> (i32, i32, i32) {
    %c0_i32 = arith.constant 0 : i32
    %c0_i32_0 = arith.constant 0 : i32
    %c0_i32_1 = arith.constant 0 : i32
    %c0_i32_2 = arith.constant 0 : i32
    return %c0_i32, %c0_i32_0, %c0_i32_1 : i32, i32, i32
  }
  func.func @transform_3(%arg0: i32) -> (i32, i32) {
    %c0_i32 = arith.constant 0 : i32
    %c0_i32_0 = arith.constant 0 : i32
    %c0_i32_1 = arith.constant 0 : i32
    return %c0_i32, %c0_i32_0 : i32, i32
  }
  func.func @transform_4(%arg0: i32) -> (i32, i32, i32) {
    %c0_i32 = arith.constant 0 : i32
    %c0_i32_0 = arith.constant 0 : i32
    %c0_i32_1 = arith.constant 0 : i32
    %c0_i32_2 = arith.constant 0 : i32
    return %c0_i32, %c0_i32_0, %c0_i32_1 : i32, i32, i32
  }
  func.func @transform_5(%arg0: i32) -> (i32, i32) {
    %c0_i32 = arith.constant 0 : i32
    %c0_i32_0 = arith.constant 0 : i32
    %c0_i32_1 = arith.constant 0 : i32
    return %c0_i32, %c0_i32_0 : i32, i32
  }
  func.func @transform_6(%arg0: i32) -> (i32, i32, i32) {
    %c0_i32 = arith.constant 0 : i32
    %c0_i32_0 = arith.constant 0 : i32
    %c0_i32_1 = arith.constant 0 : i32
    return %arg0, %c0_i32, %c0_i32_0 : i32, i32, i32
  }
}

</mosaic_0001>

<llo_original>
// kernel: _lambda_.24
$region0: #{_lambda_.24}
  #allocation0 [shape = 'u32[]', space=smem, size = 0x4, offset = 0x4, fixed_abs, tag = 'smem constant byte address 0x4 - core index']
  #allocation1 [shape = 'u32[144,128]{1,0:T(1,128)}', space=vmem, size = 0x12000, scoped, tag = 'internal scratch']
  %s0 = inlined_call_operand.vmem [shape: bf16[8,16], index: 0, kind: input, shape index: {}]
  %s1 = inlined_call_operand.vmem [shape: bf16[16,32], index: 1, kind: input, shape index: {}]
  %s2 = inlined_call_operand.vmem [shape: f32[1,32], index: 2, kind: input, shape index: {}]
  %s3 = inlined_call_operand.vmem [shape: bf16[8,32], index: 3, kind: output, shape index: {}]
  %s4 = sld [smem:[#allocation0]]
  $region22: #{_lambda_.24} parent=0
    _
  %s6 = ssub.s32 1, %s4
  %s7 = scalar_select 0, %s6, %s4
  // Predicated region
  $region2: #{_lambda_.24} parent=0 // pred_check
    _
  $region3: #{_lambda_.24} parent=0 // pred_check_branch
    %9 = sbr.rel (0) target = $region5
  $region4: #{_lambda_.24} parent=0 // pred_region
    _
  $region5: #{_lambda_.24} parent=0 // pred_fallthru
    _
  // Predicated region
  $region6: #{_lambda_.24} parent=0 // pred_check
    _
  $region7: #{_lambda_.24} parent=0 // pred_check_branch
    %11 = sbr.rel (0) target = $region9
  $region8: #{_lambda_.24} parent=0 // pred_region
    _
  $region9: #{_lambda_.24} parent=0 // pred_fallthru
    _
  // Predicated region
  $region10: #{_lambda_.24} parent=0 // pred_check
    _
  $region11: #{_lambda_.24} parent=0 // pred_check_branch
    %13 = sbr.rel (0) target = $region13
  $region12: #{_lambda_.24} parent=0 // pred_region
    _
  $region13: #{_lambda_.24} parent=0 // pred_fallthru
    _
  %v15 = vld [vmem:[%s0] sm:$0xf]
  %v16 = vld [vmem:[%s1] sm:$0xf]
  %v17 = vld [vmem:[%s1 + $0x4] sm:$0xf]
  %v18 = vld [vmem:[%s2] sm:$0x1]
  %v20 = vlaneseq
  %v21 = vshrl.u32 %v20, 7
  %v22 = vsub.s32 0, %v21
  %v23 = vrot.slane %v18, %v22
  %v27 = vunpack.c.l.b16 %v16
  %v28 = vunpack.c.l.b16 %v17
  %v29 = vpack.c.b16 %v28, %v27
  %vm31 = vcmask 130048
  %v33 = vsel %vm31, %v15, 0
  %35 = vmatprep.subr.bf16.mxu0 0
  %36 = vmatpush1.bf16.msra.mxu0 %v29
  %37 = vmatprep.subr.bf16.mxu0 0
  %38 = vmatpush1.bf16.msra.mxu0 0
  %39 = vmatprep.subr.bf16.mxu0 0
  %40 = vmatpush1.bf16.msra.mxu0 0
  %41 = vmatprep.subr.bf16.mxu0 0
  %42 = vmatpush1.bf16.msra.mxu0 0
  %43 = vmatprep.subr.bf16.mxu0 0
  %44 = vmatpush1.bf16.msra.mxu0 0
  %45 = vmatprep.subr.bf16.mxu0 0
  %46 = vmatpush1.bf16.msra.mxu0 0
  %47 = vmatprep.subr.bf16.mxu0 0
  %48 = vmatpush1.bf16.msra.mxu0 0
  %49 = vmatprep.subr.bf16.mxu0 0
  %50 = vmatpush1.bf16.msra.mxu0 0
  %51 = vmatprep.subr.bf16.mxu0 0
  %52 = vmatpush1.bf16.msra.mxu0 0
  %53 = vmatprep.subr.bf16.mxu0 0
  %54 = vmatpush1.bf16.msra.mxu0 0
  %55 = vmatprep.subr.bf16.mxu0 0
  %56 = vmatpush1.bf16.msra.mxu0 0
  %57 = vmatprep.subr.bf16.mxu0 0
  %58 = vmatpush1.bf16.msra.mxu0 0
  %59 = vmatprep.subr.bf16.mxu0 0
  %60 = vmatpush1.bf16.msra.mxu0 0
  %61 = vmatprep.subr.bf16.mxu0 0
  %62 = vmatpush1.bf16.msra.mxu0 0
  %63 = vmatprep.subr.bf16.mxu0 0
  %64 = vmatpush1.bf16.msra.mxu0 0
  %65 = vmatprep.subr.bf16.mxu0 0
  %66 = vmatpush1.bf16.msra.mxu0 0
  %67 = vmatprep.mubr.bf16.mxu0 0
  %68 = vmatmul.mubr.bf16.gmra.mrb[0].mxu0 %v33
  %v69 = vpop.f32.mrb[0].mxu0
  %v70 = vadd.f32 %v23, %v69
  %v71 = vpop.f32.mrb[0].mxu0
  %v72 = vpop.f32.mrb[0].mxu0
  %v73 = vpop.f32.mrb[0].mxu0
  %74 = vdwg.mxu0
  %v75 = vpack.c.bf16 %v70, %v70
  %vm76 = vcmask 257024
  %77 = vst.msk [vmem:[%s3] sm:$0xf] %vm76, %v75
  // Predicated region
  $region14: #{_lambda_.24} parent=0 // pred_check
    _
  $region15: #{_lambda_.24} parent=0 // pred_check_branch
    %79 = sbr.rel (0) target = $region17
  $region16: #{_lambda_.24} parent=0 // pred_region
    _
  $region17: #{_lambda_.24} parent=0 // pred_fallthru
    _
  // Predicated region
  $region18: #{_lambda_.24} parent=0 // pred_check
    _
  $region19: #{_lambda_.24} parent=0 // pred_check_branch
    %81 = sbr.rel (0) target = $region21
  $region20: #{_lambda_.24} parent=0 // pred_region
    _
  $region21: #{_lambda_.24} parent=0 // pred_fallthru
    _

// kernel: _lambda_.20
$region0: #{_lambda_.20}
  #allocation0 [shape = 'u32[]', space=smem, size = 0x4, offset = 0x4, fixed_abs, tag = 'smem constant byte address 0x4 - core index']
  #allocation1 [shape = 'u32[144,128]{1,0:T(1,128)}', space=vmem, size = 0x12000, scoped, tag = 'internal scratch']
  %s0 = inlined_call_operand.vmem [shape: bf16[128,16], index: 0, kind: input, shape index: {}]
  %s1 = inlined_call_operand.vmem [shape: f32[1,16], index: 1, kind: input, shape index: {}]
  %s2 = inlined_call_operand.vmem [shape: f32[1,16], index: 2, kind: input, shape index: {}]
  %s3 = inlined_call_operand.vmem [shape: bf16[128,16], index: 3, kind: output, shape index: {}]
  %s4 = sld [smem:[#allocation0]]
  $region45: #{_lambda_.20} parent=0
    _
  %s6 = ssub.s32 1, %s4
  %s7 = scalar_select 0, %s6, %s4
  loop: start=0, step=1, limit=4
  $region2: #{_lambda_.20} parent=0 // loop_pre_header
    _
  $region3: #{_lambda_.20} parent=0 // loop_header
    %s9 = sphi 0, %s13
    %p10 = scmp.ge.s32.totalorder %s9, 4
    %s19 = sphi 0, %s21
    %s22 = sphi 0, %s19
    %s23 = sphi 0, %s22
    %s39 = sphi 0, %s23
    %s43 = sphi 0, %s43
    %s45 = sphi 0, %s43
    %s46 = sphi 0, %s45
    %s60 = sphi 0, %s46
    %s64 = sphi 0, %s64
    %s66 = sphi 0, %s64
    %s67 = sphi 0, %s66
    %s81 = sphi 0, %s67
    %s87 = sphi 0, %s89
    %s90 = sphi 0, %s87
    %s91 = sphi 0, %s90
    %s107 = sphi 0, %s91
  $region4: #{_lambda_.20} parent=0 // loop_header_branch
    %12 = sbr.rel (%p10) target = $region8
  $region5: #{_lambda_.20} parent=0 // loop_body
    %s14 = ssub.s32 %s9, 1
    %s15 = ssub.s32 %s9, 2
    %s16 = sadd.s32 %s9, 1
    %s17 = ssub.s32 %s9, %s16
    %p18 = scmp.eq.s32.totalorder %s17, 0
    %s20 = sadd.s32 %s19, 1
    %s21 = scalar_select %p18, %s19, %s20
    %p24 = pneg %p18
    %p25 = scmp.eq.s32.totalorder %s9, 1
    %p26 = por %p24, %p25
    %p27 = scmp.ne.s32.totalorder %s19, %s22
    %p28 = scmp.eq.s32.totalorder %s9, 0
    %p29 = por %p27, %p28
    %p30 = scmp.ne.s32.totalorder %s19, %s22
    %p31 = scmp.eq.s32.totalorder %s14, 1
    %p32 = por %p30, %p31
    %p33 = scmp.ne.s32.totalorder %s22, %s23
    %p34 = scmp.eq.s32.totalorder %s14, 0
    %p35 = por %p33, %p34
    %p36 = scmp.ne.s32.totalorder %s22, %s23
    %p37 = scmp.eq.s32.totalorder %s15, 1
    %p38 = por %p36, %p37
    %p40 = scmp.ne.s32.totalorder %s23, %s39
    %p41 = scmp.eq.s32.totalorder %s15, 0
    %p42 = por %p40, %p41
    %s44 = sadd.s32 %s43, 1
    %p47 = scmp.eq.s32.totalorder %s9, 1
    %p48 = scmp.ne.s32.totalorder %s43, %s45
    %p49 = scmp.eq.s32.totalorder %s9, 0
    %p50 = por %p48, %p49
    %p51 = scmp.ne.s32.totalorder %s43, %s45
    %p52 = scmp.eq.s32.totalorder %s14, 1
    %p53 = por %p51, %p52
    %p54 = scmp.ne.s32.totalorder %s45, %s46
    %p55 = scmp.eq.s32.totalorder %s14, 0
    %p56 = por %p54, %p55
    %p57 = scmp.ne.s32.totalorder %s45, %s46
    %p58 = scmp.eq.s32.totalorder %s15, 1
    %p59 = por %p57, %p58
    %p61 = scmp.ne.s32.totalorder %s46, %s60
    %p62 = scmp.eq.s32.totalorder %s15, 0
    %p63 = por %p61, %p62
    %s65 = sadd.s32 %s64, 1
    %p68 = scmp.eq.s32.totalorder %s9, 1
    %p69 = scmp.ne.s32.totalorder %s64, %s66
    %p70 = scmp.eq.s32.totalorder %s9, 0
    %p71 = por %p69, %p70
    %p72 = scmp.ne.s32.totalorder %s64, %s66
    %p73 = scmp.eq.s32.totalorder %s14, 1
    %p74 = por %p72, %p73
    %p75 = scmp.ne.s32.totalorder %s66, %s67
    %p76 = scmp.eq.s32.totalorder %s14, 0
    %p77 = por %p75, %p76
    %p78 = scmp.ne.s32.totalorder %s66, %s67
    %p79 = scmp.eq.s32.totalorder %s15, 1
    %p80 = por %p78, %p79
    %p82 = scmp.ne.s32.totalorder %s67, %s81
    %p83 = scmp.eq.s32.totalorder %s15, 0
    %p84 = por %p82, %p83
    %s85 = ssub.s32 %s9, %s16
    %p86 = scmp.eq.s32.totalorder %s85, 0
    %s88 = sadd.s32 %s87, 1
    %s89 = scalar_select %p86, %s87, %s88
    %p92 = pneg %p86
    %p93 = scmp.eq.s32.totalorder %s9, 1
    %p94 = por %p92, %p93
    %p95 = scmp.ne.s32.totalorder %s87, %s90
    %p96 = scmp.eq.s32.totalorder %s9, 0
    %p97 = por %p95, %p96
    %p98 = scmp.ne.s32.totalorder %s87, %s90
    %p99 = scmp.eq.s32.totalorder %s14, 1
    %p100 = por %p98, %p99
    %p101 = scmp.ne.s32.totalorder %s90, %s91
    %p102 = scmp.eq.s32.totalorder %s14, 0
    %p103 = por %p101, %p102
    %p104 = scmp.ne.s32.totalorder %s90, %s91
    %p105 = scmp.eq.s32.totalorder %s15, 1
    %p106 = por %p104, %p105
    %p108 = scmp.ne.s32.totalorder %s91, %s107
    %p109 = scmp.eq.s32.totalorder %s15, 0
    %p110 = por %p108, %p109
    %p111 = scmp.le.s32.totalorder 1, %s9
    %p112 = scmp.lt.s32.totalorder %s9, 3
    %p113 = pnand %p111, %p112
    %p114 = pneg %p113
    // Predicated region
    $region9: #{_lambda_.20} parent=5 // pred_check
      _
    $region10: #{_lambda_.20} parent=5 // pred_check_branch
      %116 = sbr.rel (%p113) target = $region12
    $region11: #{_lambda_.20} parent=5 // pred_region
      %s117 = ssub.s32 %s9, 1
      // Predicated region
      $region13: #{_lambda_.20} parent=11 // pred_check
        %p118 = pneg %p56
      $region14: #{_lambda_.20} parent=11 // pred_check_branch
        %120 = sbr.rel (%p118) target = $region16
      $region15: #{_lambda_.20} parent=11 // pred_region
        _
      $region16: #{_lambda_.20} parent=11 // pred_fallthru
        _
      // Predicated region
      $region17: #{_lambda_.20} parent=11 // pred_check
        %p121 = pneg %p77
      $region18: #{_lambda_.20} parent=11 // pred_check_branch
        %123 = sbr.rel (%p121) target = $region20
      $region19: #{_lambda_.20} parent=11 // pred_region
        _
      $region20: #{_lambda_.20} parent=11 // pred_fallthru
        _
    $region12: #{_lambda_.20} parent=5 // pred_fallthru
      _
    %p124 = scmp.lt.s32.totalorder %s9, 2
    // Predicated region
    $region21: #{_lambda_.20} parent=5 // pred_check
      %p125 = pneg %p124
    $region22: #{_lambda_.20} parent=5 // pred_check_branch
      %127 = sbr.rel (%p125) target = $region24
    $region23: #{_lambda_.20} parent=5 // pred_region
      // Predicated region
      $region25: #{_lambda_.20} parent=23 // pred_check
        %p128 = pneg %p29
      $region26: #{_lambda_.20} parent=23 // pred_check_branch
        %130 = sbr.rel (%p128) target = $region28
      $region27: #{_lambda_.20} parent=23 // pred_region
        %s131 = smul.u32 8, %s9
        %p132 = scmp.lt.s32.totalorder %s131, 15
        %s133 = scalar_select %p132, %s131, 15
        %s134 = smul.addr %s133, 4
        %s135 = scalar_lea.vmem %s0, %s134
        %s136 = smul.u32 8, %s9
      $region28: #{_lambda_.20} parent=23 // pred_fallthru
        _
    $region24: #{_lambda_.20} parent=5 // pred_fallthru
      _
    %p137 = scmp.le.s32.totalorder 1, %s9
    %p138 = scmp.lt.s32.totalorder %s9, 3
    %p139 = pnand %p137, %p138
    %p140 = pneg %p139
    // Predicated region
    $region29: #{_lambda_.20} parent=5 // pred_check
      _
    $region30: #{_lambda_.20} parent=5 // pred_check_branch
      %142 = sbr.rel (%p139) target = $region32
    $region31: #{_lambda_.20} parent=5 // pred_region
      %s143 = ssub.s32 %s9, 1
      %s144 = smul.u32 8, %s14
      %p145 = scmp.lt.s32.totalorder %s144, 15
      %s146 = scalar_select %p145, %s144, 15
      %s147 = smul.addr %s146, 4
      %s148 = scalar_lea.vmem %s0, %s147
      %p149 = pneg %p35
      %p150 = pneg %p32
      %p151 = pneg %p56
      %p152 = pneg %p53
      %p153 = pneg %p77
      %p154 = pneg %p74
      %p155 = pneg %p103
      %p156 = pneg %p100
      %s157 = smul.u32 8, %s14
      %p158 = scmp.lt.s32.totalorder %s157, 15
      %s159 = scalar_select %p158, %s157, 15
      %s160 = smul.addr %s159, 4
      %s161 = scalar_lea.vmem %s3, %s160
      %s162 = smul.u32 8, %s14
      %p163 = scmp.lt.s32.totalorder %s162, 15
      %s164 = scalar_select %p163, %s162, 15
      %s165 = smul.addr %s164, 4
      %s166 = scalar_lea.vmem %s0, %s165
      %s167 = smul.u32 8, %s14
      %s168 = smul.u32 8, %s14
      %p169 = scmp.lt.s32.totalorder %s168, 15
      %s170 = scalar_select %p169, %s168, 15
      %s171 = smul.addr %s170, 4
      %s172 = scalar_lea.vmem %s3, %s171
      %s173 = smul.u32 8, %s14
      %v174 = vld [vmem:[%s166] sm:$0xf]
      %v175 = vld [vmem:[%s166 + $0x4] sm:$0xf]
      %v176 = vld [vmem:[%s166 + $0x8] sm:$0xf]
      %v177 = vld [vmem:[%s166 + $0xc] sm:$0xf]
      %v178 = vld [vmem:[%s166 + $0x10] sm:$0xf]
      %v179 = vld [vmem:[%s166 + $0x14] sm:$0xf]
      %v180 = vld [vmem:[%s166 + $0x18] sm:$0xf]
      %v181 = vld [vmem:[%s166 + $0x1c] sm:$0xf]
      %v182 = vunpack.c.l.bf16 %v174
      %v183 = vunpack.c.l.bf16 %v175
      %v184 = vunpack.c.l.bf16 %v176
      %v185 = vunpack.c.l.bf16 %v177
      %v186 = vunpack.c.l.bf16 %v178
      %v187 = vunpack.c.l.bf16 %v179
      %v188 = vunpack.c.l.bf16 %v180
      %v189 = vunpack.c.l.bf16 %v181
      %v190 = vld [vmem:[%s1] sm:$0x1]
      %v191 = vld [vmem:[%s2] sm:$0x1]
      %vm192 = vcmask 130048
      %v193 = vsel %vm192, %v182, 0.0
      %194 = vadd.xlane.f32.xlu0 %v193
      %v195 = vpop.xlane.xlu0 %194
      %v196 = vsel %vm192, %v183, 0.0
      %197 = vadd.xlane.f32.xlu0 %v196
      %v198 = vpop.xlane.xlu0 %197
      %v199 = vsel %vm192, %v184, 0.0
      %200 = vadd.xlane.f32.xlu0 %v199
      %v201 = vpop.xlane.xlu0 %200
      %v202 = vsel %vm192, %v185, 0.0
      %203 = vadd.xlane.f32.xlu0 %v202
      %v204 = vpop.xlane.xlu0 %203
      %v205 = vsel %vm192, %v186, 0.0
      %206 = vadd.xlane.f32.xlu0 %v205
      %v207 = vpop.xlane.xlu0 %206
      %v208 = vsel %vm192, %v187, 0.0
      %209 = vadd.xlane.f32.xlu0 %v208
      %v210 = vpop.xlane.xlu0 %209
      %v211 = vsel %vm192, %v188, 0.0
      %212 = vadd.xlane.f32.xlu0 %v211
      %v213 = vpop.xlane.xlu0 %212
      %v214 = vsel %vm192, %v189, 0.0
      %215 = vadd.xlane.f32.xlu0 %v214
      %v216 = vpop.xlane.xlu0 %215
      %v217 = vrcp.pop 16.0
      %v218 = vmul.f32 %v195, %v217
      %v219 = vmul.f32 %v198, %v217
      %v220 = vmul.f32 %v201, %v217
      %v221 = vmul.f32 %v204, %v217
      %v222 = vmul.f32 %v207, %v217
      %v223 = vmul.f32 %v210, %v217
      %v224 = vmul.f32 %v213, %v217
      %v225 = vmul.f32 %v216, %v217
      %v226 = vsub.f32 %v182, %v218
      %v227 = vsub.f32 %v183, %v219
      %v228 = vsub.f32 %v184, %v220
      %v229 = vsub.f32 %v185, %v221
      %v230 = vsub.f32 %v186, %v222
      %v231 = vsub.f32 %v187, %v223
      %v232 = vsub.f32 %v188, %v224
      %v233 = vsub.f32 %v189, %v225
      %v234 = vmul.f32 %v226, %v226
      %v235 = vmul.f32 %v227, %v227
      %v236 = vmul.f32 %v228, %v228
      %v237 = vmul.f32 %v229, %v229
      %v238 = vmul.f32 %v230, %v230
      %v239 = vmul.f32 %v231, %v231
      %v240 = vmul.f32 %v232, %v232
      %v241 = vmul.f32 %v233, %v233
      %v242 = vsel %vm192, %v234, 0.0
      %243 = vadd.xlane.f32.xlu0 %v242
      %v244 = vpop.xlane.xlu0 %243
      %v245 = vsel %vm192, %v235, 0.0
      %246 = vadd.xlane.f32.xlu0 %v245
      %v247 = vpop.xlane.xlu0 %246
      %v248 = vsel %vm192, %v236, 0.0
      %249 = vadd.xlane.f32.xlu0 %v248
      %v250 = vpop.xlane.xlu0 %249
      %v251 = vsel %vm192, %v237, 0.0
      %252 = vadd.xlane.f32.xlu0 %v251
      %v253 = vpop.xlane.xlu0 %252
      %v254 = vsel %vm192, %v238, 0.0
      %255 = vadd.xlane.f32.xlu0 %v254
      %v256 = vpop.xlane.xlu0 %255
      %v257 = vsel %vm192, %v239, 0.0
      %258 = vadd.xlane.f32.xlu0 %v257
      %v259 = vpop.xlane.xlu0 %258
      %v260 = vsel %vm192, %v240, 0.0
      %261 = vadd.xlane.f32.xlu0 %v260
      %v262 = vpop.xlane.xlu0 %261
      %v263 = vsel %vm192, %v241, 0.0
      %264 = vadd.xlane.f32.xlu0 %v263
      %v265 = vpop.xlane.xlu0 %264
      %v266 = vmul.f32 %v244, %v217
      %v267 = vmul.f32 %v247, %v217
      %v268 = vmul.f32 %v250, %v217
      %v269 = vmul.f32 %v253, %v217
      %v270 = vmul.f32 %v256, %v217
      %v271 = vmul.f32 %v259, %v217
      %v272 = vmul.f32 %v262, %v217
      %v273 = vmul.f32 %v265, %v217
      %v274 = vadd.f32 %v266, 1e-05
      %v275 = vadd.f32 %v267, 1e-05
      %v276 = vadd.f32 %v268, 1e-05
      %v277 = vadd.f32 %v269, 1e-05
      %v278 = vadd.f32 %v270, 1e-05
      %v279 = vadd.f32 %v271, 1e-05
      %v280 = vadd.f32 %v272, 1e-05
      %v281 = vadd.f32 %v273, 1e-05
      %v282 = vrsqrt.pop %v274
      %v283 = vrsqrt.pop %v275
      %v284 = vrsqrt.pop %v276
      %v285 = vrsqrt.pop %v277
      %v286 = vrsqrt.pop %v278
      %v287 = vrsqrt.pop %v279
      %v288 = vrsqrt.pop %v280
      %v289 = vrsqrt.pop %v281
      %v290 = vmul.f32 %v226, %v282
      %v291 = vmul.f32 %v227, %v283
      %v292 = vmul.f32 %v228, %v284
      %v293 = vmul.f32 %v229, %v285
      %v294 = vmul.f32 %v230, %v286
      %v295 = vmul.f32 %v231, %v287
      %v296 = vmul.f32 %v232, %v288
      %v297 = vmul.f32 %v233, %v289
      %v299 = vlaneseq
      %v300 = vshrl.u32 %v299, 7
      %v301 = vsub.s32 0, %v300
      %v302 = vrot.slane %v190, %v301
      %v304 = vmul.f32 %v290, %v302
      %v305 = vmul.f32 %v291, %v302
      %v306 = vmul.f32 %v292, %v302
      %v307 = vmul.f32 %v293, %v302
      %v308 = vmul.f32 %v294, %v302
      %v309 = vmul.f32 %v295, %v302
      %v310 = vmul.f32 %v296, %v302
      %v311 = vmul.f32 %v297, %v302
      %v313 = vlaneseq
      %v314 = vshrl.u32 %v313, 7
      %v315 = vsub.s32 0, %v314
      %v316 = vrot.slane %v191, %v315
      %v318 = vadd.f32 %v304, %v316
      %v319 = vadd.f32 %v305, %v316
      %v320 = vadd.f32 %v306, %v316
      %v321 = vadd.f32 %v307, %v316
      %v322 = vadd.f32 %v308, %v316
      %v323 = vadd.f32 %v309, %v316
      %v324 = vadd.f32 %v310, %v316
      %v325 = vadd.f32 %v311, %v316
      %v326 = vpack.c.bf16 %v319, %v318
      %v327 = vpack.c.bf16 %v321, %v320
      %v328 = vpack.c.bf16 %v323, %v322
      %v329 = vpack.c.bf16 %v325, %v324
      %v334 = vunpack.c.l.b16 %v326
      %v335 = vunpack.c.h.b16 %v326
      %v336 = vunpack.c.l.b16 %v327
      %v337 = vunpack.c.h.b16 %v327
      %v338 = vunpack.c.l.b16 %v328
      %v339 = vunpack.c.h.b16 %v328
      %v340 = vunpack.c.l.b16 %v329
      %v341 = vunpack.c.h.b16 %v329
      %v342 = vpack.c.b16 %v334, %v334
      %v343 = vpack.c.b16 %v335, %v335
      %v344 = vpack.c.b16 %v336, %v336
      %v345 = vpack.c.b16 %v337, %v337
      %v346 = vpack.c.b16 %v338, %v338
      %v347 = vpack.c.b16 %v339, %v339
      %v348 = vpack.c.b16 %v340, %v340
      %v349 = vpack.c.b16 %v341, %v341
      %vm358 = vcmask 125952
      %359 = vst.msk [vmem:[%s172] sm:$0xf] %vm358, %v342
      %360 = vst.msk [vmem:[%s172 + $0x4] sm:$0xf] %vm358, %v343
      %361 = vst.msk [vmem:[%s172 + $0x8] sm:$0xf] %vm358, %v344
      %362 = vst.msk [vmem:[%s172 + $0xc] sm:$0xf] %vm358, %v345
      %363 = vst.msk [vmem:[%s172 + $0x10] sm:$0xf] %vm358, %v346
      %364 = vst.msk [vmem:[%s172 + $0x14] sm:$0xf] %vm358, %v347
      %365 = vst.msk [vmem:[%s172 + $0x18] sm:$0xf] %vm358, %v348
      %366 = vst.msk [vmem:[%s172 + $0x1c] sm:$0xf] %vm358, %v349
      %s367 = smul.u32 8, %s14
      %p368 = scmp.lt.s32.totalorder %s367, 15
      %s369 = scalar_select %p368, %s367, 15
      %s370 = smul.addr %s369, 4
      %s371 = scalar_lea.vmem %s3, %s370
      // Predicated region
      $region33: #{_lambda_.20} parent=31 // pred_check
        %p372 = pneg %p100
      $region34: #{_lambda_.20} parent=31 // pred_check_branch
        %374 = sbr.rel (%p372) target = $region36
      $region35: #{_lambda_.20} parent=31 // pred_region
        %s375 = smul.u32 8, %s14
      $region36: #{_lambda_.20} parent=31 // pred_fallthru
        _
    $region32: #{_lambda_.20} parent=5 // pred_fallthru
      _
    %p376 = scmp.le.s32.totalorder 2, %s9
    // Predicated region
    $region37: #{_lambda_.20} parent=5 // pred_check
      %p377 = pneg %p376
    $region38: #{_lambda_.20} parent=5 // pred_check_branch
      %379 = sbr.rel (%p377) target = $region40
    $region39: #{_lambda_.20} parent=5 // pred_region
      %s380 = ssub.s32 %s9, 2
      // Predicated region
      $region41: #{_lambda_.20} parent=39 // pred_check
        %p381 = pneg %p106
      $region42: #{_lambda_.20} parent=39 // pred_check_branch
        %383 = sbr.rel (%p381) target = $region44
      $region43: #{_lambda_.20} parent=39 // pred_region
        %s384 = smul.u32 8, %s15
        %p385 = scmp.lt.s32.totalorder %s384, 15
        %s386 = scalar_select %p385, %s384, 15
        %s387 = smul.addr %s386, 4
        %s388 = scalar_lea.vmem %s3, %s387
      $region44: #{_lambda_.20} parent=39 // pred_fallthru
        _
    $region40: #{_lambda_.20} parent=5 // pred_fallthru
      _
  $region6: #{_lambda_.20} parent=0 // loop_footer
    %s13 = sadd.s32 1, %s9
  $region7: #{_lambda_.20} parent=0 // loop_footer_branch
    %8 = sbr.rel target = $region3
  $region8: #{_lambda_.20} parent=0 // loop_exit
    _

// kernel: _lambda_.23
$region0: #{_lambda_.23}
  #allocation0 [shape = 'u32[]', space=smem, size = 0x4, offset = 0x4, fixed_abs, tag = 'smem constant byte address 0x4 - core index']
  #allocation1 [shape = 'u32[144,128]{1,0:T(1,128)}', space=vmem, size = 0x12000, scoped, tag = 'internal scratch']
  %s0 = inlined_call_operand.vmem [shape: bf16[8,256], index: 0, kind: input, shape index: {}]
  %s1 = inlined_call_operand.vmem [shape: bf16[256,16], index: 1, kind: input, shape index: {}]
  %s2 = inlined_call_operand.vmem [shape: f32[1,16], index: 2, kind: input, shape index: {}]
  %s3 = inlined_call_operand.vmem [shape: f32[1,16], index: 3, kind: input, shape index: {}]
  %s4 = inlined_call_operand.vmem [shape: f32[1,16], index: 4, kind: input, shape index: {}]
  %s5 = inlined_call_operand.vmem [shape: bf16[8,16], index: 5, kind: output, shape index: {}]
  %s6 = sld [smem:[#allocation0]]
  $region30: #{_lambda_.23} parent=0
    _
  %s8 = ssub.s32 1, %s6
  %s9 = scalar_select 0, %s8, %s6
  // Predicated region
  $region2: #{_lambda_.23} parent=0 // pred_check
    _
  $region3: #{_lambda_.23} parent=0 // pred_check_branch
    %11 = sbr.rel (0) target = $region5
  $region4: #{_lambda_.23} parent=0 // pred_region
    _
  $region5: #{_lambda_.23} parent=0 // pred_fallthru
    _
  // Predicated region
  $region6: #{_lambda_.23} parent=0 // pred_check
    _
  $region7: #{_lambda_.23} parent=0 // pred_check_branch
    %13 = sbr.rel (0) target = $region9
  $region8: #{_lambda_.23} parent=0 // pred_region
    _
  $region9: #{_lambda_.23} parent=0 // pred_fallthru
    _
  // Predicated region
  $region10: #{_lambda_.23} parent=0 // pred_check
    _
  $region11: #{_lambda_.23} parent=0 // pred_check_branch
    %15 = sbr.rel (0) target = $region13
  $region12: #{_lambda_.23} parent=0 // pred_region
    _
  $region13: #{_lambda_.23} parent=0 // pred_fallthru
    _
  // Predicated region
  $region14: #{_lambda_.23} parent=0 // pred_check
    _
  $region15: #{_lambda_.23} parent=0 // pred_check_branch
    %17 = sbr.rel (0) target = $region17
  $region16: #{_lambda_.23} parent=0 // pred_region
    _
  $region17: #{_lambda_.23} parent=0 // pred_fallthru
    _
  // Predicated region
  $region18: #{_lambda_.23} parent=0 // pred_check
    _
  $region19: #{_lambda_.23} parent=0 // pred_check_branch
    %19 = sbr.rel (0) target = $region21
  $region20: #{_lambda_.23} parent=0 // pred_region
    _
  $region21: #{_lambda_.23} parent=0 // pred_fallthru
    _
  %v21 = vld [vmem:[%s0] sm:$0xff]
  %v22 = vld [vmem:[%s1] sm:$0xf]
  %v23 = vld [vmem:[%s1 + $0x4] sm:$0xf]
  %v24 = vld [vmem:[%s1 + $0x8] sm:$0xf]
  %v25 = vld [vmem:[%s1 + $0xc] sm:$0xf]
  %v26 = vld [vmem:[%s1 + $0x10] sm:$0xf]
  %v27 = vld [vmem:[%s1 + $0x14] sm:$0xf]
  %v28 = vld [vmem:[%s1 + $0x18] sm:$0xf]
  %v29 = vld [vmem:[%s1 + $0x1c] sm:$0xf]
  %v30 = vld [vmem:[%s1 + $0x20] sm:$0xf]
  %v31 = vld [vmem:[%s1 + $0x24] sm:$0xf]
  %v32 = vld [vmem:[%s1 + $0x28] sm:$0xf]
  %v33 = vld [vmem:[%s1 + $0x2c] sm:$0xf]
  %v34 = vld [vmem:[%s1 + $0x30] sm:$0xf]
  %v35 = vld [vmem:[%s1 + $0x34] sm:$0xf]
  %v36 = vld [vmem:[%s1 + $0x38] sm:$0xf]
  %v37 = vld [vmem:[%s1 + $0x3c] sm:$0xf]
  %v38 = vld [vmem:[%s1 + $0x40] sm:$0xf]
  %v39 = vld [vmem:[%s1 + $0x44] sm:$0xf]
  %v40 = vld [vmem:[%s1 + $0x48] sm:$0xf]
  %v41 = vld [vmem:[%s1 + $0x4c] sm:$0xf]
  %v42 = vld [vmem:[%s1 + $0x50] sm:$0xf]
  %v43 = vld [vmem:[%s1 + $0x54] sm:$0xf]
  %v44 = vld [vmem:[%s1 + $0x58] sm:$0xf]
  %v45 = vld [vmem:[%s1 + $0x5c] sm:$0xf]
  %v46 = vld [vmem:[%s1 + $0x60] sm:$0xf]
  %v47 = vld [vmem:[%s1 + $0x64] sm:$0xf]
  %v48 = vld [vmem:[%s1 + $0x68] sm:$0xf]
  %v49 = vld [vmem:[%s1 + $0x6c] sm:$0xf]
  %v50 = vld [vmem:[%s1 + $0x70] sm:$0xf]
  %v51 = vld [vmem:[%s1 + $0x74] sm:$0xf]
  %v52 = vld [vmem:[%s1 + $0x78] sm:$0xf]
  %v53 = vld [vmem:[%s1 + $0x7c] sm:$0xf]
  %v54 = vld [vmem:[%s2] sm:$0x1]
  %v56 = vlaneseq
  %v57 = vshrl.u32 %v56, 7
  %v58 = vsub.s32 0, %v57
  %v59 = vrot.slane %v54, %v58
  %v62 = vunpack.c.l.b16 %v21
  %v63 = vunpack.c.h.b16 %v21
  %v64 = vpack.c.b16 %v62, %v62
  %v65 = vpack.c.b16 %v63, %v63
  %v100 = vunpack.c.l.b16 %v22
  %v101 = vunpack.c.l.b16 %v23
  %v102 = vunpack.c.l.b16 %v24
  %v103 = vunpack.c.l.b16 %v25
  %v104 = vunpack.c.l.b16 %v26
  %v105 = vunpack.c.l.b16 %v27
  %v106 = vunpack.c.l.b16 %v28
  %v107 = vunpack.c.l.b16 %v29
  %v108 = vunpack.c.l.b16 %v30
  %v109 = vunpack.c.l.b16 %v31
  %v110 = vunpack.c.l.b16 %v32
  %v111 = vunpack.c.l.b16 %v33
  %v112 = vunpack.c.l.b16 %v34
  %v113 = vunpack.c.l.b16 %v35
  %v114 = vunpack.c.l.b16 %v36
  %v115 = vunpack.c.l.b16 %v37
  %v116 = vunpack.c.l.b16 %v38
  %v117 = vunpack.c.l.b16 %v39
  %v118 = vunpack.c.l.b16 %v40
  %v119 = vunpack.c.l.b16 %v41
  %v120 = vunpack.c.l.b16 %v42
  %v121 = vunpack.c.l.b16 %v43
  %v122 = vunpack.c.l.b16 %v44
  %v123 = vunpack.c.l.b16 %v45
  %v124 = vunpack.c.l.b16 %v46
  %v125 = vunpack.c.l.b16 %v47
  %v126 = vunpack.c.l.b16 %v48
  %v127 = vunpack.c.l.b16 %v49
  %v128 = vunpack.c.l.b16 %v50
  %v129 = vunpack.c.l.b16 %v51
  %v130 = vunpack.c.l.b16 %v52
  %v131 = vunpack.c.l.b16 %v53
  %v132 = vpack.c.b16 %v101, %v100
  %v133 = vpack.c.b16 %v103, %v102
  %v134 = vpack.c.b16 %v105, %v104
  %v135 = vpack.c.b16 %v107, %v106
  %v136 = vpack.c.b16 %v109, %v108
  %v137 = vpack.c.b16 %v111, %v110
  %v138 = vpack.c.b16 %v113, %v112
  %v139 = vpack.c.b16 %v115, %v114
  %v140 = vpack.c.b16 %v117, %v116
  %v141 = vpack.c.b16 %v119, %v118
  %v142 = vpack.c.b16 %v121, %v120
  %v143 = vpack.c.b16 %v123, %v122
  %v144 = vpack.c.b16 %v125, %v124
  %v145 = vpack.c.b16 %v127, %v126
  %v146 = vpack.c.b16 %v129, %v128
  %v147 = vpack.c.b16 %v131, %v130
  %164 = vmatprep.subr.bf16.mxu0 0
  %165 = vmatpush1.bf16.msra.mxu0 %v132
  %166 = vmatprep.subr.bf16.mxu0 0
  %167 = vmatpush1.bf16.msra.mxu0 %v133
  %168 = vmatprep.subr.bf16.mxu0 0
  %169 = vmatpush1.bf16.msra.mxu0 %v134
  %170 = vmatprep.subr.bf16.mxu0 0
  %171 = vmatpush1.bf16.msra.mxu0 %v135
  %172 = vmatprep.subr.bf16.mxu0 0
  %173 = vmatpush1.bf16.msra.mxu0 %v136
  %174 = vmatprep.subr.bf16.mxu0 0
  %175 = vmatpush1.bf16.msra.mxu0 %v137
  %176 = vmatprep.subr.bf16.mxu0 0
  %177 = vmatpush1.bf16.msra.mxu0 %v138
  %178 = vmatprep.subr.bf16.mxu0 0
  %179 = vmatpush1.bf16.msra.mxu0 %v139
  %180 = vmatprep.subr.bf16.mxu0 0
  %181 = vmatpush1.bf16.msra.mxu0 %v140
  %182 = vmatprep.subr.bf16.mxu0 0
  %183 = vmatpush1.bf16.msra.mxu0 %v141
  %184 = vmatprep.subr.bf16.mxu0 0
  %185 = vmatpush1.bf16.msra.mxu0 %v142
  %186 = vmatprep.subr.bf16.mxu0 0
  %187 = vmatpush1.bf16.msra.mxu0 %v143
  %188 = vmatprep.subr.bf16.mxu0 0
  %189 = vmatpush1.bf16.msra.mxu0 %v144
  %190 = vmatprep.subr.bf16.mxu0 0
  %191 = vmatpush1.bf16.msra.mxu0 %v145
  %192 = vmatprep.subr.bf16.mxu0 0
  %193 = vmatpush1.bf16.msra.mxu0 %v146
  %194 = vmatprep.subr.bf16.mxu0 0
  %195 = vmatpush1.bf16.msra.mxu0 %v147
  %196 = vmatprep.mubr.bf16.mxu0 %v65
  %197 = vmatmul.mubr.bf16.gmra.mrb[0].mxu0 %v64
  %v198 = vpop.f32.mrb[0].mxu0
  %v199 = vadd.f32 %v59, %v198
  %v200 = vpop.f32.mrb[0].mxu0
  %v201 = vpop.f32.mrb[0].mxu0
  %v202 = vpop.f32.mrb[0].mxu0
  %203 = vdwg.mxu0
  %v204 = vld [vmem:[%s3] sm:$0x1]
  %v205 = vld [vmem:[%s4] sm:$0x1]
  %vm206 = vcmask 130048
  %v207 = vsel %vm206, %v199, 0.0
  %208 = vadd.xlane.f32.xlu0 %v207
  %v209 = vpop.xlane.xlu0 %208
  %v210 = vrcp.pop 16.0
  %v211 = vmul.f32 %v209, %v210
  %v212 = vsub.f32 %v199, %v211
  %v213 = vmul.f32 %v212, %v212
  %v214 = vsel %vm206, %v213, 0.0
  %215 = vadd.xlane.f32.xlu0 %v214
  %v216 = vpop.xlane.xlu0 %215
  %v217 = vmul.f32 %v216, %v210
  %v218 = vadd.f32 %v217, 1e-05
  %v219 = vrsqrt.pop %v218
  %v220 = vmul.f32 %v212, %v219
  %v222 = vlaneseq
  %v223 = vshrl.u32 %v222, 7
  %v224 = vsub.s32 0, %v223
  %v225 = vrot.slane %v204, %v224
  %v227 = vmul.f32 %v220, %v225
  %v229 = vlaneseq
  %v230 = vshrl.u32 %v229, 7
  %v231 = vsub.s32 0, %v230
  %v232 = vrot.slane %v205, %v231
  %v234 = vadd.f32 %v227, %v232
  %v235 = vpack.c.bf16 %v234, %v234
  %vm236 = vcmask 125952
  %237 = vst.msk [vmem:[%s5] sm:$0xf] %vm236, %v235
  // Predicated region
  $region22: #{_lambda_.23} parent=0 // pred_check
    _
  $region23: #{_lambda_.23} parent=0 // pred_check_branch
    %239 = sbr.rel (0) target = $region25
  $region24: #{_lambda_.23} parent=0 // pred_region
    _
  $region25: #{_lambda_.23} parent=0 // pred_fallthru
    _
  // Predicated region
  $region26: #{_lambda_.23} parent=0 // pred_check
    _
  $region27: #{_lambda_.23} parent=0 // pred_check_branch
    %241 = sbr.rel (0) target = $region29
  $region28: #{_lambda_.23} parent=0 // pred_region
    _
  $region29: #{_lambda_.23} parent=0 // pred_fallthru
    _

// kernel: _lambda_.21
$region0: #{_lambda_.21}
  #allocation0 [shape = 'u32[]', space=smem, size = 0x4, offset = 0x4, fixed_abs, tag = 'smem constant byte address 0x4 - core index']
  #allocation1 [shape = 'u32[144,128]{1,0:T(1,128)}', space=vmem, size = 0x12000, scoped, tag = 'internal scratch']
  %s0 = inlined_call_operand.vmem [shape: bf16[128,16], index: 0, kind: input, shape index: {}]
  %s1 = inlined_call_operand.vmem [shape: f32[1,16], index: 1, kind: input, shape index: {}]
  %s2 = inlined_call_operand.vmem [shape: f32[1,16], index: 2, kind: input, shape index: {}]
  %s3 = inlined_call_operand.vmem [shape: bf16[16,16], index: 3, kind: input, shape index: {}]
  %s4 = inlined_call_operand.vmem [shape: f32[1,16], index: 4, kind: input, shape index: {}]
  %s5 = inlined_call_operand.vmem [shape: bf16[128,16], index: 5, kind: output, shape index: {}]
  %s6 = sld [smem:[#allocation0]]
  $region53: #{_lambda_.21} parent=0
    _
  %s8 = ssub.s32 1, %s6
  %s9 = scalar_select 0, %s8, %s6
  loop: start=0, step=1, limit=4
  $region2: #{_lambda_.21} parent=0 // loop_pre_header
    _
  $region3: #{_lambda_.21} parent=0 // loop_header
    %s11 = sphi 0, %s15
    %p12 = scmp.ge.s32.totalorder %s11, 4
    %s21 = sphi 0, %s23
    %s24 = sphi 0, %s21
    %s25 = sphi 0, %s24
    %s41 = sphi 0, %s25
    %s45 = sphi 0, %s45
    %s47 = sphi 0, %s45
    %s48 = sphi 0, %s47
    %s62 = sphi 0, %s48
    %s66 = sphi 0, %s66
    %s68 = sphi 0, %s66
    %s69 = sphi 0, %s68
    %s83 = sphi 0, %s69
    %s87 = sphi 0, %s87
    %s89 = sphi 0, %s87
    %s90 = sphi 0, %s89
    %s104 = sphi 0, %s90
    %s108 = sphi 0, %s108
    %s110 = sphi 0, %s108
    %s111 = sphi 0, %s110
    %s125 = sphi 0, %s111
    %s131 = sphi 0, %s133
    %s134 = sphi 0, %s131
    %s135 = sphi 0, %s134
    %s151 = sphi 0, %s135
  $region4: #{_lambda_.21} parent=0 // loop_header_branch
    %14 = sbr.rel (%p12) target = $region8
  $region5: #{_lambda_.21} parent=0 // loop_body
    %s16 = ssub.s32 %s11, 1
    %s17 = ssub.s32 %s11, 2
    %s18 = sadd.s32 %s11, 1
    %s19 = ssub.s32 %s11, %s18
    %p20 = scmp.eq.s32.totalorder %s19, 0
    %s22 = sadd.s32 %s21, 1
    %s23 = scalar_select %p20, %s21, %s22
    %p26 = pneg %p20
    %p27 = scmp.eq.s32.totalorder %s11, 1
    %p28 = por %p26, %p27
    %p29 = scmp.ne.s32.totalorder %s21, %s24
    %p30 = scmp.eq.s32.totalorder %s11, 0
    %p31 = por %p29, %p30
    %p32 = scmp.ne.s32.totalorder %s21, %s24
    %p33 = scmp.eq.s32.totalorder %s16, 1
    %p34 = por %p32, %p33
    %p35 = scmp.ne.s32.totalorder %s24, %s25
    %p36 = scmp.eq.s32.totalorder %s16, 0
    %p37 = por %p35, %p36
    %p38 = scmp.ne.s32.totalorder %s24, %s25
    %p39 = scmp.eq.s32.totalorder %s17, 1
    %p40 = por %p38, %p39
    %p42 = scmp.ne.s32.totalorder %s25, %s41
    %p43 = scmp.eq.s32.totalorder %s17, 0
    %p44 = por %p42, %p43
    %s46 = sadd.s32 %s45, 1
    %p49 = scmp.eq.s32.totalorder %s11, 1
    %p50 = scmp.ne.s32.totalorder %s45, %s47
    %p51 = scmp.eq.s32.totalorder %s11, 0
    %p52 = por %p50, %p51
    %p53 = scmp.ne.s32.totalorder %s45, %s47
    %p54 = scmp.eq.s32.totalorder %s16, 1
    %p55 = por %p53, %p54
    %p56 = scmp.ne.s32.totalorder %s47, %s48
    %p57 = scmp.eq.s32.totalorder %s16, 0
    %p58 = por %p56, %p57
    %p59 = scmp.ne.s32.totalorder %s47, %s48
    %p60 = scmp.eq.s32.totalorder %s17, 1
    %p61 = por %p59, %p60
    %p63 = scmp.ne.s32.totalorder %s48, %s62
    %p64 = scmp.eq.s32.totalorder %s17, 0
    %p65 = por %p63, %p64
    %s67 = sadd.s32 %s66, 1
    %p70 = scmp.eq.s32.totalorder %s11, 1
    %p71 = scmp.ne.s32.totalorder %s66, %s68
    %p72 = scmp.eq.s32.totalorder %s11, 0
    %p73 = por %p71, %p72
    %p74 = scmp.ne.s32.totalorder %s66, %s68
    %p75 = scmp.eq.s32.totalorder %s16, 1
    %p76 = por %p74, %p75
    %p77 = scmp.ne.s32.totalorder %s68, %s69
    %p78 = scmp.eq.s32.totalorder %s16, 0
    %p79 = por %p77, %p78
    %p80 = scmp.ne.s32.totalorder %s68, %s69
    %p81 = scmp.eq.s32.totalorder %s17, 1
    %p82 = por %p80, %p81
    %p84 = scmp.ne.s32.totalorder %s69, %s83
    %p85 = scmp.eq.s32.totalorder %s17, 0
    %p86 = por %p84, %p85
    %s88 = sadd.s32 %s87, 1
    %p91 = scmp.eq.s32.totalorder %s11, 1
    %p92 = scmp.ne.s32.totalorder %s87, %s89
    %p93 = scmp.eq.s32.totalorder %s11, 0
    %p94 = por %p92, %p93
    %p95 = scmp.ne.s32.totalorder %s87, %s89
    %p96 = scmp.eq.s32.totalorder %s16, 1
    %p97 = por %p95, %p96
    %p98 = scmp.ne.s32.totalorder %s89, %s90
    %p99 = scmp.eq.s32.totalorder %s16, 0
    %p100 = por %p98, %p99
    %p101 = scmp.ne.s32.totalorder %s89, %s90
    %p102 = scmp.eq.s32.totalorder %s17, 1
    %p103 = por %p101, %p102
    %p105 = scmp.ne.s32.totalorder %s90, %s104
    %p106 = scmp.eq.s32.totalorder %s17, 0
    %p107 = por %p105, %p106
    %s109 = sadd.s32 %s108, 1
    %p112 = scmp.eq.s32.totalorder %s11, 1
    %p113 = scmp.ne.s32.totalorder %s108, %s110
    %p114 = scmp.eq.s32.totalorder %s11, 0
    %p115 = por %p113, %p114
    %p116 = scmp.ne.s32.totalorder %s108, %s110
    %p117 = scmp.eq.s32.totalorder %s16, 1
    %p118 = por %p116, %p117
    %p119 = scmp.ne.s32.totalorder %s110, %s111
    %p120 = scmp.eq.s32.totalorder %s16, 0
    %p121 = por %p119, %p120
    %p122 = scmp.ne.s32.totalorder %s110, %s111
    %p123 = scmp.eq.s32.totalorder %s17, 1
    %p124 = por %p122, %p123
    %p126 = scmp.ne.s32.totalorder %s111, %s125
    %p127 = scmp.eq.s32.totalorder %s17, 0
    %p128 = por %p126, %p127
    %s129 = ssub.s32 %s11, %s18
    %p130 = scmp.eq.s32.totalorder %s129, 0
    %s132 = sadd.s32 %s131, 1
    %s133 = scalar_select %p130, %s131, %s132
    %p136 = pneg %p130
    %p137 = scmp.eq.s32.totalorder %s11, 1
    %p138 = por %p136, %p137
    %p139 = scmp.ne.s32.totalorder %s131, %s134
    %p140 = scmp.eq.s32.totalorder %s11, 0
    %p141 = por %p139, %p140
    %p142 = scmp.ne.s32.totalorder %s131, %s134
    %p143 = scmp.eq.s32.totalorder %s16, 1
    %p144 = por %p142, %p143
    %p145 = scmp.ne.s32.totalorder %s134, %s135
    %p146 = scmp.eq.s32.totalorder %s16, 0
    %p147 = por %p145, %p146
    %p148 = scmp.ne.s32.totalorder %s134, %s135
    %p149 = scmp.eq.s32.totalorder %s17, 1
    %p150 = por %p148, %p149
    %p152 = scmp.ne.s32.totalorder %s135, %s151
    %p153 = scmp.eq.s32.totalorder %s17, 0
    %p154 = por %p152, %p153
    %p155 = scmp.le.s32.totalorder 1, %s11
    %p156 = scmp.lt.s32.totalorder %s11, 3
    %p157 = pnand %p155, %p156
    %p158 = pneg %p157
    // Predicated region
    $region9: #{_lambda_.21} parent=5 // pred_check
      _
    $region10: #{_lambda_.21} parent=5 // pred_check_branch
      %160 = sbr.rel (%p157) target = $region12
    $region11: #{_lambda_.21} parent=5 // pred_region
      %s161 = ssub.s32 %s11, 1
      // Predicated region
      $region13: #{_lambda_.21} parent=11 // pred_check
        %p162 = pneg %p58
      $region14: #{_lambda_.21} parent=11 // pred_check_branch
        %164 = sbr.rel (%p162) target = $region16
      $region15: #{_lambda_.21} parent=11 // pred_region
        _
      $region16: #{_lambda_.21} parent=11 // pred_fallthru
        _
      // Predicated region
      $region17: #{_lambda_.21} parent=11 // pred_check
        %p165 = pneg %p79
      $region18: #{_lambda_.21} parent=11 // pred_check_branch
        %167 = sbr.rel (%p165) target = $region20
      $region19: #{_lambda_.21} parent=11 // pred_region
        _
      $region20: #{_lambda_.21} parent=11 // pred_fallthru
        _
      // Predicated region
      $region21: #{_lambda_.21} parent=11 // pred_check
        %p168 = pneg %p100
      $region22: #{_lambda_.21} parent=11 // pred_check_branch
        %170 = sbr.rel (%p168) target = $region24
      $region23: #{_lambda_.21} parent=11 // pred_region
        _
      $region24: #{_lambda_.21} parent=11 // pred_fallthru
        _
      // Predicated region
      $region25: #{_lambda_.21} parent=11 // pred_check
        %p171 = pneg %p121
      $region26: #{_lambda_.21} parent=11 // pred_check_branch
        %173 = sbr.rel (%p171) target = $region28
      $region27: #{_lambda_.21} parent=11 // pred_region
        _
      $region28: #{_lambda_.21} parent=11 // pred_fallthru
        _
    $region12: #{_lambda_.21} parent=5 // pred_fallthru
      _
    %p174 = scmp.lt.s32.totalorder %s11, 2
    // Predicated region
    $region29: #{_lambda_.21} parent=5 // pred_check
      %p175 = pneg %p174
    $region30: #{_lambda_.21} parent=5 // pred_check_branch
      %177 = sbr.rel (%p175) target = $region32
    $region31: #{_lambda_.21} parent=5 // pred_region
      // Predicated region
      $region33: #{_lambda_.21} parent=31 // pred_check
        %p178 = pneg %p31
      $region34: #{_lambda_.21} parent=31 // pred_check_branch
        %180 = sbr.rel (%p178) target = $region36
      $region35: #{_lambda_.21} parent=31 // pred_region
        %s181 = smul.u32 8, %s11
        %p182 = scmp.lt.s32.totalorder %s181, 15
        %s183 = scalar_select %p182, %s181, 15
        %s184 = smul.addr %s183, 4
        %s185 = scalar_lea.vmem %s0, %s184
        %s186 = smul.u32 8, %s11
      $region36: #{_lambda_.21} parent=31 // pred_fallthru
        _
    $region32: #{_lambda_.21} parent=5 // pred_fallthru
      _
    %p187 = scmp.le.s32.totalorder 1, %s11
    %p188 = scmp.lt.s32.totalorder %s11, 3
    %p189 = pnand %p187, %p188
    %p190 = pneg %p189
    // Predicated region
    $region37: #{_lambda_.21} parent=5 // pred_check
      _
    $region38: #{_lambda_.21} parent=5 // pred_check_branch
      %192 = sbr.rel (%p189) target = $region40
    $region39: #{_lambda_.21} parent=5 // pred_region
      %s193 = ssub.s32 %s11, 1
      %s194 = smul.u32 8, %s16
      %p195 = scmp.lt.s32.totalorder %s194, 15
      %s196 = scalar_select %p195, %s194, 15
      %s197 = smul.addr %s196, 4
      %s198 = scalar_lea.vmem %s0, %s197
      %p199 = pneg %p37
      %p200 = pneg %p34
      %p201 = pneg %p58
      %p202 = pneg %p55
      %p203 = pneg %p79
      %p204 = pneg %p76
      %p205 = pneg %p100
      %p206 = pneg %p97
      %p207 = pneg %p121
      %p208 = pneg %p118
      %p209 = pneg %p147
      %p210 = pneg %p144
      %s211 = smul.u32 8, %s16
      %p212 = scmp.lt.s32.totalorder %s211, 15
      %s213 = scalar_select %p212, %s211, 15
      %s214 = smul.addr %s213, 4
      %s215 = scalar_lea.vmem %s5, %s214
      %s216 = smul.u32 8, %s16
      %p217 = scmp.lt.s32.totalorder %s216, 15
      %s218 = scalar_select %p217, %s216, 15
      %s219 = smul.addr %s218, 4
      %s220 = scalar_lea.vmem %s0, %s219
      %s221 = smul.u32 8, %s16
      %s222 = smul.u32 8, %s16
      %p223 = scmp.lt.s32.totalorder %s222, 15
      %s224 = scalar_select %p223, %s222, 15
      %s225 = smul.addr %s224, 4
      %s226 = scalar_lea.vmem %s5, %s225
      %s227 = smul.u32 8, %s16
      %v229 = vld [vmem:[%s220] sm:$0xf]
      %v230 = vld [vmem:[%s220 + $0x4] sm:$0xf]
      %v231 = vld [vmem:[%s220 + $0x8] sm:$0xf]
      %v232 = vld [vmem:[%s220 + $0xc] sm:$0xf]
      %v233 = vld [vmem:[%s220 + $0x10] sm:$0xf]
      %v234 = vld [vmem:[%s220 + $0x14] sm:$0xf]
      %v235 = vld [vmem:[%s220 + $0x18] sm:$0xf]
      %v236 = vld [vmem:[%s220 + $0x1c] sm:$0xf]
      %v237 = vunpack.c.l.bf16 %v229
      %v238 = vunpack.c.l.bf16 %v230
      %v239 = vunpack.c.l.bf16 %v231
      %v240 = vunpack.c.l.bf16 %v232
      %v241 = vunpack.c.l.bf16 %v233
      %v242 = vunpack.c.l.bf16 %v234
      %v243 = vunpack.c.l.bf16 %v235
      %v244 = vunpack.c.l.bf16 %v236
      %v245 = vld [vmem:[%s1] sm:$0x1]
      %v246 = vld [vmem:[%s2] sm:$0x1]
      %vm247 = vcmask 130048
      %v248 = vsel %vm247, %v237, 0.0
      %249 = vadd.xlane.f32.xlu0 %v248
      %v250 = vpop.xlane.xlu0 %249
      %v251 = vsel %vm247, %v238, 0.0
      %252 = vadd.xlane.f32.xlu0 %v251
      %v253 = vpop.xlane.xlu0 %252
      %v254 = vsel %vm247, %v239, 0.0
      %255 = vadd.xlane.f32.xlu0 %v254
      %v256 = vpop.xlane.xlu0 %255
      %v257 = vsel %vm247, %v240, 0.0
      %258 = vadd.xlane.f32.xlu0 %v257
      %v259 = vpop.xlane.xlu0 %258
      %v260 = vsel %vm247, %v241, 0.0
      %261 = vadd.xlane.f32.xlu0 %v260
      %v262 = vpop.xlane.xlu0 %261
      %v263 = vsel %vm247, %v242, 0.0
      %264 = vadd.xlane.f32.xlu0 %v263
      %v265 = vpop.xlane.xlu0 %264
      %v266 = vsel %vm247, %v243, 0.0
      %267 = vadd.xlane.f32.xlu0 %v266
      %v268 = vpop.xlane.xlu0 %267
      %v269 = vsel %vm247, %v244, 0.0
      %270 = vadd.xlane.f32.xlu0 %v269
      %v271 = vpop.xlane.xlu0 %270
      %v272 = vrcp.pop 16.0
      %v273 = vmul.f32 %v250, %v272
      %v274 = vmul.f32 %v253, %v272
      %v275 = vmul.f32 %v256, %v272
      %v276 = vmul.f32 %v259, %v272
      %v277 = vmul.f32 %v262, %v272
      %v278 = vmul.f32 %v265, %v272
      %v279 = vmul.f32 %v268, %v272
      %v280 = vmul.f32 %v271, %v272
      %v281 = vsub.f32 %v237, %v273
      %v282 = vsub.f32 %v238, %v274
      %v283 = vsub.f32 %v239, %v275
      %v284 = vsub.f32 %v240, %v276
      %v285 = vsub.f32 %v241, %v277
      %v286 = vsub.f32 %v242, %v278
      %v287 = vsub.f32 %v243, %v279
      %v288 = vsub.f32 %v244, %v280
      %v289 = vmul.f32 %v281, %v281
      %v290 = vmul.f32 %v282, %v282
      %v291 = vmul.f32 %v283, %v283
      %v292 = vmul.f32 %v284, %v284
      %v293 = vmul.f32 %v285, %v285
      %v294 = vmul.f32 %v286, %v286
      %v295 = vmul.f32 %v287, %v287
      %v296 = vmul.f32 %v288, %v288
      %v297 = vsel %vm247, %v289, 0.0
      %298 = vadd.xlane.f32.xlu0 %v297
      %v299 = vpop.xlane.xlu0 %298
      %v300 = vsel %vm247, %v290, 0.0
      %301 = vadd.xlane.f32.xlu0 %v300
      %v302 = vpop.xlane.xlu0 %301
      %v303 = vsel %vm247, %v291, 0.0
      %304 = vadd.xlane.f32.xlu0 %v303
      %v305 = vpop.xlane.xlu0 %304
      %v306 = vsel %vm247, %v292, 0.0
      %307 = vadd.xlane.f32.xlu0 %v306
      %v308 = vpop.xlane.xlu0 %307
      %v309 = vsel %vm247, %v293, 0.0
      %310 = vadd.xlane.f32.xlu0 %v309
      %v311 = vpop.xlane.xlu0 %310
      %v312 = vsel %vm247, %v294, 0.0
      %313 = vadd.xlane.f32.xlu0 %v312
      %v314 = vpop.xlane.xlu0 %313
      %v315 = vsel %vm247, %v295, 0.0
      %316 = vadd.xlane.f32.xlu0 %v315
      %v317 = vpop.xlane.xlu0 %316
      %v318 = vsel %vm247, %v296, 0.0
      %319 = vadd.xlane.f32.xlu0 %v318
      %v320 = vpop.xlane.xlu0 %319
      %v321 = vmul.f32 %v299, %v272
      %v322 = vmul.f32 %v302, %v272
      %v323 = vmul.f32 %v305, %v272
      %v324 = vmul.f32 %v308, %v272
      %v325 = vmul.f32 %v311, %v272
      %v326 = vmul.f32 %v314, %v272
      %v327 = vmul.f32 %v317, %v272
      %v328 = vmul.f32 %v320, %v272
      %v329 = vadd.f32 %v321, 1e-05
      %v330 = vadd.f32 %v322, 1e-05
      %v331 = vadd.f32 %v323, 1e-05
      %v332 = vadd.f32 %v324, 1e-05
      %v333 = vadd.f32 %v325, 1e-05
      %v334 = vadd.f32 %v326, 1e-05
      %v335 = vadd.f32 %v327, 1e-05
      %v336 = vadd.f32 %v328, 1e-05
      %v337 = vrsqrt.pop %v329
      %v338 = vrsqrt.pop %v330
      %v339 = vrsqrt.pop %v331
      %v340 = vrsqrt.pop %v332
      %v341 = vrsqrt.pop %v333
      %v342 = vrsqrt.pop %v334
      %v343 = vrsqrt.pop %v335
      %v344 = vrsqrt.pop %v336
      %v345 = vmul.f32 %v281, %v337
      %v346 = vmul.f32 %v282, %v338
      %v347 = vmul.f32 %v283, %v339
      %v348 = vmul.f32 %v284, %v340
      %v349 = vmul.f32 %v285, %v341
      %v350 = vmul.f32 %v286, %v342
      %v351 = vmul.f32 %v287, %v343
      %v352 = vmul.f32 %v288, %v344
      %v354 = vlaneseq
      %v355 = vshrl.u32 %v354, 7
      %v356 = vsub.s32 0, %v355
      %v357 = vrot.slane %v245, %v356
      %v359 = vmul.f32 %v345, %v357
      %v360 = vmul.f32 %v346, %v357
      %v361 = vmul.f32 %v347, %v357
      %v362 = vmul.f32 %v348, %v357
      %v363 = vmul.f32 %v349, %v357
      %v364 = vmul.f32 %v350, %v357
      %v365 = vmul.f32 %v351, %v357
      %v366 = vmul.f32 %v352, %v357
      %v368 = vlaneseq
      %v369 = vshrl.u32 %v368, 7
      %v370 = vsub.s32 0, %v369
      %v371 = vrot.slane %v246, %v370
      %v373 = vadd.f32 %v359, %v371
      %v374 = vadd.f32 %v360, %v371
      %v375 = vadd.f32 %v361, %v371
      %v376 = vadd.f32 %v362, %v371
      %v377 = vadd.f32 %v363, %v371
      %v378 = vadd.f32 %v364, %v371
      %v379 = vadd.f32 %v365, %v371
      %v380 = vadd.f32 %v366, %v371
      %v381 = vpack.c.bf16 %v374, %v373
      %v382 = vpack.c.bf16 %v376, %v375
      %v383 = vpack.c.bf16 %v378, %v377
      %v384 = vpack.c.bf16 %v380, %v379
      %v385 = vld [vmem:[%s3] sm:$0xf]
      %v386 = vld [vmem:[%s3 + $0x4] sm:$0xf]
      %v387 = vld [vmem:[%s4] sm:$0x1]
      %v389 = vlaneseq
      %v390 = vshrl.u32 %v389, 7
      %v391 = vsub.s32 0, %v390
      %v392 = vrot.slane %v387, %v391
      %v396 = vunpack.c.l.b16 %v385
      %v397 = vunpack.c.l.b16 %v386
      %v398 = vpack.c.b16 %v397, %v396
      %v401 = vsel %vm247, %v381, 0
      %v404 = vsel %vm247, %v382, 0
      %v407 = vsel %vm247, %v383, 0
      %v410 = vsel %vm247, %v384, 0
      %412 = vmatprep.subr.bf16.mxu0 0
      %413 = vmatpush1.bf16.msra.mxu0 %v398
      %414 = vmatprep.subr.bf16.mxu0 0
      %415 = vmatpush1.bf16.msra.mxu0 0
      %416 = vmatprep.subr.bf16.mxu0 0
      %417 = vmatpush1.bf16.msra.mxu0 0
      %418 = vmatprep.subr.bf16.mxu0 0
      %419 = vmatpush1.bf16.msra.mxu0 0
      %420 = vmatprep.subr.bf16.mxu0 0
      %421 = vmatpush1.bf16.msra.mxu0 0
      %422 = vmatprep.subr.bf16.mxu0 0
      %423 = vmatpush1.bf16.msra.mxu0 0
      %424 = vmatprep.subr.bf16.mxu0 0
      %425 = vmatpush1.bf16.msra.mxu0 0
      %426 = vmatprep.subr.bf16.mxu0 0
      %427 = vmatpush1.bf16.msra.mxu0 0
      %428 = vmatprep.subr.bf16.mxu0 0
      %429 = vmatpush1.bf16.msra.mxu0 0
      %430 = vmatprep.subr.bf16.mxu0 0
      %431 = vmatpush1.bf16.msra.mxu0 0
      %432 = vmatprep.subr.bf16.mxu0 0
      %433 = vmatpush1.bf16.msra.mxu0 0
      %434 = vmatprep.subr.bf16.mxu0 0
      %435 = vmatpush1.bf16.msra.mxu0 0
      %436 = vmatprep.subr.bf16.mxu0 0
      %437 = vmatpush1.bf16.msra.mxu0 0
      %438 = vmatprep.subr.bf16.mxu0 0
      %439 = vmatpush1.bf16.msra.mxu0 0
      %440 = vmatprep.subr.bf16.mxu0 0
      %441 = vmatpush1.bf16.msra.mxu0 0
      %442 = vmatprep.subr.bf16.mxu0 0
      %443 = vmatpush1.bf16.msra.mxu0 0
      %444 = vmatprep.mubr.bf16.mxu0 0
      %445 = vmatmul.mubr.bf16.gmra.mrb[0].mxu0 %v401
      %v446 = vpop.f32.mrb[0].mxu0
      %v447 = vadd.f32 %v392, %v446
      %v448 = vpop.f32.mrb[0].mxu0
      %v449 = vpop.f32.mrb[0].mxu0
      %v450 = vadd.f32 %v392, %v449
      %v451 = vpop.f32.mrb[0].mxu0
      %452 = vmatprep.mubr.bf16.mxu0 0
      %453 = vmatmul.mubr.bf16.gmra.mrb[0].mxu0 %v404
      %v454 = vpop.f32.mrb[0].mxu0
      %v455 = vadd.f32 %v392, %v454
      %v456 = vpop.f32.mrb[0].mxu0
      %v457 = vpop.f32.mrb[0].mxu0
      %v458 = vadd.f32 %v392, %v457
      %v459 = vpop.f32.mrb[0].mxu0
      %460 = vmatprep.mubr.bf16.mxu0 0
      %461 = vmatmul.mubr.bf16.gmra.mrb[0].mxu0 %v407
      %v462 = vpop.f32.mrb[0].mxu0
      %v463 = vadd.f32 %v392, %v462
      %v464 = vpop.f32.mrb[0].mxu0
      %v465 = vpop.f32.mrb[0].mxu0
      %v466 = vadd.f32 %v392, %v465
      %v467 = vpop.f32.mrb[0].mxu0
      %468 = vmatprep.mubr.bf16.mxu0 0
      %469 = vmatmul.mubr.bf16.gmra.mrb[0].mxu0 %v410
      %v470 = vpop.f32.mrb[0].mxu0
      %v471 = vadd.f32 %v392, %v470
      %v472 = vpop.f32.mrb[0].mxu0
      %v473 = vpop.f32.mrb[0].mxu0
      %v474 = vadd.f32 %v392, %v473
      %v475 = vpop.f32.mrb[0].mxu0
      %476 = vdwg.mxu0
      %v477 = vpack.c.bf16 %v450, %v447
      %v478 = vpack.c.bf16 %v458, %v455
      %v479 = vpack.c.bf16 %v466, %v463
      %v480 = vpack.c.bf16 %v474, %v471
      %v485 = vunpack.c.l.b16 %v477
      %v486 = vunpack.c.h.b16 %v477
      %v487 = vunpack.c.l.b16 %v478
      %v488 = vunpack.c.h.b16 %v478
      %v489 = vunpack.c.l.b16 %v479
      %v490 = vunpack.c.h.b16 %v479
      %v491 = vunpack.c.l.b16 %v480
      %v492 = vunpack.c.h.b16 %v480
      %v493 = vpack.c.b16 %v485, %v485
      %v494 = vpack.c.b16 %v486, %v486
      %v495 = vpack.c.b16 %v487, %v487
      %v496 = vpack.c.b16 %v488, %v488
      %v497 = vpack.c.b16 %v489, %v489
      %v498 = vpack.c.b16 %v490, %v490
      %v499 = vpack.c.b16 %v491, %v491
      %v500 = vpack.c.b16 %v492, %v492
      %vm509 = vcmask 125952
      %510 = vst.msk [vmem:[%s226] sm:$0xf] %vm509, %v493
      %511 = vst.msk [vmem:[%s226 + $0x4] sm:$0xf] %vm509, %v494
      %512 = vst.msk [vmem:[%s226 + $0x8] sm:$0xf] %vm509, %v495
      %513 = vst.msk [vmem:[%s226 + $0xc] sm:$0xf] %vm509, %v496
      %514 = vst.msk [vmem:[%s226 + $0x10] sm:$0xf] %vm509, %v497
      %515 = vst.msk [vmem:[%s226 + $0x14] sm:$0xf] %vm509, %v498
      %516 = vst.msk [vmem:[%s226 + $0x18] sm:$0xf] %vm509, %v499
      %517 = vst.msk [vmem:[%s226 + $0x1c] sm:$0xf] %vm509, %v500
      %s518 = smul.u32 8, %s16
      %p519 = scmp.lt.s32.totalorder %s518, 15
      %s520 = scalar_select %p519, %s518, 15
      %s521 = smul.addr %s520, 4
      %s522 = scalar_lea.vmem %s5, %s521
      // Predicated region
      $region41: #{_lambda_.21} parent=39 // pred_check
        %p523 = pneg %p144
      $region42: #{_lambda_.21} parent=39 // pred_check_branch
        %525 = sbr.rel (%p523) target = $region44
      $region43: #{_lambda_.21} parent=39 // pred_region
        %s526 = smul.u32 8, %s16
      $region44: #{_lambda_.21} parent=39 // pred_fallthru
        _
    $region40: #{_lambda_.21} parent=5 // pred_fallthru
      _
    %p527 = scmp.le.s32.totalorder 2, %s11
    // Predicated region
    $region45: #{_lambda_.21} parent=5 // pred_check
      %p528 = pneg %p527
    $region46: #{_lambda_.21} parent=5 // pred_check_branch
      %530 = sbr.rel (%p528) target = $region48
    $region47: #{_lambda_.21} parent=5 // pred_region
      %s531 = ssub.s32 %s11, 2
      // Predicated region
      $region49: #{_lambda_.21} parent=47 // pred_check
        %p532 = pneg %p150
      $region50: #{_lambda_.21} parent=47 // pred_check_branch
        %534 = sbr.rel (%p532) target = $region52
      $region51: #{_lambda_.21} parent=47 // pred_region
        %s535 = smul.u32 8, %s17
        %p536 = scmp.lt.s32.totalorder %s535, 15
        %s537 = scalar_select %p536, %s535, 15
        %s538 = smul.addr %s537, 4
        %s539 = scalar_lea.vmem %s5, %s538
      $region52: #{_lambda_.21} parent=47 // pred_fallthru
        _
    $region48: #{_lambda_.21} parent=5 // pred_fallthru
      _
  $region6: #{_lambda_.21} parent=0 // loop_footer
    %s15 = sadd.s32 1, %s11
  $region7: #{_lambda_.21} parent=0 // loop_footer_branch
    %10 = sbr.rel target = $region3
  $region8: #{_lambda_.21} parent=0 // loop_exit
    _

// kernel: _lambda_.26
$region0: #{_lambda_.26}
  #allocation0 [shape = 'u32[]', space=smem, size = 0x4, offset = 0x4, fixed_abs, tag = 'smem constant byte address 0x4 - core index']
  #allocation1 [shape = 'u32[144,128]{1,0:T(1,128)}', space=vmem, size = 0x12000, scoped, tag = 'internal scratch']
  %s0 = inlined_call_operand.vmem [shape: bf16[128,16], index: 0, kind: input, shape index: {}]
  %s1 = inlined_call_operand.vmem [shape: bf16[16,16], index: 1, kind: input, shape index: {}]
  %s2 = inlined_call_operand.vmem [shape: f32[1,16], index: 2, kind: input, shape index: {}]
  %s3 = inlined_call_operand.vmem [shape: bf16[128,16], index: 3, kind: input, shape index: {}]
  %s4 = inlined_call_operand.vmem [shape: bf16[128,16], index: 4, kind: output, shape index: {}]
  %s5 = sld [smem:[#allocation0]]
  $region49: #{_lambda_.26} parent=0
    _
  %s7 = ssub.s32 1, %s5
  %s8 = scalar_select 0, %s7, %s5
  loop: start=0, step=1, limit=4
  $region2: #{_lambda_.26} parent=0 // loop_pre_header
    _
  $region3: #{_lambda_.26} parent=0 // loop_header
    %s10 = sphi 0, %s14
    %p11 = scmp.ge.s32.totalorder %s10, 4
    %s20 = sphi 0, %s22
    %s23 = sphi 0, %s20
    %s24 = sphi 0, %s23
    %s40 = sphi 0, %s24
    %s44 = sphi 0, %s44
    %s46 = sphi 0, %s44
    %s47 = sphi 0, %s46
    %s61 = sphi 0, %s47
    %s65 = sphi 0, %s65
    %s67 = sphi 0, %s65
    %s68 = sphi 0, %s67
    %s82 = sphi 0, %s68
    %s88 = sphi 0, %s90
    %s91 = sphi 0, %s88
    %s92 = sphi 0, %s91
    %s108 = sphi 0, %s92
    %s114 = sphi 0, %s116
    %s117 = sphi 0, %s114
    %s118 = sphi 0, %s117
    %s134 = sphi 0, %s118
  $region4: #{_lambda_.26} parent=0 // loop_header_branch
    %13 = sbr.rel (%p11) target = $region8
  $region5: #{_lambda_.26} parent=0 // loop_body
    %s15 = ssub.s32 %s10, 1
    %s16 = ssub.s32 %s10, 2
    %s17 = sadd.s32 %s10, 1
    %s18 = ssub.s32 %s10, %s17
    %p19 = scmp.eq.s32.totalorder %s18, 0
    %s21 = sadd.s32 %s20, 1
    %s22 = scalar_select %p19, %s20, %s21
    %p25 = pneg %p19
    %p26 = scmp.eq.s32.totalorder %s10, 1
    %p27 = por %p25, %p26
    %p28 = scmp.ne.s32.totalorder %s20, %s23
    %p29 = scmp.eq.s32.totalorder %s10, 0
    %p30 = por %p28, %p29
    %p31 = scmp.ne.s32.totalorder %s20, %s23
    %p32 = scmp.eq.s32.totalorder %s15, 1
    %p33 = por %p31, %p32
    %p34 = scmp.ne.s32.totalorder %s23, %s24
    %p35 = scmp.eq.s32.totalorder %s15, 0
    %p36 = por %p34, %p35
    %p37 = scmp.ne.s32.totalorder %s23, %s24
    %p38 = scmp.eq.s32.totalorder %s16, 1
    %p39 = por %p37, %p38
    %p41 = scmp.ne.s32.totalorder %s24, %s40
    %p42 = scmp.eq.s32.totalorder %s16, 0
    %p43 = por %p41, %p42
    %s45 = sadd.s32 %s44, 1
    %p48 = scmp.eq.s32.totalorder %s10, 1
    %p49 = scmp.ne.s32.totalorder %s44, %s46
    %p50 = scmp.eq.s32.totalorder %s10, 0
    %p51 = por %p49, %p50
    %p52 = scmp.ne.s32.totalorder %s44, %s46
    %p53 = scmp.eq.s32.totalorder %s15, 1
    %p54 = por %p52, %p53
    %p55 = scmp.ne.s32.totalorder %s46, %s47
    %p56 = scmp.eq.s32.totalorder %s15, 0
    %p57 = por %p55, %p56
    %p58 = scmp.ne.s32.totalorder %s46, %s47
    %p59 = scmp.eq.s32.totalorder %s16, 1
    %p60 = por %p58, %p59
    %p62 = scmp.ne.s32.totalorder %s47, %s61
    %p63 = scmp.eq.s32.totalorder %s16, 0
    %p64 = por %p62, %p63
    %s66 = sadd.s32 %s65, 1
    %p69 = scmp.eq.s32.totalorder %s10, 1
    %p70 = scmp.ne.s32.totalorder %s65, %s67
    %p71 = scmp.eq.s32.totalorder %s10, 0
    %p72 = por %p70, %p71
    %p73 = scmp.ne.s32.totalorder %s65, %s67
    %p74 = scmp.eq.s32.totalorder %s15, 1
    %p75 = por %p73, %p74
    %p76 = scmp.ne.s32.totalorder %s67, %s68
    %p77 = scmp.eq.s32.totalorder %s15, 0
    %p78 = por %p76, %p77
    %p79 = scmp.ne.s32.totalorder %s67, %s68
    %p80 = scmp.eq.s32.totalorder %s16, 1
    %p81 = por %p79, %p80
    %p83 = scmp.ne.s32.totalorder %s68, %s82
    %p84 = scmp.eq.s32.totalorder %s16, 0
    %p85 = por %p83, %p84
    %s86 = ssub.s32 %s10, %s17
    %p87 = scmp.eq.s32.totalorder %s86, 0
    %s89 = sadd.s32 %s88, 1
    %s90 = scalar_select %p87, %s88, %s89
    %p93 = pneg %p87
    %p94 = scmp.eq.s32.totalorder %s10, 1
    %p95 = por %p93, %p94
    %p96 = scmp.ne.s32.totalorder %s88, %s91
    %p97 = scmp.eq.s32.totalorder %s10, 0
    %p98 = por %p96, %p97
    %p99 = scmp.ne.s32.totalorder %s88, %s91
    %p100 = scmp.eq.s32.totalorder %s15, 1
    %p101 = por %p99, %p100
    %p102 = scmp.ne.s32.totalorder %s91, %s92
    %p103 = scmp.eq.s32.totalorder %s15, 0
    %p104 = por %p102, %p103
    %p105 = scmp.ne.s32.totalorder %s91, %s92
    %p106 = scmp.eq.s32.totalorder %s16, 1
    %p107 = por %p105, %p106
    %p109 = scmp.ne.s32.totalorder %s92, %s108
    %p110 = scmp.eq.s32.totalorder %s16, 0
    %p111 = por %p109, %p110
    %s112 = ssub.s32 %s10, %s17
    %p113 = scmp.eq.s32.totalorder %s112, 0
    %s115 = sadd.s32 %s114, 1
    %s116 = scalar_select %p113, %s114, %s115
    %p119 = pneg %p113
    %p120 = scmp.eq.s32.totalorder %s10, 1
    %p121 = por %p119, %p120
    %p122 = scmp.ne.s32.totalorder %s114, %s117
    %p123 = scmp.eq.s32.totalorder %s10, 0
    %p124 = por %p122, %p123
    %p125 = scmp.ne.s32.totalorder %s114, %s117
    %p126 = scmp.eq.s32.totalorder %s15, 1
    %p127 = por %p125, %p126
    %p128 = scmp.ne.s32.totalorder %s117, %s118
    %p129 = scmp.eq.s32.totalorder %s15, 0
    %p130 = por %p128, %p129
    %p131 = scmp.ne.s32.totalorder %s117, %s118
    %p132 = scmp.eq.s32.totalorder %s16, 1
    %p133 = por %p131, %p132
    %p135 = scmp.ne.s32.totalorder %s118, %s134
    %p136 = scmp.eq.s32.totalorder %s16, 0
    %p137 = por %p135, %p136
    %p138 = scmp.le.s32.totalorder 1, %s10
    %p139 = scmp.lt.s32.totalorder %s10, 3
    %p140 = pnand %p138, %p139
    %p141 = pneg %p140
    // Predicated region
    $region9: #{_lambda_.26} parent=5 // pred_check
      _
    $region10: #{_lambda_.26} parent=5 // pred_check_branch
      %143 = sbr.rel (%p140) target = $region12
    $region11: #{_lambda_.26} parent=5 // pred_region
      %s144 = ssub.s32 %s10, 1
      // Predicated region
      $region13: #{_lambda_.26} parent=11 // pred_check
        %p145 = pneg %p57
      $region14: #{_lambda_.26} parent=11 // pred_check_branch
        %147 = sbr.rel (%p145) target = $region16
      $region15: #{_lambda_.26} parent=11 // pred_region
        _
      $region16: #{_lambda_.26} parent=11 // pred_fallthru
        _
      // Predicated region
      $region17: #{_lambda_.26} parent=11 // pred_check
        %p148 = pneg %p78
      $region18: #{_lambda_.26} parent=11 // pred_check_branch
        %150 = sbr.rel (%p148) target = $region20
      $region19: #{_lambda_.26} parent=11 // pred_region
        _
      $region20: #{_lambda_.26} parent=11 // pred_fallthru
        _
    $region12: #{_lambda_.26} parent=5 // pred_fallthru
      _
    %p151 = scmp.lt.s32.totalorder %s10, 2
    // Predicated region
    $region21: #{_lambda_.26} parent=5 // pred_check
      %p152 = pneg %p151
    $region22: #{_lambda_.26} parent=5 // pred_check_branch
      %154 = sbr.rel (%p152) target = $region24
    $region23: #{_lambda_.26} parent=5 // pred_region
      // Predicated region
      $region25: #{_lambda_.26} parent=23 // pred_check
        %p155 = pneg %p30
      $region26: #{_lambda_.26} parent=23 // pred_check_branch
        %157 = sbr.rel (%p155) target = $region28
      $region27: #{_lambda_.26} parent=23 // pred_region
        %s158 = smul.u32 8, %s10
        %p159 = scmp.lt.s32.totalorder %s158, 15
        %s160 = scalar_select %p159, %s158, 15
        %s161 = smul.addr %s160, 4
        %s162 = scalar_lea.vmem %s0, %s161
        %s163 = smul.u32 8, %s10
      $region28: #{_lambda_.26} parent=23 // pred_fallthru
        _
      // Predicated region
      $region29: #{_lambda_.26} parent=23 // pred_check
        %p164 = pneg %p98
      $region30: #{_lambda_.26} parent=23 // pred_check_branch
        %166 = sbr.rel (%p164) target = $region32
      $region31: #{_lambda_.26} parent=23 // pred_region
        %s167 = smul.u32 8, %s10
        %p168 = scmp.lt.s32.totalorder %s167, 15
        %s169 = scalar_select %p168, %s167, 15
        %s170 = smul.addr %s169, 4
        %s171 = scalar_lea.vmem %s3, %s170
        %s172 = smul.u32 8, %s10
      $region32: #{_lambda_.26} parent=23 // pred_fallthru
        _
    $region24: #{_lambda_.26} parent=5 // pred_fallthru
      _
    %p173 = scmp.le.s32.totalorder 1, %s10
    %p174 = scmp.lt.s32.totalorder %s10, 3
    %p175 = pnand %p173, %p174
    %p176 = pneg %p175
    // Predicated region
    $region33: #{_lambda_.26} parent=5 // pred_check
      _
    $region34: #{_lambda_.26} parent=5 // pred_check_branch
      %178 = sbr.rel (%p175) target = $region36
    $region35: #{_lambda_.26} parent=5 // pred_region
      %s179 = ssub.s32 %s10, 1
      %s180 = smul.u32 8, %s15
      %p181 = scmp.lt.s32.totalorder %s180, 15
      %s182 = scalar_select %p181, %s180, 15
      %s183 = smul.addr %s182, 4
      %s184 = scalar_lea.vmem %s0, %s183
      %p185 = pneg %p36
      %p186 = pneg %p33
      %p187 = pneg %p57
      %p188 = pneg %p54
      %p189 = pneg %p78
      %p190 = pneg %p75
      %s191 = smul.u32 8, %s15
      %p192 = scmp.lt.s32.totalorder %s191, 15
      %s193 = scalar_select %p192, %s191, 15
      %s194 = smul.addr %s193, 4
      %s195 = scalar_lea.vmem %s3, %s194
      %p196 = pneg %p104
      %p197 = pneg %p101
      %p198 = pneg %p130
      %p199 = pneg %p127
      %s200 = smul.u32 8, %s15
      %p201 = scmp.lt.s32.totalorder %s200, 15
      %s202 = scalar_select %p201, %s200, 15
      %s203 = smul.addr %s202, 4
      %s204 = scalar_lea.vmem %s4, %s203
      %s205 = smul.u32 8, %s15
      %p206 = scmp.lt.s32.totalorder %s205, 15
      %s207 = scalar_select %p206, %s205, 15
      %s208 = smul.addr %s207, 4
      %s209 = scalar_lea.vmem %s0, %s208
      %s210 = smul.u32 8, %s15
      %s211 = smul.u32 8, %s15
      %p212 = scmp.lt.s32.totalorder %s211, 15
      %s213 = scalar_select %p212, %s211, 15
      %s214 = smul.addr %s213, 4
      %s215 = scalar_lea.vmem %s3, %s214
      %s216 = smul.u32 8, %s15
      %s217 = smul.u32 8, %s15
      %p218 = scmp.lt.s32.totalorder %s217, 15
      %s219 = scalar_select %p218, %s217, 15
      %s220 = smul.addr %s219, 4
      %s221 = scalar_lea.vmem %s4, %s220
      %s222 = smul.u32 8, %s15
      %v224 = vld [vmem:[%s209] sm:$0xf]
      %v225 = vld [vmem:[%s209 + $0x4] sm:$0xf]
      %v226 = vld [vmem:[%s209 + $0x8] sm:$0xf]
      %v227 = vld [vmem:[%s209 + $0xc] sm:$0xf]
      %v228 = vld [vmem:[%s209 + $0x10] sm:$0xf]
      %v229 = vld [vmem:[%s209 + $0x14] sm:$0xf]
      %v230 = vld [vmem:[%s209 + $0x18] sm:$0xf]
      %v231 = vld [vmem:[%s209 + $0x1c] sm:$0xf]
      %v232 = vld [vmem:[%s1] sm:$0xf]
      %v233 = vld [vmem:[%s1 + $0x4] sm:$0xf]
      %v234 = vld [vmem:[%s2] sm:$0x1]
      %v236 = vlaneseq
      %v237 = vshrl.u32 %v236, 7
      %v238 = vsub.s32 0, %v237
      %v239 = vrot.slane %v234, %v238
      %v249 = vunpack.c.l.b16 %v224
      %v250 = vunpack.c.l.b16 %v225
      %v251 = vunpack.c.l.b16 %v226
      %v252 = vunpack.c.l.b16 %v227
      %v253 = vunpack.c.l.b16 %v228
      %v254 = vunpack.c.l.b16 %v229
      %v255 = vunpack.c.l.b16 %v230
      %v256 = vunpack.c.l.b16 %v231
      %v257 = vpack.c.b16 %v250, %v249
      %v258 = vpack.c.b16 %v252, %v251
      %v259 = vpack.c.b16 %v254, %v253
      %v260 = vpack.c.b16 %v256, %v255
      %v263 = vunpack.c.l.b16 %v232
      %v264 = vunpack.c.l.b16 %v233
      %v265 = vpack.c.b16 %v264, %v263
      %vm267 = vcmask 130048
      %v269 = vsel %vm267, %v257, 0
      %v272 = vsel %vm267, %v258, 0
      %v275 = vsel %vm267, %v259, 0
      %v278 = vsel %vm267, %v260, 0
      %280 = vmatprep.subr.bf16.mxu0 0
      %281 = vmatpush1.bf16.msra.mxu0 %v265
      %282 = vmatprep.subr.bf16.mxu0 0
      %283 = vmatpush1.bf16.msra.mxu0 0
      %284 = vmatprep.subr.bf16.mxu0 0
      %285 = vmatpush1.bf16.msra.mxu0 0
      %286 = vmatprep.subr.bf16.mxu0 0
      %287 = vmatpush1.bf16.msra.mxu0 0
      %288 = vmatprep.subr.bf16.mxu0 0
      %289 = vmatpush1.bf16.msra.mxu0 0
      %290 = vmatprep.subr.bf16.mxu0 0
      %291 = vmatpush1.bf16.msra.mxu0 0
      %292 = vmatprep.subr.bf16.mxu0 0
      %293 = vmatpush1.bf16.msra.mxu0 0
      %294 = vmatprep.subr.bf16.mxu0 0
      %295 = vmatpush1.bf16.msra.mxu0 0
      %296 = vmatprep.subr.bf16.mxu0 0
      %297 = vmatpush1.bf16.msra.mxu0 0
      %298 = vmatprep.subr.bf16.mxu0 0
      %299 = vmatpush1.bf16.msra.mxu0 0
      %300 = vmatprep.subr.bf16.mxu0 0
      %301 = vmatpush1.bf16.msra.mxu0 0
      %302 = vmatprep.subr.bf16.mxu0 0
      %303 = vmatpush1.bf16.msra.mxu0 0
      %304 = vmatprep.subr.bf16.mxu0 0
      %305 = vmatpush1.bf16.msra.mxu0 0
      %306 = vmatprep.subr.bf16.mxu0 0
      %307 = vmatpush1.bf16.msra.mxu0 0
      %308 = vmatprep.subr.bf16.mxu0 0
      %309 = vmatpush1.bf16.msra.mxu0 0
      %310 = vmatprep.subr.bf16.mxu0 0
      %311 = vmatpush1.bf16.msra.mxu0 0
      %312 = vmatprep.mubr.bf16.mxu0 0
      %313 = vmatmul.mubr.bf16.gmra.mrb[0].mxu0 %v269
      %v314 = vpop.f32.mrb[0].mxu0
      %v315 = vadd.f32 %v239, %v314
      %v316 = vpop.f32.mrb[0].mxu0
      %v317 = vpop.f32.mrb[0].mxu0
      %v318 = vadd.f32 %v239, %v317
      %v319 = vpop.f32.mrb[0].mxu0
      %320 = vmatprep.mubr.bf16.mxu0 0
      %321 = vmatmul.mubr.bf16.gmra.mrb[0].mxu0 %v272
      %v322 = vpop.f32.mrb[0].mxu0
      %v323 = vadd.f32 %v239, %v322
      %v324 = vpop.f32.mrb[0].mxu0
      %v325 = vpop.f32.mrb[0].mxu0
      %v326 = vadd.f32 %v239, %v325
      %v327 = vpop.f32.mrb[0].mxu0
      %328 = vmatprep.mubr.bf16.mxu0 0
      %329 = vmatmul.mubr.bf16.gmra.mrb[0].mxu0 %v275
      %v330 = vpop.f32.mrb[0].mxu0
      %v331 = vadd.f32 %v239, %v330
      %v332 = vpop.f32.mrb[0].mxu0
      %v333 = vpop.f32.mrb[0].mxu0
      %v334 = vadd.f32 %v239, %v333
      %v335 = vpop.f32.mrb[0].mxu0
      %336 = vmatprep.mubr.bf16.mxu0 0
      %337 = vmatmul.mubr.bf16.gmra.mrb[0].mxu0 %v278
      %v338 = vpop.f32.mrb[0].mxu0
      %v339 = vadd.f32 %v239, %v338
      %v340 = vpop.f32.mrb[0].mxu0
      %v341 = vpop.f32.mrb[0].mxu0
      %v342 = vadd.f32 %v239, %v341
      %v343 = vpop.f32.mrb[0].mxu0
      %344 = vdwg.mxu0
      %v345 = vld [vmem:[%s215] sm:$0xf]
      %v346 = vld [vmem:[%s215 + $0x4] sm:$0xf]
      %v347 = vld [vmem:[%s215 + $0x8] sm:$0xf]
      %v348 = vld [vmem:[%s215 + $0xc] sm:$0xf]
      %v349 = vld [vmem:[%s215 + $0x10] sm:$0xf]
      %v350 = vld [vmem:[%s215 + $0x14] sm:$0xf]
      %v351 = vld [vmem:[%s215 + $0x18] sm:$0xf]
      %v352 = vld [vmem:[%s215 + $0x1c] sm:$0xf]
      %v353 = vunpack.c.l.bf16 %v345
      %v354 = vunpack.c.l.bf16 %v346
      %v355 = vunpack.c.l.bf16 %v347
      %v356 = vunpack.c.l.bf16 %v348
      %v357 = vunpack.c.l.bf16 %v349
      %v358 = vunpack.c.l.bf16 %v350
      %v359 = vunpack.c.l.bf16 %v351
      %v360 = vunpack.c.l.bf16 %v352
      %v361 = vadd.f32 %v315, %v353
      %v362 = vadd.f32 %v318, %v354
      %v363 = vadd.f32 %v323, %v355
      %v364 = vadd.f32 %v326, %v356
      %v365 = vadd.f32 %v331, %v357
      %v366 = vadd.f32 %v334, %v358
      %v367 = vadd.f32 %v339, %v359
      %v368 = vadd.f32 %v342, %v360
      %v369 = vpack.c.bf16 %v362, %v361
      %v370 = vpack.c.bf16 %v364, %v363
      %v371 = vpack.c.bf16 %v366, %v365
      %v372 = vpack.c.bf16 %v368, %v367
      %v377 = vunpack.c.l.b16 %v369
      %v378 = vunpack.c.h.b16 %v369
      %v379 = vunpack.c.l.b16 %v370
      %v380 = vunpack.c.h.b16 %v370
      %v381 = vunpack.c.l.b16 %v371
      %v382 = vunpack.c.h.b16 %v371
      %v383 = vunpack.c.l.b16 %v372
      %v384 = vunpack.c.h.b16 %v372
      %v385 = vpack.c.b16 %v377, %v377
      %v386 = vpack.c.b16 %v378, %v378
      %v387 = vpack.c.b16 %v379, %v379
      %v388 = vpack.c.b16 %v380, %v380
      %v389 = vpack.c.b16 %v381, %v381
      %v390 = vpack.c.b16 %v382, %v382
      %v391 = vpack.c.b16 %v383, %v383
      %v392 = vpack.c.b16 %v384, %v384
      %vm401 = vcmask 125952
      %402 = vst.msk [vmem:[%s221] sm:$0xf] %vm401, %v385
      %403 = vst.msk [vmem:[%s221 + $0x4] sm:$0xf] %vm401, %v386
      %404 = vst.msk [vmem:[%s221 + $0x8] sm:$0xf] %vm401, %v387
      %405 = vst.msk [vmem:[%s221 + $0xc] sm:$0xf] %vm401, %v388
      %406 = vst.msk [vmem:[%s221 + $0x10] sm:$0xf] %vm401, %v389
      %407 = vst.msk [vmem:[%s221 + $0x14] sm:$0xf] %vm401, %v390
      %408 = vst.msk [vmem:[%s221 + $0x18] sm:$0xf] %vm401, %v391
      %409 = vst.msk [vmem:[%s221 + $0x1c] sm:$0xf] %vm401, %v392
      %s410 = smul.u32 8, %s15
      %p411 = scmp.lt.s32.totalorder %s410, 15
      %s412 = scalar_select %p411, %s410, 15
      %s413 = smul.addr %s412, 4
      %s414 = scalar_lea.vmem %s4, %s413
      // Predicated region
      $region37: #{_lambda_.26} parent=35 // pred_check
        %p415 = pneg %p127
      $region38: #{_lambda_.26} parent=35 // pred_check_branch
        %417 = sbr.rel (%p415) target = $region40
      $region39: #{_lambda_.26} parent=35 // pred_region
        %s418 = smul.u32 8, %s15
      $region40: #{_lambda_.26} parent=35 // pred_fallthru
        _
    $region36: #{_lambda_.26} parent=5 // pred_fallthru
      _
    %p419 = scmp.le.s32.totalorder 2, %s10
    // Predicated region
    $region41: #{_lambda_.26} parent=5 // pred_check
      %p420 = pneg %p419
    $region42: #{_lambda_.26} parent=5 // pred_check_branch
      %422 = sbr.rel (%p420) target = $region44
    $region43: #{_lambda_.26} parent=5 // pred_region
      %s423 = ssub.s32 %s10, 2
      // Predicated region
      $region45: #{_lambda_.26} parent=43 // pred_check
        %p424 = pneg %p133
      $region46: #{_lambda_.26} parent=43 // pred_check_branch
        %426 = sbr.rel (%p424) target = $region48
      $region47: #{_lambda_.26} parent=43 // pred_region
        %s427 = smul.u32 8, %s16
        %p428 = scmp.lt.s32.totalorder %s427, 15
        %s429 = scalar_select %p428, %s427, 15
        %s430 = smul.addr %s429, 4
        %s431 = scalar_lea.vmem %s4, %s430
      $region48: #{_lambda_.26} parent=43 // pred_fallthru
        _
    $region44: #{_lambda_.26} parent=5 // pred_fallthru
      _
  $region6: #{_lambda_.26} parent=0 // loop_footer
    %s14 = sadd.s32 1, %s10
  $region7: #{_lambda_.26} parent=0 // loop_footer_branch
    %9 = sbr.rel target = $region3
  $region8: #{_lambda_.26} parent=0 // loop_exit
    _

// kernel: _lambda_.25
$region0: #{_lambda_.25}
  #allocation0 [shape = 'u32[]', space=smem, size = 0x4, offset = 0x4, fixed_abs, tag = 'smem constant byte address 0x4 - core index']
  #allocation1 [shape = 'u32[144,128]{1,0:T(1,128)}', space=vmem, size = 0x12000, scoped, tag = 'internal scratch']
  %s0 = inlined_call_operand.vmem [shape: bf16[2,64,16], index: 0, kind: input, shape index: {}]
  %s1 = inlined_call_operand.vmem [shape: bf16[2,16,4], index: 1, kind: input, shape index: {}]
  %s2 = inlined_call_operand.vmem [shape: bf16[2,4,16], index: 2, kind: input, shape index: {}]
  %s3 = inlined_call_operand.vmem [shape: bf16[2,64,16], index: 3, kind: output, shape index: {}]
  %s4 = sld [smem:[#allocation0]]
  $region45: #{_lambda_.25} parent=0
    _
  %s6 = ssub.s32 1, %s4
  %s7 = scalar_select 0, %s6, %s4
  loop: start=0, step=1, limit=4
  $region2: #{_lambda_.25} parent=0 // loop_pre_header
    _
  $region3: #{_lambda_.25} parent=0 // loop_header
    %s9 = sphi 0, %s13
    %p10 = scmp.ge.s32.totalorder %s9, 4
    %s16 = sphi 0, %s28
    %s17 = sphi 0, %s24
    %s18 = sphi 0, %s16
    %s19 = sphi 0, %s17
    %s20 = sphi 0, %s18
    %s21 = sphi 0, %s19
    %s33 = sphi 0, %s35
    %s36 = sphi 0, %s33
    %s37 = sphi 0, %s36
    %s53 = sphi 0, %s37
    %s59 = sphi 0, %s61
    %s62 = sphi 0, %s59
    %s63 = sphi 0, %s62
    %s79 = sphi 0, %s63
    %s85 = sphi 0, %s87
    %s88 = sphi 0, %s85
    %s89 = sphi 0, %s88
    %s105 = sphi 0, %s89
    %s113 = sphi 0, %s115
    %s116 = sphi 0, %s113
    %s117 = sphi 0, %s116
    %s133 = sphi 0, %s117
  $region4: #{_lambda_.25} parent=0 // loop_header_branch
    %12 = sbr.rel (%p10) target = $region8
  $region5: #{_lambda_.25} parent=0 // loop_body
    %s14 = ssub.s32 %s9, 1
    %s15 = ssub.s32 %s9, 2
    %s22 = sadd.s32 1, %s17
    %p23 = scmp.ge.s32.totalorder %s22, 1
    %s24 = scalar_select %p23, 0, %s22
    %s25 = sadd.s32 1, %s16
    %s26 = scalar_select %p23, %s25, %s16
    %p27 = scmp.ge.s32.totalorder %s26, 2
    %s28 = scalar_select %p27, 0, %s26
    %s29 = ssub.s32 %s16, %s28
    %s30 = ssub.s32 %s17, %s24
    %s31 = sor.u32 %s29, %s30
    %p32 = scmp.eq.s32.totalorder %s31, 0
    %s34 = sadd.s32 %s33, 1
    %s35 = scalar_select %p32, %s33, %s34
    %p38 = pneg %p32
    %p39 = scmp.eq.s32.totalorder %s9, 1
    %p40 = por %p38, %p39
    %p41 = scmp.ne.s32.totalorder %s33, %s36
    %p42 = scmp.eq.s32.totalorder %s9, 0
    %p43 = por %p41, %p42
    %p44 = scmp.ne.s32.totalorder %s33, %s36
    %p45 = scmp.eq.s32.totalorder %s14, 1
    %p46 = por %p44, %p45
    %p47 = scmp.ne.s32.totalorder %s36, %s37
    %p48 = scmp.eq.s32.totalorder %s14, 0
    %p49 = por %p47, %p48
    %p50 = scmp.ne.s32.totalorder %s36, %s37
    %p51 = scmp.eq.s32.totalorder %s15, 1
    %p52 = por %p50, %p51
    %p54 = scmp.ne.s32.totalorder %s37, %s53
    %p55 = scmp.eq.s32.totalorder %s15, 0
    %p56 = por %p54, %p55
    %s57 = ssub.s32 %s16, %s28
    %p58 = scmp.eq.s32.totalorder %s57, 0
    %s60 = sadd.s32 %s59, 1
    %s61 = scalar_select %p58, %s59, %s60
    %p64 = pneg %p58
    %p65 = scmp.eq.s32.totalorder %s9, 1
    %p66 = por %p64, %p65
    %p67 = scmp.ne.s32.totalorder %s59, %s62
    %p68 = scmp.eq.s32.totalorder %s9, 0
    %p69 = por %p67, %p68
    %p70 = scmp.ne.s32.totalorder %s59, %s62
    %p71 = scmp.eq.s32.totalorder %s14, 1
    %p72 = por %p70, %p71
    %p73 = scmp.ne.s32.totalorder %s62, %s63
    %p74 = scmp.eq.s32.totalorder %s14, 0
    %p75 = por %p73, %p74
    %p76 = scmp.ne.s32.totalorder %s62, %s63
    %p77 = scmp.eq.s32.totalorder %s15, 1
    %p78 = por %p76, %p77
    %p80 = scmp.ne.s32.totalorder %s63, %s79
    %p81 = scmp.eq.s32.totalorder %s15, 0
    %p82 = por %p80, %p81
    %s83 = ssub.s32 %s16, %s28
    %p84 = scmp.eq.s32.totalorder %s83, 0
    %s86 = sadd.s32 %s85, 1
    %s87 = scalar_select %p84, %s85, %s86
    %p90 = pneg %p84
    %p91 = scmp.eq.s32.totalorder %s9, 1
    %p92 = por %p90, %p91
    %p93 = scmp.ne.s32.totalorder %s85, %s88
    %p94 = scmp.eq.s32.totalorder %s9, 0
    %p95 = por %p93, %p94
    %p96 = scmp.ne.s32.totalorder %s85, %s88
    %p97 = scmp.eq.s32.totalorder %s14, 1
    %p98 = por %p96, %p97
    %p99 = scmp.ne.s32.totalorder %s88, %s89
    %p100 = scmp.eq.s32.totalorder %s14, 0
    %p101 = por %p99, %p100
    %p102 = scmp.ne.s32.totalorder %s88, %s89
    %p103 = scmp.eq.s32.totalorder %s15, 1
    %p104 = por %p102, %p103
    %p106 = scmp.ne.s32.totalorder %s89, %s105
    %p107 = scmp.eq.s32.totalorder %s15, 0
    %p108 = por %p106, %p107
    %s109 = ssub.s32 %s16, %s28
    %s110 = ssub.s32 %s17, %s24
    %s111 = sor.u32 %s109, %s110
    %p112 = scmp.eq.s32.totalorder %s111, 0
    %s114 = sadd.s32 %s113, 1
    %s115 = scalar_select %p112, %s113, %s114
    %p118 = pneg %p112
    %p119 = scmp.eq.s32.totalorder %s9, 1
    %p120 = por %p118, %p119
    %p121 = scmp.ne.s32.totalorder %s113, %s116
    %p122 = scmp.eq.s32.totalorder %s9, 0
    %p123 = por %p121, %p122
    %p124 = scmp.ne.s32.totalorder %s113, %s116
    %p125 = scmp.eq.s32.totalorder %s14, 1
    %p126 = por %p124, %p125
    %p127 = scmp.ne.s32.totalorder %s116, %s117
    %p128 = scmp.eq.s32.totalorder %s14, 0
    %p129 = por %p127, %p128
    %p130 = scmp.ne.s32.totalorder %s116, %s117
    %p131 = scmp.eq.s32.totalorder %s15, 1
    %p132 = por %p130, %p131
    %p134 = scmp.ne.s32.totalorder %s117, %s133
    %p135 = scmp.eq.s32.totalorder %s15, 0
    %p136 = por %p134, %p135
    %p137 = scmp.le.s32.totalorder 1, %s9
    %p138 = scmp.lt.s32.totalorder %s9, 3
    %p139 = pnand %p137, %p138
    %p140 = pneg %p139
    // Predicated region
    $region9: #{_lambda_.25} parent=5 // pred_check
      _
    $region10: #{_lambda_.25} parent=5 // pred_check_branch
      %142 = sbr.rel (%p139) target = $region12
    $region11: #{_lambda_.25} parent=5 // pred_region
      %s143 = ssub.s32 %s9, 1
    $region12: #{_lambda_.25} parent=5 // pred_fallthru
      _
    %p144 = scmp.lt.s32.totalorder %s9, 2
    // Predicated region
    $region13: #{_lambda_.25} parent=5 // pred_check
      %p145 = pneg %p144
    $region14: #{_lambda_.25} parent=5 // pred_check_branch
      %147 = sbr.rel (%p145) target = $region16
    $region15: #{_lambda_.25} parent=5 // pred_region
      // Predicated region
      $region17: #{_lambda_.25} parent=15 // pred_check
        %p148 = pneg %p43
      $region18: #{_lambda_.25} parent=15 // pred_check_branch
        %150 = sbr.rel (%p148) target = $region20
      $region19: #{_lambda_.25} parent=15 // pred_region
        %s151 = smul.u32 8, %s17
        %p152 = scmp.lt.s32.totalorder %s16, 1
        %s153 = scalar_select %p152, %s16, 1
        %p154 = scmp.lt.s32.totalorder %s151, 7
        %s155 = scalar_select %p154, %s151, 7
        %s156 = smul.addr %s153, 8
        %s157 = sadd.s32 %s155, %s156
        %s158 = smul.addr %s157, 4
        %s159 = scalar_lea.vmem %s0, %s158
        %s160 = smul.u32 8, %s17
      $region20: #{_lambda_.25} parent=15 // pred_fallthru
        _
      // Predicated region
      $region21: #{_lambda_.25} parent=15 // pred_check
        %p161 = pneg %p69
      $region22: #{_lambda_.25} parent=15 // pred_check_branch
        %163 = sbr.rel (%p161) target = $region24
      $region23: #{_lambda_.25} parent=15 // pred_region
        %p164 = scmp.lt.s32.totalorder %s16, 1
        %s165 = scalar_select %p164, %s16, 1
        %s166 = smul.addr %s165, 2
        %s167 = smul.addr %s166, 4
        %s168 = scalar_lea.vmem %s1, %s167
      $region24: #{_lambda_.25} parent=15 // pred_fallthru
        _
      // Predicated region
      $region25: #{_lambda_.25} parent=15 // pred_check
        %p169 = pneg %p95
      $region26: #{_lambda_.25} parent=15 // pred_check_branch
        %171 = sbr.rel (%p169) target = $region28
      $region27: #{_lambda_.25} parent=15 // pred_region
        %p172 = scmp.lt.s32.totalorder %s16, 1
        %s173 = scalar_select %p172, %s16, 1
        %s174 = smul.addr %s173, 2
        %s175 = scalar_lea.vmem %s2, %s174
      $region28: #{_lambda_.25} parent=15 // pred_fallthru
        _
    $region16: #{_lambda_.25} parent=5 // pred_fallthru
      _
    %p176 = scmp.le.s32.totalorder 1, %s9
    %p177 = scmp.lt.s32.totalorder %s9, 3
    %p178 = pnand %p176, %p177
    %p179 = pneg %p178
    // Predicated region
    $region29: #{_lambda_.25} parent=5 // pred_check
      _
    $region30: #{_lambda_.25} parent=5 // pred_check_branch
      %181 = sbr.rel (%p178) target = $region32
    $region31: #{_lambda_.25} parent=5 // pred_region
      %s182 = ssub.s32 %s9, 1
      %s183 = smul.u32 8, %s19
      %p184 = scmp.lt.s32.totalorder %s18, 1
      %s185 = scalar_select %p184, %s18, 1
      %p186 = scmp.lt.s32.totalorder %s183, 7
      %s187 = scalar_select %p186, %s183, 7
      %s188 = smul.addr %s185, 8
      %s189 = sadd.s32 %s187, %s188
      %s190 = smul.addr %s189, 4
      %s191 = scalar_lea.vmem %s0, %s190
      %p192 = pneg %p49
      %p193 = pneg %p46
      %p194 = scmp.lt.s32.totalorder %s18, 1
      %s195 = scalar_select %p194, %s18, 1
      %s196 = smul.addr %s195, 2
      %s197 = smul.addr %s196, 4
      %s198 = scalar_lea.vmem %s1, %s197
      %p199 = pneg %p75
      %p200 = pneg %p72
      %p201 = scmp.lt.s32.totalorder %s18, 1
      %s202 = scalar_select %p201, %s18, 1
      %s203 = smul.addr %s202, 2
      %s204 = scalar_lea.vmem %s2, %s203
      %p205 = pneg %p101
      %p206 = pneg %p98
      %p207 = pneg %p129
      %p208 = pneg %p126
      %s209 = smul.u32 8, %s19
      %p210 = scmp.lt.s32.totalorder %s18, 1
      %s211 = scalar_select %p210, %s18, 1
      %p212 = scmp.lt.s32.totalorder %s209, 7
      %s213 = scalar_select %p212, %s209, 7
      %s214 = smul.addr %s211, 8
      %s215 = sadd.s32 %s213, %s214
      %s216 = smul.addr %s215, 4
      %s217 = scalar_lea.vmem %s3, %s216
      %s218 = smul.u32 8, %s19
      %p219 = scmp.lt.s32.totalorder %s18, 1
      %s220 = scalar_select %p219, %s18, 1
      %p221 = scmp.lt.s32.totalorder %s218, 7
      %s222 = scalar_select %p221, %s218, 7
      %s223 = smul.addr %s220, 8
      %s224 = sadd.s32 %s222, %s223
      %s225 = smul.addr %s224, 4
      %s226 = scalar_lea.vmem %s0, %s225
      %s227 = smul.u32 8, %s19
      %p228 = scmp.lt.s32.totalorder %s18, 1
      %s229 = scalar_select %p228, %s18, 1
      %s230 = smul.addr %s229, 2
      %s231 = smul.addr %s230, 4
      %s232 = scalar_lea.vmem %s1, %s231
      %p233 = scmp.lt.s32.totalorder %s18, 1
      %s234 = scalar_select %p233, %s18, 1
      %s235 = smul.addr %s234, 2
      %s236 = scalar_lea.vmem %s2, %s235
      %s237 = smul.u32 8, %s19
      %p238 = scmp.lt.s32.totalorder %s18, 1
      %s239 = scalar_select %p238, %s18, 1
      %p240 = scmp.lt.s32.totalorder %s237, 7
      %s241 = scalar_select %p240, %s237, 7
      %s242 = smul.addr %s239, 8
      %s243 = sadd.s32 %s241, %s242
      %s244 = smul.addr %s243, 4
      %s245 = scalar_lea.vmem %s3, %s244
      %s246 = smul.u32 8, %s19
      %v248 = vld [vmem:[%s226] sm:$0xf]
      %v249 = vld [vmem:[%s226 + $0x4] sm:$0xf]
      %v250 = vld [vmem:[%s226 + $0x8] sm:$0xf]
      %v251 = vld [vmem:[%s226 + $0xc] sm:$0xf]
      %v252 = vld [vmem:[%s226 + $0x10] sm:$0xf]
      %v253 = vld [vmem:[%s226 + $0x14] sm:$0xf]
      %v254 = vld [vmem:[%s226 + $0x18] sm:$0xf]
      %v255 = vld [vmem:[%s226 + $0x1c] sm:$0xf]
      %v256 = vld [vmem:[%s232] sm:$0xf]
      %v257 = vld [vmem:[%s232 + $0x4] sm:$0xf]
      %v258 = vld [vmem:[%s236] sm:$0x3]
      %v267 = vunpack.c.l.b16 %v248
      %v268 = vunpack.c.l.b16 %v249
      %v269 = vunpack.c.l.b16 %v250
      %v270 = vunpack.c.l.b16 %v251
      %v271 = vunpack.c.l.b16 %v252
      %v272 = vunpack.c.l.b16 %v253
      %v273 = vunpack.c.l.b16 %v254
      %v274 = vunpack.c.l.b16 %v255
      %v275 = vpack.c.b16 %v268, %v267
      %v276 = vpack.c.b16 %v270, %v269
      %v277 = vpack.c.b16 %v272, %v271
      %v278 = vpack.c.b16 %v274, %v273
      %vm279 = vcmask 64512
      %v281 = vsel %vm279, %v275, 0
      %v284 = vsel %vm279, %v276, 0
      %v287 = vsel %vm279, %v277, 0
      %v290 = vsel %vm279, %v278, 0
      %vm292 = vcmask 1043456
      %v294 = vsel %vm292, %v256, 0
      %296 = vmatprep.subr.bf16.mxu0 0
      %297 = vmatpush1.bf16.msra.mxu0 %v294
      %298 = vmatprep.subr.bf16.mxu0 0
      %299 = vmatpush1.bf16.msra.mxu0 0
      %300 = vmatprep.subr.bf16.mxu0 0
      %301 = vmatpush1.bf16.msra.mxu0 0
      %302 = vmatprep.subr.bf16.mxu0 0
      %303 = vmatpush1.bf16.msra.mxu0 0
      %304 = vmatprep.subr.bf16.mxu0 0
      %305 = vmatpush1.bf16.msra.mxu0 0
      %306 = vmatprep.subr.bf16.mxu0 0
      %307 = vmatpush1.bf16.msra.mxu0 0
      %308 = vmatprep.subr.bf16.mxu0 0
      %309 = vmatpush1.bf16.msra.mxu0 0
      %310 = vmatprep.subr.bf16.mxu0 0
      %311 = vmatpush1.bf16.msra.mxu0 0
      %312 = vmatprep.subr.bf16.mxu0 0
      %313 = vmatpush1.bf16.msra.mxu0 0
      %314 = vmatprep.subr.bf16.mxu0 0
      %315 = vmatpush1.bf16.msra.mxu0 0
      %316 = vmatprep.subr.bf16.mxu0 0
      %317 = vmatpush1.bf16.msra.mxu0 0
      %318 = vmatprep.subr.bf16.mxu0 0
      %319 = vmatpush1.bf16.msra.mxu0 0
      %320 = vmatprep.subr.bf16.mxu0 0
      %321 = vmatpush1.bf16.msra.mxu0 0
      %322 = vmatprep.subr.bf16.mxu0 0
      %323 = vmatpush1.bf16.msra.mxu0 0
      %324 = vmatprep.subr.bf16.mxu0 0
      %325 = vmatpush1.bf16.msra.mxu0 0
      %326 = vmatprep.subr.bf16.mxu0 0
      %327 = vmatpush1.bf16.msra.mxu0 0
      %328 = vmatprep.mubr.bf16.mxu0 0
      %329 = vmatmul.mubr.bf16.gmra.mrb[0].mxu0 %v281
      %v330 = vpop.f32.mrb[0].mxu0
      %v331 = vadd.f32 0.0, %v330
      %v332 = vpop.f32.mrb[0].mxu0
      %v333 = vpop.f32.mrb[0].mxu0
      %v334 = vadd.f32 0.0, %v333
      %v335 = vpop.f32.mrb[0].mxu0
      %336 = vmatprep.mubr.bf16.mxu0 0
      %337 = vmatmul.mubr.bf16.gmra.mrb[0].mxu0 %v284
      %v338 = vpop.f32.mrb[0].mxu0
      %v339 = vadd.f32 0.0, %v338
      %v340 = vpop.f32.mrb[0].mxu0
      %v341 = vpop.f32.mrb[0].mxu0
      %v342 = vadd.f32 0.0, %v341
      %v343 = vpop.f32.mrb[0].mxu0
      %344 = vmatprep.mubr.bf16.mxu0 0
      %345 = vmatmul.mubr.bf16.gmra.mrb[0].mxu0 %v287
      %v346 = vpop.f32.mrb[0].mxu0
      %v347 = vadd.f32 0.0, %v346
      %v348 = vpop.f32.mrb[0].mxu0
      %v349 = vpop.f32.mrb[0].mxu0
      %v350 = vadd.f32 0.0, %v349
      %v351 = vpop.f32.mrb[0].mxu0
      %352 = vmatprep.mubr.bf16.mxu0 0
      %353 = vmatmul.mubr.bf16.gmra.mrb[0].mxu0 %v290
      %v354 = vpop.f32.mrb[0].mxu0
      %v355 = vadd.f32 0.0, %v354
      %v356 = vpop.f32.mrb[0].mxu0
      %v357 = vpop.f32.mrb[0].mxu0
      %v358 = vadd.f32 0.0, %v357
      %v359 = vpop.f32.mrb[0].mxu0
      %360 = vdwg.mxu0
      %v361 = vmul.f32 %v331, 0.35355338
      %v362 = vmul.f32 %v334, 0.35355338
      %v363 = vmul.f32 %v339, 0.35355338
      %v364 = vmul.f32 %v342, 0.35355338
      %v365 = vmul.f32 %v347, 0.35355338
      %v366 = vmul.f32 %v350, 0.35355338
      %v367 = vmul.f32 %v355, 0.35355338
      %v368 = vmul.f32 %v358, 0.35355338
      %vm369 = vcmask 31744
      %v370 = vsel %vm369, %v361, -inf
      %371 = vmax.xlane.f32.xlu0 %v370
      %v372 = vpop.xlane.xlu0 %371
      %v373 = vsel %vm369, %v362, -inf
      %374 = vmax.xlane.f32.xlu0 %v373
      %v375 = vpop.xlane.xlu0 %374
      %v376 = vsel %vm369, %v363, -inf
      %377 = vmax.xlane.f32.xlu0 %v376
      %v378 = vpop.xlane.xlu0 %377
      %v379 = vsel %vm369, %v364, -inf
      %380 = vmax.xlane.f32.xlu0 %v379
      %v381 = vpop.xlane.xlu0 %380
      %v382 = vsel %vm369, %v365, -inf
      %383 = vmax.xlane.f32.xlu0 %v382
      %v384 = vpop.xlane.xlu0 %383
      %v385 = vsel %vm369, %v366, -inf
      %386 = vmax.xlane.f32.xlu0 %v385
      %v387 = vpop.xlane.xlu0 %386
      %v388 = vsel %vm369, %v367, -inf
      %389 = vmax.xlane.f32.xlu0 %v388
      %v390 = vpop.xlane.xlu0 %389
      %v391 = vsel %vm369, %v368, -inf
      %392 = vmax.xlane.f32.xlu0 %v391
      %v393 = vpop.xlane.xlu0 %392
      %v394 = vsub.f32 %v361, %v372
      %v395 = vsub.f32 %v362, %v375
      %v396 = vsub.f32 %v363, %v378
      %v397 = vsub.f32 %v364, %v381
      %v398 = vsub.f32 %v365, %v384
      %v399 = vsub.f32 %v366, %v387
      %v400 = vsub.f32 %v367, %v390
      %v401 = vsub.f32 %v368, %v393
      %v402 = vmul.f32 %v394, 1.442695
      %v403 = vpow.pop %v402
      %v404 = vmul.f32 %v395, 1.442695
      %v405 = vpow.pop %v404
      %v406 = vmul.f32 %v396, 1.442695
      %v407 = vpow.pop %v406
      %v408 = vmul.f32 %v397, 1.442695
      %v409 = vpow.pop %v408
      %v410 = vmul.f32 %v398, 1.442695
      %v411 = vpow.pop %v410
      %v412 = vmul.f32 %v399, 1.442695
      %v413 = vpow.pop %v412
      %v414 = vmul.f32 %v400, 1.442695
      %v415 = vpow.pop %v414
      %v416 = vmul.f32 %v401, 1.442695
      %v417 = vpow.pop %v416
      %v418 = vsel %vm369, %v403, 0.0
      %419 = vadd.xlane.f32.xlu0 %v418
      %v420 = vpop.xlane.xlu0 %419
      %v421 = vsel %vm369, %v405, 0.0
      %422 = vadd.xlane.f32.xlu0 %v421
      %v423 = vpop.xlane.xlu0 %422
      %v424 = vsel %vm369, %v407, 0.0
      %425 = vadd.xlane.f32.xlu0 %v424
      %v426 = vpop.xlane.xlu0 %425
      %v427 = vsel %vm369, %v409, 0.0
      %428 = vadd.xlane.f32.xlu0 %v427
      %v429 = vpop.xlane.xlu0 %428
      %v430 = vsel %vm369, %v411, 0.0
      %431 = vadd.xlane.f32.xlu0 %v430
      %v432 = vpop.xlane.xlu0 %431
      %v433 = vsel %vm369, %v413, 0.0
      %434 = vadd.xlane.f32.xlu0 %v433
      %v435 = vpop.xlane.xlu0 %434
      %v436 = vsel %vm369, %v415, 0.0
      %437 = vadd.xlane.f32.xlu0 %v436
      %v438 = vpop.xlane.xlu0 %437
      %v439 = vsel %vm369, %v417, 0.0
      %440 = vadd.xlane.f32.xlu0 %v439
      %v441 = vpop.xlane.xlu0 %440
      %v442 = vrcp.pop %v420
      %v443 = vrcp.pop %v423
      %v444 = vrcp.pop %v426
      %v445 = vrcp.pop %v429
      %v446 = vrcp.pop %v432
      %v447 = vrcp.pop %v435
      %v448 = vrcp.pop %v438
      %v449 = vrcp.pop %v441
      %v450 = vmul.f32 %v403, %v442
      %v451 = vmul.f32 %v405, %v443
      %v452 = vmul.f32 %v407, %v444
      %v453 = vmul.f32 %v409, %v445
      %v454 = vmul.f32 %v411, %v446
      %v455 = vmul.f32 %v413, %v447
      %v456 = vmul.f32 %v415, %v448
      %v457 = vmul.f32 %v417, %v449
      %v458 = vpack.c.bf16 %v451, %v450
      %v459 = vpack.c.bf16 %v453, %v452
      %v460 = vpack.c.bf16 %v455, %v454
      %v461 = vpack.c.bf16 %v457, %v456
      %v463 = vsel %vm369, %v458, 0
      %v466 = vsel %vm369, %v459, 0
      %v469 = vsel %vm369, %v460, 0
      %v472 = vsel %vm369, %v461, 0
      %vm474 = vcmask 1041408
      %v476 = vsel %vm474, %v258, 0
      %478 = vmatprep.subr.bf16.mxu0 0
      %479 = vmatpush1.bf16.msra.mxu0 %v476
      %480 = vmatprep.subr.bf16.mxu0 0
      %481 = vmatpush1.bf16.msra.mxu0 0
      %482 = vmatprep.subr.bf16.mxu0 0
      %483 = vmatpush1.bf16.msra.mxu0 0
      %484 = vmatprep.subr.bf16.mxu0 0
      %485 = vmatpush1.bf16.msra.mxu0 0
      %486 = vmatprep.subr.bf16.mxu0 0
      %487 = vmatpush1.bf16.msra.mxu0 0
      %488 = vmatprep.subr.bf16.mxu0 0
      %489 = vmatpush1.bf16.msra.mxu0 0
      %490 = vmatprep.subr.bf16.mxu0 0
      %491 = vmatpush1.bf16.msra.mxu0 0
      %492 = vmatprep.subr.bf16.mxu0 0
      %493 = vmatpush1.bf16.msra.mxu0 0
      %494 = vmatprep.subr.bf16.mxu0 0
      %495 = vmatpush1.bf16.msra.mxu0 0
      %496 = vmatprep.subr.bf16.mxu0 0
      %497 = vmatpush1.bf16.msra.mxu0 0
      %498 = vmatprep.subr.bf16.mxu0 0
      %499 = vmatpush1.bf16.msra.mxu0 0
      %500 = vmatprep.subr.bf16.mxu0 0
      %501 = vmatpush1.bf16.msra.mxu0 0
      %502 = vmatprep.subr.bf16.mxu0 0
      %503 = vmatpush1.bf16.msra.mxu0 0
      %504 = vmatprep.subr.bf16.mxu0 0
      %505 = vmatpush1.bf16.msra.mxu0 0
      %506 = vmatprep.subr.bf16.mxu0 0
      %507 = vmatpush1.bf16.msra.mxu0 0
      %508 = vmatprep.subr.bf16.mxu0 0
      %509 = vmatpush1.bf16.msra.mxu0 0
      %510 = vmatprep.mubr.bf16.mxu0 0
      %511 = vmatmul.mubr.bf16.gmra.mrb[0].mxu0 %v463
      %v512 = vpop.f32.mrb[0].mxu0
      %v513 = vadd.f32 0.0, %v512
      %v514 = vpop.f32.mrb[0].mxu0
      %v515 = vpop.f32.mrb[0].mxu0
      %v516 = vadd.f32 0.0, %v515
      %v517 = vpop.f32.mrb[0].mxu0
      %518 = vmatprep.mubr.bf16.mxu0 0
      %519 = vmatmul.mubr.bf16.gmra.mrb[0].mxu0 %v466
      %v520 = vpop.f32.mrb[0].mxu0
      %v521 = vadd.f32 0.0, %v520
      %v522 = vpop.f32.mrb[0].mxu0
      %v523 = vpop.f32.mrb[0].mxu0
      %v524 = vadd.f32 0.0, %v523
      %v525 = vpop.f32.mrb[0].mxu0
      %526 = vmatprep.mubr.bf16.mxu0 0
      %527 = vmatmul.mubr.bf16.gmra.mrb[0].mxu0 %v469
      %v528 = vpop.f32.mrb[0].mxu0
      %v529 = vadd.f32 0.0, %v528
      %v530 = vpop.f32.mrb[0].mxu0
      %v531 = vpop.f32.mrb[0].mxu0
      %v532 = vadd.f32 0.0, %v531
      %v533 = vpop.f32.mrb[0].mxu0
      %534 = vmatprep.mubr.bf16.mxu0 0
      %535 = vmatmul.mubr.bf16.gmra.mrb[0].mxu0 %v472
      %v536 = vpop.f32.mrb[0].mxu0
      %v537 = vadd.f32 0.0, %v536
      %v538 = vpop.f32.mrb[0].mxu0
      %v539 = vpop.f32.mrb[0].mxu0
      %v540 = vadd.f32 0.0, %v539
      %v541 = vpop.f32.mrb[0].mxu0
      %542 = vdwg.mxu0
      %543 = vrot.lane.b32.xlu0 %v275, 120
      %v544 = vpop.permute.xlu0 %543
      %545 = vrot.lane.b32.xlu0 %v276, 120
      %v546 = vpop.permute.xlu0 %545
      %547 = vrot.lane.b32.xlu0 %v277, 120
      %v548 = vpop.permute.xlu0 %547
      %549 = vrot.lane.b32.xlu0 %v278, 120
      %v550 = vpop.permute.xlu0 %549
      %v552 = vsel %vm279, %v544, 0
      %v555 = vsel %vm279, %v546, 0
      %v558 = vsel %vm279, %v548, 0
      %v561 = vsel %vm279, %v550, 0
      %v564 = vsel %vm292, %v257, 0
      %566 = vmatprep.subr.bf16.mxu0 0
      %567 = vmatpush1.bf16.msra.mxu0 %v564
      %568 = vmatprep.subr.bf16.mxu0 0
      %569 = vmatpush1.bf16.msra.mxu0 0
      %570 = vmatprep.subr.bf16.mxu0 0
      %571 = vmatpush1.bf16.msra.mxu0 0
      %572 = vmatprep.subr.bf16.mxu0 0
      %573 = vmatpush1.bf16.msra.mxu0 0
      %574 = vmatprep.subr.bf16.mxu0 0
      %575 = vmatpush1.bf16.msra.mxu0 0
      %576 = vmatprep.subr.bf16.mxu0 0
      %577 = vmatpush1.bf16.msra.mxu0 0
      %578 = vmatprep.subr.bf16.mxu0 0
      %579 = vmatpush1.bf16.msra.mxu0 0
      %580 = vmatprep.subr.bf16.mxu0 0
      %581 = vmatpush1.bf16.msra.mxu0 0
      %582 = vmatprep.subr.bf16.mxu0 0
      %583 = vmatpush1.bf16.msra.mxu0 0
      %584 = vmatprep.subr.bf16.mxu0 0
      %585 = vmatpush1.bf16.msra.mxu0 0
      %586 = vmatprep.subr.bf16.mxu0 0
      %587 = vmatpush1.bf16.msra.mxu0 0
      %588 = vmatprep.subr.bf16.mxu0 0
      %589 = vmatpush1.bf16.msra.mxu0 0
      %590 = vmatprep.subr.bf16.mxu0 0
      %591 = vmatpush1.bf16.msra.mxu0 0
      %592 = vmatprep.subr.bf16.mxu0 0
      %593 = vmatpush1.bf16.msra.mxu0 0
      %594 = vmatprep.subr.bf16.mxu0 0
      %595 = vmatpush1.bf16.msra.mxu0 0
      %596 = vmatprep.subr.bf16.mxu0 0
      %597 = vmatpush1.bf16.msra.mxu0 0
      %598 = vmatprep.mubr.bf16.mxu0 0
      %599 = vmatmul.mubr.bf16.gmra.mrb[0].mxu0 %v552
      %v600 = vpop.f32.mrb[0].mxu0
      %v601 = vadd.f32 0.0, %v600
      %v602 = vpop.f32.mrb[0].mxu0
      %v603 = vpop.f32.mrb[0].mxu0
      %v604 = vadd.f32 0.0, %v603
      %v605 = vpop.f32.mrb[0].mxu0
      %606 = vmatprep.mubr.bf16.mxu0 0
      %607 = vmatmul.mubr.bf16.gmra.mrb[0].mxu0 %v555
      %v608 = vpop.f32.mrb[0].mxu0
      %v609 = vadd.f32 0.0, %v608
      %v610 = vpop.f32.mrb[0].mxu0
      %v611 = vpop.f32.mrb[0].mxu0
      %v612 = vadd.f32 0.0, %v611
      %v613 = vpop.f32.mrb[0].mxu0
      %614 = vmatprep.mubr.bf16.mxu0 0
      %615 = vmatmul.mubr.bf16.gmra.mrb[0].mxu0 %v558
      %v616 = vpop.f32.mrb[0].mxu0
      %v617 = vadd.f32 0.0, %v616
      %v618 = vpop.f32.mrb[0].mxu0
      %v619 = vpop.f32.mrb[0].mxu0
      %v620 = vadd.f32 0.0, %v619
      %v621 = vpop.f32.mrb[0].mxu0
      %622 = vmatprep.mubr.bf16.mxu0 0
      %623 = vmatmul.mubr.bf16.gmra.mrb[0].mxu0 %v561
      %v624 = vpop.f32.mrb[0].mxu0
      %v625 = vadd.f32 0.0, %v624
      %v626 = vpop.f32.mrb[0].mxu0
      %v627 = vpop.f32.mrb[0].mxu0
      %v628 = vadd.f32 0.0, %v627
      %v629 = vpop.f32.mrb[0].mxu0
      %630 = vdwg.mxu0
      %v631 = vmul.f32 %v601, 0.35355338
      %v632 = vmul.f32 %v604, 0.35355338
      %v633 = vmul.f32 %v609, 0.35355338
      %v634 = vmul.f32 %v612, 0.35355338
      %v635 = vmul.f32 %v617, 0.35355338
      %v636 = vmul.f32 %v620, 0.35355338
      %v637 = vmul.f32 %v625, 0.35355338
      %v638 = vmul.f32 %v628, 0.35355338
      %v639 = vsel %vm369, %v631, -inf
      %640 = vmax.xlane.f32.xlu0 %v639
      %v641 = vpop.xlane.xlu0 %640
      %v642 = vsel %vm369, %v632, -inf
      %643 = vmax.xlane.f32.xlu0 %v642
      %v644 = vpop.xlane.xlu0 %643
      %v645 = vsel %vm369, %v633, -inf
      %646 = vmax.xlane.f32.xlu0 %v645
      %v647 = vpop.xlane.xlu0 %646
      %v648 = vsel %vm369, %v634, -inf
      %649 = vmax.xlane.f32.xlu0 %v648
      %v650 = vpop.xlane.xlu0 %649
      %v651 = vsel %vm369, %v635, -inf
      %652 = vmax.xlane.f32.xlu0 %v651
      %v653 = vpop.xlane.xlu0 %652
      %v654 = vsel %vm369, %v636, -inf
      %655 = vmax.xlane.f32.xlu0 %v654
      %v656 = vpop.xlane.xlu0 %655
      %v657 = vsel %vm369, %v637, -inf
      %658 = vmax.xlane.f32.xlu0 %v657
      %v659 = vpop.xlane.xlu0 %658
      %v660 = vsel %vm369, %v638, -inf
      %661 = vmax.xlane.f32.xlu0 %v660
      %v662 = vpop.xlane.xlu0 %661
      %v663 = vsub.f32 %v631, %v641
      %v664 = vsub.f32 %v632, %v644
      %v665 = vsub.f32 %v633, %v647
      %v666 = vsub.f32 %v634, %v650
      %v667 = vsub.f32 %v635, %v653
      %v668 = vsub.f32 %v636, %v656
      %v669 = vsub.f32 %v637, %v659
      %v670 = vsub.f32 %v638, %v662
      %v671 = vmul.f32 %v663, 1.442695
      %v672 = vpow.pop %v671
      %v673 = vmul.f32 %v664, 1.442695
      %v674 = vpow.pop %v673
      %v675 = vmul.f32 %v665, 1.442695
      %v676 = vpow.pop %v675
      %v677 = vmul.f32 %v666, 1.442695
      %v678 = vpow.pop %v677
      %v679 = vmul.f32 %v667, 1.442695
      %v680 = vpow.pop %v679
      %v681 = vmul.f32 %v668, 1.442695
      %v682 = vpow.pop %v681
      %v683 = vmul.f32 %v669, 1.442695
      %v684 = vpow.pop %v683
      %v685 = vmul.f32 %v670, 1.442695
      %v686 = vpow.pop %v685
      %v687 = vsel %vm369, %v672, 0.0
      %688 = vadd.xlane.f32.xlu0 %v687
      %v689 = vpop.xlane.xlu0 %688
      %v690 = vsel %vm369, %v674, 0.0
      %691 = vadd.xlane.f32.xlu0 %v690
      %v692 = vpop.xlane.xlu0 %691
      %v693 = vsel %vm369, %v676, 0.0
      %694 = vadd.xlane.f32.xlu0 %v693
      %v695 = vpop.xlane.xlu0 %694
      %v696 = vsel %vm369, %v678, 0.0
      %697 = vadd.xlane.f32.xlu0 %v696
      %v698 = vpop.xlane.xlu0 %697
      %v699 = vsel %vm369, %v680, 0.0
      %700 = vadd.xlane.f32.xlu0 %v699
      %v701 = vpop.xlane.xlu0 %700
      %v702 = vsel %vm369, %v682, 0.0
      %703 = vadd.xlane.f32.xlu0 %v702
      %v704 = vpop.xlane.xlu0 %703
      %v705 = vsel %vm369, %v684, 0.0
      %706 = vadd.xlane.f32.xlu0 %v705
      %v707 = vpop.xlane.xlu0 %706
      %v708 = vsel %vm369, %v686, 0.0
      %709 = vadd.xlane.f32.xlu0 %v708
      %v710 = vpop.xlane.xlu0 %709
      %v711 = vrcp.pop %v689
      %v712 = vrcp.pop %v692
      %v713 = vrcp.pop %v695
      %v714 = vrcp.pop %v698
      %v715 = vrcp.pop %v701
      %v716 = vrcp.pop %v704
      %v717 = vrcp.pop %v707
      %v718 = vrcp.pop %v710
      %v719 = vmul.f32 %v672, %v711
      %v720 = vmul.f32 %v674, %v712
      %v721 = vmul.f32 %v676, %v713
      %v722 = vmul.f32 %v678, %v714
      %v723 = vmul.f32 %v680, %v715
      %v724 = vmul.f32 %v682, %v716
      %v725 = vmul.f32 %v684, %v717
      %v726 = vmul.f32 %v686, %v718
      %v727 = vpack.c.bf16 %v720, %v719
      %v728 = vpack.c.bf16 %v722, %v721
      %v729 = vpack.c.bf16 %v724, %v723
      %v730 = vpack.c.bf16 %v726, %v725
      %v733 = vunpack.c.l.s4 1983009808
      %v734 = vunpack.c.0.s8 %v733
      %v735 = vlaneseq
      %v736 = vshrl.u32 %v735, 7
      %v737 = vsub.s32 %v734, %v736
      %v738 = vrot.slane %v258, %v737
      %739 = vrot.lane.b32.xlu0 %v738, 120
      %v740 = vpop.permute.xlu0 %739
      %v742 = vsel %vm369, %v727, 0
      %v745 = vsel %vm369, %v728, 0
      %v748 = vsel %vm369, %v729, 0
      %v751 = vsel %vm369, %v730, 0
      %v754 = vsel %vm474, %v740, 0
      %756 = vmatprep.subr.bf16.mxu0 0
      %757 = vmatpush1.bf16.msra.mxu0 %v754
      %758 = vmatprep.subr.bf16.mxu0 0
      %759 = vmatpush1.bf16.msra.mxu0 0
      %760 = vmatprep.subr.bf16.mxu0 0
      %761 = vmatpush1.bf16.msra.mxu0 0
      %762 = vmatprep.subr.bf16.mxu0 0
      %763 = vmatpush1.bf16.msra.mxu0 0
      %764 = vmatprep.subr.bf16.mxu0 0
      %765 = vmatpush1.bf16.msra.mxu0 0
      %766 = vmatprep.subr.bf16.mxu0 0
      %767 = vmatpush1.bf16.msra.mxu0 0
      %768 = vmatprep.subr.bf16.mxu0 0
      %769 = vmatpush1.bf16.msra.mxu0 0
      %770 = vmatprep.subr.bf16.mxu0 0
      %771 = vmatpush1.bf16.msra.mxu0 0
      %772 = vmatprep.subr.bf16.mxu0 0
      %773 = vmatpush1.bf16.msra.mxu0 0
      %774 = vmatprep.subr.bf16.mxu0 0
      %775 = vmatpush1.bf16.msra.mxu0 0
      %776 = vmatprep.subr.bf16.mxu0 0
      %777 = vmatpush1.bf16.msra.mxu0 0
      %778 = vmatprep.subr.bf16.mxu0 0
      %779 = vmatpush1.bf16.msra.mxu0 0
      %780 = vmatprep.subr.bf16.mxu0 0
      %781 = vmatpush1.bf16.msra.mxu0 0
      %782 = vmatprep.subr.bf16.mxu0 0
      %783 = vmatpush1.bf16.msra.mxu0 0
      %784 = vmatprep.subr.bf16.mxu0 0
      %785 = vmatpush1.bf16.msra.mxu0 0
      %786 = vmatprep.subr.bf16.mxu0 0
      %787 = vmatpush1.bf16.msra.mxu0 0
      %788 = vmatprep.mubr.bf16.mxu0 0
      %789 = vmatmul.mubr.bf16.gmra.mrb[0].mxu0 %v742
      %v790 = vpop.f32.mrb[0].mxu0
      %v791 = vadd.f32 0.0, %v790
      %v792 = vpop.f32.mrb[0].mxu0
      %v793 = vpop.f32.mrb[0].mxu0
      %v794 = vadd.f32 0.0, %v793
      %v795 = vpop.f32.mrb[0].mxu0
      %796 = vmatprep.mubr.bf16.mxu0 0
      %797 = vmatmul.mubr.bf16.gmra.mrb[0].mxu0 %v745
      %v798 = vpop.f32.mrb[0].mxu0
      %v799 = vadd.f32 0.0, %v798
      %v800 = vpop.f32.mrb[0].mxu0
      %v801 = vpop.f32.mrb[0].mxu0
      %v802 = vadd.f32 0.0, %v801
      %v803 = vpop.f32.mrb[0].mxu0
      %804 = vmatprep.mubr.bf16.mxu0 0
      %805 = vmatmul.mubr.bf16.gmra.mrb[0].mxu0 %v748
      %v806 = vpop.f32.mrb[0].mxu0
      %v807 = vadd.f32 0.0, %v806
      %v808 = vpop.f32.mrb[0].mxu0
      %v809 = vpop.f32.mrb[0].mxu0
      %v810 = vadd.f32 0.0, %v809
      %v811 = vpop.f32.mrb[0].mxu0
      %812 = vmatprep.mubr.bf16.mxu0 0
      %813 = vmatmul.mubr.bf16.gmra.mrb[0].mxu0 %v751
      %v814 = vpop.f32.mrb[0].mxu0
      %v815 = vadd.f32 0.0, %v814
      %v816 = vpop.f32.mrb[0].mxu0
      %v817 = vpop.f32.mrb[0].mxu0
      %v818 = vadd.f32 0.0, %v817
      %v819 = vpop.f32.mrb[0].mxu0
      %820 = vdwg.mxu0
      %829 = vrot.lane.b32.xlu0 %v791, 8
      %v830 = vpop.permute.xlu0 %829
      %831 = vrot.lane.b32.xlu0 %v794, 8
      %v832 = vpop.permute.xlu0 %831
      %833 = vrot.lane.b32.xlu0 %v799, 8
      %v834 = vpop.permute.xlu0 %833
      %835 = vrot.lane.b32.xlu0 %v802, 8
      %v836 = vpop.permute.xlu0 %835
      %837 = vrot.lane.b32.xlu0 %v807, 8
      %v838 = vpop.permute.xlu0 %837
      %839 = vrot.lane.b32.xlu0 %v810, 8
      %v840 = vpop.permute.xlu0 %839
      %841 = vrot.lane.b32.xlu0 %v815, 8
      %v842 = vpop.permute.xlu0 %841
      %843 = vrot.lane.b32.xlu0 %v818, 8
      %v844 = vpop.permute.xlu0 %843
      %v853 = vsel %vm279, %v513, %v830
      %v854 = vsel %vm279, %v516, %v832
      %v855 = vsel %vm279, %v521, %v834
      %v856 = vsel %vm279, %v524, %v836
      %v857 = vsel %vm279, %v529, %v838
      %v858 = vsel %vm279, %v532, %v840
      %v859 = vsel %vm279, %v537, %v842
      %v860 = vsel %vm279, %v540, %v844
      %v861 = vpack.c.bf16 %v854, %v853
      %v862 = vpack.c.bf16 %v856, %v855
      %v863 = vpack.c.bf16 %v858, %v857
      %v864 = vpack.c.bf16 %v860, %v859
      %v869 = vunpack.c.l.b16 %v861
      %v870 = vunpack.c.h.b16 %v861
      %v871 = vunpack.c.l.b16 %v862
      %v872 = vunpack.c.h.b16 %v862
      %v873 = vunpack.c.l.b16 %v863
      %v874 = vunpack.c.h.b16 %v863
      %v875 = vunpack.c.l.b16 %v864
      %v876 = vunpack.c.h.b16 %v864
      %v877 = vpack.c.b16 %v869, %v869
      %v878 = vpack.c.b16 %v870, %v870
      %v879 = vpack.c.b16 %v871, %v871
      %v880 = vpack.c.b16 %v872, %v872
      %v881 = vpack.c.b16 %v873, %v873
      %v882 = vpack.c.b16 %v874, %v874
      %v883 = vpack.c.b16 %v875, %v875
      %v884 = vpack.c.b16 %v876, %v876
      %vm893 = vcmask 125952
      %894 = vst.msk [vmem:[%s245] sm:$0xf] %vm893, %v877
      %895 = vst.msk [vmem:[%s245 + $0x4] sm:$0xf] %vm893, %v878
      %896 = vst.msk [vmem:[%s245 + $0x8] sm:$0xf] %vm893, %v879
      %897 = vst.msk [vmem:[%s245 + $0xc] sm:$0xf] %vm893, %v880
      %898 = vst.msk [vmem:[%s245 + $0x10] sm:$0xf] %vm893, %v881
      %899 = vst.msk [vmem:[%s245 + $0x14] sm:$0xf] %vm893, %v882
      %900 = vst.msk [vmem:[%s245 + $0x18] sm:$0xf] %vm893, %v883
      %901 = vst.msk [vmem:[%s245 + $0x1c] sm:$0xf] %vm893, %v884
      %s902 = smul.u32 8, %s19
      %p903 = scmp.lt.s32.totalorder %s18, 1
      %s904 = scalar_select %p903, %s18, 1
      %p905 = scmp.lt.s32.totalorder %s902, 7
      %s906 = scalar_select %p905, %s902, 7
      %s907 = smul.addr %s904, 8
      %s908 = sadd.s32 %s906, %s907
      %s909 = smul.addr %s908, 4
      %s910 = scalar_lea.vmem %s3, %s909
      // Predicated region
      $region33: #{_lambda_.25} parent=31 // pred_check
        %p911 = pneg %p126
      $region34: #{_lambda_.25} parent=31 // pred_check_branch
        %913 = sbr.rel (%p911) target = $region36
      $region35: #{_lambda_.25} parent=31 // pred_region
        %s914 = smul.u32 8, %s19
      $region36: #{_lambda_.25} parent=31 // pred_fallthru
        _
    $region32: #{_lambda_.25} parent=5 // pred_fallthru
      _
    %p915 = scmp.le.s32.totalorder 2, %s9
    // Predicated region
    $region37: #{_lambda_.25} parent=5 // pred_check
      %p916 = pneg %p915
    $region38: #{_lambda_.25} parent=5 // pred_check_branch
      %918 = sbr.rel (%p916) target = $region40
    $region39: #{_lambda_.25} parent=5 // pred_region
      %s919 = ssub.s32 %s9, 2
      // Predicated region
      $region41: #{_lambda_.25} parent=39 // pred_check
        %p920 = pneg %p132
      $region42: #{_lambda_.25} parent=39 // pred_check_branch
        %922 = sbr.rel (%p920) target = $region44
      $region43: #{_lambda_.25} parent=39 // pred_region
        %s923 = smul.u32 8, %s21
        %p924 = scmp.lt.s32.totalorder %s20, 1
        %s925 = scalar_select %p924, %s20, 1
        %p926 = scmp.lt.s32.totalorder %s923, 7
        %s927 = scalar_select %p926, %s923, 7
        %s928 = smul.addr %s925, 8
        %s929 = sadd.s32 %s927, %s928
        %s930 = smul.addr %s929, 4
        %s931 = scalar_lea.vmem %s3, %s930
      $region44: #{_lambda_.25} parent=39 // pred_fallthru
        _
    $region40: #{_lambda_.25} parent=5 // pred_fallthru
      _
  $region6: #{_lambda_.25} parent=0 // loop_footer
    %s13 = sadd.s32 1, %s9
  $region7: #{_lambda_.25} parent=0 // loop_footer_branch
    %8 = sbr.rel target = $region3
  $region8: #{_lambda_.25} parent=0 // loop_exit
    _

// kernel: _lambda_.30
$region0: #{_lambda_.30}
  #allocation0 [shape = 'u32[]', space=smem, size = 0x4, offset = 0x4, fixed_abs, tag = 'smem constant byte address 0x4 - core index']
  #allocation1 [shape = 'u32[144,128]{1,0:T(1,128)}', space=vmem, size = 0x12000, scoped, tag = 'internal scratch']
  %s0 = inlined_call_operand.vmem [shape: bf16[32,32], index: 0, kind: input, shape index: {}]
  %s1 = inlined_call_operand.vmem [shape: f32[1,32], index: 1, kind: input, shape index: {}]
  %s2 = inlined_call_operand.vmem [shape: f32[1,32], index: 2, kind: input, shape index: {}]
  %s3 = inlined_call_operand.vmem [shape: bf16[32,32], index: 3, kind: output, shape index: {}]
  %s4 = sld [smem:[#allocation0]]
  $region45: #{_lambda_.30} parent=0
    _
  %s6 = ssub.s32 1, %s4
  %s7 = scalar_select 0, %s6, %s4
  loop: start=0, step=1, limit=4
  $region2: #{_lambda_.30} parent=0 // loop_pre_header
    _
  $region3: #{_lambda_.30} parent=0 // loop_header
    %s9 = sphi 0, %s13
    %p10 = scmp.ge.s32.totalorder %s9, 4
    %s19 = sphi 0, %s21
    %s22 = sphi 0, %s19
    %s23 = sphi 0, %s22
    %s39 = sphi 0, %s23
    %s43 = sphi 0, %s43
    %s45 = sphi 0, %s43
    %s46 = sphi 0, %s45
    %s60 = sphi 0, %s46
    %s64 = sphi 0, %s64
    %s66 = sphi 0, %s64
    %s67 = sphi 0, %s66
    %s81 = sphi 0, %s67
    %s87 = sphi 0, %s89
    %s90 = sphi 0, %s87
    %s91 = sphi 0, %s90
    %s107 = sphi 0, %s91
  $region4: #{_lambda_.30} parent=0 // loop_header_branch
    %12 = sbr.rel (%p10) target = $region8
  $region5: #{_lambda_.30} parent=0 // loop_body
    %s14 = ssub.s32 %s9, 1
    %s15 = ssub.s32 %s9, 2
    %s16 = sadd.s32 %s9, 1
    %s17 = ssub.s32 %s9, %s16
    %p18 = scmp.eq.s32.totalorder %s17, 0
    %s20 = sadd.s32 %s19, 1
    %s21 = scalar_select %p18, %s19, %s20
    %p24 = pneg %p18
    %p25 = scmp.eq.s32.totalorder %s9, 1
    %p26 = por %p24, %p25
    %p27 = scmp.ne.s32.totalorder %s19, %s22
    %p28 = scmp.eq.s32.totalorder %s9, 0
    %p29 = por %p27, %p28
    %p30 = scmp.ne.s32.totalorder %s19, %s22
    %p31 = scmp.eq.s32.totalorder %s14, 1
    %p32 = por %p30, %p31
    %p33 = scmp.ne.s32.totalorder %s22, %s23
    %p34 = scmp.eq.s32.totalorder %s14, 0
    %p35 = por %p33, %p34
    %p36 = scmp.ne.s32.totalorder %s22, %s23
    %p37 = scmp.eq.s32.totalorder %s15, 1
    %p38 = por %p36, %p37
    %p40 = scmp.ne.s32.totalorder %s23, %s39
    %p41 = scmp.eq.s32.totalorder %s15, 0
    %p42 = por %p40, %p41
    %s44 = sadd.s32 %s43, 1
    %p47 = scmp.eq.s32.totalorder %s9, 1
    %p48 = scmp.ne.s32.totalorder %s43, %s45
    %p49 = scmp.eq.s32.totalorder %s9, 0
    %p50 = por %p48, %p49
    %p51 = scmp.ne.s32.totalorder %s43, %s45
    %p52 = scmp.eq.s32.totalorder %s14, 1
    %p53 = por %p51, %p52
    %p54 = scmp.ne.s32.totalorder %s45, %s46
    %p55 = scmp.eq.s32.totalorder %s14, 0
    %p56 = por %p54, %p55
    %p57 = scmp.ne.s32.totalorder %s45, %s46
    %p58 = scmp.eq.s32.totalorder %s15, 1
    %p59 = por %p57, %p58
    %p61 = scmp.ne.s32.totalorder %s46, %s60
    %p62 = scmp.eq.s32.totalorder %s15, 0
    %p63 = por %p61, %p62
    %s65 = sadd.s32 %s64, 1
    %p68 = scmp.eq.s32.totalorder %s9, 1
    %p69 = scmp.ne.s32.totalorder %s64, %s66
    %p70 = scmp.eq.s32.totalorder %s9, 0
    %p71 = por %p69, %p70
    %p72 = scmp.ne.s32.totalorder %s64, %s66
    %p73 = scmp.eq.s32.totalorder %s14, 1
    %p74 = por %p72, %p73
    %p75 = scmp.ne.s32.totalorder %s66, %s67
    %p76 = scmp.eq.s32.totalorder %s14, 0
    %p77 = por %p75, %p76
    %p78 = scmp.ne.s32.totalorder %s66, %s67
    %p79 = scmp.eq.s32.totalorder %s15, 1
    %p80 = por %p78, %p79
    %p82 = scmp.ne.s32.totalorder %s67, %s81
    %p83 = scmp.eq.s32.totalorder %s15, 0
    %p84 = por %p82, %p83
    %s85 = ssub.s32 %s9, %s16
    %p86 = scmp.eq.s32.totalorder %s85, 0
    %s88 = sadd.s32 %s87, 1
    %s89 = scalar_select %p86, %s87, %s88
    %p92 = pneg %p86
    %p93 = scmp.eq.s32.totalorder %s9, 1
    %p94 = por %p92, %p93
    %p95 = scmp.ne.s32.totalorder %s87, %s90
    %p96 = scmp.eq.s32.totalorder %s9, 0
    %p97 = por %p95, %p96
    %p98 = scmp.ne.s32.totalorder %s87, %s90
    %p99 = scmp.eq.s32.totalorder %s14, 1
    %p100 = por %p98, %p99
    %p101 = scmp.ne.s32.totalorder %s90, %s91
    %p102 = scmp.eq.s32.totalorder %s14, 0
    %p103 = por %p101, %p102
    %p104 = scmp.ne.s32.totalorder %s90, %s91
    %p105 = scmp.eq.s32.totalorder %s15, 1
    %p106 = por %p104, %p105
    %p108 = scmp.ne.s32.totalorder %s91, %s107
    %p109 = scmp.eq.s32.totalorder %s15, 0
    %p110 = por %p108, %p109
    %p111 = scmp.le.s32.totalorder 1, %s9
    %p112 = scmp.lt.s32.totalorder %s9, 3
    %p113 = pnand %p111, %p112
    %p114 = pneg %p113
    // Predicated region
    $region9: #{_lambda_.30} parent=5 // pred_check
      _
    $region10: #{_lambda_.30} parent=5 // pred_check_branch
      %116 = sbr.rel (%p113) target = $region12
    $region11: #{_lambda_.30} parent=5 // pred_region
      %s117 = ssub.s32 %s9, 1
      // Predicated region
      $region13: #{_lambda_.30} parent=11 // pred_check
        %p118 = pneg %p56
      $region14: #{_lambda_.30} parent=11 // pred_check_branch
        %120 = sbr.rel (%p118) target = $region16
      $region15: #{_lambda_.30} parent=11 // pred_region
        _
      $region16: #{_lambda_.30} parent=11 // pred_fallthru
        _
      // Predicated region
      $region17: #{_lambda_.30} parent=11 // pred_check
        %p121 = pneg %p77
      $region18: #{_lambda_.30} parent=11 // pred_check_branch
        %123 = sbr.rel (%p121) target = $region20
      $region19: #{_lambda_.30} parent=11 // pred_region
        _
      $region20: #{_lambda_.30} parent=11 // pred_fallthru
        _
    $region12: #{_lambda_.30} parent=5 // pred_fallthru
      _
    %p124 = scmp.lt.s32.totalorder %s9, 2
    // Predicated region
    $region21: #{_lambda_.30} parent=5 // pred_check
      %p125 = pneg %p124
    $region22: #{_lambda_.30} parent=5 // pred_check_branch
      %127 = sbr.rel (%p125) target = $region24
    $region23: #{_lambda_.30} parent=5 // pred_region
      // Predicated region
      $region25: #{_lambda_.30} parent=23 // pred_check
        %p128 = pneg %p29
      $region26: #{_lambda_.30} parent=23 // pred_check_branch
        %130 = sbr.rel (%p128) target = $region28
      $region27: #{_lambda_.30} parent=23 // pred_region
        %s131 = smul.u32 2, %s9
        %p132 = scmp.lt.s32.totalorder %s131, 3
        %s133 = scalar_select %p132, %s131, 3
        %s134 = smul.addr %s133, 4
        %s135 = scalar_lea.vmem %s0, %s134
        %s136 = smul.u32 2, %s9
      $region28: #{_lambda_.30} parent=23 // pred_fallthru
        _
    $region24: #{_lambda_.30} parent=5 // pred_fallthru
      _
    %p137 = scmp.le.s32.totalorder 1, %s9
    %p138 = scmp.lt.s32.totalorder %s9, 3
    %p139 = pnand %p137, %p138
    %p140 = pneg %p139
    // Predicated region
    $region29: #{_lambda_.30} parent=5 // pred_check
      _
    $region30: #{_lambda_.30} parent=5 // pred_check_branch
      %142 = sbr.rel (%p139) target = $region32
    $region31: #{_lambda_.30} parent=5 // pred_region
      %s143 = ssub.s32 %s9, 1
      %s144 = smul.u32 2, %s14
      %p145 = scmp.lt.s32.totalorder %s144, 3
      %s146 = scalar_select %p145, %s144, 3
      %s147 = smul.addr %s146, 4
      %s148 = scalar_lea.vmem %s0, %s147
      %p149 = pneg %p35
      %p150 = pneg %p32
      %p151 = pneg %p56
      %p152 = pneg %p53
      %p153 = pneg %p77
      %p154 = pneg %p74
      %p155 = pneg %p103
      %p156 = pneg %p100
      %s157 = smul.u32 2, %s14
      %p158 = scmp.lt.s32.totalorder %s157, 3
      %s159 = scalar_select %p158, %s157, 3
      %s160 = smul.addr %s159, 4
      %s161 = scalar_lea.vmem %s3, %s160
      %s162 = smul.u32 2, %s14
      %p163 = scmp.lt.s32.totalorder %s162, 3
      %s164 = scalar_select %p163, %s162, 3
      %s165 = smul.addr %s164, 4
      %s166 = scalar_lea.vmem %s0, %s165
      %s167 = smul.u32 2, %s14
      %s168 = smul.u32 2, %s14
      %p169 = scmp.lt.s32.totalorder %s168, 3
      %s170 = scalar_select %p169, %s168, 3
      %s171 = smul.addr %s170, 4
      %s172 = scalar_lea.vmem %s3, %s171
      %s173 = smul.u32 2, %s14
      %v174 = vld [vmem:[%s166] sm:$0xf]
      %v175 = vld [vmem:[%s166 + $0x4] sm:$0xf]
      %v176 = vunpack.c.l.bf16 %v174
      %v177 = vunpack.c.l.bf16 %v175
      %v178 = vld [vmem:[%s1] sm:$0x1]
      %v179 = vld [vmem:[%s2] sm:$0x1]
      %vm180 = vcmask 261120
      %v181 = vsel %vm180, %v176, 0.0
      %182 = vadd.xlane.f32.xlu0 %v181
      %v183 = vpop.xlane.xlu0 %182
      %v184 = vsel %vm180, %v177, 0.0
      %185 = vadd.xlane.f32.xlu0 %v184
      %v186 = vpop.xlane.xlu0 %185
      %v187 = vrcp.pop 32.0
      %v188 = vmul.f32 %v183, %v187
      %v189 = vmul.f32 %v186, %v187
      %v190 = vsub.f32 %v176, %v188
      %v191 = vsub.f32 %v177, %v189
      %v192 = vmul.f32 %v190, %v190
      %v193 = vmul.f32 %v191, %v191
      %v194 = vsel %vm180, %v192, 0.0
      %195 = vadd.xlane.f32.xlu0 %v194
      %v196 = vpop.xlane.xlu0 %195
      %v197 = vsel %vm180, %v193, 0.0
      %198 = vadd.xlane.f32.xlu0 %v197
      %v199 = vpop.xlane.xlu0 %198
      %v200 = vmul.f32 %v196, %v187
      %v201 = vmul.f32 %v199, %v187
      %v202 = vadd.f32 %v200, 1e-05
      %v203 = vadd.f32 %v201, 1e-05
      %v204 = vrsqrt.pop %v202
      %v205 = vrsqrt.pop %v203
      %v206 = vmul.f32 %v190, %v204
      %v207 = vmul.f32 %v191, %v205
      %v209 = vlaneseq
      %v210 = vshrl.u32 %v209, 7
      %v211 = vsub.s32 0, %v210
      %v212 = vrot.slane %v178, %v211
      %v214 = vmul.f32 %v206, %v212
      %v215 = vmul.f32 %v207, %v212
      %v217 = vlaneseq
      %v218 = vshrl.u32 %v217, 7
      %v219 = vsub.s32 0, %v218
      %v220 = vrot.slane %v179, %v219
      %v222 = vadd.f32 %v214, %v220
      %v223 = vadd.f32 %v215, %v220
      %v224 = vpack.c.bf16 %v223, %v222
      %v226 = vunpack.c.l.b16 %v224
      %v227 = vunpack.c.h.b16 %v224
      %v228 = vpack.c.b16 %v226, %v226
      %v229 = vpack.c.b16 %v227, %v227
      %vm232 = vcmask 257024
      %233 = vst.msk [vmem:[%s172] sm:$0xf] %vm232, %v228
      %234 = vst.msk [vmem:[%s172 + $0x4] sm:$0xf] %vm232, %v229
      %s235 = smul.u32 2, %s14
      %p236 = scmp.lt.s32.totalorder %s235, 3
      %s237 = scalar_select %p236, %s235, 3
      %s238 = smul.addr %s237, 4
      %s239 = scalar_lea.vmem %s3, %s238
      // Predicated region
      $region33: #{_lambda_.30} parent=31 // pred_check
        %p240 = pneg %p100
      $region34: #{_lambda_.30} parent=31 // pred_check_branch
        %242 = sbr.rel (%p240) target = $region36
      $region35: #{_lambda_.30} parent=31 // pred_region
        %s243 = smul.u32 2, %s14
      $region36: #{_lambda_.30} parent=31 // pred_fallthru
        _
    $region32: #{_lambda_.30} parent=5 // pred_fallthru
      _
    %p244 = scmp.le.s32.totalorder 2, %s9
    // Predicated region
    $region37: #{_lambda_.30} parent=5 // pred_check
      %p245 = pneg %p244
    $region38: #{_lambda_.30} parent=5 // pred_check_branch
      %247 = sbr.rel (%p245) target = $region40
    $region39: #{_lambda_.30} parent=5 // pred_region
      %s248 = ssub.s32 %s9, 2
      // Predicated region
      $region41: #{_lambda_.30} parent=39 // pred_check
        %p249 = pneg %p106
      $region42: #{_lambda_.30} parent=39 // pred_check_branch
        %251 = sbr.rel (%p249) target = $region44
      $region43: #{_lambda_.30} parent=39 // pred_region
        %s252 = smul.u32 2, %s15
        %p253 = scmp.lt.s32.totalorder %s252, 3
        %s254 = scalar_select %p253, %s252, 3
        %s255 = smul.addr %s254, 4
        %s256 = scalar_lea.vmem %s3, %s255
      $region44: #{_lambda_.30} parent=39 // pred_fallthru
        _
    $region40: #{_lambda_.30} parent=5 // pred_fallthru
      _
  $region6: #{_lambda_.30} parent=0 // loop_footer
    %s13 = sadd.s32 1, %s9
  $region7: #{_lambda_.30} parent=0 // loop_footer_branch
    %8 = sbr.rel target = $region3
  $region8: #{_lambda_.30} parent=0 // loop_exit
    _

// kernel: _lambda_.28
$region0: #{_lambda_.28}
  #allocation0 [shape = 'u32[]', space=smem, size = 0x4, offset = 0x4, fixed_abs, tag = 'smem constant byte address 0x4 - core index']
  #allocation1 [shape = 'u32[144,128]{1,0:T(1,128)}', space=vmem, size = 0x12000, scoped, tag = 'internal scratch']
  %s0 = inlined_call_operand.vmem [shape: bf16[2,10,10,16], index: 0, kind: input, shape index: {}]
  %s1 = inlined_call_operand.vmem [shape: bf16[2,64,16], index: 1, kind: input, shape index: {}]
  %s2 = inlined_call_operand.vmem [shape: f32[2,9,16], index: 2, kind: input, shape index: {}]
  %s3 = inlined_call_operand.vmem [shape: f32[2,16], index: 3, kind: input, shape index: {}]
  %s4 = inlined_call_operand.vmem [shape: bf16[2,16,16], index: 4, kind: input, shape index: {}]
  %s5 = inlined_call_operand.vmem [shape: f32[1,16], index: 5, kind: input, shape index: {}]
  %s6 = inlined_call_operand.vmem [shape: bf16[2,64,16], index: 6, kind: output, shape index: {}]
  %s7 = sld [smem:[#allocation0]]
  $region57: #{_lambda_.28} parent=0
    _
  %s9 = ssub.s32 1, %s7
  %s10 = scalar_select 0, %s9, %s7
  loop: start=0, step=1, limit=4
  $region2: #{_lambda_.28} parent=0 // loop_pre_header
    _
  $region3: #{_lambda_.28} parent=0 // loop_header
    %s12 = sphi 0, %s16
    %p13 = scmp.ge.s32.totalorder %s12, 4
    %s22 = sphi 0, %s24
    %s25 = sphi 0, %s22
    %s26 = sphi 0, %s25
    %s42 = sphi 0, %s26
    %s48 = sphi 0, %s50
    %s51 = sphi 0, %s48
    %s52 = sphi 0, %s51
    %s68 = sphi 0, %s52
    %s72 = sphi 0, %s72
    %s74 = sphi 0, %s72
    %s75 = sphi 0, %s74
    %s89 = sphi 0, %s75
    %s93 = sphi 0, %s93
    %s95 = sphi 0, %s93
    %s96 = sphi 0, %s95
    %s110 = sphi 0, %s96
    %s114 = sphi 0, %s114
    %s116 = sphi 0, %s114
    %s117 = sphi 0, %s116
    %s131 = sphi 0, %s117
    %s135 = sphi 0, %s135
    %s137 = sphi 0, %s135
    %s138 = sphi 0, %s137
    %s152 = sphi 0, %s138
    %s158 = sphi 0, %s160
    %s161 = sphi 0, %s158
    %s162 = sphi 0, %s161
    %s178 = sphi 0, %s162
  $region4: #{_lambda_.28} parent=0 // loop_header_branch
    %15 = sbr.rel (%p13) target = $region8
  $region5: #{_lambda_.28} parent=0 // loop_body
    %s17 = ssub.s32 %s12, 1
    %s18 = ssub.s32 %s12, 2
    %s19 = sadd.s32 %s12, 1
    %s20 = ssub.s32 %s12, %s19
    %p21 = scmp.eq.s32.totalorder %s20, 0
    %s23 = sadd.s32 %s22, 1
    %s24 = scalar_select %p21, %s22, %s23
    %p27 = pneg %p21
    %p28 = scmp.eq.s32.totalorder %s12, 1
    %p29 = por %p27, %p28
    %p30 = scmp.ne.s32.totalorder %s22, %s25
    %p31 = scmp.eq.s32.totalorder %s12, 0
    %p32 = por %p30, %p31
    %p33 = scmp.ne.s32.totalorder %s22, %s25
    %p34 = scmp.eq.s32.totalorder %s17, 1
    %p35 = por %p33, %p34
    %p36 = scmp.ne.s32.totalorder %s25, %s26
    %p37 = scmp.eq.s32.totalorder %s17, 0
    %p38 = por %p36, %p37
    %p39 = scmp.ne.s32.totalorder %s25, %s26
    %p40 = scmp.eq.s32.totalorder %s18, 1
    %p41 = por %p39, %p40
    %p43 = scmp.ne.s32.totalorder %s26, %s42
    %p44 = scmp.eq.s32.totalorder %s18, 0
    %p45 = por %p43, %p44
    %s46 = ssub.s32 %s12, %s19
    %p47 = scmp.eq.s32.totalorder %s46, 0
    %s49 = sadd.s32 %s48, 1
    %s50 = scalar_select %p47, %s48, %s49
    %p53 = pneg %p47
    %p54 = scmp.eq.s32.totalorder %s12, 1
    %p55 = por %p53, %p54
    %p56 = scmp.ne.s32.totalorder %s48, %s51
    %p57 = scmp.eq.s32.totalorder %s12, 0
    %p58 = por %p56, %p57
    %p59 = scmp.ne.s32.totalorder %s48, %s51
    %p60 = scmp.eq.s32.totalorder %s17, 1
    %p61 = por %p59, %p60
    %p62 = scmp.ne.s32.totalorder %s51, %s52
    %p63 = scmp.eq.s32.totalorder %s17, 0
    %p64 = por %p62, %p63
    %p65 = scmp.ne.s32.totalorder %s51, %s52
    %p66 = scmp.eq.s32.totalorder %s18, 1
    %p67 = por %p65, %p66
    %p69 = scmp.ne.s32.totalorder %s52, %s68
    %p70 = scmp.eq.s32.totalorder %s18, 0
    %p71 = por %p69, %p70
    %s73 = sadd.s32 %s72, 1
    %p76 = scmp.eq.s32.totalorder %s12, 1
    %p77 = scmp.ne.s32.totalorder %s72, %s74
    %p78 = scmp.eq.s32.totalorder %s12, 0
    %p79 = por %p77, %p78
    %p80 = scmp.ne.s32.totalorder %s72, %s74
    %p81 = scmp.eq.s32.totalorder %s17, 1
    %p82 = por %p80, %p81
    %p83 = scmp.ne.s32.totalorder %s74, %s75
    %p84 = scmp.eq.s32.totalorder %s17, 0
    %p85 = por %p83, %p84
    %p86 = scmp.ne.s32.totalorder %s74, %s75
    %p87 = scmp.eq.s32.totalorder %s18, 1
    %p88 = por %p86, %p87
    %p90 = scmp.ne.s32.totalorder %s75, %s89
    %p91 = scmp.eq.s32.totalorder %s18, 0
    %p92 = por %p90, %p91
    %s94 = sadd.s32 %s93, 1
    %p97 = scmp.eq.s32.totalorder %s12, 1
    %p98 = scmp.ne.s32.totalorder %s93, %s95
    %p99 = scmp.eq.s32.totalorder %s12, 0
    %p100 = por %p98, %p99
    %p101 = scmp.ne.s32.totalorder %s93, %s95
    %p102 = scmp.eq.s32.totalorder %s17, 1
    %p103 = por %p101, %p102
    %p104 = scmp.ne.s32.totalorder %s95, %s96
    %p105 = scmp.eq.s32.totalorder %s17, 0
    %p106 = por %p104, %p105
    %p107 = scmp.ne.s32.totalorder %s95, %s96
    %p108 = scmp.eq.s32.totalorder %s18, 1
    %p109 = por %p107, %p108
    %p111 = scmp.ne.s32.totalorder %s96, %s110
    %p112 = scmp.eq.s32.totalorder %s18, 0
    %p113 = por %p111, %p112
    %s115 = sadd.s32 %s114, 1
    %p118 = scmp.eq.s32.totalorder %s12, 1
    %p119 = scmp.ne.s32.totalorder %s114, %s116
    %p120 = scmp.eq.s32.totalorder %s12, 0
    %p121 = por %p119, %p120
    %p122 = scmp.ne.s32.totalorder %s114, %s116
    %p123 = scmp.eq.s32.totalorder %s17, 1
    %p124 = por %p122, %p123
    %p125 = scmp.ne.s32.totalorder %s116, %s117
    %p126 = scmp.eq.s32.totalorder %s17, 0
    %p127 = por %p125, %p126
    %p128 = scmp.ne.s32.totalorder %s116, %s117
    %p129 = scmp.eq.s32.totalorder %s18, 1
    %p130 = por %p128, %p129
    %p132 = scmp.ne.s32.totalorder %s117, %s131
    %p133 = scmp.eq.s32.totalorder %s18, 0
    %p134 = por %p132, %p133
    %s136 = sadd.s32 %s135, 1
    %p139 = scmp.eq.s32.totalorder %s12, 1
    %p140 = scmp.ne.s32.totalorder %s135, %s137
    %p141 = scmp.eq.s32.totalorder %s12, 0
    %p142 = por %p140, %p141
    %p143 = scmp.ne.s32.totalorder %s135, %s137
    %p144 = scmp.eq.s32.totalorder %s17, 1
    %p145 = por %p143, %p144
    %p146 = scmp.ne.s32.totalorder %s137, %s138
    %p147 = scmp.eq.s32.totalorder %s17, 0
    %p148 = por %p146, %p147
    %p149 = scmp.ne.s32.totalorder %s137, %s138
    %p150 = scmp.eq.s32.totalorder %s18, 1
    %p151 = por %p149, %p150
    %p153 = scmp.ne.s32.totalorder %s138, %s152
    %p154 = scmp.eq.s32.totalorder %s18, 0
    %p155 = por %p153, %p154
    %s156 = ssub.s32 %s12, %s19
    %p157 = scmp.eq.s32.totalorder %s156, 0
    %s159 = sadd.s32 %s158, 1
    %s160 = scalar_select %p157, %s158, %s159
    %p163 = pneg %p157
    %p164 = scmp.eq.s32.totalorder %s12, 1
    %p165 = por %p163, %p164
    %p166 = scmp.ne.s32.totalorder %s158, %s161
    %p167 = scmp.eq.s32.totalorder %s12, 0
    %p168 = por %p166, %p167
    %p169 = scmp.ne.s32.totalorder %s158, %s161
    %p170 = scmp.eq.s32.totalorder %s17, 1
    %p171 = por %p169, %p170
    %p172 = scmp.ne.s32.totalorder %s161, %s162
    %p173 = scmp.eq.s32.totalorder %s17, 0
    %p174 = por %p172, %p173
    %p175 = scmp.ne.s32.totalorder %s161, %s162
    %p176 = scmp.eq.s32.totalorder %s18, 1
    %p177 = por %p175, %p176
    %p179 = scmp.ne.s32.totalorder %s162, %s178
    %p180 = scmp.eq.s32.totalorder %s18, 0
    %p181 = por %p179, %p180
    %p182 = scmp.le.s32.totalorder 1, %s12
    %p183 = scmp.lt.s32.totalorder %s12, 3
    %p184 = pnand %p182, %p183
    %p185 = pneg %p184
    // Predicated region
    $region9: #{_lambda_.28} parent=5 // pred_check
      _
    $region10: #{_lambda_.28} parent=5 // pred_check_branch
      %187 = sbr.rel (%p184) target = $region12
    $region11: #{_lambda_.28} parent=5 // pred_region
      %s188 = ssub.s32 %s12, 1
      // Predicated region
      $region13: #{_lambda_.28} parent=11 // pred_check
        %p189 = pneg %p85
      $region14: #{_lambda_.28} parent=11 // pred_check_branch
        %191 = sbr.rel (%p189) target = $region16
      $region15: #{_lambda_.28} parent=11 // pred_region
        _
      $region16: #{_lambda_.28} parent=11 // pred_fallthru
        _
      // Predicated region
      $region17: #{_lambda_.28} parent=11 // pred_check
        %p192 = pneg %p106
      $region18: #{_lambda_.28} parent=11 // pred_check_branch
        %194 = sbr.rel (%p192) target = $region20
      $region19: #{_lambda_.28} parent=11 // pred_region
        _
      $region20: #{_lambda_.28} parent=11 // pred_fallthru
        _
      // Predicated region
      $region21: #{_lambda_.28} parent=11 // pred_check
        %p195 = pneg %p127
      $region22: #{_lambda_.28} parent=11 // pred_check_branch
        %197 = sbr.rel (%p195) target = $region24
      $region23: #{_lambda_.28} parent=11 // pred_region
        _
      $region24: #{_lambda_.28} parent=11 // pred_fallthru
        _
      // Predicated region
      $region25: #{_lambda_.28} parent=11 // pred_check
        %p198 = pneg %p148
      $region26: #{_lambda_.28} parent=11 // pred_check_branch
        %200 = sbr.rel (%p198) target = $region28
      $region27: #{_lambda_.28} parent=11 // pred_region
        _
      $region28: #{_lambda_.28} parent=11 // pred_fallthru
        _
    $region12: #{_lambda_.28} parent=5 // pred_fallthru
      _
    %p201 = scmp.lt.s32.totalorder %s12, 2
    // Predicated region
    $region29: #{_lambda_.28} parent=5 // pred_check
      %p202 = pneg %p201
    $region30: #{_lambda_.28} parent=5 // pred_check_branch
      %204 = sbr.rel (%p202) target = $region32
    $region31: #{_lambda_.28} parent=5 // pred_region
      // Predicated region
      $region33: #{_lambda_.28} parent=31 // pred_check
        %p205 = pneg %p32
      $region34: #{_lambda_.28} parent=31 // pred_check_branch
        %207 = sbr.rel (%p205) target = $region36
      $region35: #{_lambda_.28} parent=31 // pred_region
        %p208 = scmp.lt.s32.totalorder %s12, 1
        %s209 = scalar_select %p208, %s12, 1
        %s210 = smul.addr %s209, 20
        %s211 = smul.addr %s210, 4
        %s212 = scalar_lea.vmem %s0, %s211
      $region36: #{_lambda_.28} parent=31 // pred_fallthru
        _
      // Predicated region
      $region37: #{_lambda_.28} parent=31 // pred_check
        %p213 = pneg %p58
      $region38: #{_lambda_.28} parent=31 // pred_check_branch
        %215 = sbr.rel (%p213) target = $region40
      $region39: #{_lambda_.28} parent=31 // pred_region
        %p216 = scmp.lt.s32.totalorder %s12, 1
        %s217 = scalar_select %p216, %s12, 1
        %s218 = smul.addr %s217, 8
        %s219 = smul.addr %s218, 4
        %s220 = scalar_lea.vmem %s1, %s219
      $region40: #{_lambda_.28} parent=31 // pred_fallthru
        _
    $region32: #{_lambda_.28} parent=5 // pred_fallthru
      _
    %p221 = scmp.le.s32.totalorder 1, %s12
    %p222 = scmp.lt.s32.totalorder %s12, 3
    %p223 = pnand %p221, %p222
    %p224 = pneg %p223
    // Predicated region
    $region41: #{_lambda_.28} parent=5 // pred_check
      _
    $region42: #{_lambda_.28} parent=5 // pred_check_branch
      %226 = sbr.rel (%p223) target = $region44
    $region43: #{_lambda_.28} parent=5 // pred_region
      %s227 = ssub.s32 %s12, 1
      %p228 = scmp.lt.s32.totalorder %s17, 1
      %s229 = scalar_select %p228, %s17, 1
      %s230 = smul.addr %s229, 20
      %s231 = smul.addr %s230, 4
      %s232 = scalar_lea.vmem %s0, %s231
      %p233 = pneg %p38
      %p234 = pneg %p35
      %p235 = scmp.lt.s32.totalorder %s17, 1
      %s236 = scalar_select %p235, %s17, 1
      %s237 = smul.addr %s236, 8
      %s238 = smul.addr %s237, 4
      %s239 = scalar_lea.vmem %s1, %s238
      %p240 = pneg %p64
      %p241 = pneg %p61
      %p242 = pneg %p85
      %p243 = pneg %p82
      %p244 = pneg %p106
      %p245 = pneg %p103
      %p246 = pneg %p127
      %p247 = pneg %p124
      %p248 = pneg %p148
      %p249 = pneg %p145
      %p250 = pneg %p174
      %p251 = pneg %p171
      %p252 = scmp.lt.s32.totalorder %s17, 1
      %s253 = scalar_select %p252, %s17, 1
      %s254 = smul.addr %s253, 8
      %s255 = smul.addr %s254, 4
      %s256 = scalar_lea.vmem %s6, %s255
      %p257 = scmp.lt.s32.totalorder %s17, 1
      %s258 = scalar_select %p257, %s17, 1
      %s259 = smul.addr %s258, 20
      %s260 = smul.addr %s259, 4
      %s261 = scalar_lea.vmem %s0, %s260
      %p262 = scmp.lt.s32.totalorder %s17, 1
      %s263 = scalar_select %p262, %s17, 1
      %s264 = smul.addr %s263, 8
      %s265 = smul.addr %s264, 4
      %s266 = scalar_lea.vmem %s1, %s265
      %p267 = scmp.lt.s32.totalorder %s17, 1
      %s268 = scalar_select %p267, %s17, 1
      %s269 = smul.addr %s268, 8
      %s270 = smul.addr %s269, 4
      %s271 = scalar_lea.vmem %s6, %s270
      %v273 = vld [vmem:[%s2] sm:$0xff]
      %v274 = vld [vmem:[%s2 + $0x8] sm:$0x1]
      %v275 = vld [vmem:[%s2 + $0x10] sm:$0xff]
      %v276 = vld [vmem:[%s2 + $0x18] sm:$0x1]
      %v277 = vld [vmem:[%s3] sm:$0x3]
      %v278 = vld [vmem:[%s4] sm:$0xf]
      %v279 = vld [vmem:[%s4 + $0x4] sm:$0xf]
      %v280 = vld [vmem:[%s4 + $0x8] sm:$0xf]
      %v281 = vld [vmem:[%s4 + $0xc] sm:$0xf]
      %v282 = vld [vmem:[%s266] sm:$0xf]
      %v283 = vld [vmem:[%s266 + $0x4] sm:$0xf]
      %v284 = vld [vmem:[%s266 + $0x8] sm:$0xf]
      %v285 = vld [vmem:[%s266 + $0xc] sm:$0xf]
      %v286 = vld [vmem:[%s266 + $0x10] sm:$0xf]
      %v287 = vld [vmem:[%s266 + $0x14] sm:$0xf]
      %v288 = vld [vmem:[%s266 + $0x18] sm:$0xf]
      %v289 = vld [vmem:[%s266 + $0x1c] sm:$0xf]
      %v290 = vunpack.c.l.bf16 %v282
      %v291 = vunpack.c.l.bf16 %v283
      %v292 = vunpack.c.l.bf16 %v284
      %v293 = vunpack.c.l.bf16 %v285
      %v294 = vunpack.c.l.bf16 %v286
      %v295 = vunpack.c.l.bf16 %v287
      %v296 = vunpack.c.l.bf16 %v288
      %v297 = vunpack.c.l.bf16 %v289
      %v298 = vld [vmem:[%s5] sm:$0x1]
      %v300 = vlaneseq
      %v301 = vshrl.u32 %v300, 7
      %v302 = vsub.s32 0, %v301
      %v303 = vrot.slane %v298, %v302
      %v305 = vadd.f32 %v290, %v303
      %v306 = vadd.f32 %v291, %v303
      %v307 = vadd.f32 %v292, %v303
      %v308 = vadd.f32 %v293, %v303
      %v309 = vadd.f32 %v294, %v303
      %v310 = vadd.f32 %v295, %v303
      %v311 = vadd.f32 %v296, %v303
      %v312 = vadd.f32 %v297, %v303
      %v313 = vlaneseq
      %v314 = vshrl.u32 %v313, 7
      %v315 = vsub.s32 0, %v314
      %v316 = vrot.slane %v277, %v315
      %v317 = vadd.f32 %v316, 0.0
      %v318 = vld [vmem:[%s261] sm:$0xf]
      %v319 = vld [vmem:[%s261 + $0x8] sm:$0xf]
      %v320 = vld [vmem:[%s261 + $0x10] sm:$0xf]
      %v321 = vld [vmem:[%s261 + $0x18] sm:$0xf]
      %v322 = vld [vmem:[%s261 + $0x20] sm:$0xf]
      %v323 = vld [vmem:[%s261 + $0x28] sm:$0xf]
      %v324 = vld [vmem:[%s261 + $0x30] sm:$0xf]
      %v325 = vld [vmem:[%s261 + $0x38] sm:$0xf]
      %v326 = vunpack.c.l.bf16 %v318
      %v327 = vunpack.c.l.bf16 %v319
      %v328 = vunpack.c.l.bf16 %v320
      %v329 = vunpack.c.l.bf16 %v321
      %v330 = vunpack.c.l.bf16 %v322
      %v331 = vunpack.c.l.bf16 %v323
      %v332 = vunpack.c.l.bf16 %v324
      %v333 = vunpack.c.l.bf16 %v325
      %v334 = vlaneseq
      %v335 = vshrl.u32 %v334, 7
      %v336 = vsub.s32 0, %v335
      %v337 = vrot.slane %v273, %v336
      %v338 = vmul.f32 %v326, %v337
      %v339 = vmul.f32 %v327, %v337
      %v340 = vmul.f32 %v328, %v337
      %v341 = vmul.f32 %v329, %v337
      %v342 = vmul.f32 %v330, %v337
      %v343 = vmul.f32 %v331, %v337
      %v344 = vmul.f32 %v332, %v337
      %v345 = vmul.f32 %v333, %v337
      %v346 = vadd.f32 %v317, %v338
      %v347 = vadd.f32 %v317, %v339
      %v348 = vadd.f32 %v317, %v340
      %v349 = vadd.f32 %v317, %v341
      %v350 = vadd.f32 %v317, %v342
      %v351 = vadd.f32 %v317, %v343
      %v352 = vadd.f32 %v317, %v344
      %v353 = vadd.f32 %v317, %v345
      %v354 = vld [vmem:[%s261 + $0x4] sm:$0x1]
      %v355 = vld [vmem:[%s261 + $0xc] sm:$0x1]
      %v356 = vld [vmem:[%s261 + $0x14] sm:$0x1]
      %v357 = vld [vmem:[%s261 + $0x1c] sm:$0x1]
      %v358 = vld [vmem:[%s261 + $0x24] sm:$0x1]
      %v359 = vld [vmem:[%s261 + $0x2c] sm:$0x1]
      %v360 = vld [vmem:[%s261 + $0x34] sm:$0x1]
      %v361 = vld [vmem:[%s261 + $0x3c] sm:$0x1]
      %v362 = vunpack.c.l.bf16 %v354
      %v363 = vunpack.c.l.bf16 %v355
      %v364 = vunpack.c.l.bf16 %v356
      %v365 = vunpack.c.l.bf16 %v357
      %v366 = vunpack.c.l.bf16 %v358
      %v367 = vunpack.c.l.bf16 %v359
      %v368 = vunpack.c.l.bf16 %v360
      %v369 = vunpack.c.l.bf16 %v361
      %v370 = vlaneseq
      %v371 = vshrl.u32 %v370, 7
      %v372 = vsub.s32 1, %v371
      %v373 = vrot.slane %v273, %v372
      %v374 = vmul.f32 %v326, %v373
      %v375 = vmul.f32 %v362, %v373
      %v376 = vmul.f32 %v327, %v373
      %v377 = vmul.f32 %v363, %v373
      %v378 = vmul.f32 %v328, %v373
      %v379 = vmul.f32 %v364, %v373
      %v380 = vmul.f32 %v329, %v373
      %v381 = vmul.f32 %v365, %v373
      %v382 = vmul.f32 %v330, %v373
      %v383 = vmul.f32 %v366, %v373
      %v384 = vmul.f32 %v331, %v373
      %v385 = vmul.f32 %v367, %v373
      %v386 = vmul.f32 %v332, %v373
      %v387 = vmul.f32 %v368, %v373
      %v388 = vmul.f32 %v333, %v373
      %v389 = vmul.f32 %v369, %v373
      %vm406 = vcmask 1046528
      %v407 = vrot.slane %v374, 1
      %v408 = vrot.slane %v375, 1
      %v409 = vsel %vm406, %v407, %v408
      %v410 = vrot.slane %v376, 1
      %v411 = vrot.slane %v377, 1
      %v412 = vsel %vm406, %v410, %v411
      %v413 = vrot.slane %v378, 1
      %v414 = vrot.slane %v379, 1
      %v415 = vsel %vm406, %v413, %v414
      %v416 = vrot.slane %v380, 1
      %v417 = vrot.slane %v381, 1
      %v418 = vsel %vm406, %v416, %v417
      %v419 = vrot.slane %v382, 1
      %v420 = vrot.slane %v383, 1
      %v421 = vsel %vm406, %v419, %v420
      %v422 = vrot.slane %v384, 1
      %v423 = vrot.slane %v385, 1
      %v424 = vsel %vm406, %v422, %v423
      %v425 = vrot.slane %v386, 1
      %v426 = vrot.slane %v387, 1
      %v427 = vsel %vm406, %v425, %v426
      %v428 = vrot.slane %v388, 1
      %v429 = vrot.slane %v389, 1
      %v430 = vsel %vm406, %v428, %v429
      %v439 = vadd.f32 %v346, %v409
      %v440 = vadd.f32 %v347, %v412
      %v441 = vadd.f32 %v348, %v415
      %v442 = vadd.f32 %v349, %v418
      %v443 = vadd.f32 %v350, %v421
      %v444 = vadd.f32 %v351, %v424
      %v445 = vadd.f32 %v352, %v427
      %v446 = vadd.f32 %v353, %v430
      %v447 = vld [vmem:[%s261] sm:$0xe]
      %v448 = vld [vmem:[%s261 + $0x8] sm:$0xe]
      %v449 = vld [vmem:[%s261 + $0x10] sm:$0xe]
      %v450 = vld [vmem:[%s261 + $0x18] sm:$0xe]
      %v451 = vld [vmem:[%s261 + $0x20] sm:$0xe]
      %v452 = vld [vmem:[%s261 + $0x28] sm:$0xe]
      %v453 = vld [vmem:[%s261 + $0x30] sm:$0xe]
      %v454 = vld [vmem:[%s261 + $0x38] sm:$0xe]
      %v455 = vunpack.c.l.bf16 %v447
      %v456 = vunpack.c.l.bf16 %v448
      %v457 = vunpack.c.l.bf16 %v449
      %v458 = vunpack.c.l.bf16 %v450
      %v459 = vunpack.c.l.bf16 %v451
      %v460 = vunpack.c.l.bf16 %v452
      %v461 = vunpack.c.l.bf16 %v453
      %v462 = vunpack.c.l.bf16 %v454
      %v463 = vlaneseq
      %v464 = vshrl.u32 %v463, 7
      %v465 = vsub.s32 2, %v464
      %v466 = vrot.slane %v273, %v465
      %v467 = vmul.f32 %v455, %v466
      %v468 = vmul.f32 %v362, %v466
      %v469 = vmul.f32 %v456, %v466
      %v470 = vmul.f32 %v363, %v466
      %v471 = vmul.f32 %v457, %v466
      %v472 = vmul.f32 %v364, %v466
      %v473 = vmul.f32 %v458, %v466
      %v474 = vmul.f32 %v365, %v466
      %v475 = vmul.f32 %v459, %v466
      %v476 = vmul.f32 %v366, %v466
      %v477 = vmul.f32 %v460, %v466
      %v478 = vmul.f32 %v367, %v466
      %v479 = vmul.f32 %v461, %v466
      %v480 = vmul.f32 %v368, %v466
      %v481 = vmul.f32 %v462, %v466
      %v482 = vmul.f32 %v369, %v466
      %vm499 = vcmask 1045504
      %v500 = vrot.slane %v467, 2
      %v501 = vrot.slane %v468, 2
      %v502 = vsel %vm499, %v500, %v501
      %v503 = vrot.slane %v469, 2
      %v504 = vrot.slane %v470, 2
      %v505 = vsel %vm499, %v503, %v504
      %v506 = vrot.slane %v471, 2
      %v507 = vrot.slane %v472, 2
      %v508 = vsel %vm499, %v506, %v507
      %v509 = vrot.slane %v473, 2
      %v510 = vrot.slane %v474, 2
      %v511 = vsel %vm499, %v509, %v510
      %v512 = vrot.slane %v475, 2
      %v513 = vrot.slane %v476, 2
      %v514 = vsel %vm499, %v512, %v513
      %v515 = vrot.slane %v477, 2
      %v516 = vrot.slane %v478, 2
      %v517 = vsel %vm499, %v515, %v516
      %v518 = vrot.slane %v479, 2
      %v519 = vrot.slane %v480, 2
      %v520 = vsel %vm499, %v518, %v519
      %v521 = vrot.slane %v481, 2
      %v522 = vrot.slane %v482, 2
      %v523 = vsel %vm499, %v521, %v522
      %v532 = vadd.f32 %v439, %v502
      %v533 = vadd.f32 %v440, %v505
      %v534 = vadd.f32 %v441, %v508
      %v535 = vadd.f32 %v442, %v511
      %v536 = vadd.f32 %v443, %v514
      %v537 = vadd.f32 %v444, %v517
      %v538 = vadd.f32 %v445, %v520
      %v539 = vadd.f32 %v446, %v523
      %s540 = scalar_lea.vmem %s261, 8
      %v541 = vld [vmem:[%s540] sm:$0xf]
      %v542 = vld [vmem:[%s540 + $0x8] sm:$0xf]
      %v543 = vld [vmem:[%s540 + $0x10] sm:$0xf]
      %v544 = vld [vmem:[%s540 + $0x18] sm:$0xf]
      %v545 = vld [vmem:[%s540 + $0x20] sm:$0xf]
      %v546 = vld [vmem:[%s540 + $0x28] sm:$0xf]
      %v547 = vld [vmem:[%s540 + $0x30] sm:$0xf]
      %v548 = vld [vmem:[%s540 + $0x38] sm:$0xf]
      %v549 = vunpack.c.l.bf16 %v541
      %v550 = vunpack.c.l.bf16 %v542
      %v551 = vunpack.c.l.bf16 %v543
      %v552 = vunpack.c.l.bf16 %v544
      %v553 = vunpack.c.l.bf16 %v545
      %v554 = vunpack.c.l.bf16 %v546
      %v555 = vunpack.c.l.bf16 %v547
      %v556 = vunpack.c.l.bf16 %v548
      %v557 = vlaneseq
      %v558 = vshrl.u32 %v557, 7
      %v559 = vsub.s32 3, %v558
      %v560 = vrot.slane %v273, %v559
      %v561 = vmul.f32 %v549, %v560
      %v562 = vmul.f32 %v550, %v560
      %v563 = vmul.f32 %v551, %v560
      %v564 = vmul.f32 %v552, %v560
      %v565 = vmul.f32 %v553, %v560
      %v566 = vmul.f32 %v554, %v560
      %v567 = vmul.f32 %v555, %v560
      %v568 = vmul.f32 %v556, %v560
      %v569 = vadd.f32 %v532, %v561
      %v570 = vadd.f32 %v533, %v562
      %v571 = vadd.f32 %v534, %v563
      %v572 = vadd.f32 %v535, %v564
      %v573 = vadd.f32 %v536, %v565
      %v574 = vadd.f32 %v537, %v566
      %v575 = vadd.f32 %v538, %v567
      %v576 = vadd.f32 %v539, %v568
      %v577 = vld [vmem:[%s540 + $0x4] sm:$0x1]
      %v578 = vld [vmem:[%s540 + $0xc] sm:$0x1]
      %v579 = vld [vmem:[%s540 + $0x14] sm:$0x1]
      %v580 = vld [vmem:[%s540 + $0x1c] sm:$0x1]
      %v581 = vld [vmem:[%s540 + $0x24] sm:$0x1]
      %v582 = vld [vmem:[%s540 + $0x2c] sm:$0x1]
      %v583 = vld [vmem:[%s540 + $0x34] sm:$0x1]
      %v584 = vld [vmem:[%s540 + $0x3c] sm:$0x1]
      %v585 = vunpack.c.l.bf16 %v577
      %v586 = vunpack.c.l.bf16 %v578
      %v587 = vunpack.c.l.bf16 %v579
      %v588 = vunpack.c.l.bf16 %v580
      %v589 = vunpack.c.l.bf16 %v581
      %v590 = vunpack.c.l.bf16 %v582
      %v591 = vunpack.c.l.bf16 %v583
      %v592 = vunpack.c.l.bf16 %v584
      %v593 = vlaneseq
      %v594 = vshrl.u32 %v593, 7
      %v595 = vsub.s32 4, %v594
      %v596 = vrot.slane %v273, %v595
      %v597 = vmul.f32 %v549, %v596
      %v598 = vmul.f32 %v585, %v596
      %v599 = vmul.f32 %v550, %v596
      %v600 = vmul.f32 %v586, %v596
      %v601 = vmul.f32 %v551, %v596
      %v602 = vmul.f32 %v587, %v596
      %v603 = vmul.f32 %v552, %v596
      %v604 = vmul.f32 %v588, %v596
      %v605 = vmul.f32 %v553, %v596
      %v606 = vmul.f32 %v589, %v596
      %v607 = vmul.f32 %v554, %v596
      %v608 = vmul.f32 %v590, %v596
      %v609 = vmul.f32 %v555, %v596
      %v610 = vmul.f32 %v591, %v596
      %v611 = vmul.f32 %v556, %v596
      %v612 = vmul.f32 %v592, %v596
      %v629 = vrot.slane %v597, 1
      %v630 = vrot.slane %v598, 1
      %v631 = vsel %vm406, %v629, %v630
      %v632 = vrot.slane %v599, 1
      %v633 = vrot.slane %v600, 1
      %v634 = vsel %vm406, %v632, %v633
      %v635 = vrot.slane %v601, 1
      %v636 = vrot.slane %v602, 1
      %v637 = vsel %vm406, %v635, %v636
      %v638 = vrot.slane %v603, 1
      %v639 = vrot.slane %v604, 1
      %v640 = vsel %vm406, %v638, %v639
      %v641 = vrot.slane %v605, 1
      %v642 = vrot.slane %v606, 1
      %v643 = vsel %vm406, %v641, %v642
      %v644 = vrot.slane %v607, 1
      %v645 = vrot.slane %v608, 1
      %v646 = vsel %vm406, %v644, %v645
      %v647 = vrot.slane %v609, 1
      %v648 = vrot.slane %v610, 1
      %v649 = vsel %vm406, %v647, %v648
      %v650 = vrot.slane %v611, 1
      %v651 = vrot.slane %v612, 1
      %v652 = vsel %vm406, %v650, %v651
      %v661 = vadd.f32 %v569, %v631
      %v662 = vadd.f32 %v570, %v634
      %v663 = vadd.f32 %v571, %v637
      %v664 = vadd.f32 %v572, %v640
      %v665 = vadd.f32 %v573, %v643
      %v666 = vadd.f32 %v574, %v646
      %v667 = vadd.f32 %v575, %v649
      %v668 = vadd.f32 %v576, %v652
      %v669 = vld [vmem:[%s540] sm:$0xe]
      %v670 = vld [vmem:[%s540 + $0x8] sm:$0xe]
      %v671 = vld [vmem:[%s540 + $0x10] sm:$0xe]
      %v672 = vld [vmem:[%s540 + $0x18] sm:$0xe]
      %v673 = vld [vmem:[%s540 + $0x20] sm:$0xe]
      %v674 = vld [vmem:[%s540 + $0x28] sm:$0xe]
      %v675 = vld [vmem:[%s540 + $0x30] sm:$0xe]
      %v676 = vld [vmem:[%s540 + $0x38] sm:$0xe]
      %v677 = vunpack.c.l.bf16 %v669
      %v678 = vunpack.c.l.bf16 %v670
      %v679 = vunpack.c.l.bf16 %v671
      %v680 = vunpack.c.l.bf16 %v672
      %v681 = vunpack.c.l.bf16 %v673
      %v682 = vunpack.c.l.bf16 %v674
      %v683 = vunpack.c.l.bf16 %v675
      %v684 = vunpack.c.l.bf16 %v676
      %v685 = vlaneseq
      %v686 = vshrl.u32 %v685, 7
      %v687 = vsub.s32 5, %v686
      %v688 = vrot.slane %v273, %v687
      %v689 = vmul.f32 %v677, %v688
      %v690 = vmul.f32 %v585, %v688
      %v691 = vmul.f32 %v678, %v688
      %v692 = vmul.f32 %v586, %v688
      %v693 = vmul.f32 %v679, %v688
      %v694 = vmul.f32 %v587, %v688
      %v695 = vmul.f32 %v680, %v688
      %v696 = vmul.f32 %v588, %v688
      %v697 = vmul.f32 %v681, %v688
      %v698 = vmul.f32 %v589, %v688
      %v699 = vmul.f32 %v682, %v688
      %v700 = vmul.f32 %v590, %v688
      %v701 = vmul.f32 %v683, %v688
      %v702 = vmul.f32 %v591, %v688
      %v703 = vmul.f32 %v684, %v688
      %v704 = vmul.f32 %v592, %v688
      %v721 = vrot.slane %v689, 2
      %v722 = vrot.slane %v690, 2
      %v723 = vsel %vm499, %v721, %v722
      %v724 = vrot.slane %v691, 2
      %v725 = vrot.slane %v692, 2
      %v726 = vsel %vm499, %v724, %v725
      %v727 = vrot.slane %v693, 2
      %v728 = vrot.slane %v694, 2
      %v729 = vsel %vm499, %v727, %v728
      %v730 = vrot.slane %v695, 2
      %v731 = vrot.slane %v696, 2
      %v732 = vsel %vm499, %v730, %v731
      %v733 = vrot.slane %v697, 2
      %v734 = vrot.slane %v698, 2
      %v735 = vsel %vm499, %v733, %v734
      %v736 = vrot.slane %v699, 2
      %v737 = vrot.slane %v700, 2
      %v738 = vsel %vm499, %v736, %v737
      %v739 = vrot.slane %v701, 2
      %v740 = vrot.slane %v702, 2
      %v741 = vsel %vm499, %v739, %v740
      %v742 = vrot.slane %v703, 2
      %v743 = vrot.slane %v704, 2
      %v744 = vsel %vm499, %v742, %v743
      %v753 = vadd.f32 %v661, %v723
      %v754 = vadd.f32 %v662, %v726
      %v755 = vadd.f32 %v663, %v729
      %v756 = vadd.f32 %v664, %v732
      %v757 = vadd.f32 %v665, %v735
      %v758 = vadd.f32 %v666, %v738
      %v759 = vadd.f32 %v667, %v741
      %v760 = vadd.f32 %v668, %v744
      %s761 = scalar_lea.vmem %s261, 16
      %v762 = vld [vmem:[%s761] sm:$0xf]
      %v763 = vld [vmem:[%s761 + $0x8] sm:$0xf]
      %v764 = vld [vmem:[%s761 + $0x10] sm:$0xf]
      %v765 = vld [vmem:[%s761 + $0x18] sm:$0xf]
      %v766 = vld [vmem:[%s761 + $0x20] sm:$0xf]
      %v767 = vld [vmem:[%s761 + $0x28] sm:$0xf]
      %v768 = vld [vmem:[%s761 + $0x30] sm:$0xf]
      %v769 = vld [vmem:[%s761 + $0x38] sm:$0xf]
      %v770 = vunpack.c.l.bf16 %v762
      %v771 = vunpack.c.l.bf16 %v763
      %v772 = vunpack.c.l.bf16 %v764
      %v773 = vunpack.c.l.bf16 %v765
      %v774 = vunpack.c.l.bf16 %v766
      %v775 = vunpack.c.l.bf16 %v767
      %v776 = vunpack.c.l.bf16 %v768
      %v777 = vunpack.c.l.bf16 %v769
      %v778 = vlaneseq
      %v779 = vshrl.u32 %v778, 7
      %v780 = vsub.s32 6, %v779
      %v781 = vrot.slane %v273, %v780
      %v782 = vmul.f32 %v770, %v781
      %v783 = vmul.f32 %v771, %v781
      %v784 = vmul.f32 %v772, %v781
      %v785 = vmul.f32 %v773, %v781
      %v786 = vmul.f32 %v774, %v781
      %v787 = vmul.f32 %v775, %v781
      %v788 = vmul.f32 %v776, %v781
      %v789 = vmul.f32 %v777, %v781
      %v790 = vadd.f32 %v753, %v782
      %v791 = vadd.f32 %v754, %v783
      %v792 = vadd.f32 %v755, %v784
      %v793 = vadd.f32 %v756, %v785
      %v794 = vadd.f32 %v757, %v786
      %v795 = vadd.f32 %v758, %v787
      %v796 = vadd.f32 %v759, %v788
      %v797 = vadd.f32 %v760, %v789
      %v798 = vld [vmem:[%s761 + $0x4] sm:$0x1]
      %v799 = vld [vmem:[%s761 + $0xc] sm:$0x1]
      %v800 = vld [vmem:[%s761 + $0x14] sm:$0x1]
      %v801 = vld [vmem:[%s761 + $0x1c] sm:$0x1]
      %v802 = vld [vmem:[%s761 + $0x24] sm:$0x1]
      %v803 = vld [vmem:[%s761 + $0x2c] sm:$0x1]
      %v804 = vld [vmem:[%s761 + $0x34] sm:$0x1]
      %v805 = vld [vmem:[%s761 + $0x3c] sm:$0x1]
      %v806 = vunpack.c.l.bf16 %v798
      %v807 = vunpack.c.l.bf16 %v799
      %v808 = vunpack.c.l.bf16 %v800
      %v809 = vunpack.c.l.bf16 %v801
      %v810 = vunpack.c.l.bf16 %v802
      %v811 = vunpack.c.l.bf16 %v803
      %v812 = vunpack.c.l.bf16 %v804
      %v813 = vunpack.c.l.bf16 %v805
      %v814 = vlaneseq
      %v815 = vshrl.u32 %v814, 7
      %v816 = vsub.s32 7, %v815
      %v817 = vrot.slane %v273, %v816
      %v818 = vmul.f32 %v770, %v817
      %v819 = vmul.f32 %v806, %v817
      %v820 = vmul.f32 %v771, %v817
      %v821 = vmul.f32 %v807, %v817
      %v822 = vmul.f32 %v772, %v817
      %v823 = vmul.f32 %v808, %v817
      %v824 = vmul.f32 %v773, %v817
      %v825 = vmul.f32 %v809, %v817
      %v826 = vmul.f32 %v774, %v817
      %v827 = vmul.f32 %v810, %v817
      %v828 = vmul.f32 %v775, %v817
      %v829 = vmul.f32 %v811, %v817
      %v830 = vmul.f32 %v776, %v817
      %v831 = vmul.f32 %v812, %v817
      %v832 = vmul.f32 %v777, %v817
      %v833 = vmul.f32 %v813, %v817
      %v850 = vrot.slane %v818, 1
      %v851 = vrot.slane %v819, 1
      %v852 = vsel %vm406, %v850, %v851
      %v853 = vrot.slane %v820, 1
      %v854 = vrot.slane %v821, 1
      %v855 = vsel %vm406, %v853, %v854
      %v856 = vrot.slane %v822, 1
      %v857 = vrot.slane %v823, 1
      %v858 = vsel %vm406, %v856, %v857
      %v859 = vrot.slane %v824, 1
      %v860 = vrot.slane %v825, 1
      %v861 = vsel %vm406, %v859, %v860
      %v862 = vrot.slane %v826, 1
      %v863 = vrot.slane %v827, 1
      %v864 = vsel %vm406, %v862, %v863
      %v865 = vrot.slane %v828, 1
      %v866 = vrot.slane %v829, 1
      %v867 = vsel %vm406, %v865, %v866
      %v868 = vrot.slane %v830, 1
      %v869 = vrot.slane %v831, 1
      %v870 = vsel %vm406, %v868, %v869
      %v871 = vrot.slane %v832, 1
      %v872 = vrot.slane %v833, 1
      %v873 = vsel %vm406, %v871, %v872
      %v882 = vadd.f32 %v790, %v852
      %v883 = vadd.f32 %v791, %v855
      %v884 = vadd.f32 %v792, %v858
      %v885 = vadd.f32 %v793, %v861
      %v886 = vadd.f32 %v794, %v864
      %v887 = vadd.f32 %v795, %v867
      %v888 = vadd.f32 %v796, %v870
      %v889 = vadd.f32 %v797, %v873
      %v890 = vld [vmem:[%s761] sm:$0xe]
      %v891 = vld [vmem:[%s761 + $0x8] sm:$0xe]
      %v892 = vld [vmem:[%s761 + $0x10] sm:$0xe]
      %v893 = vld [vmem:[%s761 + $0x18] sm:$0xe]
      %v894 = vld [vmem:[%s761 + $0x20] sm:$0xe]
      %v895 = vld [vmem:[%s761 + $0x28] sm:$0xe]
      %v896 = vld [vmem:[%s761 + $0x30] sm:$0xe]
      %v897 = vld [vmem:[%s761 + $0x38] sm:$0xe]
      %v898 = vunpack.c.l.bf16 %v890
      %v899 = vunpack.c.l.bf16 %v891
      %v900 = vunpack.c.l.bf16 %v892
      %v901 = vunpack.c.l.bf16 %v893
      %v902 = vunpack.c.l.bf16 %v894
      %v903 = vunpack.c.l.bf16 %v895
      %v904 = vunpack.c.l.bf16 %v896
      %v905 = vunpack.c.l.bf16 %v897
      %v906 = vlaneseq
      %v907 = vshrl.u32 %v906, 7
      %v908 = vsub.s32 0, %v907
      %v909 = vrot.slane %v274, %v908
      %v910 = vmul.f32 %v898, %v909
      %v911 = vmul.f32 %v806, %v909
      %v912 = vmul.f32 %v899, %v909
      %v913 = vmul.f32 %v807, %v909
      %v914 = vmul.f32 %v900, %v909
      %v915 = vmul.f32 %v808, %v909
      %v916 = vmul.f32 %v901, %v909
      %v917 = vmul.f32 %v809, %v909
      %v918 = vmul.f32 %v902, %v909
      %v919 = vmul.f32 %v810, %v909
      %v920 = vmul.f32 %v903, %v909
      %v921 = vmul.f32 %v811, %v909
      %v922 = vmul.f32 %v904, %v909
      %v923 = vmul.f32 %v812, %v909
      %v924 = vmul.f32 %v905, %v909
      %v925 = vmul.f32 %v813, %v909
      %v942 = vrot.slane %v910, 2
      %v943 = vrot.slane %v911, 2
      %v944 = vsel %vm499, %v942, %v943
      %v945 = vrot.slane %v912, 2
      %v946 = vrot.slane %v913, 2
      %v947 = vsel %vm499, %v945, %v946
      %v948 = vrot.slane %v914, 2
      %v949 = vrot.slane %v915, 2
      %v950 = vsel %vm499, %v948, %v949
      %v951 = vrot.slane %v916, 2
      %v952 = vrot.slane %v917, 2
      %v953 = vsel %vm499, %v951, %v952
      %v954 = vrot.slane %v918, 2
      %v955 = vrot.slane %v919, 2
      %v956 = vsel %vm499, %v954, %v955
      %v957 = vrot.slane %v920, 2
      %v958 = vrot.slane %v921, 2
      %v959 = vsel %vm499, %v957, %v958
      %v960 = vrot.slane %v922, 2
      %v961 = vrot.slane %v923, 2
      %v962 = vsel %vm499, %v960, %v961
      %v963 = vrot.slane %v924, 2
      %v964 = vrot.slane %v925, 2
      %v965 = vsel %vm499, %v963, %v964
      %v974 = vadd.f32 %v882, %v944
      %v975 = vadd.f32 %v883, %v947
      %v976 = vadd.f32 %v884, %v950
      %v977 = vadd.f32 %v885, %v953
      %v978 = vadd.f32 %v886, %v956
      %v979 = vadd.f32 %v887, %v959
      %v980 = vadd.f32 %v888, %v962
      %v981 = vadd.f32 %v889, %v965
      %v982 = vmul.f32 %v974, 0.5
      %v983 = vmul.f32 %v975, 0.5
      %v984 = vmul.f32 %v976, 0.5
      %v985 = vmul.f32 %v977, 0.5
      %v986 = vmul.f32 %v978, 0.5
      %v987 = vmul.f32 %v979, 0.5
      %v988 = vmul.f32 %v980, 0.5
      %v989 = vmul.f32 %v981, 0.5
      %v990 = vmul.f32 %v974, 0.044715
      %v991 = vmul.f32 %v975, 0.044715
      %v992 = vmul.f32 %v976, 0.044715
      %v993 = vmul.f32 %v977, 0.044715
      %v994 = vmul.f32 %v978, 0.044715
      %v995 = vmul.f32 %v979, 0.044715
      %v996 = vmul.f32 %v980, 0.044715
      %v997 = vmul.f32 %v981, 0.044715
      %v998 = vmul.f32 %v990, %v974
      %v999 = vmul.f32 %v991, %v975
      %v1000 = vmul.f32 %v992, %v976
      %v1001 = vmul.f32 %v993, %v977
      %v1002 = vmul.f32 %v994, %v978
      %v1003 = vmul.f32 %v995, %v979
      %v1004 = vmul.f32 %v996, %v980
      %v1005 = vmul.f32 %v997, %v981
      %v1006 = vmul.f32 %v998, %v974
      %v1007 = vmul.f32 %v999, %v975
      %v1008 = vmul.f32 %v1000, %v976
      %v1009 = vmul.f32 %v1001, %v977
      %v1010 = vmul.f32 %v1002, %v978
      %v1011 = vmul.f32 %v1003, %v979
      %v1012 = vmul.f32 %v1004, %v980
      %v1013 = vmul.f32 %v1005, %v981
      %v1014 = vadd.f32 %v974, %v1006
      %v1015 = vadd.f32 %v975, %v1007
      %v1016 = vadd.f32 %v976, %v1008
      %v1017 = vadd.f32 %v977, %v1009
      %v1018 = vadd.f32 %v978, %v1010
      %v1019 = vadd.f32 %v979, %v1011
      %v1020 = vadd.f32 %v980, %v1012
      %v1021 = vadd.f32 %v981, %v1013
      %v1022 = vmul.f32 %v1014, 0.7978846
      %v1023 = vmul.f32 %v1015, 0.7978846
      %v1024 = vmul.f32 %v1016, 0.7978846
      %v1025 = vmul.f32 %v1017, 0.7978846
      %v1026 = vmul.f32 %v1018, 0.7978846
      %v1027 = vmul.f32 %v1019, 0.7978846
      %v1028 = vmul.f32 %v1020, 0.7978846
      %v1029 = vmul.f32 %v1021, 0.7978846
      %v1030 = vtanh.pop %v1022
      %v1031 = vtanh.pop %v1023
      %v1032 = vtanh.pop %v1024
      %v1033 = vtanh.pop %v1025
      %v1034 = vtanh.pop %v1026
      %v1035 = vtanh.pop %v1027
      %v1036 = vtanh.pop %v1028
      %v1037 = vtanh.pop %v1029
      %v1038 = vadd.f32 %v1030, 1.0
      %v1039 = vadd.f32 %v1031, 1.0
      %v1040 = vadd.f32 %v1032, 1.0
      %v1041 = vadd.f32 %v1033, 1.0
      %v1042 = vadd.f32 %v1034, 1.0
      %v1043 = vadd.f32 %v1035, 1.0
      %v1044 = vadd.f32 %v1036, 1.0
      %v1045 = vadd.f32 %v1037, 1.0
      %v1046 = vmul.f32 %v982, %v1038
      %v1047 = vmul.f32 %v983, %v1039
      %v1048 = vmul.f32 %v984, %v1040
      %v1049 = vmul.f32 %v985, %v1041
      %v1050 = vmul.f32 %v986, %v1042
      %v1051 = vmul.f32 %v987, %v1043
      %v1052 = vmul.f32 %v988, %v1044
      %v1053 = vmul.f32 %v989, %v1045
      %v1054 = vpack.c.bf16 %v1046, %v1046
      %v1055 = vpack.c.bf16 %v1047, %v1047
      %v1056 = vpack.c.bf16 %v1048, %v1048
      %v1057 = vpack.c.bf16 %v1049, %v1049
      %v1058 = vpack.c.bf16 %v1050, %v1050
      %v1059 = vpack.c.bf16 %v1051, %v1051
      %v1060 = vpack.c.bf16 %v1052, %v1052
      %v1061 = vpack.c.bf16 %v1053, %v1053
      %v1070 = vunpack.c.l.b16 %v1054
      %v1071 = vunpack.c.l.b16 %v1055
      %v1072 = vunpack.c.l.b16 %v1056
      %v1073 = vunpack.c.l.b16 %v1057
      %v1074 = vunpack.c.l.b16 %v1058
      %v1075 = vunpack.c.l.b16 %v1059
      %v1076 = vunpack.c.l.b16 %v1060
      %v1077 = vunpack.c.l.b16 %v1061
      %v1078 = vpack.c.b16 %v1071, %v1070
      %v1079 = vpack.c.b16 %v1073, %v1072
      %v1080 = vpack.c.b16 %v1075, %v1074
      %v1081 = vpack.c.b16 %v1077, %v1076
      %v1084 = vunpack.c.l.b16 %v278
      %v1085 = vunpack.c.l.b16 %v279
      %v1086 = vpack.c.b16 %v1085, %v1084
      %vm1088 = vcmask 130048
      %v1090 = vsel %vm1088, %v1078, 0
      %v1093 = vsel %vm1088, %v1079, 0
      %v1096 = vsel %vm1088, %v1080, 0
      %v1099 = vsel %vm1088, %v1081, 0
      %1101 = vmatprep.subr.bf16.mxu0 0
      %1102 = vmatpush1.bf16.msra.mxu0 %v1086
      %1103 = vmatprep.subr.bf16.mxu0 0
      %1104 = vmatpush1.bf16.msra.mxu0 0
      %1105 = vmatprep.subr.bf16.mxu0 0
      %1106 = vmatpush1.bf16.msra.mxu0 0
      %1107 = vmatprep.subr.bf16.mxu0 0
      %1108 = vmatpush1.bf16.msra.mxu0 0
      %1109 = vmatprep.subr.bf16.mxu0 0
      %1110 = vmatpush1.bf16.msra.mxu0 0
      %1111 = vmatprep.subr.bf16.mxu0 0
      %1112 = vmatpush1.bf16.msra.mxu0 0
      %1113 = vmatprep.subr.bf16.mxu0 0
      %1114 = vmatpush1.bf16.msra.mxu0 0
      %1115 = vmatprep.subr.bf16.mxu0 0
      %1116 = vmatpush1.bf16.msra.mxu0 0
      %1117 = vmatprep.subr.bf16.mxu0 0
      %1118 = vmatpush1.bf16.msra.mxu0 0
      %1119 = vmatprep.subr.bf16.mxu0 0
      %1120 = vmatpush1.bf16.msra.mxu0 0
      %1121 = vmatprep.subr.bf16.mxu0 0
      %1122 = vmatpush1.bf16.msra.mxu0 0
      %1123 = vmatprep.subr.bf16.mxu0 0
      %1124 = vmatpush1.bf16.msra.mxu0 0
      %1125 = vmatprep.subr.bf16.mxu0 0
      %1126 = vmatpush1.bf16.msra.mxu0 0
      %1127 = vmatprep.subr.bf16.mxu0 0
      %1128 = vmatpush1.bf16.msra.mxu0 0
      %1129 = vmatprep.subr.bf16.mxu0 0
      %1130 = vmatpush1.bf16.msra.mxu0 0
      %1131 = vmatprep.subr.bf16.mxu0 0
      %1132 = vmatpush1.bf16.msra.mxu0 0
      %1133 = vmatprep.mubr.bf16.mxu0 0
      %1134 = vmatmul.mubr.bf16.gmra.mrb[0].mxu0 %v1090
      %v1135 = vpop.f32.mrb[0].mxu0
      %v1136 = vadd.f32 0.0, %v1135
      %v1137 = vpop.f32.mrb[0].mxu0
      %v1138 = vpop.f32.mrb[0].mxu0
      %v1139 = vadd.f32 0.0, %v1138
      %v1140 = vpop.f32.mrb[0].mxu0
      %1141 = vmatprep.mubr.bf16.mxu0 0
      %1142 = vmatmul.mubr.bf16.gmra.mrb[0].mxu0 %v1093
      %v1143 = vpop.f32.mrb[0].mxu0
      %v1144 = vadd.f32 0.0, %v1143
      %v1145 = vpop.f32.mrb[0].mxu0
      %v1146 = vpop.f32.mrb[0].mxu0
      %v1147 = vadd.f32 0.0, %v1146
      %v1148 = vpop.f32.mrb[0].mxu0
      %1149 = vmatprep.mubr.bf16.mxu0 0
      %1150 = vmatmul.mubr.bf16.gmra.mrb[0].mxu0 %v1096
      %v1151 = vpop.f32.mrb[0].mxu0
      %v1152 = vadd.f32 0.0, %v1151
      %v1153 = vpop.f32.mrb[0].mxu0
      %v1154 = vpop.f32.mrb[0].mxu0
      %v1155 = vadd.f32 0.0, %v1154
      %v1156 = vpop.f32.mrb[0].mxu0
      %1157 = vmatprep.mubr.bf16.mxu0 0
      %1158 = vmatmul.mubr.bf16.gmra.mrb[0].mxu0 %v1099
      %v1159 = vpop.f32.mrb[0].mxu0
      %v1160 = vadd.f32 0.0, %v1159
      %v1161 = vpop.f32.mrb[0].mxu0
      %v1162 = vpop.f32.mrb[0].mxu0
      %v1163 = vadd.f32 0.0, %v1162
      %v1164 = vpop.f32.mrb[0].mxu0
      %1165 = vdwg.mxu0
      %v1166 = vadd.f32 %v305, %v1136
      %v1167 = vadd.f32 %v306, %v1139
      %v1168 = vadd.f32 %v307, %v1144
      %v1169 = vadd.f32 %v308, %v1147
      %v1170 = vadd.f32 %v309, %v1152
      %v1171 = vadd.f32 %v310, %v1155
      %v1172 = vadd.f32 %v311, %v1160
      %v1173 = vadd.f32 %v312, %v1163
      %v1174 = vlaneseq
      %v1175 = vshrl.u32 %v1174, 7
      %v1176 = vsub.s32 1, %v1175
      %v1177 = vrot.slane %v277, %v1176
      %v1178 = vadd.f32 %v1177, 0.0
      %v1179 = vlaneseq
      %v1180 = vshrl.u32 %v1179, 7
      %v1181 = vsub.s32 0, %v1180
      %v1182 = vrot.slane %v275, %v1181
      %v1183 = vmul.f32 %v326, %v1182
      %v1184 = vmul.f32 %v327, %v1182
      %v1185 = vmul.f32 %v328, %v1182
      %v1186 = vmul.f32 %v329, %v1182
      %v1187 = vmul.f32 %v330, %v1182
      %v1188 = vmul.f32 %v331, %v1182
      %v1189 = vmul.f32 %v332, %v1182
      %v1190 = vmul.f32 %v333, %v1182
      %v1191 = vadd.f32 %v1178, %v1183
      %v1192 = vadd.f32 %v1178, %v1184
      %v1193 = vadd.f32 %v1178, %v1185
      %v1194 = vadd.f32 %v1178, %v1186
      %v1195 = vadd.f32 %v1178, %v1187
      %v1196 = vadd.f32 %v1178, %v1188
      %v1197 = vadd.f32 %v1178, %v1189
      %v1198 = vadd.f32 %v1178, %v1190
      %v1199 = vlaneseq
      %v1200 = vshrl.u32 %v1199, 7
      %v1201 = vsub.s32 1, %v1200
      %v1202 = vrot.slane %v275, %v1201
      %v1203 = vmul.f32 %v326, %v1202
      %v1204 = vmul.f32 %v362, %v1202
      %v1205 = vmul.f32 %v327, %v1202
      %v1206 = vmul.f32 %v363, %v1202
      %v1207 = vmul.f32 %v328, %v1202
      %v1208 = vmul.f32 %v364, %v1202
      %v1209 = vmul.f32 %v329, %v1202
      %v1210 = vmul.f32 %v365, %v1202
      %v1211 = vmul.f32 %v330, %v1202
      %v1212 = vmul.f32 %v366, %v1202
      %v1213 = vmul.f32 %v331, %v1202
      %v1214 = vmul.f32 %v367, %v1202
      %v1215 = vmul.f32 %v332, %v1202
      %v1216 = vmul.f32 %v368, %v1202
      %v1217 = vmul.f32 %v333, %v1202
      %v1218 = vmul.f32 %v369, %v1202
      %v1235 = vrot.slane %v1203, 1
      %v1236 = vrot.slane %v1204, 1
      %v1237 = vsel %vm406, %v1235, %v1236
      %v1238 = vrot.slane %v1205, 1
      %v1239 = vrot.slane %v1206, 1
      %v1240 = vsel %vm406, %v1238, %v1239
      %v1241 = vrot.slane %v1207, 1
      %v1242 = vrot.slane %v1208, 1
      %v1243 = vsel %vm406, %v1241, %v1242
      %v1244 = vrot.slane %v1209, 1
      %v1245 = vrot.slane %v1210, 1
      %v1246 = vsel %vm406, %v1244, %v1245
      %v1247 = vrot.slane %v1211, 1
      %v1248 = vrot.slane %v1212, 1
      %v1249 = vsel %vm406, %v1247, %v1248
      %v1250 = vrot.slane %v1213, 1
      %v1251 = vrot.slane %v1214, 1
      %v1252 = vsel %vm406, %v1250, %v1251
      %v1253 = vrot.slane %v1215, 1
      %v1254 = vrot.slane %v1216, 1
      %v1255 = vsel %vm406, %v1253, %v1254
      %v1256 = vrot.slane %v1217, 1
      %v1257 = vrot.slane %v1218, 1
      %v1258 = vsel %vm406, %v1256, %v1257
      %v1267 = vadd.f32 %v1191, %v1237
      %v1268 = vadd.f32 %v1192, %v1240
      %v1269 = vadd.f32 %v1193, %v1243
      %v1270 = vadd.f32 %v1194, %v1246
      %v1271 = vadd.f32 %v1195, %v1249
      %v1272 = vadd.f32 %v1196, %v1252
      %v1273 = vadd.f32 %v1197, %v1255
      %v1274 = vadd.f32 %v1198, %v1258
      %v1275 = vlaneseq
      %v1276 = vshrl.u32 %v1275, 7
      %v1277 = vsub.s32 2, %v1276
      %v1278 = vrot.slane %v275, %v1277
      %v1279 = vmul.f32 %v455, %v1278
      %v1280 = vmul.f32 %v362, %v1278
      %v1281 = vmul.f32 %v456, %v1278
      %v1282 = vmul.f32 %v363, %v1278
      %v1283 = vmul.f32 %v457, %v1278
      %v1284 = vmul.f32 %v364, %v1278
      %v1285 = vmul.f32 %v458, %v1278
      %v1286 = vmul.f32 %v365, %v1278
      %v1287 = vmul.f32 %v459, %v1278
      %v1288 = vmul.f32 %v366, %v1278
      %v1289 = vmul.f32 %v460, %v1278
      %v1290 = vmul.f32 %v367, %v1278
      %v1291 = vmul.f32 %v461, %v1278
      %v1292 = vmul.f32 %v368, %v1278
      %v1293 = vmul.f32 %v462, %v1278
      %v1294 = vmul.f32 %v369, %v1278
      %v1311 = vrot.slane %v1279, 2
      %v1312 = vrot.slane %v1280, 2
      %v1313 = vsel %vm499, %v1311, %v1312
      %v1314 = vrot.slane %v1281, 2
      %v1315 = vrot.slane %v1282, 2
      %v1316 = vsel %vm499, %v1314, %v1315
      %v1317 = vrot.slane %v1283, 2
      %v1318 = vrot.slane %v1284, 2
      %v1319 = vsel %vm499, %v1317, %v1318
      %v1320 = vrot.slane %v1285, 2
      %v1321 = vrot.slane %v1286, 2
      %v1322 = vsel %vm499, %v1320, %v1321
      %v1323 = vrot.slane %v1287, 2
      %v1324 = vrot.slane %v1288, 2
      %v1325 = vsel %vm499, %v1323, %v1324
      %v1326 = vrot.slane %v1289, 2
      %v1327 = vrot.slane %v1290, 2
      %v1328 = vsel %vm499, %v1326, %v1327
      %v1329 = vrot.slane %v1291, 2
      %v1330 = vrot.slane %v1292, 2
      %v1331 = vsel %vm499, %v1329, %v1330
      %v1332 = vrot.slane %v1293, 2
      %v1333 = vrot.slane %v1294, 2
      %v1334 = vsel %vm499, %v1332, %v1333
      %v1343 = vadd.f32 %v1267, %v1313
      %v1344 = vadd.f32 %v1268, %v1316
      %v1345 = vadd.f32 %v1269, %v1319
      %v1346 = vadd.f32 %v1270, %v1322
      %v1347 = vadd.f32 %v1271, %v1325
      %v1348 = vadd.f32 %v1272, %v1328
      %v1349 = vadd.f32 %v1273, %v1331
      %v1350 = vadd.f32 %v1274, %v1334
      %v1351 = vlaneseq
      %v1352 = vshrl.u32 %v1351, 7
      %v1353 = vsub.s32 3, %v1352
      %v1354 = vrot.slane %v275, %v1353
      %v1355 = vmul.f32 %v549, %v1354
      %v1356 = vmul.f32 %v550, %v1354
      %v1357 = vmul.f32 %v551, %v1354
      %v1358 = vmul.f32 %v552, %v1354
      %v1359 = vmul.f32 %v553, %v1354
      %v1360 = vmul.f32 %v554, %v1354
      %v1361 = vmul.f32 %v555, %v1354
      %v1362 = vmul.f32 %v556, %v1354
      %v1363 = vadd.f32 %v1343, %v1355
      %v1364 = vadd.f32 %v1344, %v1356
      %v1365 = vadd.f32 %v1345, %v1357
      %v1366 = vadd.f32 %v1346, %v1358
      %v1367 = vadd.f32 %v1347, %v1359
      %v1368 = vadd.f32 %v1348, %v1360
      %v1369 = vadd.f32 %v1349, %v1361
      %v1370 = vadd.f32 %v1350, %v1362
      %v1371 = vlaneseq
      %v1372 = vshrl.u32 %v1371, 7
      %v1373 = vsub.s32 4, %v1372
      %v1374 = vrot.slane %v275, %v1373
      %v1375 = vmul.f32 %v549, %v1374
      %v1376 = vmul.f32 %v585, %v1374
      %v1377 = vmul.f32 %v550, %v1374
      %v1378 = vmul.f32 %v586, %v1374
      %v1379 = vmul.f32 %v551, %v1374
      %v1380 = vmul.f32 %v587, %v1374
      %v1381 = vmul.f32 %v552, %v1374
      %v1382 = vmul.f32 %v588, %v1374
      %v1383 = vmul.f32 %v553, %v1374
      %v1384 = vmul.f32 %v589, %v1374
      %v1385 = vmul.f32 %v554, %v1374
      %v1386 = vmul.f32 %v590, %v1374
      %v1387 = vmul.f32 %v555, %v1374
      %v1388 = vmul.f32 %v591, %v1374
      %v1389 = vmul.f32 %v556, %v1374
      %v1390 = vmul.f32 %v592, %v1374
      %v1407 = vrot.slane %v1375, 1
      %v1408 = vrot.slane %v1376, 1
      %v1409 = vsel %vm406, %v1407, %v1408
      %v1410 = vrot.slane %v1377, 1
      %v1411 = vrot.slane %v1378, 1
      %v1412 = vsel %vm406, %v1410, %v1411
      %v1413 = vrot.slane %v1379, 1
      %v1414 = vrot.slane %v1380, 1
      %v1415 = vsel %vm406, %v1413, %v1414
      %v1416 = vrot.slane %v1381, 1
      %v1417 = vrot.slane %v1382, 1
      %v1418 = vsel %vm406, %v1416, %v1417
      %v1419 = vrot.slane %v1383, 1
      %v1420 = vrot.slane %v1384, 1
      %v1421 = vsel %vm406, %v1419, %v1420
      %v1422 = vrot.slane %v1385, 1
      %v1423 = vrot.slane %v1386, 1
      %v1424 = vsel %vm406, %v1422, %v1423
      %v1425 = vrot.slane %v1387, 1
      %v1426 = vrot.slane %v1388, 1
      %v1427 = vsel %vm406, %v1425, %v1426
      %v1428 = vrot.slane %v1389, 1
      %v1429 = vrot.slane %v1390, 1
      %v1430 = vsel %vm406, %v1428, %v1429
      %v1439 = vadd.f32 %v1363, %v1409
      %v1440 = vadd.f32 %v1364, %v1412
      %v1441 = vadd.f32 %v1365, %v1415
      %v1442 = vadd.f32 %v1366, %v1418
      %v1443 = vadd.f32 %v1367, %v1421
      %v1444 = vadd.f32 %v1368, %v1424
      %v1445 = vadd.f32 %v1369, %v1427
      %v1446 = vadd.f32 %v1370, %v1430
      %v1447 = vlaneseq
      %v1448 = vshrl.u32 %v1447, 7
      %v1449 = vsub.s32 5, %v1448
      %v1450 = vrot.slane %v275, %v1449
      %v1451 = vmul.f32 %v677, %v1450
      %v1452 = vmul.f32 %v585, %v1450
      %v1453 = vmul.f32 %v678, %v1450
      %v1454 = vmul.f32 %v586, %v1450
      %v1455 = vmul.f32 %v679, %v1450
      %v1456 = vmul.f32 %v587, %v1450
      %v1457 = vmul.f32 %v680, %v1450
      %v1458 = vmul.f32 %v588, %v1450
      %v1459 = vmul.f32 %v681, %v1450
      %v1460 = vmul.f32 %v589, %v1450
      %v1461 = vmul.f32 %v682, %v1450
      %v1462 = vmul.f32 %v590, %v1450
      %v1463 = vmul.f32 %v683, %v1450
      %v1464 = vmul.f32 %v591, %v1450
      %v1465 = vmul.f32 %v684, %v1450
      %v1466 = vmul.f32 %v592, %v1450
      %v1483 = vrot.slane %v1451, 2
      %v1484 = vrot.slane %v1452, 2
      %v1485 = vsel %vm499, %v1483, %v1484
      %v1486 = vrot.slane %v1453, 2
      %v1487 = vrot.slane %v1454, 2
      %v1488 = vsel %vm499, %v1486, %v1487
      %v1489 = vrot.slane %v1455, 2
      %v1490 = vrot.slane %v1456, 2
      %v1491 = vsel %vm499, %v1489, %v1490
      %v1492 = vrot.slane %v1457, 2
      %v1493 = vrot.slane %v1458, 2
      %v1494 = vsel %vm499, %v1492, %v1493
      %v1495 = vrot.slane %v1459, 2
      %v1496 = vrot.slane %v1460, 2
      %v1497 = vsel %vm499, %v1495, %v1496
      %v1498 = vrot.slane %v1461, 2
      %v1499 = vrot.slane %v1462, 2
      %v1500 = vsel %vm499, %v1498, %v1499
      %v1501 = vrot.slane %v1463, 2
      %v1502 = vrot.slane %v1464, 2
      %v1503 = vsel %vm499, %v1501, %v1502
      %v1504 = vrot.slane %v1465, 2
      %v1505 = vrot.slane %v1466, 2
      %v1506 = vsel %vm499, %v1504, %v1505
      %v1515 = vadd.f32 %v1439, %v1485
      %v1516 = vadd.f32 %v1440, %v1488
      %v1517 = vadd.f32 %v1441, %v1491
      %v1518 = vadd.f32 %v1442, %v1494
      %v1519 = vadd.f32 %v1443, %v1497
      %v1520 = vadd.f32 %v1444, %v1500
      %v1521 = vadd.f32 %v1445, %v1503
      %v1522 = vadd.f32 %v1446, %v1506
      %v1523 = vlaneseq
      %v1524 = vshrl.u32 %v1523, 7
      %v1525 = vsub.s32 6, %v1524
      %v1526 = vrot.slane %v275, %v1525
      %v1527 = vmul.f32 %v770, %v1526
      %v1528 = vmul.f32 %v771, %v1526
      %v1529 = vmul.f32 %v772, %v1526
      %v1530 = vmul.f32 %v773, %v1526
      %v1531 = vmul.f32 %v774, %v1526
      %v1532 = vmul.f32 %v775, %v1526
      %v1533 = vmul.f32 %v776, %v1526
      %v1534 = vmul.f32 %v777, %v1526
      %v1535 = vadd.f32 %v1515, %v1527
      %v1536 = vadd.f32 %v1516, %v1528
      %v1537 = vadd.f32 %v1517, %v1529
      %v1538 = vadd.f32 %v1518, %v1530
      %v1539 = vadd.f32 %v1519, %v1531
      %v1540 = vadd.f32 %v1520, %v1532
      %v1541 = vadd.f32 %v1521, %v1533
      %v1542 = vadd.f32 %v1522, %v1534
      %v1543 = vlaneseq
      %v1544 = vshrl.u32 %v1543, 7
      %v1545 = vsub.s32 7, %v1544
      %v1546 = vrot.slane %v275, %v1545
      %v1547 = vmul.f32 %v770, %v1546
      %v1548 = vmul.f32 %v806, %v1546
      %v1549 = vmul.f32 %v771, %v1546
      %v1550 = vmul.f32 %v807, %v1546
      %v1551 = vmul.f32 %v772, %v1546
      %v1552 = vmul.f32 %v808, %v1546
      %v1553 = vmul.f32 %v773, %v1546
      %v1554 = vmul.f32 %v809, %v1546
      %v1555 = vmul.f32 %v774, %v1546
      %v1556 = vmul.f32 %v810, %v1546
      %v1557 = vmul.f32 %v775, %v1546
      %v1558 = vmul.f32 %v811, %v1546
      %v1559 = vmul.f32 %v776, %v1546
      %v1560 = vmul.f32 %v812, %v1546
      %v1561 = vmul.f32 %v777, %v1546
      %v1562 = vmul.f32 %v813, %v1546
      %v1579 = vrot.slane %v1547, 1
      %v1580 = vrot.slane %v1548, 1
      %v1581 = vsel %vm406, %v1579, %v1580
      %v1582 = vrot.slane %v1549, 1
      %v1583 = vrot.slane %v1550, 1
      %v1584 = vsel %vm406, %v1582, %v1583
      %v1585 = vrot.slane %v1551, 1
      %v1586 = vrot.slane %v1552, 1
      %v1587 = vsel %vm406, %v1585, %v1586
      %v1588 = vrot.slane %v1553, 1
      %v1589 = vrot.slane %v1554, 1
      %v1590 = vsel %vm406, %v1588, %v1589
      %v1591 = vrot.slane %v1555, 1
      %v1592 = vrot.slane %v1556, 1
      %v1593 = vsel %vm406, %v1591, %v1592
      %v1594 = vrot.slane %v1557, 1
      %v1595 = vrot.slane %v1558, 1
      %v1596 = vsel %vm406, %v1594, %v1595
      %v1597 = vrot.slane %v1559, 1
      %v1598 = vrot.slane %v1560, 1
      %v1599 = vsel %vm406, %v1597, %v1598
      %v1600 = vrot.slane %v1561, 1
      %v1601 = vrot.slane %v1562, 1
      %v1602 = vsel %vm406, %v1600, %v1601
      %v1611 = vadd.f32 %v1535, %v1581
      %v1612 = vadd.f32 %v1536, %v1584
      %v1613 = vadd.f32 %v1537, %v1587
      %v1614 = vadd.f32 %v1538, %v1590
      %v1615 = vadd.f32 %v1539, %v1593
      %v1616 = vadd.f32 %v1540, %v1596
      %v1617 = vadd.f32 %v1541, %v1599
      %v1618 = vadd.f32 %v1542, %v1602
      %v1619 = vlaneseq
      %v1620 = vshrl.u32 %v1619, 7
      %v1621 = vsub.s32 0, %v1620
      %v1622 = vrot.slane %v276, %v1621
      %v1623 = vmul.f32 %v898, %v1622
      %v1624 = vmul.f32 %v806, %v1622
      %v1625 = vmul.f32 %v899, %v1622
      %v1626 = vmul.f32 %v807, %v1622
      %v1627 = vmul.f32 %v900, %v1622
      %v1628 = vmul.f32 %v808, %v1622
      %v1629 = vmul.f32 %v901, %v1622
      %v1630 = vmul.f32 %v809, %v1622
      %v1631 = vmul.f32 %v902, %v1622
      %v1632 = vmul.f32 %v810, %v1622
      %v1633 = vmul.f32 %v903, %v1622
      %v1634 = vmul.f32 %v811, %v1622
      %v1635 = vmul.f32 %v904, %v1622
      %v1636 = vmul.f32 %v812, %v1622
      %v1637 = vmul.f32 %v905, %v1622
      %v1638 = vmul.f32 %v813, %v1622
      %v1655 = vrot.slane %v1623, 2
      %v1656 = vrot.slane %v1624, 2
      %v1657 = vsel %vm499, %v1655, %v1656
      %v1658 = vrot.slane %v1625, 2
      %v1659 = vrot.slane %v1626, 2
      %v1660 = vsel %vm499, %v1658, %v1659
      %v1661 = vrot.slane %v1627, 2
      %v1662 = vrot.slane %v1628, 2
      %v1663 = vsel %vm499, %v1661, %v1662
      %v1664 = vrot.slane %v1629, 2
      %v1665 = vrot.slane %v1630, 2
      %v1666 = vsel %vm499, %v1664, %v1665
      %v1667 = vrot.slane %v1631, 2
      %v1668 = vrot.slane %v1632, 2
      %v1669 = vsel %vm499, %v1667, %v1668
      %v1670 = vrot.slane %v1633, 2
      %v1671 = vrot.slane %v1634, 2
      %v1672 = vsel %vm499, %v1670, %v1671
      %v1673 = vrot.slane %v1635, 2
      %v1674 = vrot.slane %v1636, 2
      %v1675 = vsel %vm499, %v1673, %v1674
      %v1676 = vrot.slane %v1637, 2
      %v1677 = vrot.slane %v1638, 2
      %v1678 = vsel %vm499, %v1676, %v1677
      %v1687 = vadd.f32 %v1611, %v1657
      %v1688 = vadd.f32 %v1612, %v1660
      %v1689 = vadd.f32 %v1613, %v1663
      %v1690 = vadd.f32 %v1614, %v1666
      %v1691 = vadd.f32 %v1615, %v1669
      %v1692 = vadd.f32 %v1616, %v1672
      %v1693 = vadd.f32 %v1617, %v1675
      %v1694 = vadd.f32 %v1618, %v1678
      %v1695 = vmul.f32 %v1687, 0.5
      %v1696 = vmul.f32 %v1688, 0.5
      %v1697 = vmul.f32 %v1689, 0.5
      %v1698 = vmul.f32 %v1690, 0.5
      %v1699 = vmul.f32 %v1691, 0.5
      %v1700 = vmul.f32 %v1692, 0.5
      %v1701 = vmul.f32 %v1693, 0.5
      %v1702 = vmul.f32 %v1694, 0.5
      %v1703 = vmul.f32 %v1687, 0.044715
      %v1704 = vmul.f32 %v1688, 0.044715
      %v1705 = vmul.f32 %v1689, 0.044715
      %v1706 = vmul.f32 %v1690, 0.044715
      %v1707 = vmul.f32 %v1691, 0.044715
      %v1708 = vmul.f32 %v1692, 0.044715
      %v1709 = vmul.f32 %v1693, 0.044715
      %v1710 = vmul.f32 %v1694, 0.044715
      %v1711 = vmul.f32 %v1703, %v1687
      %v1712 = vmul.f32 %v1704, %v1688
      %v1713 = vmul.f32 %v1705, %v1689
      %v1714 = vmul.f32 %v1706, %v1690
      %v1715 = vmul.f32 %v1707, %v1691
      %v1716 = vmul.f32 %v1708, %v1692
      %v1717 = vmul.f32 %v1709, %v1693
      %v1718 = vmul.f32 %v1710, %v1694
      %v1719 = vmul.f32 %v1711, %v1687
      %v1720 = vmul.f32 %v1712, %v1688
      %v1721 = vmul.f32 %v1713, %v1689
      %v1722 = vmul.f32 %v1714, %v1690
      %v1723 = vmul.f32 %v1715, %v1691
      %v1724 = vmul.f32 %v1716, %v1692
      %v1725 = vmul.f32 %v1717, %v1693
      %v1726 = vmul.f32 %v1718, %v1694
      %v1727 = vadd.f32 %v1687, %v1719
      %v1728 = vadd.f32 %v1688, %v1720
      %v1729 = vadd.f32 %v1689, %v1721
      %v1730 = vadd.f32 %v1690, %v1722
      %v1731 = vadd.f32 %v1691, %v1723
      %v1732 = vadd.f32 %v1692, %v1724
      %v1733 = vadd.f32 %v1693, %v1725
      %v1734 = vadd.f32 %v1694, %v1726
      %v1735 = vmul.f32 %v1727, 0.7978846
      %v1736 = vmul.f32 %v1728, 0.7978846
      %v1737 = vmul.f32 %v1729, 0.7978846
      %v1738 = vmul.f32 %v1730, 0.7978846
      %v1739 = vmul.f32 %v1731, 0.7978846
      %v1740 = vmul.f32 %v1732, 0.7978846
      %v1741 = vmul.f32 %v1733, 0.7978846
      %v1742 = vmul.f32 %v1734, 0.7978846
      %v1743 = vtanh.pop %v1735
      %v1744 = vtanh.pop %v1736
      %v1745 = vtanh.pop %v1737
      %v1746 = vtanh.pop %v1738
      %v1747 = vtanh.pop %v1739
      %v1748 = vtanh.pop %v1740
      %v1749 = vtanh.pop %v1741
      %v1750 = vtanh.pop %v1742
      %v1751 = vadd.f32 %v1743, 1.0
      %v1752 = vadd.f32 %v1744, 1.0
      %v1753 = vadd.f32 %v1745, 1.0
      %v1754 = vadd.f32 %v1746, 1.0
      %v1755 = vadd.f32 %v1747, 1.0
      %v1756 = vadd.f32 %v1748, 1.0
      %v1757 = vadd.f32 %v1749, 1.0
      %v1758 = vadd.f32 %v1750, 1.0
      %v1759 = vmul.f32 %v1695, %v1751
      %v1760 = vmul.f32 %v1696, %v1752
      %v1761 = vmul.f32 %v1697, %v1753
      %v1762 = vmul.f32 %v1698, %v1754
      %v1763 = vmul.f32 %v1699, %v1755
      %v1764 = vmul.f32 %v1700, %v1756
      %v1765 = vmul.f32 %v1701, %v1757
      %v1766 = vmul.f32 %v1702, %v1758
      %v1767 = vpack.c.bf16 %v1759, %v1759
      %v1768 = vpack.c.bf16 %v1760, %v1760
      %v1769 = vpack.c.bf16 %v1761, %v1761
      %v1770 = vpack.c.bf16 %v1762, %v1762
      %v1771 = vpack.c.bf16 %v1763, %v1763
      %v1772 = vpack.c.bf16 %v1764, %v1764
      %v1773 = vpack.c.bf16 %v1765, %v1765
      %v1774 = vpack.c.bf16 %v1766, %v1766
      %v1783 = vunpack.c.l.b16 %v1767
      %v1784 = vunpack.c.l.b16 %v1768
      %v1785 = vunpack.c.l.b16 %v1769
      %v1786 = vunpack.c.l.b16 %v1770
      %v1787 = vunpack.c.l.b16 %v1771
      %v1788 = vunpack.c.l.b16 %v1772
      %v1789 = vunpack.c.l.b16 %v1773
      %v1790 = vunpack.c.l.b16 %v1774
      %v1791 = vpack.c.b16 %v1784, %v1783
      %v1792 = vpack.c.b16 %v1786, %v1785
      %v1793 = vpack.c.b16 %v1788, %v1787
      %v1794 = vpack.c.b16 %v1790, %v1789
      %v1797 = vunpack.c.l.b16 %v280
      %v1798 = vunpack.c.l.b16 %v281
      %v1799 = vpack.c.b16 %v1798, %v1797
      %v1802 = vsel %vm1088, %v1791, 0
      %v1805 = vsel %vm1088, %v1792, 0
      %v1808 = vsel %vm1088, %v1793, 0
      %v1811 = vsel %vm1088, %v1794, 0
      %1813 = vmatprep.subr.bf16.mxu0 0
      %1814 = vmatpush1.bf16.msra.mxu0 %v1799
      %1815 = vmatprep.subr.bf16.mxu0 0
      %1816 = vmatpush1.bf16.msra.mxu0 0
      %1817 = vmatprep.subr.bf16.mxu0 0
      %1818 = vmatpush1.bf16.msra.mxu0 0
      %1819 = vmatprep.subr.bf16.mxu0 0
      %1820 = vmatpush1.bf16.msra.mxu0 0
      %1821 = vmatprep.subr.bf16.mxu0 0
      %1822 = vmatpush1.bf16.msra.mxu0 0
      %1823 = vmatprep.subr.bf16.mxu0 0
      %1824 = vmatpush1.bf16.msra.mxu0 0
      %1825 = vmatprep.subr.bf16.mxu0 0
      %1826 = vmatpush1.bf16.msra.mxu0 0
      %1827 = vmatprep.subr.bf16.mxu0 0
      %1828 = vmatpush1.bf16.msra.mxu0 0
      %1829 = vmatprep.subr.bf16.mxu0 0
      %1830 = vmatpush1.bf16.msra.mxu0 0
      %1831 = vmatprep.subr.bf16.mxu0 0
      %1832 = vmatpush1.bf16.msra.mxu0 0
      %1833 = vmatprep.subr.bf16.mxu0 0
      %1834 = vmatpush1.bf16.msra.mxu0 0
      %1835 = vmatprep.subr.bf16.mxu0 0
      %1836 = vmatpush1.bf16.msra.mxu0 0
      %1837 = vmatprep.subr.bf16.mxu0 0
      %1838 = vmatpush1.bf16.msra.mxu0 0
      %1839 = vmatprep.subr.bf16.mxu0 0
      %1840 = vmatpush1.bf16.msra.mxu0 0
      %1841 = vmatprep.subr.bf16.mxu0 0
      %1842 = vmatpush1.bf16.msra.mxu0 0
      %1843 = vmatprep.subr.bf16.mxu0 0
      %1844 = vmatpush1.bf16.msra.mxu0 0
      %1845 = vmatprep.mubr.bf16.mxu0 0
      %1846 = vmatmul.mubr.bf16.gmra.mrb[0].mxu0 %v1802
      %v1847 = vpop.f32.mrb[0].mxu0
      %v1848 = vadd.f32 0.0, %v1847
      %v1849 = vpop.f32.mrb[0].mxu0
      %v1850 = vpop.f32.mrb[0].mxu0
      %v1851 = vadd.f32 0.0, %v1850
      %v1852 = vpop.f32.mrb[0].mxu0
      %1853 = vmatprep.mubr.bf16.mxu0 0
      %1854 = vmatmul.mubr.bf16.gmra.mrb[0].mxu0 %v1805
      %v1855 = vpop.f32.mrb[0].mxu0
      %v1856 = vadd.f32 0.0, %v1855
      %v1857 = vpop.f32.mrb[0].mxu0
      %v1858 = vpop.f32.mrb[0].mxu0
      %v1859 = vadd.f32 0.0, %v1858
      %v1860 = vpop.f32.mrb[0].mxu0
      %1861 = vmatprep.mubr.bf16.mxu0 0
      %1862 = vmatmul.mubr.bf16.gmra.mrb[0].mxu0 %v1808
      %v1863 = vpop.f32.mrb[0].mxu0
      %v1864 = vadd.f32 0.0, %v1863
      %v1865 = vpop.f32.mrb[0].mxu0
      %v1866 = vpop.f32.mrb[0].mxu0
      %v1867 = vadd.f32 0.0, %v1866
      %v1868 = vpop.f32.mrb[0].mxu0
      %1869 = vmatprep.mubr.bf16.mxu0 0
      %1870 = vmatmul.mubr.bf16.gmra.mrb[0].mxu0 %v1811
      %v1871 = vpop.f32.mrb[0].mxu0
      %v1872 = vadd.f32 0.0, %v1871
      %v1873 = vpop.f32.mrb[0].mxu0
      %v1874 = vpop.f32.mrb[0].mxu0
      %v1875 = vadd.f32 0.0, %v1874
      %v1876 = vpop.f32.mrb[0].mxu0
      %1877 = vdwg.mxu0
      %v1878 = vadd.f32 %v1166, %v1848
      %v1879 = vadd.f32 %v1167, %v1851
      %v1880 = vadd.f32 %v1168, %v1856
      %v1881 = vadd.f32 %v1169, %v1859
      %v1882 = vadd.f32 %v1170, %v1864
      %v1883 = vadd.f32 %v1171, %v1867
      %v1884 = vadd.f32 %v1172, %v1872
      %v1885 = vadd.f32 %v1173, %v1875
      %v1886 = vpack.c.bf16 %v1879, %v1878
      %v1887 = vpack.c.bf16 %v1881, %v1880
      %v1888 = vpack.c.bf16 %v1883, %v1882
      %v1889 = vpack.c.bf16 %v1885, %v1884
      %v1894 = vunpack.c.l.b16 %v1886
      %v1895 = vunpack.c.h.b16 %v1886
      %v1896 = vunpack.c.l.b16 %v1887
      %v1897 = vunpack.c.h.b16 %v1887
      %v1898 = vunpack.c.l.b16 %v1888
      %v1899 = vunpack.c.h.b16 %v1888
      %v1900 = vunpack.c.l.b16 %v1889
      %v1901 = vunpack.c.h.b16 %v1889
      %v1902 = vpack.c.b16 %v1894, %v1894
      %v1903 = vpack.c.b16 %v1895, %v1895
      %v1904 = vpack.c.b16 %v1896, %v1896
      %v1905 = vpack.c.b16 %v1897, %v1897
      %v1906 = vpack.c.b16 %v1898, %v1898
      %v1907 = vpack.c.b16 %v1899, %v1899
      %v1908 = vpack.c.b16 %v1900, %v1900
      %v1909 = vpack.c.b16 %v1901, %v1901
      %vm1918 = vcmask 125952
      %1919 = vst.msk [vmem:[%s271] sm:$0xf] %vm1918, %v1902
      %1920 = vst.msk [vmem:[%s271 + $0x4] sm:$0xf] %vm1918, %v1903
      %1921 = vst.msk [vmem:[%s271 + $0x8] sm:$0xf] %vm1918, %v1904
      %1922 = vst.msk [vmem:[%s271 + $0xc] sm:$0xf] %vm1918, %v1905
      %1923 = vst.msk [vmem:[%s271 + $0x10] sm:$0xf] %vm1918, %v1906
      %1924 = vst.msk [vmem:[%s271 + $0x14] sm:$0xf] %vm1918, %v1907
      %1925 = vst.msk [vmem:[%s271 + $0x18] sm:$0xf] %vm1918, %v1908
      %1926 = vst.msk [vmem:[%s271 + $0x1c] sm:$0xf] %vm1918, %v1909
      %p1927 = scmp.lt.s32.totalorder %s17, 1
      %s1928 = scalar_select %p1927, %s17, 1
      %s1929 = smul.addr %s1928, 8
      %s1930 = smul.addr %s1929, 4
      %s1931 = scalar_lea.vmem %s6, %s1930
      // Predicated region
      $region45: #{_lambda_.28} parent=43 // pred_check
        %p1932 = pneg %p171
      $region46: #{_lambda_.28} parent=43 // pred_check_branch
        %1934 = sbr.rel (%p1932) target = $region48
      $region47: #{_lambda_.28} parent=43 // pred_region
        _
      $region48: #{_lambda_.28} parent=43 // pred_fallthru
        _
    $region44: #{_lambda_.28} parent=5 // pred_fallthru
      _
    %p1935 = scmp.le.s32.totalorder 2, %s12
    // Predicated region
    $region49: #{_lambda_.28} parent=5 // pred_check
      %p1936 = pneg %p1935
    $region50: #{_lambda_.28} parent=5 // pred_check_branch
      %1938 = sbr.rel (%p1936) target = $region52
    $region51: #{_lambda_.28} parent=5 // pred_region
      %s1939 = ssub.s32 %s12, 2
      // Predicated region
      $region53: #{_lambda_.28} parent=51 // pred_check
        %p1940 = pneg %p177
      $region54: #{_lambda_.28} parent=51 // pred_check_branch
        %1942 = sbr.rel (%p1940) target = $region56
      $region55: #{_lambda_.28} parent=51 // pred_region
        %p1943 = scmp.lt.s32.totalorder %s18, 1
        %s1944 = scalar_select %p1943, %s18, 1
        %s1945 = smul.addr %s1944, 8
        %s1946 = smul.addr %s1945, 4
        %s1947 = scalar_lea.vmem %s6, %s1946
      $region56: #{_lambda_.28} parent=51 // pred_fallthru
        _
    $region52: #{_lambda_.28} parent=5 // pred_fallthru
      _
  $region6: #{_lambda_.28} parent=0 // loop_footer
    %s16 = sadd.s32 1, %s12
  $region7: #{_lambda_.28} parent=0 // loop_footer_branch
    %11 = sbr.rel target = $region3
  $region8: #{_lambda_.28} parent=0 // loop_exit
    _

// kernel: _lambda_.34
$region0: #{_lambda_.34}
  #allocation0 [shape = 'u32[]', space=smem, size = 0x4, offset = 0x4, fixed_abs, tag = 'smem constant byte address 0x4 - core index']
  #allocation1 [shape = 'u32[144,128]{1,0:T(1,128)}', space=vmem, size = 0x12000, scoped, tag = 'internal scratch']
  %s0 = inlined_call_operand.vmem [shape: bf16[8,32], index: 0, kind: input, shape index: {}]
  %s1 = inlined_call_operand.vmem [shape: bf16[32,64], index: 1, kind: input, shape index: {}]
  %s2 = inlined_call_operand.vmem [shape: f32[1,64], index: 2, kind: input, shape index: {}]
  %s3 = inlined_call_operand.vmem [shape: bf16[8,64], index: 3, kind: output, shape index: {}]
  %s4 = sld [smem:[#allocation0]]
  $region22: #{_lambda_.34} parent=0
    _
  %s6 = ssub.s32 1, %s4
  %s7 = scalar_select 0, %s6, %s4
  // Predicated region
  $region2: #{_lambda_.34} parent=0 // pred_check
    _
  $region3: #{_lambda_.34} parent=0 // pred_check_branch
    %9 = sbr.rel (0) target = $region5
  $region4: #{_lambda_.34} parent=0 // pred_region
    _
  $region5: #{_lambda_.34} parent=0 // pred_fallthru
    _
  // Predicated region
  $region6: #{_lambda_.34} parent=0 // pred_check
    _
  $region7: #{_lambda_.34} parent=0 // pred_check_branch
    %11 = sbr.rel (0) target = $region9
  $region8: #{_lambda_.34} parent=0 // pred_region
    _
  $region9: #{_lambda_.34} parent=0 // pred_fallthru
    _
  // Predicated region
  $region10: #{_lambda_.34} parent=0 // pred_check
    _
  $region11: #{_lambda_.34} parent=0 // pred_check_branch
    %13 = sbr.rel (0) target = $region13
  $region12: #{_lambda_.34} parent=0 // pred_region
    _
  $region13: #{_lambda_.34} parent=0 // pred_fallthru
    _
  %v15 = vld [vmem:[%s0] sm:$0xf]
  %v16 = vld [vmem:[%s1] sm:$0xf]
  %v17 = vld [vmem:[%s1 + $0x4] sm:$0xf]
  %v18 = vld [vmem:[%s1 + $0x8] sm:$0xf]
  %v19 = vld [vmem:[%s1 + $0xc] sm:$0xf]
  %v20 = vld [vmem:[%s2] sm:$0x1]
  %v22 = vlaneseq
  %v23 = vshrl.u32 %v22, 7
  %v24 = vsub.s32 0, %v23
  %v25 = vrot.slane %v20, %v24
  %v31 = vunpack.c.l.b16 %v16
  %v32 = vunpack.c.l.b16 %v17
  %v33 = vunpack.c.l.b16 %v18
  %v34 = vunpack.c.l.b16 %v19
  %v35 = vpack.c.b16 %v32, %v31
  %v36 = vpack.c.b16 %v34, %v33
  %vm39 = vcmask 261120
  %v41 = vsel %vm39, %v15, 0
  %43 = vmatprep.subr.bf16.mxu0 0
  %44 = vmatpush1.bf16.msra.mxu0 %v35
  %45 = vmatprep.subr.bf16.mxu0 0
  %46 = vmatpush1.bf16.msra.mxu0 %v36
  %47 = vmatprep.subr.bf16.mxu0 0
  %48 = vmatpush1.bf16.msra.mxu0 0
  %49 = vmatprep.subr.bf16.mxu0 0
  %50 = vmatpush1.bf16.msra.mxu0 0
  %51 = vmatprep.subr.bf16.mxu0 0
  %52 = vmatpush1.bf16.msra.mxu0 0
  %53 = vmatprep.subr.bf16.mxu0 0
  %54 = vmatpush1.bf16.msra.mxu0 0
  %55 = vmatprep.subr.bf16.mxu0 0
  %56 = vmatpush1.bf16.msra.mxu0 0
  %57 = vmatprep.subr.bf16.mxu0 0
  %58 = vmatpush1.bf16.msra.mxu0 0
  %59 = vmatprep.subr.bf16.mxu0 0
  %60 = vmatpush1.bf16.msra.mxu0 0
  %61 = vmatprep.subr.bf16.mxu0 0
  %62 = vmatpush1.bf16.msra.mxu0 0
  %63 = vmatprep.subr.bf16.mxu0 0
  %64 = vmatpush1.bf16.msra.mxu0 0
  %65 = vmatprep.subr.bf16.mxu0 0
  %66 = vmatpush1.bf16.msra.mxu0 0
  %67 = vmatprep.subr.bf16.mxu0 0
  %68 = vmatpush1.bf16.msra.mxu0 0
  %69 = vmatprep.subr.bf16.mxu0 0
  %70 = vmatpush1.bf16.msra.mxu0 0
  %71 = vmatprep.subr.bf16.mxu0 0
  %72 = vmatpush1.bf16.msra.mxu0 0
  %73 = vmatprep.subr.bf16.mxu0 0
  %74 = vmatpush1.bf16.msra.mxu0 0
  %75 = vmatprep.mubr.bf16.mxu0 0
  %76 = vmatmul.mubr.bf16.gmra.mrb[0].mxu0 %v41
  %v77 = vpop.f32.mrb[0].mxu0
  %v78 = vadd.f32 %v25, %v77
  %v79 = vpop.f32.mrb[0].mxu0
  %v80 = vpop.f32.mrb[0].mxu0
  %v81 = vpop.f32.mrb[0].mxu0
  %82 = vdwg.mxu0
  %v83 = vpack.c.bf16 %v78, %v78
  %vm84 = vcmask 519168
  %85 = vst.msk [vmem:[%s3] sm:$0xf] %vm84, %v83
  // Predicated region
  $region14: #{_lambda_.34} parent=0 // pred_check
    _
  $region15: #{_lambda_.34} parent=0 // pred_check_branch
    %87 = sbr.rel (0) target = $region17
  $region16: #{_lambda_.34} parent=0 // pred_region
    _
  $region17: #{_lambda_.34} parent=0 // pred_fallthru
    _
  // Predicated region
  $region18: #{_lambda_.34} parent=0 // pred_check
    _
  $region19: #{_lambda_.34} parent=0 // pred_check_branch
    %89 = sbr.rel (0) target = $region21
  $region20: #{_lambda_.34} parent=0 // pred_region
    _
  $region21: #{_lambda_.34} parent=0 // pred_fallthru
    _

// kernel: _lambda_.33
$region0: #{_lambda_.33}
  #allocation0 [shape = 'u32[]', space=smem, size = 0x4, offset = 0x4, fixed_abs, tag = 'smem constant byte address 0x4 - core index']
  #allocation1 [shape = 'u32[144,128]{1,0:T(1,128)}', space=vmem, size = 0x12000, scoped, tag = 'internal scratch']
  %s0 = inlined_call_operand.vmem [shape: bf16[8,128], index: 0, kind: input, shape index: {}]
  %s1 = inlined_call_operand.vmem [shape: bf16[128,32], index: 1, kind: input, shape index: {}]
  %s2 = inlined_call_operand.vmem [shape: f32[1,32], index: 2, kind: input, shape index: {}]
  %s3 = inlined_call_operand.vmem [shape: f32[1,32], index: 3, kind: input, shape index: {}]
  %s4 = inlined_call_operand.vmem [shape: f32[1,32], index: 4, kind: input, shape index: {}]
  %s5 = inlined_call_operand.vmem [shape: bf16[8,32], index: 5, kind: output, shape index: {}]
  %s6 = sld [smem:[#allocation0]]
  $region30: #{_lambda_.33} parent=0
    _
  %s8 = ssub.s32 1, %s6
  %s9 = scalar_select 0, %s8, %s6
  // Predicated region
  $region2: #{_lambda_.33} parent=0 // pred_check
    _
  $region3: #{_lambda_.33} parent=0 // pred_check_branch
    %11 = sbr.rel (0) target = $region5
  $region4: #{_lambda_.33} parent=0 // pred_region
    _
  $region5: #{_lambda_.33} parent=0 // pred_fallthru
    _
  // Predicated region
  $region6: #{_lambda_.33} parent=0 // pred_check
    _
  $region7: #{_lambda_.33} parent=0 // pred_check_branch
    %13 = sbr.rel (0) target = $region9
  $region8: #{_lambda_.33} parent=0 // pred_region
    _
  $region9: #{_lambda_.33} parent=0 // pred_fallthru
    _
  // Predicated region
  $region10: #{_lambda_.33} parent=0 // pred_check
    _
  $region11: #{_lambda_.33} parent=0 // pred_check_branch
    %15 = sbr.rel (0) target = $region13
  $region12: #{_lambda_.33} parent=0 // pred_region
    _
  $region13: #{_lambda_.33} parent=0 // pred_fallthru
    _
  // Predicated region
  $region14: #{_lambda_.33} parent=0 // pred_check
    _
  $region15: #{_lambda_.33} parent=0 // pred_check_branch
    %17 = sbr.rel (0) target = $region17
  $region16: #{_lambda_.33} parent=0 // pred_region
    _
  $region17: #{_lambda_.33} parent=0 // pred_fallthru
    _
  // Predicated region
  $region18: #{_lambda_.33} parent=0 // pred_check
    _
  $region19: #{_lambda_.33} parent=0 // pred_check_branch
    %19 = sbr.rel (0) target = $region21
  $region20: #{_lambda_.33} parent=0 // pred_region
    _
  $region21: #{_lambda_.33} parent=0 // pred_fallthru
    _
  %v21 = vld [vmem:[%s0] sm:$0xf]
  %v22 = vld [vmem:[%s1] sm:$0xf]
  %v23 = vld [vmem:[%s1 + $0x4] sm:$0xf]
  %v24 = vld [vmem:[%s1 + $0x8] sm:$0xf]
  %v25 = vld [vmem:[%s1 + $0xc] sm:$0xf]
  %v26 = vld [vmem:[%s1 + $0x10] sm:$0xf]
  %v27 = vld [vmem:[%s1 + $0x14] sm:$0xf]
  %v28 = vld [vmem:[%s1 + $0x18] sm:$0xf]
  %v29 = vld [vmem:[%s1 + $0x1c] sm:$0xf]
  %v30 = vld [vmem:[%s1 + $0x20] sm:$0xf]
  %v31 = vld [vmem:[%s1 + $0x24] sm:$0xf]
  %v32 = vld [vmem:[%s1 + $0x28] sm:$0xf]
  %v33 = vld [vmem:[%s1 + $0x2c] sm:$0xf]
  %v34 = vld [vmem:[%s1 + $0x30] sm:$0xf]
  %v35 = vld [vmem:[%s1 + $0x34] sm:$0xf]
  %v36 = vld [vmem:[%s1 + $0x38] sm:$0xf]
  %v37 = vld [vmem:[%s1 + $0x3c] sm:$0xf]
  %v38 = vld [vmem:[%s2] sm:$0x1]
  %v40 = vlaneseq
  %v41 = vshrl.u32 %v40, 7
  %v42 = vsub.s32 0, %v41
  %v43 = vrot.slane %v38, %v42
  %v61 = vunpack.c.l.b16 %v22
  %v62 = vunpack.c.l.b16 %v23
  %v63 = vunpack.c.l.b16 %v24
  %v64 = vunpack.c.l.b16 %v25
  %v65 = vunpack.c.l.b16 %v26
  %v66 = vunpack.c.l.b16 %v27
  %v67 = vunpack.c.l.b16 %v28
  %v68 = vunpack.c.l.b16 %v29
  %v69 = vunpack.c.l.b16 %v30
  %v70 = vunpack.c.l.b16 %v31
  %v71 = vunpack.c.l.b16 %v32
  %v72 = vunpack.c.l.b16 %v33
  %v73 = vunpack.c.l.b16 %v34
  %v74 = vunpack.c.l.b16 %v35
  %v75 = vunpack.c.l.b16 %v36
  %v76 = vunpack.c.l.b16 %v37
  %v77 = vpack.c.b16 %v62, %v61
  %v78 = vpack.c.b16 %v64, %v63
  %v79 = vpack.c.b16 %v66, %v65
  %v80 = vpack.c.b16 %v68, %v67
  %v81 = vpack.c.b16 %v70, %v69
  %v82 = vpack.c.b16 %v72, %v71
  %v83 = vpack.c.b16 %v74, %v73
  %v84 = vpack.c.b16 %v76, %v75
  %93 = vmatprep.subr.bf16.mxu0 0
  %94 = vmatpush1.bf16.msra.mxu0 %v77
  %95 = vmatprep.subr.bf16.mxu0 0
  %96 = vmatpush1.bf16.msra.mxu0 %v78
  %97 = vmatprep.subr.bf16.mxu0 0
  %98 = vmatpush1.bf16.msra.mxu0 %v79
  %99 = vmatprep.subr.bf16.mxu0 0
  %100 = vmatpush1.bf16.msra.mxu0 %v80
  %101 = vmatprep.subr.bf16.mxu0 0
  %102 = vmatpush1.bf16.msra.mxu0 %v81
  %103 = vmatprep.subr.bf16.mxu0 0
  %104 = vmatpush1.bf16.msra.mxu0 %v82
  %105 = vmatprep.subr.bf16.mxu0 0
  %106 = vmatpush1.bf16.msra.mxu0 %v83
  %107 = vmatprep.subr.bf16.mxu0 0
  %108 = vmatpush1.bf16.msra.mxu0 %v84
  %109 = vmatprep.subr.bf16.mxu0 0
  %110 = vmatpush1.bf16.msra.mxu0 0
  %111 = vmatprep.subr.bf16.mxu0 0
  %112 = vmatpush1.bf16.msra.mxu0 0
  %113 = vmatprep.subr.bf16.mxu0 0
  %114 = vmatpush1.bf16.msra.mxu0 0
  %115 = vmatprep.subr.bf16.mxu0 0
  %116 = vmatpush1.bf16.msra.mxu0 0
  %117 = vmatprep.subr.bf16.mxu0 0
  %118 = vmatpush1.bf16.msra.mxu0 0
  %119 = vmatprep.subr.bf16.mxu0 0
  %120 = vmatpush1.bf16.msra.mxu0 0
  %121 = vmatprep.subr.bf16.mxu0 0
  %122 = vmatpush1.bf16.msra.mxu0 0
  %123 = vmatprep.subr.bf16.mxu0 0
  %124 = vmatpush1.bf16.msra.mxu0 0
  %125 = vmatprep.mubr.bf16.mxu0 0
  %126 = vmatmul.mubr.bf16.gmra.mrb[0].mxu0 %v21
  %v127 = vpop.f32.mrb[0].mxu0
  %v128 = vadd.f32 %v43, %v127
  %v129 = vpop.f32.mrb[0].mxu0
  %v130 = vpop.f32.mrb[0].mxu0
  %v131 = vpop.f32.mrb[0].mxu0
  %132 = vdwg.mxu0
  %v133 = vld [vmem:[%s3] sm:$0x1]
  %v134 = vld [vmem:[%s4] sm:$0x1]
  %vm135 = vcmask 261120
  %v136 = vsel %vm135, %v128, 0.0
  %137 = vadd.xlane.f32.xlu0 %v136
  %v138 = vpop.xlane.xlu0 %137
  %v139 = vrcp.pop 32.0
  %v140 = vmul.f32 %v138, %v139
  %v141 = vsub.f32 %v128, %v140
  %v142 = vmul.f32 %v141, %v141
  %v143 = vsel %vm135, %v142, 0.0
  %144 = vadd.xlane.f32.xlu0 %v143
  %v145 = vpop.xlane.xlu0 %144
  %v146 = vmul.f32 %v145, %v139
  %v147 = vadd.f32 %v146, 1e-05
  %v148 = vrsqrt.pop %v147
  %v149 = vmul.f32 %v141, %v148
  %v151 = vlaneseq
  %v152 = vshrl.u32 %v151, 7
  %v153 = vsub.s32 0, %v152
  %v154 = vrot.slane %v133, %v153
  %v156 = vmul.f32 %v149, %v154
  %v158 = vlaneseq
  %v159 = vshrl.u32 %v158, 7
  %v160 = vsub.s32 0, %v159
  %v161 = vrot.slane %v134, %v160
  %v163 = vadd.f32 %v156, %v161
  %v164 = vpack.c.bf16 %v163, %v163
  %vm165 = vcmask 257024
  %166 = vst.msk [vmem:[%s5] sm:$0xf] %vm165, %v164
  // Predicated region
  $region22: #{_lambda_.33} parent=0 // pred_check
    _
  $region23: #{_lambda_.33} parent=0 // pred_check_branch
    %168 = sbr.rel (0) target = $region25
  $region24: #{_lambda_.33} parent=0 // pred_region
    _
  $region25: #{_lambda_.33} parent=0 // pred_fallthru
    _
  // Predicated region
  $region26: #{_lambda_.33} parent=0 // pred_check
    _
  $region27: #{_lambda_.33} parent=0 // pred_check_branch
    %170 = sbr.rel (0) target = $region29
  $region28: #{_lambda_.33} parent=0 // pred_region
    _
  $region29: #{_lambda_.33} parent=0 // pred_fallthru
    _

// kernel: _lambda_.31
$region0: #{_lambda_.31}
  #allocation0 [shape = 'u32[]', space=smem, size = 0x4, offset = 0x4, fixed_abs, tag = 'smem constant byte address 0x4 - core index']
  #allocation1 [shape = 'u32[144,128]{1,0:T(1,128)}', space=vmem, size = 0x12000, scoped, tag = 'internal scratch']
  %s0 = inlined_call_operand.vmem [shape: bf16[32,32], index: 0, kind: input, shape index: {}]
  %s1 = inlined_call_operand.vmem [shape: f32[1,32], index: 1, kind: input, shape index: {}]
  %s2 = inlined_call_operand.vmem [shape: f32[1,32], index: 2, kind: input, shape index: {}]
  %s3 = inlined_call_operand.vmem [shape: bf16[32,32], index: 3, kind: input, shape index: {}]
  %s4 = inlined_call_operand.vmem [shape: f32[1,32], index: 4, kind: input, shape index: {}]
  %s5 = inlined_call_operand.vmem [shape: bf16[32,32], index: 5, kind: output, shape index: {}]
  %s6 = sld [smem:[#allocation0]]
  $region53: #{_lambda_.31} parent=0
    _
  %s8 = ssub.s32 1, %s6
  %s9 = scalar_select 0, %s8, %s6
  loop: start=0, step=1, limit=4
  $region2: #{_lambda_.31} parent=0 // loop_pre_header
    _
  $region3: #{_lambda_.31} parent=0 // loop_header
    %s11 = sphi 0, %s15
    %p12 = scmp.ge.s32.totalorder %s11, 4
    %s21 = sphi 0, %s23
    %s24 = sphi 0, %s21
    %s25 = sphi 0, %s24
    %s41 = sphi 0, %s25
    %s45 = sphi 0, %s45
    %s47 = sphi 0, %s45
    %s48 = sphi 0, %s47
    %s62 = sphi 0, %s48
    %s66 = sphi 0, %s66
    %s68 = sphi 0, %s66
    %s69 = sphi 0, %s68
    %s83 = sphi 0, %s69
    %s87 = sphi 0, %s87
    %s89 = sphi 0, %s87
    %s90 = sphi 0, %s89
    %s104 = sphi 0, %s90
    %s108 = sphi 0, %s108
    %s110 = sphi 0, %s108
    %s111 = sphi 0, %s110
    %s125 = sphi 0, %s111
    %s131 = sphi 0, %s133
    %s134 = sphi 0, %s131
    %s135 = sphi 0, %s134
    %s151 = sphi 0, %s135
  $region4: #{_lambda_.31} parent=0 // loop_header_branch
    %14 = sbr.rel (%p12) target = $region8
  $region5: #{_lambda_.31} parent=0 // loop_body
    %s16 = ssub.s32 %s11, 1
    %s17 = ssub.s32 %s11, 2
    %s18 = sadd.s32 %s11, 1
    %s19 = ssub.s32 %s11, %s18
    %p20 = scmp.eq.s32.totalorder %s19, 0
    %s22 = sadd.s32 %s21, 1
    %s23 = scalar_select %p20, %s21, %s22
    %p26 = pneg %p20
    %p27 = scmp.eq.s32.totalorder %s11, 1
    %p28 = por %p26, %p27
    %p29 = scmp.ne.s32.totalorder %s21, %s24
    %p30 = scmp.eq.s32.totalorder %s11, 0
    %p31 = por %p29, %p30
    %p32 = scmp.ne.s32.totalorder %s21, %s24
    %p33 = scmp.eq.s32.totalorder %s16, 1
    %p34 = por %p32, %p33
    %p35 = scmp.ne.s32.totalorder %s24, %s25
    %p36 = scmp.eq.s32.totalorder %s16, 0
    %p37 = por %p35, %p36
    %p38 = scmp.ne.s32.totalorder %s24, %s25
    %p39 = scmp.eq.s32.totalorder %s17, 1
    %p40 = por %p38, %p39
    %p42 = scmp.ne.s32.totalorder %s25, %s41
    %p43 = scmp.eq.s32.totalorder %s17, 0
    %p44 = por %p42, %p43
    %s46 = sadd.s32 %s45, 1
    %p49 = scmp.eq.s32.totalorder %s11, 1
    %p50 = scmp.ne.s32.totalorder %s45, %s47
    %p51 = scmp.eq.s32.totalorder %s11, 0
    %p52 = por %p50, %p51
    %p53 = scmp.ne.s32.totalorder %s45, %s47
    %p54 = scmp.eq.s32.totalorder %s16, 1
    %p55 = por %p53, %p54
    %p56 = scmp.ne.s32.totalorder %s47, %s48
    %p57 = scmp.eq.s32.totalorder %s16, 0
    %p58 = por %p56, %p57
    %p59 = scmp.ne.s32.totalorder %s47, %s48
    %p60 = scmp.eq.s32.totalorder %s17, 1
    %p61 = por %p59, %p60
    %p63 = scmp.ne.s32.totalorder %s48, %s62
    %p64 = scmp.eq.s32.totalorder %s17, 0
    %p65 = por %p63, %p64
    %s67 = sadd.s32 %s66, 1
    %p70 = scmp.eq.s32.totalorder %s11, 1
    %p71 = scmp.ne.s32.totalorder %s66, %s68
    %p72 = scmp.eq.s32.totalorder %s11, 0
    %p73 = por %p71, %p72
    %p74 = scmp.ne.s32.totalorder %s66, %s68
    %p75 = scmp.eq.s32.totalorder %s16, 1
    %p76 = por %p74, %p75
    %p77 = scmp.ne.s32.totalorder %s68, %s69
    %p78 = scmp.eq.s32.totalorder %s16, 0
    %p79 = por %p77, %p78
    %p80 = scmp.ne.s32.totalorder %s68, %s69
    %p81 = scmp.eq.s32.totalorder %s17, 1
    %p82 = por %p80, %p81
    %p84 = scmp.ne.s32.totalorder %s69, %s83
    %p85 = scmp.eq.s32.totalorder %s17, 0
    %p86 = por %p84, %p85
    %s88 = sadd.s32 %s87, 1
    %p91 = scmp.eq.s32.totalorder %s11, 1
    %p92 = scmp.ne.s32.totalorder %s87, %s89
    %p93 = scmp.eq.s32.totalorder %s11, 0
    %p94 = por %p92, %p93
    %p95 = scmp.ne.s32.totalorder %s87, %s89
    %p96 = scmp.eq.s32.totalorder %s16, 1
    %p97 = por %p95, %p96
    %p98 = scmp.ne.s32.totalorder %s89, %s90
    %p99 = scmp.eq.s32.totalorder %s16, 0
    %p100 = por %p98, %p99
    %p101 = scmp.ne.s32.totalorder %s89, %s90
    %p102 = scmp.eq.s32.totalorder %s17, 1
    %p103 = por %p101, %p102
    %p105 = scmp.ne.s32.totalorder %s90, %s104
    %p106 = scmp.eq.s32.totalorder %s17, 0
    %p107 = por %p105, %p106
    %s109 = sadd.s32 %s108, 1
    %p112 = scmp.eq.s32.totalorder %s11, 1
    %p113 = scmp.ne.s32.totalorder %s108, %s110
    %p114 = scmp.eq.s32.totalorder %s11, 0
    %p115 = por %p113, %p114
    %p116 = scmp.ne.s32.totalorder %s108, %s110
    %p117 = scmp.eq.s32.totalorder %s16, 1
    %p118 = por %p116, %p117
    %p119 = scmp.ne.s32.totalorder %s110, %s111
    %p120 = scmp.eq.s32.totalorder %s16, 0
    %p121 = por %p119, %p120
    %p122 = scmp.ne.s32.totalorder %s110, %s111
    %p123 = scmp.eq.s32.totalorder %s17, 1
    %p124 = por %p122, %p123
    %p126 = scmp.ne.s32.totalorder %s111, %s125
    %p127 = scmp.eq.s32.totalorder %s17, 0
    %p128 = por %p126, %p127
    %s129 = ssub.s32 %s11, %s18
    %p130 = scmp.eq.s32.totalorder %s129, 0
    %s132 = sadd.s32 %s131, 1
    %s133 = scalar_select %p130, %s131, %s132
    %p136 = pneg %p130
    %p137 = scmp.eq.s32.totalorder %s11, 1
    %p138 = por %p136, %p137
    %p139 = scmp.ne.s32.totalorder %s131, %s134
    %p140 = scmp.eq.s32.totalorder %s11, 0
    %p141 = por %p139, %p140
    %p142 = scmp.ne.s32.totalorder %s131, %s134
    %p143 = scmp.eq.s32.totalorder %s16, 1
    %p144 = por %p142, %p143
    %p145 = scmp.ne.s32.totalorder %s134, %s135
    %p146 = scmp.eq.s32.totalorder %s16, 0
    %p147 = por %p145, %p146
    %p148 = scmp.ne.s32.totalorder %s134, %s135
    %p149 = scmp.eq.s32.totalorder %s17, 1
    %p150 = por %p148, %p149
    %p152 = scmp.ne.s32.totalorder %s135, %s151
    %p153 = scmp.eq.s32.totalorder %s17, 0
    %p154 = por %p152, %p153
    %p155 = scmp.le.s32.totalorder 1, %s11
    %p156 = scmp.lt.s32.totalorder %s11, 3
    %p157 = pnand %p155, %p156
    %p158 = pneg %p157
    // Predicated region
    $region9: #{_lambda_.31} parent=5 // pred_check
      _
    $region10: #{_lambda_.31} parent=5 // pred_check_branch
      %160 = sbr.rel (%p157) target = $region12
    $region11: #{_lambda_.31} parent=5 // pred_region
      %s161 = ssub.s32 %s11, 1
      // Predicated region
      $region13: #{_lambda_.31} parent=11 // pred_check
        %p162 = pneg %p58
      $region14: #{_lambda_.31} parent=11 // pred_check_branch
        %164 = sbr.rel (%p162) target = $region16
      $region15: #{_lambda_.31} parent=11 // pred_region
        _
      $region16: #{_lambda_.31} parent=11 // pred_fallthru
        _
      // Predicated region
      $region17: #{_lambda_.31} parent=11 // pred_check
        %p165 = pneg %p79
      $region18: #{_lambda_.31} parent=11 // pred_check_branch
        %167 = sbr.rel (%p165) target = $region20
      $region19: #{_lambda_.31} parent=11 // pred_region
        _
      $region20: #{_lambda_.31} parent=11 // pred_fallthru
        _
      // Predicated region
      $region21: #{_lambda_.31} parent=11 // pred_check
        %p168 = pneg %p100
      $region22: #{_lambda_.31} parent=11 // pred_check_branch
        %170 = sbr.rel (%p168) target = $region24
      $region23: #{_lambda_.31} parent=11 // pred_region
        _
      $region24: #{_lambda_.31} parent=11 // pred_fallthru
        _
      // Predicated region
      $region25: #{_lambda_.31} parent=11 // pred_check
        %p171 = pneg %p121
      $region26: #{_lambda_.31} parent=11 // pred_check_branch
        %173 = sbr.rel (%p171) target = $region28
      $region27: #{_lambda_.31} parent=11 // pred_region
        _
      $region28: #{_lambda_.31} parent=11 // pred_fallthru
        _
    $region12: #{_lambda_.31} parent=5 // pred_fallthru
      _
    %p174 = scmp.lt.s32.totalorder %s11, 2
    // Predicated region
    $region29: #{_lambda_.31} parent=5 // pred_check
      %p175 = pneg %p174
    $region30: #{_lambda_.31} parent=5 // pred_check_branch
      %177 = sbr.rel (%p175) target = $region32
    $region31: #{_lambda_.31} parent=5 // pred_region
      // Predicated region
      $region33: #{_lambda_.31} parent=31 // pred_check
        %p178 = pneg %p31
      $region34: #{_lambda_.31} parent=31 // pred_check_branch
        %180 = sbr.rel (%p178) target = $region36
      $region35: #{_lambda_.31} parent=31 // pred_region
        %s181 = smul.u32 2, %s11
        %p182 = scmp.lt.s32.totalorder %s181, 3
        %s183 = scalar_select %p182, %s181, 3
        %s184 = smul.addr %s183, 4
        %s185 = scalar_lea.vmem %s0, %s184
        %s186 = smul.u32 2, %s11
      $region36: #{_lambda_.31} parent=31 // pred_fallthru
        _
    $region32: #{_lambda_.31} parent=5 // pred_fallthru
      _
    %p187 = scmp.le.s32.totalorder 1, %s11
    %p188 = scmp.lt.s32.totalorder %s11, 3
    %p189 = pnand %p187, %p188
    %p190 = pneg %p189
    // Predicated region
    $region37: #{_lambda_.31} parent=5 // pred_check
      _
    $region38: #{_lambda_.31} parent=5 // pred_check_branch
      %192 = sbr.rel (%p189) target = $region40
    $region39: #{_lambda_.31} parent=5 // pred_region
      %s193 = ssub.s32 %s11, 1
      %s194 = smul.u32 2, %s16
      %p195 = scmp.lt.s32.totalorder %s194, 3
      %s196 = scalar_select %p195, %s194, 3
      %s197 = smul.addr %s196, 4
      %s198 = scalar_lea.vmem %s0, %s197
      %p199 = pneg %p37
      %p200 = pneg %p34
      %p201 = pneg %p58
      %p202 = pneg %p55
      %p203 = pneg %p79
      %p204 = pneg %p76
      %p205 = pneg %p100
      %p206 = pneg %p97
      %p207 = pneg %p121
      %p208 = pneg %p118
      %p209 = pneg %p147
      %p210 = pneg %p144
      %s211 = smul.u32 2, %s16
      %p212 = scmp.lt.s32.totalorder %s211, 3
      %s213 = scalar_select %p212, %s211, 3
      %s214 = smul.addr %s213, 4
      %s215 = scalar_lea.vmem %s5, %s214
      %s216 = smul.u32 2, %s16
      %p217 = scmp.lt.s32.totalorder %s216, 3
      %s218 = scalar_select %p217, %s216, 3
      %s219 = smul.addr %s218, 4
      %s220 = scalar_lea.vmem %s0, %s219
      %s221 = smul.u32 2, %s16
      %s222 = smul.u32 2, %s16
      %p223 = scmp.lt.s32.totalorder %s222, 3
      %s224 = scalar_select %p223, %s222, 3
      %s225 = smul.addr %s224, 4
      %s226 = scalar_lea.vmem %s5, %s225
      %s227 = smul.u32 2, %s16
      %v229 = vld [vmem:[%s220] sm:$0xf]
      %v230 = vld [vmem:[%s220 + $0x4] sm:$0xf]
      %v231 = vunpack.c.l.bf16 %v229
      %v232 = vunpack.c.l.bf16 %v230
      %v233 = vld [vmem:[%s1] sm:$0x1]
      %v234 = vld [vmem:[%s2] sm:$0x1]
      %vm235 = vcmask 261120
      %v236 = vsel %vm235, %v231, 0.0
      %237 = vadd.xlane.f32.xlu0 %v236
      %v238 = vpop.xlane.xlu0 %237
      %v239 = vsel %vm235, %v232, 0.0
      %240 = vadd.xlane.f32.xlu0 %v239
      %v241 = vpop.xlane.xlu0 %240
      %v242 = vrcp.pop 32.0
      %v243 = vmul.f32 %v238, %v242
      %v244 = vmul.f32 %v241, %v242
      %v245 = vsub.f32 %v231, %v243
      %v246 = vsub.f32 %v232, %v244
      %v247 = vmul.f32 %v245, %v245
      %v248 = vmul.f32 %v246, %v246
      %v249 = vsel %vm235, %v247, 0.0
      %250 = vadd.xlane.f32.xlu0 %v249
      %v251 = vpop.xlane.xlu0 %250
      %v252 = vsel %vm235, %v248, 0.0
      %253 = vadd.xlane.f32.xlu0 %v252
      %v254 = vpop.xlane.xlu0 %253
      %v255 = vmul.f32 %v251, %v242
      %v256 = vmul.f32 %v254, %v242
      %v257 = vadd.f32 %v255, 1e-05
      %v258 = vadd.f32 %v256, 1e-05
      %v259 = vrsqrt.pop %v257
      %v260 = vrsqrt.pop %v258
      %v261 = vmul.f32 %v245, %v259
      %v262 = vmul.f32 %v246, %v260
      %v264 = vlaneseq
      %v265 = vshrl.u32 %v264, 7
      %v266 = vsub.s32 0, %v265
      %v267 = vrot.slane %v233, %v266
      %v269 = vmul.f32 %v261, %v267
      %v270 = vmul.f32 %v262, %v267
      %v272 = vlaneseq
      %v273 = vshrl.u32 %v272, 7
      %v274 = vsub.s32 0, %v273
      %v275 = vrot.slane %v234, %v274
      %v277 = vadd.f32 %v269, %v275
      %v278 = vadd.f32 %v270, %v275
      %v279 = vpack.c.bf16 %v278, %v277
      %v280 = vld [vmem:[%s3] sm:$0xf]
      %v281 = vld [vmem:[%s3 + $0x4] sm:$0xf]
      %v282 = vld [vmem:[%s3 + $0x8] sm:$0xf]
      %v283 = vld [vmem:[%s3 + $0xc] sm:$0xf]
      %v284 = vld [vmem:[%s4] sm:$0x1]
      %v286 = vlaneseq
      %v287 = vshrl.u32 %v286, 7
      %v288 = vsub.s32 0, %v287
      %v289 = vrot.slane %v284, %v288
      %v295 = vunpack.c.l.b16 %v280
      %v296 = vunpack.c.l.b16 %v281
      %v297 = vunpack.c.l.b16 %v282
      %v298 = vunpack.c.l.b16 %v283
      %v299 = vpack.c.b16 %v296, %v295
      %v300 = vpack.c.b16 %v298, %v297
      %v304 = vsel %vm235, %v279, 0
      %306 = vmatprep.subr.bf16.mxu0 0
      %307 = vmatpush1.bf16.msra.mxu0 %v299
      %308 = vmatprep.subr.bf16.mxu0 0
      %309 = vmatpush1.bf16.msra.mxu0 %v300
      %310 = vmatprep.subr.bf16.mxu0 0
      %311 = vmatpush1.bf16.msra.mxu0 0
      %312 = vmatprep.subr.bf16.mxu0 0
      %313 = vmatpush1.bf16.msra.mxu0 0
      %314 = vmatprep.subr.bf16.mxu0 0
      %315 = vmatpush1.bf16.msra.mxu0 0
      %316 = vmatprep.subr.bf16.mxu0 0
      %317 = vmatpush1.bf16.msra.mxu0 0
      %318 = vmatprep.subr.bf16.mxu0 0
      %319 = vmatpush1.bf16.msra.mxu0 0
      %320 = vmatprep.subr.bf16.mxu0 0
      %321 = vmatpush1.bf16.msra.mxu0 0
      %322 = vmatprep.subr.bf16.mxu0 0
      %323 = vmatpush1.bf16.msra.mxu0 0
      %324 = vmatprep.subr.bf16.mxu0 0
      %325 = vmatpush1.bf16.msra.mxu0 0
      %326 = vmatprep.subr.bf16.mxu0 0
      %327 = vmatpush1.bf16.msra.mxu0 0
      %328 = vmatprep.subr.bf16.mxu0 0
      %329 = vmatpush1.bf16.msra.mxu0 0
      %330 = vmatprep.subr.bf16.mxu0 0
      %331 = vmatpush1.bf16.msra.mxu0 0
      %332 = vmatprep.subr.bf16.mxu0 0
      %333 = vmatpush1.bf16.msra.mxu0 0
      %334 = vmatprep.subr.bf16.mxu0 0
      %335 = vmatpush1.bf16.msra.mxu0 0
      %336 = vmatprep.subr.bf16.mxu0 0
      %337 = vmatpush1.bf16.msra.mxu0 0
      %338 = vmatprep.mubr.bf16.mxu0 0
      %339 = vmatmul.mubr.bf16.gmra.mrb[0].mxu0 %v304
      %v340 = vpop.f32.mrb[0].mxu0
      %v341 = vadd.f32 %v289, %v340
      %v342 = vpop.f32.mrb[0].mxu0
      %v343 = vpop.f32.mrb[0].mxu0
      %v344 = vadd.f32 %v289, %v343
      %v345 = vpop.f32.mrb[0].mxu0
      %346 = vdwg.mxu0
      %v347 = vpack.c.bf16 %v344, %v341
      %v349 = vunpack.c.l.b16 %v347
      %v350 = vunpack.c.h.b16 %v347
      %v351 = vpack.c.b16 %v349, %v349
      %v352 = vpack.c.b16 %v350, %v350
      %vm355 = vcmask 257024
      %356 = vst.msk [vmem:[%s226] sm:$0xf] %vm355, %v351
      %357 = vst.msk [vmem:[%s226 + $0x4] sm:$0xf] %vm355, %v352
      %s358 = smul.u32 2, %s16
      %p359 = scmp.lt.s32.totalorder %s358, 3
      %s360 = scalar_select %p359, %s358, 3
      %s361 = smul.addr %s360, 4
      %s362 = scalar_lea.vmem %s5, %s361
      // Predicated region
      $region41: #{_lambda_.31} parent=39 // pred_check
        %p363 = pneg %p144
      $region42: #{_lambda_.31} parent=39 // pred_check_branch
        %365 = sbr.rel (%p363) target = $region44
      $region43: #{_lambda_.31} parent=39 // pred_region
        %s366 = smul.u32 2, %s16
      $region44: #{_lambda_.31} parent=39 // pred_fallthru
        _
    $region40: #{_lambda_.31} parent=5 // pred_fallthru
      _
    %p367 = scmp.le.s32.totalorder 2, %s11
    // Predicated region
    $region45: #{_lambda_.31} parent=5 // pred_check
      %p368 = pneg %p367
    $region46: #{_lambda_.31} parent=5 // pred_check_branch
      %370 = sbr.rel (%p368) target = $region48
    $region47: #{_lambda_.31} parent=5 // pred_region
      %s371 = ssub.s32 %s11, 2
      // Predicated region
      $region49: #{_lambda_.31} parent=47 // pred_check
        %p372 = pneg %p150
      $region50: #{_lambda_.31} parent=47 // pred_check_branch
        %374 = sbr.rel (%p372) target = $region52
      $region51: #{_lambda_.31} parent=47 // pred_region
        %s375 = smul.u32 2, %s17
        %p376 = scmp.lt.s32.totalorder %s375, 3
        %s377 = scalar_select %p376, %s375, 3
        %s378 = smul.addr %s377, 4
        %s379 = scalar_lea.vmem %s5, %s378
      $region52: #{_lambda_.31} parent=47 // pred_fallthru
        _
    $region48: #{_lambda_.31} parent=5 // pred_fallthru
      _
  $region6: #{_lambda_.31} parent=0 // loop_footer
    %s15 = sadd.s32 1, %s11
  $region7: #{_lambda_.31} parent=0 // loop_footer_branch
    %10 = sbr.rel target = $region3
  $region8: #{_lambda_.31} parent=0 // loop_exit
    _

// kernel: _lambda_.35
$region0: #{_lambda_.35}
  #allocation0 [shape = 'u32[]', space=smem, size = 0x4, offset = 0x4, fixed_abs, tag = 'smem constant byte address 0x4 - core index']
  #allocation1 [shape = 'u32[144,128]{1,0:T(1,128)}', space=vmem, size = 0x12000, scoped, tag = 'internal scratch']
  %s0 = inlined_call_operand.vmem [shape: bf16[2,16,32], index: 0, kind: input, shape index: {}]
  %s1 = inlined_call_operand.vmem [shape: bf16[2,32,4], index: 1, kind: input, shape index: {}]
  %s2 = inlined_call_operand.vmem [shape: bf16[2,4,32], index: 2, kind: input, shape index: {}]
  %s3 = inlined_call_operand.vmem [shape: bf16[2,16,32], index: 3, kind: output, shape index: {}]
  %s4 = sld [smem:[#allocation0]]
  $region45: #{_lambda_.35} parent=0
    _
  %s6 = ssub.s32 1, %s4
  %s7 = scalar_select 0, %s6, %s4
  loop: start=0, step=1, limit=4
  $region2: #{_lambda_.35} parent=0 // loop_pre_header
    _
  $region3: #{_lambda_.35} parent=0 // loop_header
    %s9 = sphi 0, %s13
    %p10 = scmp.ge.s32.totalorder %s9, 4
    %s16 = sphi 0, %s28
    %s17 = sphi 0, %s24
    %s18 = sphi 0, %s16
    %s19 = sphi 0, %s17
    %s20 = sphi 0, %s18
    %s21 = sphi 0, %s19
    %s33 = sphi 0, %s35
    %s36 = sphi 0, %s33
    %s37 = sphi 0, %s36
    %s53 = sphi 0, %s37
    %s59 = sphi 0, %s61
    %s62 = sphi 0, %s59
    %s63 = sphi 0, %s62
    %s79 = sphi 0, %s63
    %s85 = sphi 0, %s87
    %s88 = sphi 0, %s85
    %s89 = sphi 0, %s88
    %s105 = sphi 0, %s89
    %s113 = sphi 0, %s115
    %s116 = sphi 0, %s113
    %s117 = sphi 0, %s116
    %s133 = sphi 0, %s117
  $region4: #{_lambda_.35} parent=0 // loop_header_branch
    %12 = sbr.rel (%p10) target = $region8
  $region5: #{_lambda_.35} parent=0 // loop_body
    %s14 = ssub.s32 %s9, 1
    %s15 = ssub.s32 %s9, 2
    %s22 = sadd.s32 1, %s17
    %p23 = scmp.ge.s32.totalorder %s22, 1
    %s24 = scalar_select %p23, 0, %s22
    %s25 = sadd.s32 1, %s16
    %s26 = scalar_select %p23, %s25, %s16
    %p27 = scmp.ge.s32.totalorder %s26, 2
    %s28 = scalar_select %p27, 0, %s26
    %s29 = ssub.s32 %s16, %s28
    %s30 = ssub.s32 %s17, %s24
    %s31 = sor.u32 %s29, %s30
    %p32 = scmp.eq.s32.totalorder %s31, 0
    %s34 = sadd.s32 %s33, 1
    %s35 = scalar_select %p32, %s33, %s34
    %p38 = pneg %p32
    %p39 = scmp.eq.s32.totalorder %s9, 1
    %p40 = por %p38, %p39
    %p41 = scmp.ne.s32.totalorder %s33, %s36
    %p42 = scmp.eq.s32.totalorder %s9, 0
    %p43 = por %p41, %p42
    %p44 = scmp.ne.s32.totalorder %s33, %s36
    %p45 = scmp.eq.s32.totalorder %s14, 1
    %p46 = por %p44, %p45
    %p47 = scmp.ne.s32.totalorder %s36, %s37
    %p48 = scmp.eq.s32.totalorder %s14, 0
    %p49 = por %p47, %p48
    %p50 = scmp.ne.s32.totalorder %s36, %s37
    %p51 = scmp.eq.s32.totalorder %s15, 1
    %p52 = por %p50, %p51
    %p54 = scmp.ne.s32.totalorder %s37, %s53
    %p55 = scmp.eq.s32.totalorder %s15, 0
    %p56 = por %p54, %p55
    %s57 = ssub.s32 %s16, %s28
    %p58 = scmp.eq.s32.totalorder %s57, 0
    %s60 = sadd.s32 %s59, 1
    %s61 = scalar_select %p58, %s59, %s60
    %p64 = pneg %p58
    %p65 = scmp.eq.s32.totalorder %s9, 1
    %p66 = por %p64, %p65
    %p67 = scmp.ne.s32.totalorder %s59, %s62
    %p68 = scmp.eq.s32.totalorder %s9, 0
    %p69 = por %p67, %p68
    %p70 = scmp.ne.s32.totalorder %s59, %s62
    %p71 = scmp.eq.s32.totalorder %s14, 1
    %p72 = por %p70, %p71
    %p73 = scmp.ne.s32.totalorder %s62, %s63
    %p74 = scmp.eq.s32.totalorder %s14, 0
    %p75 = por %p73, %p74
    %p76 = scmp.ne.s32.totalorder %s62, %s63
    %p77 = scmp.eq.s32.totalorder %s15, 1
    %p78 = por %p76, %p77
    %p80 = scmp.ne.s32.totalorder %s63, %s79
    %p81 = scmp.eq.s32.totalorder %s15, 0
    %p82 = por %p80, %p81
    %s83 = ssub.s32 %s16, %s28
    %p84 = scmp.eq.s32.totalorder %s83, 0
    %s86 = sadd.s32 %s85, 1
    %s87 = scalar_select %p84, %s85, %s86
    %p90 = pneg %p84
    %p91 = scmp.eq.s32.totalorder %s9, 1
    %p92 = por %p90, %p91
    %p93 = scmp.ne.s32.totalorder %s85, %s88
    %p94 = scmp.eq.s32.totalorder %s9, 0
    %p95 = por %p93, %p94
    %p96 = scmp.ne.s32.totalorder %s85, %s88
    %p97 = scmp.eq.s32.totalorder %s14, 1
    %p98 = por %p96, %p97
    %p99 = scmp.ne.s32.totalorder %s88, %s89
    %p100 = scmp.eq.s32.totalorder %s14, 0
    %p101 = por %p99, %p100
    %p102 = scmp.ne.s32.totalorder %s88, %s89
    %p103 = scmp.eq.s32.totalorder %s15, 1
    %p104 = por %p102, %p103
    %p106 = scmp.ne.s32.totalorder %s89, %s105
    %p107 = scmp.eq.s32.totalorder %s15, 0
    %p108 = por %p106, %p107
    %s109 = ssub.s32 %s16, %s28
    %s110 = ssub.s32 %s17, %s24
    %s111 = sor.u32 %s109, %s110
    %p112 = scmp.eq.s32.totalorder %s111, 0
    %s114 = sadd.s32 %s113, 1
    %s115 = scalar_select %p112, %s113, %s114
    %p118 = pneg %p112
    %p119 = scmp.eq.s32.totalorder %s9, 1
    %p120 = por %p118, %p119
    %p121 = scmp.ne.s32.totalorder %s113, %s116
    %p122 = scmp.eq.s32.totalorder %s9, 0
    %p123 = por %p121, %p122
    %p124 = scmp.ne.s32.totalorder %s113, %s116
    %p125 = scmp.eq.s32.totalorder %s14, 1
    %p126 = por %p124, %p125
    %p127 = scmp.ne.s32.totalorder %s116, %s117
    %p128 = scmp.eq.s32.totalorder %s14, 0
    %p129 = por %p127, %p128
    %p130 = scmp.ne.s32.totalorder %s116, %s117
    %p131 = scmp.eq.s32.totalorder %s15, 1
    %p132 = por %p130, %p131
    %p134 = scmp.ne.s32.totalorder %s117, %s133
    %p135 = scmp.eq.s32.totalorder %s15, 0
    %p136 = por %p134, %p135
    %p137 = scmp.le.s32.totalorder 1, %s9
    %p138 = scmp.lt.s32.totalorder %s9, 3
    %p139 = pnand %p137, %p138
    %p140 = pneg %p139
    // Predicated region
    $region9: #{_lambda_.35} parent=5 // pred_check
      _
    $region10: #{_lambda_.35} parent=5 // pred_check_branch
      %142 = sbr.rel (%p139) target = $region12
    $region11: #{_lambda_.35} parent=5 // pred_region
      %s143 = ssub.s32 %s9, 1
    $region12: #{_lambda_.35} parent=5 // pred_fallthru
      _
    %p144 = scmp.lt.s32.totalorder %s9, 2
    // Predicated region
    $region13: #{_lambda_.35} parent=5 // pred_check
      %p145 = pneg %p144
    $region14: #{_lambda_.35} parent=5 // pred_check_branch
      %147 = sbr.rel (%p145) target = $region16
    $region15: #{_lambda_.35} parent=5 // pred_region
      // Predicated region
      $region17: #{_lambda_.35} parent=15 // pred_check
        %p148 = pneg %p43
      $region18: #{_lambda_.35} parent=15 // pred_check_branch
        %150 = sbr.rel (%p148) target = $region20
      $region19: #{_lambda_.35} parent=15 // pred_region
        %s151 = smul.u32 2, %s17
        %p152 = scmp.lt.s32.totalorder %s16, 1
        %s153 = scalar_select %p152, %s16, 1
        %p154 = scmp.lt.s32.totalorder %s151, 1
        %s155 = scalar_select %p154, %s151, 1
        %s156 = smul.addr %s153, 2
        %s157 = sadd.s32 %s155, %s156
        %s158 = smul.addr %s157, 4
        %s159 = scalar_lea.vmem %s0, %s158
        %s160 = smul.u32 2, %s17
      $region20: #{_lambda_.35} parent=15 // pred_fallthru
        _
      // Predicated region
      $region21: #{_lambda_.35} parent=15 // pred_check
        %p161 = pneg %p69
      $region22: #{_lambda_.35} parent=15 // pred_check_branch
        %163 = sbr.rel (%p161) target = $region24
      $region23: #{_lambda_.35} parent=15 // pred_region
        %p164 = scmp.lt.s32.totalorder %s16, 1
        %s165 = scalar_select %p164, %s16, 1
        %s166 = smul.addr %s165, 4
        %s167 = smul.addr %s166, 4
        %s168 = scalar_lea.vmem %s1, %s167
      $region24: #{_lambda_.35} parent=15 // pred_fallthru
        _
      // Predicated region
      $region25: #{_lambda_.35} parent=15 // pred_check
        %p169 = pneg %p95
      $region26: #{_lambda_.35} parent=15 // pred_check_branch
        %171 = sbr.rel (%p169) target = $region28
      $region27: #{_lambda_.35} parent=15 // pred_region
        %p172 = scmp.lt.s32.totalorder %s16, 1
        %s173 = scalar_select %p172, %s16, 1
        %s174 = smul.addr %s173, 2
        %s175 = scalar_lea.vmem %s2, %s174
      $region28: #{_lambda_.35} parent=15 // pred_fallthru
        _
    $region16: #{_lambda_.35} parent=5 // pred_fallthru
      _
    %p176 = scmp.le.s32.totalorder 1, %s9
    %p177 = scmp.lt.s32.totalorder %s9, 3
    %p178 = pnand %p176, %p177
    %p179 = pneg %p178
    // Predicated region
    $region29: #{_lambda_.35} parent=5 // pred_check
      _
    $region30: #{_lambda_.35} parent=5 // pred_check_branch
      %181 = sbr.rel (%p178) target = $region32
    $region31: #{_lambda_.35} parent=5 // pred_region
      %s182 = ssub.s32 %s9, 1
      %s183 = smul.u32 2, %s19
      %p184 = scmp.lt.s32.totalorder %s18, 1
      %s185 = scalar_select %p184, %s18, 1
      %p186 = scmp.lt.s32.totalorder %s183, 1
      %s187 = scalar_select %p186, %s183, 1
      %s188 = smul.addr %s185, 2
      %s189 = sadd.s32 %s187, %s188
      %s190 = smul.addr %s189, 4
      %s191 = scalar_lea.vmem %s0, %s190
      %p192 = pneg %p49
      %p193 = pneg %p46
      %p194 = scmp.lt.s32.totalorder %s18, 1
      %s195 = scalar_select %p194, %s18, 1
      %s196 = smul.addr %s195, 4
      %s197 = smul.addr %s196, 4
      %s198 = scalar_lea.vmem %s1, %s197
      %p199 = pneg %p75
      %p200 = pneg %p72
      %p201 = scmp.lt.s32.totalorder %s18, 1
      %s202 = scalar_select %p201, %s18, 1
      %s203 = smul.addr %s202, 2
      %s204 = scalar_lea.vmem %s2, %s203
      %p205 = pneg %p101
      %p206 = pneg %p98
      %p207 = pneg %p129
      %p208 = pneg %p126
      %s209 = smul.u32 2, %s19
      %p210 = scmp.lt.s32.totalorder %s18, 1
      %s211 = scalar_select %p210, %s18, 1
      %p212 = scmp.lt.s32.totalorder %s209, 1
      %s213 = scalar_select %p212, %s209, 1
      %s214 = smul.addr %s211, 2
      %s215 = sadd.s32 %s213, %s214
      %s216 = smul.addr %s215, 4
      %s217 = scalar_lea.vmem %s3, %s216
      %s218 = smul.u32 2, %s19
      %p219 = scmp.lt.s32.totalorder %s18, 1
      %s220 = scalar_select %p219, %s18, 1
      %p221 = scmp.lt.s32.totalorder %s218, 1
      %s222 = scalar_select %p221, %s218, 1
      %s223 = smul.addr %s220, 2
      %s224 = sadd.s32 %s222, %s223
      %s225 = smul.addr %s224, 4
      %s226 = scalar_lea.vmem %s0, %s225
      %s227 = smul.u32 2, %s19
      %p228 = scmp.lt.s32.totalorder %s18, 1
      %s229 = scalar_select %p228, %s18, 1
      %s230 = smul.addr %s229, 4
      %s231 = smul.addr %s230, 4
      %s232 = scalar_lea.vmem %s1, %s231
      %p233 = scmp.lt.s32.totalorder %s18, 1
      %s234 = scalar_select %p233, %s18, 1
      %s235 = smul.addr %s234, 2
      %s236 = scalar_lea.vmem %s2, %s235
      %s237 = smul.u32 2, %s19
      %p238 = scmp.lt.s32.totalorder %s18, 1
      %s239 = scalar_select %p238, %s18, 1
      %p240 = scmp.lt.s32.totalorder %s237, 1
      %s241 = scalar_select %p240, %s237, 1
      %s242 = smul.addr %s239, 2
      %s243 = sadd.s32 %s241, %s242
      %s244 = smul.addr %s243, 4
      %s245 = scalar_lea.vmem %s3, %s244
      %s246 = smul.u32 2, %s19
      %v248 = vld [vmem:[%s226] sm:$0xf]
      %v249 = vld [vmem:[%s226 + $0x4] sm:$0xf]
      %v250 = vld [vmem:[%s232] sm:$0xf]
      %v251 = vld [vmem:[%s232 + $0x4] sm:$0xf]
      %v252 = vld [vmem:[%s232 + $0x8] sm:$0xf]
      %v253 = vld [vmem:[%s232 + $0xc] sm:$0xf]
      %v254 = vld [vmem:[%s236] sm:$0x3]
      %v257 = vunpack.c.l.b16 %v248
      %v258 = vunpack.c.l.b16 %v249
      %v259 = vpack.c.b16 %v258, %v257
      %vm260 = vcmask 64512
      %v262 = vsel %vm260, %v259, 0
      %vm264 = vcmask 1043456
      %v266 = vsel %vm264, %v250, 0
      %268 = vmatprep.subr.bf16.mxu0 0
      %269 = vmatpush1.bf16.msra.mxu0 %v266
      %270 = vmatprep.subr.bf16.mxu0 0
      %271 = vmatpush1.bf16.msra.mxu0 0
      %272 = vmatprep.subr.bf16.mxu0 0
      %273 = vmatpush1.bf16.msra.mxu0 0
      %274 = vmatprep.subr.bf16.mxu0 0
      %275 = vmatpush1.bf16.msra.mxu0 0
      %276 = vmatprep.subr.bf16.mxu0 0
      %277 = vmatpush1.bf16.msra.mxu0 0
      %278 = vmatprep.subr.bf16.mxu0 0
      %279 = vmatpush1.bf16.msra.mxu0 0
      %280 = vmatprep.subr.bf16.mxu0 0
      %281 = vmatpush1.bf16.msra.mxu0 0
      %282 = vmatprep.subr.bf16.mxu0 0
      %283 = vmatpush1.bf16.msra.mxu0 0
      %284 = vmatprep.subr.bf16.mxu0 0
      %285 = vmatpush1.bf16.msra.mxu0 0
      %286 = vmatprep.subr.bf16.mxu0 0
      %287 = vmatpush1.bf16.msra.mxu0 0
      %288 = vmatprep.subr.bf16.mxu0 0
      %289 = vmatpush1.bf16.msra.mxu0 0
      %290 = vmatprep.subr.bf16.mxu0 0
      %291 = vmatpush1.bf16.msra.mxu0 0
      %292 = vmatprep.subr.bf16.mxu0 0
      %293 = vmatpush1.bf16.msra.mxu0 0
      %294 = vmatprep.subr.bf16.mxu0 0
      %295 = vmatpush1.bf16.msra.mxu0 0
      %296 = vmatprep.subr.bf16.mxu0 0
      %297 = vmatpush1.bf16.msra.mxu0 0
      %298 = vmatprep.subr.bf16.mxu0 0
      %299 = vmatpush1.bf16.msra.mxu0 0
      %300 = vmatprep.mubr.bf16.mxu0 0
      %301 = vmatmul.mubr.bf16.gmra.mrb[0].mxu0 %v262
      %v302 = vpop.f32.mrb[0].mxu0
      %v303 = vadd.f32 0.0, %v302
      %v304 = vpop.f32.mrb[0].mxu0
      %v305 = vpop.f32.mrb[0].mxu0
      %v306 = vadd.f32 0.0, %v305
      %v307 = vpop.f32.mrb[0].mxu0
      %308 = vdwg.mxu0
      %v309 = vmul.f32 %v303, 0.35355338
      %v310 = vmul.f32 %v306, 0.35355338
      %vm311 = vcmask 31744
      %v312 = vsel %vm311, %v309, -inf
      %313 = vmax.xlane.f32.xlu0 %v312
      %v314 = vpop.xlane.xlu0 %313
      %v315 = vsel %vm311, %v310, -inf
      %316 = vmax.xlane.f32.xlu0 %v315
      %v317 = vpop.xlane.xlu0 %316
      %v318 = vsub.f32 %v309, %v314
      %v319 = vsub.f32 %v310, %v317
      %v320 = vmul.f32 %v318, 1.442695
      %v321 = vpow.pop %v320
      %v322 = vmul.f32 %v319, 1.442695
      %v323 = vpow.pop %v322
      %v324 = vsel %vm311, %v321, 0.0
      %325 = vadd.xlane.f32.xlu0 %v324
      %v326 = vpop.xlane.xlu0 %325
      %v327 = vsel %vm311, %v323, 0.0
      %328 = vadd.xlane.f32.xlu0 %v327
      %v329 = vpop.xlane.xlu0 %328
      %v330 = vrcp.pop %v326
      %v331 = vrcp.pop %v329
      %v332 = vmul.f32 %v321, %v330
      %v333 = vmul.f32 %v323, %v331
      %v334 = vpack.c.bf16 %v333, %v332
      %v336 = vsel %vm311, %v334, 0
      %vm338 = vcmask 1041408
      %v340 = vsel %vm338, %v254, 0
      %342 = vmatprep.subr.bf16.mxu0 0
      %343 = vmatpush1.bf16.msra.mxu0 %v340
      %344 = vmatprep.subr.bf16.mxu0 0
      %345 = vmatpush1.bf16.msra.mxu0 0
      %346 = vmatprep.subr.bf16.mxu0 0
      %347 = vmatpush1.bf16.msra.mxu0 0
      %348 = vmatprep.subr.bf16.mxu0 0
      %349 = vmatpush1.bf16.msra.mxu0 0
      %350 = vmatprep.subr.bf16.mxu0 0
      %351 = vmatpush1.bf16.msra.mxu0 0
      %352 = vmatprep.subr.bf16.mxu0 0
      %353 = vmatpush1.bf16.msra.mxu0 0
      %354 = vmatprep.subr.bf16.mxu0 0
      %355 = vmatpush1.bf16.msra.mxu0 0
      %356 = vmatprep.subr.bf16.mxu0 0
      %357 = vmatpush1.bf16.msra.mxu0 0
      %358 = vmatprep.subr.bf16.mxu0 0
      %359 = vmatpush1.bf16.msra.mxu0 0
      %360 = vmatprep.subr.bf16.mxu0 0
      %361 = vmatpush1.bf16.msra.mxu0 0
      %362 = vmatprep.subr.bf16.mxu0 0
      %363 = vmatpush1.bf16.msra.mxu0 0
      %364 = vmatprep.subr.bf16.mxu0 0
      %365 = vmatpush1.bf16.msra.mxu0 0
      %366 = vmatprep.subr.bf16.mxu0 0
      %367 = vmatpush1.bf16.msra.mxu0 0
      %368 = vmatprep.subr.bf16.mxu0 0
      %369 = vmatpush1.bf16.msra.mxu0 0
      %370 = vmatprep.subr.bf16.mxu0 0
      %371 = vmatpush1.bf16.msra.mxu0 0
      %372 = vmatprep.subr.bf16.mxu0 0
      %373 = vmatpush1.bf16.msra.mxu0 0
      %374 = vmatprep.mubr.bf16.mxu0 0
      %375 = vmatmul.mubr.bf16.gmra.mrb[0].mxu0 %v336
      %v376 = vpop.f32.mrb[0].mxu0
      %v377 = vadd.f32 0.0, %v376
      %v378 = vpop.f32.mrb[0].mxu0
      %v379 = vpop.f32.mrb[0].mxu0
      %v380 = vadd.f32 0.0, %v379
      %v381 = vpop.f32.mrb[0].mxu0
      %382 = vdwg.mxu0
      %383 = vrot.lane.b32.xlu0 %v259, 120
      %v384 = vpop.permute.xlu0 %383
      %v386 = vsel %vm260, %v384, 0
      %v389 = vsel %vm264, %v251, 0
      %391 = vmatprep.subr.bf16.mxu0 0
      %392 = vmatpush1.bf16.msra.mxu0 %v389
      %393 = vmatprep.subr.bf16.mxu0 0
      %394 = vmatpush1.bf16.msra.mxu0 0
      %395 = vmatprep.subr.bf16.mxu0 0
      %396 = vmatpush1.bf16.msra.mxu0 0
      %397 = vmatprep.subr.bf16.mxu0 0
      %398 = vmatpush1.bf16.msra.mxu0 0
      %399 = vmatprep.subr.bf16.mxu0 0
      %400 = vmatpush1.bf16.msra.mxu0 0
      %401 = vmatprep.subr.bf16.mxu0 0
      %402 = vmatpush1.bf16.msra.mxu0 0
      %403 = vmatprep.subr.bf16.mxu0 0
      %404 = vmatpush1.bf16.msra.mxu0 0
      %405 = vmatprep.subr.bf16.mxu0 0
      %406 = vmatpush1.bf16.msra.mxu0 0
      %407 = vmatprep.subr.bf16.mxu0 0
      %408 = vmatpush1.bf16.msra.mxu0 0
      %409 = vmatprep.subr.bf16.mxu0 0
      %410 = vmatpush1.bf16.msra.mxu0 0
      %411 = vmatprep.subr.bf16.mxu0 0
      %412 = vmatpush1.bf16.msra.mxu0 0
      %413 = vmatprep.subr.bf16.mxu0 0
      %414 = vmatpush1.bf16.msra.mxu0 0
      %415 = vmatprep.subr.bf16.mxu0 0
      %416 = vmatpush1.bf16.msra.mxu0 0
      %417 = vmatprep.subr.bf16.mxu0 0
      %418 = vmatpush1.bf16.msra.mxu0 0
      %419 = vmatprep.subr.bf16.mxu0 0
      %420 = vmatpush1.bf16.msra.mxu0 0
      %421 = vmatprep.subr.bf16.mxu0 0
      %422 = vmatpush1.bf16.msra.mxu0 0
      %423 = vmatprep.mubr.bf16.mxu0 0
      %424 = vmatmul.mubr.bf16.gmra.mrb[0].mxu0 %v386
      %v425 = vpop.f32.mrb[0].mxu0
      %v426 = vadd.f32 0.0, %v425
      %v427 = vpop.f32.mrb[0].mxu0
      %v428 = vpop.f32.mrb[0].mxu0
      %v429 = vadd.f32 0.0, %v428
      %v430 = vpop.f32.mrb[0].mxu0
      %431 = vdwg.mxu0
      %v432 = vmul.f32 %v426, 0.35355338
      %v433 = vmul.f32 %v429, 0.35355338
      %v434 = vsel %vm311, %v432, -inf
      %435 = vmax.xlane.f32.xlu0 %v434
      %v436 = vpop.xlane.xlu0 %435
      %v437 = vsel %vm311, %v433, -inf
      %438 = vmax.xlane.f32.xlu0 %v437
      %v439 = vpop.xlane.xlu0 %438
      %v440 = vsub.f32 %v432, %v436
      %v441 = vsub.f32 %v433, %v439
      %v442 = vmul.f32 %v440, 1.442695
      %v443 = vpow.pop %v442
      %v444 = vmul.f32 %v441, 1.442695
      %v445 = vpow.pop %v444
      %v446 = vsel %vm311, %v443, 0.0
      %447 = vadd.xlane.f32.xlu0 %v446
      %v448 = vpop.xlane.xlu0 %447
      %v449 = vsel %vm311, %v445, 0.0
      %450 = vadd.xlane.f32.xlu0 %v449
      %v451 = vpop.xlane.xlu0 %450
      %v452 = vrcp.pop %v448
      %v453 = vrcp.pop %v451
      %v454 = vmul.f32 %v443, %v452
      %v455 = vmul.f32 %v445, %v453
      %v456 = vpack.c.bf16 %v455, %v454
      %v459 = vunpack.c.l.s4 1983009808
      %v460 = vunpack.c.0.s8 %v459
      %v461 = vlaneseq
      %v462 = vshrl.u32 %v461, 7
      %v463 = vsub.s32 %v460, %v462
      %v464 = vrot.slane %v254, %v463
      %465 = vrot.lane.b32.xlu0 %v464, 120
      %v466 = vpop.permute.xlu0 %465
      %v468 = vsel %vm311, %v456, 0
      %v471 = vsel %vm338, %v466, 0
      %473 = vmatprep.subr.bf16.mxu0 0
      %474 = vmatpush1.bf16.msra.mxu0 %v471
      %475 = vmatprep.subr.bf16.mxu0 0
      %476 = vmatpush1.bf16.msra.mxu0 0
      %477 = vmatprep.subr.bf16.mxu0 0
      %478 = vmatpush1.bf16.msra.mxu0 0
      %479 = vmatprep.subr.bf16.mxu0 0
      %480 = vmatpush1.bf16.msra.mxu0 0
      %481 = vmatprep.subr.bf16.mxu0 0
      %482 = vmatpush1.bf16.msra.mxu0 0
      %483 = vmatprep.subr.bf16.mxu0 0
      %484 = vmatpush1.bf16.msra.mxu0 0
      %485 = vmatprep.subr.bf16.mxu0 0
      %486 = vmatpush1.bf16.msra.mxu0 0
      %487 = vmatprep.subr.bf16.mxu0 0
      %488 = vmatpush1.bf16.msra.mxu0 0
      %489 = vmatprep.subr.bf16.mxu0 0
      %490 = vmatpush1.bf16.msra.mxu0 0
      %491 = vmatprep.subr.bf16.mxu0 0
      %492 = vmatpush1.bf16.msra.mxu0 0
      %493 = vmatprep.subr.bf16.mxu0 0
      %494 = vmatpush1.bf16.msra.mxu0 0
      %495 = vmatprep.subr.bf16.mxu0 0
      %496 = vmatpush1.bf16.msra.mxu0 0
      %497 = vmatprep.subr.bf16.mxu0 0
      %498 = vmatpush1.bf16.msra.mxu0 0
      %499 = vmatprep.subr.bf16.mxu0 0
      %500 = vmatpush1.bf16.msra.mxu0 0
      %501 = vmatprep.subr.bf16.mxu0 0
      %502 = vmatpush1.bf16.msra.mxu0 0
      %503 = vmatprep.subr.bf16.mxu0 0
      %504 = vmatpush1.bf16.msra.mxu0 0
      %505 = vmatprep.mubr.bf16.mxu0 0
      %506 = vmatmul.mubr.bf16.gmra.mrb[0].mxu0 %v468
      %v507 = vpop.f32.mrb[0].mxu0
      %v508 = vadd.f32 0.0, %v507
      %v509 = vpop.f32.mrb[0].mxu0
      %v510 = vpop.f32.mrb[0].mxu0
      %v511 = vadd.f32 0.0, %v510
      %v512 = vpop.f32.mrb[0].mxu0
      %513 = vdwg.mxu0
      %514 = vrot.lane.b32.xlu0 %v259, 112
      %v515 = vpop.permute.xlu0 %514
      %v517 = vsel %vm260, %v515, 0
      %v520 = vsel %vm264, %v252, 0
      %522 = vmatprep.subr.bf16.mxu0 0
      %523 = vmatpush1.bf16.msra.mxu0 %v520
      %524 = vmatprep.subr.bf16.mxu0 0
      %525 = vmatpush1.bf16.msra.mxu0 0
      %526 = vmatprep.subr.bf16.mxu0 0
      %527 = vmatpush1.bf16.msra.mxu0 0
      %528 = vmatprep.subr.bf16.mxu0 0
      %529 = vmatpush1.bf16.msra.mxu0 0
      %530 = vmatprep.subr.bf16.mxu0 0
      %531 = vmatpush1.bf16.msra.mxu0 0
      %532 = vmatprep.subr.bf16.mxu0 0
      %533 = vmatpush1.bf16.msra.mxu0 0
      %534 = vmatprep.subr.bf16.mxu0 0
      %535 = vmatpush1.bf16.msra.mxu0 0
      %536 = vmatprep.subr.bf16.mxu0 0
      %537 = vmatpush1.bf16.msra.mxu0 0
      %538 = vmatprep.subr.bf16.mxu0 0
      %539 = vmatpush1.bf16.msra.mxu0 0
      %540 = vmatprep.subr.bf16.mxu0 0
      %541 = vmatpush1.bf16.msra.mxu0 0
      %542 = vmatprep.subr.bf16.mxu0 0
      %543 = vmatpush1.bf16.msra.mxu0 0
      %544 = vmatprep.subr.bf16.mxu0 0
      %545 = vmatpush1.bf16.msra.mxu0 0
      %546 = vmatprep.subr.bf16.mxu0 0
      %547 = vmatpush1.bf16.msra.mxu0 0
      %548 = vmatprep.subr.bf16.mxu0 0
      %549 = vmatpush1.bf16.msra.mxu0 0
      %550 = vmatprep.subr.bf16.mxu0 0
      %551 = vmatpush1.bf16.msra.mxu0 0
      %552 = vmatprep.subr.bf16.mxu0 0
      %553 = vmatpush1.bf16.msra.mxu0 0
      %554 = vmatprep.mubr.bf16.mxu0 0
      %555 = vmatmul.mubr.bf16.gmra.mrb[0].mxu0 %v517
      %v556 = vpop.f32.mrb[0].mxu0
      %v557 = vadd.f32 0.0, %v556
      %v558 = vpop.f32.mrb[0].mxu0
      %v559 = vpop.f32.mrb[0].mxu0
      %v560 = vadd.f32 0.0, %v559
      %v561 = vpop.f32.mrb[0].mxu0
      %562 = vdwg.mxu0
      %v563 = vmul.f32 %v557, 0.35355338
      %v564 = vmul.f32 %v560, 0.35355338
      %v565 = vsel %vm311, %v563, -inf
      %566 = vmax.xlane.f32.xlu0 %v565
      %v567 = vpop.xlane.xlu0 %566
      %v568 = vsel %vm311, %v564, -inf
      %569 = vmax.xlane.f32.xlu0 %v568
      %v570 = vpop.xlane.xlu0 %569
      %v571 = vsub.f32 %v563, %v567
      %v572 = vsub.f32 %v564, %v570
      %v573 = vmul.f32 %v571, 1.442695
      %v574 = vpow.pop %v573
      %v575 = vmul.f32 %v572, 1.442695
      %v576 = vpow.pop %v575
      %v577 = vsel %vm311, %v574, 0.0
      %578 = vadd.xlane.f32.xlu0 %v577
      %v579 = vpop.xlane.xlu0 %578
      %v580 = vsel %vm311, %v576, 0.0
      %581 = vadd.xlane.f32.xlu0 %v580
      %v582 = vpop.xlane.xlu0 %581
      %v583 = vrcp.pop %v579
      %v584 = vrcp.pop %v582
      %v585 = vmul.f32 %v574, %v583
      %v586 = vmul.f32 %v576, %v584
      %v587 = vpack.c.bf16 %v586, %v585
      %588 = vrot.lane.b32.xlu0 %v464, 112
      %v589 = vpop.permute.xlu0 %588
      %v591 = vsel %vm311, %v587, 0
      %v594 = vsel %vm338, %v589, 0
      %596 = vmatprep.subr.bf16.mxu0 0
      %597 = vmatpush1.bf16.msra.mxu0 %v594
      %598 = vmatprep.subr.bf16.mxu0 0
      %599 = vmatpush1.bf16.msra.mxu0 0
      %600 = vmatprep.subr.bf16.mxu0 0
      %601 = vmatpush1.bf16.msra.mxu0 0
      %602 = vmatprep.subr.bf16.mxu0 0
      %603 = vmatpush1.bf16.msra.mxu0 0
      %604 = vmatprep.subr.bf16.mxu0 0
      %605 = vmatpush1.bf16.msra.mxu0 0
      %606 = vmatprep.subr.bf16.mxu0 0
      %607 = vmatpush1.bf16.msra.mxu0 0
      %608 = vmatprep.subr.bf16.mxu0 0
      %609 = vmatpush1.bf16.msra.mxu0 0
      %610 = vmatprep.subr.bf16.mxu0 0
      %611 = vmatpush1.bf16.msra.mxu0 0
      %612 = vmatprep.subr.bf16.mxu0 0
      %613 = vmatpush1.bf16.msra.mxu0 0
      %614 = vmatprep.subr.bf16.mxu0 0
      %615 = vmatpush1.bf16.msra.mxu0 0
      %616 = vmatprep.subr.bf16.mxu0 0
      %617 = vmatpush1.bf16.msra.mxu0 0
      %618 = vmatprep.subr.bf16.mxu0 0
      %619 = vmatpush1.bf16.msra.mxu0 0
      %620 = vmatprep.subr.bf16.mxu0 0
      %621 = vmatpush1.bf16.msra.mxu0 0
      %622 = vmatprep.subr.bf16.mxu0 0
      %623 = vmatpush1.bf16.msra.mxu0 0
      %624 = vmatprep.subr.bf16.mxu0 0
      %625 = vmatpush1.bf16.msra.mxu0 0
      %626 = vmatprep.subr.bf16.mxu0 0
      %627 = vmatpush1.bf16.msra.mxu0 0
      %628 = vmatprep.mubr.bf16.mxu0 0
      %629 = vmatmul.mubr.bf16.gmra.mrb[0].mxu0 %v591
      %v630 = vpop.f32.mrb[0].mxu0
      %v631 = vadd.f32 0.0, %v630
      %v632 = vpop.f32.mrb[0].mxu0
      %v633 = vpop.f32.mrb[0].mxu0
      %v634 = vadd.f32 0.0, %v633
      %v635 = vpop.f32.mrb[0].mxu0
      %636 = vdwg.mxu0
      %637 = vrot.lane.b32.xlu0 %v259, 104
      %v638 = vpop.permute.xlu0 %637
      %v640 = vsel %vm260, %v638, 0
      %v643 = vsel %vm264, %v253, 0
      %645 = vmatprep.subr.bf16.mxu0 0
      %646 = vmatpush1.bf16.msra.mxu0 %v643
      %647 = vmatprep.subr.bf16.mxu0 0
      %648 = vmatpush1.bf16.msra.mxu0 0
      %649 = vmatprep.subr.bf16.mxu0 0
      %650 = vmatpush1.bf16.msra.mxu0 0
      %651 = vmatprep.subr.bf16.mxu0 0
      %652 = vmatpush1.bf16.msra.mxu0 0
      %653 = vmatprep.subr.bf16.mxu0 0
      %654 = vmatpush1.bf16.msra.mxu0 0
      %655 = vmatprep.subr.bf16.mxu0 0
      %656 = vmatpush1.bf16.msra.mxu0 0
      %657 = vmatprep.subr.bf16.mxu0 0
      %658 = vmatpush1.bf16.msra.mxu0 0
      %659 = vmatprep.subr.bf16.mxu0 0
      %660 = vmatpush1.bf16.msra.mxu0 0
      %661 = vmatprep.subr.bf16.mxu0 0
      %662 = vmatpush1.bf16.msra.mxu0 0
      %663 = vmatprep.subr.bf16.mxu0 0
      %664 = vmatpush1.bf16.msra.mxu0 0
      %665 = vmatprep.subr.bf16.mxu0 0
      %666 = vmatpush1.bf16.msra.mxu0 0
      %667 = vmatprep.subr.bf16.mxu0 0
      %668 = vmatpush1.bf16.msra.mxu0 0
      %669 = vmatprep.subr.bf16.mxu0 0
      %670 = vmatpush1.bf16.msra.mxu0 0
      %671 = vmatprep.subr.bf16.mxu0 0
      %672 = vmatpush1.bf16.msra.mxu0 0
      %673 = vmatprep.subr.bf16.mxu0 0
      %674 = vmatpush1.bf16.msra.mxu0 0
      %675 = vmatprep.subr.bf16.mxu0 0
      %676 = vmatpush1.bf16.msra.mxu0 0
      %677 = vmatprep.mubr.bf16.mxu0 0
      %678 = vmatmul.mubr.bf16.gmra.mrb[0].mxu0 %v640
      %v679 = vpop.f32.mrb[0].mxu0
      %v680 = vadd.f32 0.0, %v679
      %v681 = vpop.f32.mrb[0].mxu0
      %v682 = vpop.f32.mrb[0].mxu0
      %v683 = vadd.f32 0.0, %v682
      %v684 = vpop.f32.mrb[0].mxu0
      %685 = vdwg.mxu0
      %v686 = vmul.f32 %v680, 0.35355338
      %v687 = vmul.f32 %v683, 0.35355338
      %v688 = vsel %vm311, %v686, -inf
      %689 = vmax.xlane.f32.xlu0 %v688
      %v690 = vpop.xlane.xlu0 %689
      %v691 = vsel %vm311, %v687, -inf
      %692 = vmax.xlane.f32.xlu0 %v691
      %v693 = vpop.xlane.xlu0 %692
      %v694 = vsub.f32 %v686, %v690
      %v695 = vsub.f32 %v687, %v693
      %v696 = vmul.f32 %v694, 1.442695
      %v697 = vpow.pop %v696
      %v698 = vmul.f32 %v695, 1.442695
      %v699 = vpow.pop %v698
      %v700 = vsel %vm311, %v697, 0.0
      %701 = vadd.xlane.f32.xlu0 %v700
      %v702 = vpop.xlane.xlu0 %701
      %v703 = vsel %vm311, %v699, 0.0
      %704 = vadd.xlane.f32.xlu0 %v703
      %v705 = vpop.xlane.xlu0 %704
      %v706 = vrcp.pop %v702
      %v707 = vrcp.pop %v705
      %v708 = vmul.f32 %v697, %v706
      %v709 = vmul.f32 %v699, %v707
      %v710 = vpack.c.bf16 %v709, %v708
      %711 = vrot.lane.b32.xlu0 %v464, 104
      %v712 = vpop.permute.xlu0 %711
      %v714 = vsel %vm311, %v710, 0
      %v717 = vsel %vm338, %v712, 0
      %719 = vmatprep.subr.bf16.mxu0 0
      %720 = vmatpush1.bf16.msra.mxu0 %v717
      %721 = vmatprep.subr.bf16.mxu0 0
      %722 = vmatpush1.bf16.msra.mxu0 0
      %723 = vmatprep.subr.bf16.mxu0 0
      %724 = vmatpush1.bf16.msra.mxu0 0
      %725 = vmatprep.subr.bf16.mxu0 0
      %726 = vmatpush1.bf16.msra.mxu0 0
      %727 = vmatprep.subr.bf16.mxu0 0
      %728 = vmatpush1.bf16.msra.mxu0 0
      %729 = vmatprep.subr.bf16.mxu0 0
      %730 = vmatpush1.bf16.msra.mxu0 0
      %731 = vmatprep.subr.bf16.mxu0 0
      %732 = vmatpush1.bf16.msra.mxu0 0
      %733 = vmatprep.subr.bf16.mxu0 0
      %734 = vmatpush1.bf16.msra.mxu0 0
      %735 = vmatprep.subr.bf16.mxu0 0
      %736 = vmatpush1.bf16.msra.mxu0 0
      %737 = vmatprep.subr.bf16.mxu0 0
      %738 = vmatpush1.bf16.msra.mxu0 0
      %739 = vmatprep.subr.bf16.mxu0 0
      %740 = vmatpush1.bf16.msra.mxu0 0
      %741 = vmatprep.subr.bf16.mxu0 0
      %742 = vmatpush1.bf16.msra.mxu0 0
      %743 = vmatprep.subr.bf16.mxu0 0
      %744 = vmatpush1.bf16.msra.mxu0 0
      %745 = vmatprep.subr.bf16.mxu0 0
      %746 = vmatpush1.bf16.msra.mxu0 0
      %747 = vmatprep.subr.bf16.mxu0 0
      %748 = vmatpush1.bf16.msra.mxu0 0
      %749 = vmatprep.subr.bf16.mxu0 0
      %750 = vmatpush1.bf16.msra.mxu0 0
      %751 = vmatprep.mubr.bf16.mxu0 0
      %752 = vmatmul.mubr.bf16.gmra.mrb[0].mxu0 %v714
      %v753 = vpop.f32.mrb[0].mxu0
      %v754 = vadd.f32 0.0, %v753
      %v755 = vpop.f32.mrb[0].mxu0
      %v756 = vpop.f32.mrb[0].mxu0
      %v757 = vadd.f32 0.0, %v756
      %v758 = vpop.f32.mrb[0].mxu0
      %759 = vdwg.mxu0
      %762 = vrot.lane.b32.xlu0 %v508, 8
      %v763 = vpop.permute.xlu0 %762
      %764 = vrot.lane.b32.xlu0 %v511, 8
      %v765 = vpop.permute.xlu0 %764
      %770 = vrot.lane.b32.xlu0 %v631, 16
      %v771 = vpop.permute.xlu0 %770
      %772 = vrot.lane.b32.xlu0 %v634, 16
      %v773 = vpop.permute.xlu0 %772
      %778 = vrot.lane.b32.xlu0 %v754, 24
      %v779 = vpop.permute.xlu0 %778
      %780 = vrot.lane.b32.xlu0 %v757, 24
      %v781 = vpop.permute.xlu0 %780
      %v784 = vsel %vm260, %v377, %v763
      %v785 = vsel %vm260, %v380, %v765
      %vm786 = vcmask 130048
      %v787 = vsel %vm786, %v784, %v771
      %v788 = vsel %vm786, %v785, %v773
      %vm789 = vcmask 195584
      %v790 = vsel %vm789, %v787, %v779
      %v791 = vsel %vm789, %v788, %v781
      %v792 = vpack.c.bf16 %v791, %v790
      %v794 = vunpack.c.l.b16 %v792
      %v795 = vunpack.c.h.b16 %v792
      %v796 = vpack.c.b16 %v794, %v794
      %v797 = vpack.c.b16 %v795, %v795
      %vm800 = vcmask 257024
      %801 = vst.msk [vmem:[%s245] sm:$0xf] %vm800, %v796
      %802 = vst.msk [vmem:[%s245 + $0x4] sm:$0xf] %vm800, %v797
      %s803 = smul.u32 2, %s19
      %p804 = scmp.lt.s32.totalorder %s18, 1
      %s805 = scalar_select %p804, %s18, 1
      %p806 = scmp.lt.s32.totalorder %s803, 1
      %s807 = scalar_select %p806, %s803, 1
      %s808 = smul.addr %s805, 2
      %s809 = sadd.s32 %s807, %s808
      %s810 = smul.addr %s809, 4
      %s811 = scalar_lea.vmem %s3, %s810
      // Predicated region
      $region33: #{_lambda_.35} parent=31 // pred_check
        %p812 = pneg %p126
      $region34: #{_lambda_.35} parent=31 // pred_check_branch
        %814 = sbr.rel (%p812) target = $region36
      $region35: #{_lambda_.35} parent=31 // pred_region
        %s815 = smul.u32 2, %s19
      $region36: #{_lambda_.35} parent=31 // pred_fallthru
        _
    $region32: #{_lambda_.35} parent=5 // pred_fallthru
      _
    %p816 = scmp.le.s32.totalorder 2, %s9
    // Predicated region
    $region37: #{_lambda_.35} parent=5 // pred_check
      %p817 = pneg %p816
    $region38: #{_lambda_.35} parent=5 // pred_check_branch
      %819 = sbr.rel (%p817) target = $region40
    $region39: #{_lambda_.35} parent=5 // pred_region
      %s820 = ssub.s32 %s9, 2
      // Predicated region
      $region41: #{_lambda_.35} parent=39 // pred_check
        %p821 = pneg %p132
      $region42: #{_lambda_.35} parent=39 // pred_check_branch
        %823 = sbr.rel (%p821) target = $region44
      $region43: #{_lambda_.35} parent=39 // pred_region
        %s824 = smul.u32 2, %s21
        %p825 = scmp.lt.s32.totalorder %s20, 1
        %s826 = scalar_select %p825, %s20, 1
        %p827 = scmp.lt.s32.totalorder %s824, 1
        %s828 = scalar_select %p827, %s824, 1
        %s829 = smul.addr %s826, 2
        %s830 = sadd.s32 %s828, %s829
        %s831 = smul.addr %s830, 4
        %s832 = scalar_lea.vmem %s3, %s831
      $region44: #{_lambda_.35} parent=39 // pred_fallthru
        _
    $region40: #{_lambda_.35} parent=5 // pred_fallthru
      _
  $region6: #{_lambda_.35} parent=0 // loop_footer
    %s13 = sadd.s32 1, %s9
  $region7: #{_lambda_.35} parent=0 // loop_footer_branch
    %8 = sbr.rel target = $region3
  $region8: #{_lambda_.35} parent=0 // loop_exit
    _

// kernel: _lambda_.36
$region0: #{_lambda_.36}
  #allocation0 [shape = 'u32[]', space=smem, size = 0x4, offset = 0x4, fixed_abs, tag = 'smem constant byte address 0x4 - core index']
  #allocation1 [shape = 'u32[144,128]{1,0:T(1,128)}', space=vmem, size = 0x12000, scoped, tag = 'internal scratch']
  %s0 = inlined_call_operand.vmem [shape: bf16[32,32], index: 0, kind: input, shape index: {}]
  %s1 = inlined_call_operand.vmem [shape: bf16[32,32], index: 1, kind: input, shape index: {}]
  %s2 = inlined_call_operand.vmem [shape: f32[1,32], index: 2, kind: input, shape index: {}]
  %s3 = inlined_call_operand.vmem [shape: bf16[32,32], index: 3, kind: input, shape index: {}]
  %s4 = inlined_call_operand.vmem [shape: bf16[32,32], index: 4, kind: output, shape index: {}]
  %s5 = sld [smem:[#allocation0]]
  $region49: #{_lambda_.36} parent=0
    _
  %s7 = ssub.s32 1, %s5
  %s8 = scalar_select 0, %s7, %s5
  loop: start=0, step=1, limit=4
  $region2: #{_lambda_.36} parent=0 // loop_pre_header
    _
  $region3: #{_lambda_.36} parent=0 // loop_header
    %s10 = sphi 0, %s14
    %p11 = scmp.ge.s32.totalorder %s10, 4
    %s20 = sphi 0, %s22
    %s23 = sphi 0, %s20
    %s24 = sphi 0, %s23
    %s40 = sphi 0, %s24
    %s44 = sphi 0, %s44
    %s46 = sphi 0, %s44
    %s47 = sphi 0, %s46
    %s61 = sphi 0, %s47
    %s65 = sphi 0, %s65
    %s67 = sphi 0, %s65
    %s68 = sphi 0, %s67
    %s82 = sphi 0, %s68
    %s88 = sphi 0, %s90
    %s91 = sphi 0, %s88
    %s92 = sphi 0, %s91
    %s108 = sphi 0, %s92
    %s114 = sphi 0, %s116
    %s117 = sphi 0, %s114
    %s118 = sphi 0, %s117
    %s134 = sphi 0, %s118
  $region4: #{_lambda_.36} parent=0 // loop_header_branch
    %13 = sbr.rel (%p11) target = $region8
  $region5: #{_lambda_.36} parent=0 // loop_body
    %s15 = ssub.s32 %s10, 1
    %s16 = ssub.s32 %s10, 2
    %s17 = sadd.s32 %s10, 1
    %s18 = ssub.s32 %s10, %s17
    %p19 = scmp.eq.s32.totalorder %s18, 0
    %s21 = sadd.s32 %s20, 1
    %s22 = scalar_select %p19, %s20, %s21
    %p25 = pneg %p19
    %p26 = scmp.eq.s32.totalorder %s10, 1
    %p27 = por %p25, %p26
    %p28 = scmp.ne.s32.totalorder %s20, %s23
    %p29 = scmp.eq.s32.totalorder %s10, 0
    %p30 = por %p28, %p29
    %p31 = scmp.ne.s32.totalorder %s20, %s23
    %p32 = scmp.eq.s32.totalorder %s15, 1
    %p33 = por %p31, %p32
    %p34 = scmp.ne.s32.totalorder %s23, %s24
    %p35 = scmp.eq.s32.totalorder %s15, 0
    %p36 = por %p34, %p35
    %p37 = scmp.ne.s32.totalorder %s23, %s24
    %p38 = scmp.eq.s32.totalorder %s16, 1
    %p39 = por %p37, %p38
    %p41 = scmp.ne.s32.totalorder %s24, %s40
    %p42 = scmp.eq.s32.totalorder %s16, 0
    %p43 = por %p41, %p42
    %s45 = sadd.s32 %s44, 1
    %p48 = scmp.eq.s32.totalorder %s10, 1
    %p49 = scmp.ne.s32.totalorder %s44, %s46
    %p50 = scmp.eq.s32.totalorder %s10, 0
    %p51 = por %p49, %p50
    %p52 = scmp.ne.s32.totalorder %s44, %s46
    %p53 = scmp.eq.s32.totalorder %s15, 1
    %p54 = por %p52, %p53
    %p55 = scmp.ne.s32.totalorder %s46, %s47
    %p56 = scmp.eq.s32.totalorder %s15, 0
    %p57 = por %p55, %p56
    %p58 = scmp.ne.s32.totalorder %s46, %s47
    %p59 = scmp.eq.s32.totalorder %s16, 1
    %p60 = por %p58, %p59
    %p62 = scmp.ne.s32.totalorder %s47, %s61
    %p63 = scmp.eq.s32.totalorder %s16, 0
    %p64 = por %p62, %p63
    %s66 = sadd.s32 %s65, 1
    %p69 = scmp.eq.s32.totalorder %s10, 1
    %p70 = scmp.ne.s32.totalorder %s65, %s67
    %p71 = scmp.eq.s32.totalorder %s10, 0
    %p72 = por %p70, %p71
    %p73 = scmp.ne.s32.totalorder %s65, %s67
    %p74 = scmp.eq.s32.totalorder %s15, 1
    %p75 = por %p73, %p74
    %p76 = scmp.ne.s32.totalorder %s67, %s68
    %p77 = scmp.eq.s32.totalorder %s15, 0
    %p78 = por %p76, %p77
    %p79 = scmp.ne.s32.totalorder %s67, %s68
    %p80 = scmp.eq.s32.totalorder %s16, 1
    %p81 = por %p79, %p80
    %p83 = scmp.ne.s32.totalorder %s68, %s82
    %p84 = scmp.eq.s32.totalorder %s16, 0
    %p85 = por %p83, %p84
    %s86 = ssub.s32 %s10, %s17
    %p87 = scmp.eq.s32.totalorder %s86, 0
    %s89 = sadd.s32 %s88, 1
    %s90 = scalar_select %p87, %s88, %s89
    %p93 = pneg %p87
    %p94 = scmp.eq.s32.totalorder %s10, 1
    %p95 = por %p93, %p94
    %p96 = scmp.ne.s32.totalorder %s88, %s91
    %p97 = scmp.eq.s32.totalorder %s10, 0
    %p98 = por %p96, %p97
    %p99 = scmp.ne.s32.totalorder %s88, %s91
    %p100 = scmp.eq.s32.totalorder %s15, 1
    %p101 = por %p99, %p100
    %p102 = scmp.ne.s32.totalorder %s91, %s92
    %p103 = scmp.eq.s32.totalorder %s15, 0
    %p104 = por %p102, %p103
    %p105 = scmp.ne.s32.totalorder %s91, %s92
    %p106 = scmp.eq.s32.totalorder %s16, 1
    %p107 = por %p105, %p106
    %p109 = scmp.ne.s32.totalorder %s92, %s108
    %p110 = scmp.eq.s32.totalorder %s16, 0
    %p111 = por %p109, %p110
    %s112 = ssub.s32 %s10, %s17
    %p113 = scmp.eq.s32.totalorder %s112, 0
    %s115 = sadd.s32 %s114, 1
    %s116 = scalar_select %p113, %s114, %s115
    %p119 = pneg %p113
    %p120 = scmp.eq.s32.totalorder %s10, 1
    %p121 = por %p119, %p120
    %p122 = scmp.ne.s32.totalorder %s114, %s117
    %p123 = scmp.eq.s32.totalorder %s10, 0
    %p124 = por %p122, %p123
    %p125 = scmp.ne.s32.totalorder %s114, %s117
    %p126 = scmp.eq.s32.totalorder %s15, 1
    %p127 = por %p125, %p126
    %p128 = scmp.ne.s32.totalorder %s117, %s118
    %p129 = scmp.eq.s32.totalorder %s15, 0
    %p130 = por %p128, %p129
    %p131 = scmp.ne.s32.totalorder %s117, %s118
    %p132 = scmp.eq.s32.totalorder %s16, 1
    %p133 = por %p131, %p132
    %p135 = scmp.ne.s32.totalorder %s118, %s134
    %p136 = scmp.eq.s32.totalorder %s16, 0
    %p137 = por %p135, %p136
    %p138 = scmp.le.s32.totalorder 1, %s10
    %p139 = scmp.lt.s32.totalorder %s10, 3
    %p140 = pnand %p138, %p139
    %p141 = pneg %p140
    // Predicated region
    $region9: #{_lambda_.36} parent=5 // pred_check
      _
    $region10: #{_lambda_.36} parent=5 // pred_check_branch
      %143 = sbr.rel (%p140) target = $region12
    $region11: #{_lambda_.36} parent=5 // pred_region
      %s144 = ssub.s32 %s10, 1
      // Predicated region
      $region13: #{_lambda_.36} parent=11 // pred_check
        %p145 = pneg %p57
      $region14: #{_lambda_.36} parent=11 // pred_check_branch
        %147 = sbr.rel (%p145) target = $region16
      $region15: #{_lambda_.36} parent=11 // pred_region
        _
      $region16: #{_lambda_.36} parent=11 // pred_fallthru
        _
      // Predicated region
      $region17: #{_lambda_.36} parent=11 // pred_check
        %p148 = pneg %p78
      $region18: #{_lambda_.36} parent=11 // pred_check_branch
        %150 = sbr.rel (%p148) target = $region20
      $region19: #{_lambda_.36} parent=11 // pred_region
        _
      $region20: #{_lambda_.36} parent=11 // pred_fallthru
        _
    $region12: #{_lambda_.36} parent=5 // pred_fallthru
      _
    %p151 = scmp.lt.s32.totalorder %s10, 2
    // Predicated region
    $region21: #{_lambda_.36} parent=5 // pred_check
      %p152 = pneg %p151
    $region22: #{_lambda_.36} parent=5 // pred_check_branch
      %154 = sbr.rel (%p152) target = $region24
    $region23: #{_lambda_.36} parent=5 // pred_region
      // Predicated region
      $region25: #{_lambda_.36} parent=23 // pred_check
        %p155 = pneg %p30
      $region26: #{_lambda_.36} parent=23 // pred_check_branch
        %157 = sbr.rel (%p155) target = $region28
      $region27: #{_lambda_.36} parent=23 // pred_region
        %s158 = smul.u32 2, %s10
        %p159 = scmp.lt.s32.totalorder %s158, 3
        %s160 = scalar_select %p159, %s158, 3
        %s161 = smul.addr %s160, 4
        %s162 = scalar_lea.vmem %s0, %s161
        %s163 = smul.u32 2, %s10
      $region28: #{_lambda_.36} parent=23 // pred_fallthru
        _
      // Predicated region
      $region29: #{_lambda_.36} parent=23 // pred_check
        %p164 = pneg %p98
      $region30: #{_lambda_.36} parent=23 // pred_check_branch
        %166 = sbr.rel (%p164) target = $region32
      $region31: #{_lambda_.36} parent=23 // pred_region
        %s167 = smul.u32 2, %s10
        %p168 = scmp.lt.s32.totalorder %s167, 3
        %s169 = scalar_select %p168, %s167, 3
        %s170 = smul.addr %s169, 4
        %s171 = scalar_lea.vmem %s3, %s170
        %s172 = smul.u32 2, %s10
      $region32: #{_lambda_.36} parent=23 // pred_fallthru
        _
    $region24: #{_lambda_.36} parent=5 // pred_fallthru
      _
    %p173 = scmp.le.s32.totalorder 1, %s10
    %p174 = scmp.lt.s32.totalorder %s10, 3
    %p175 = pnand %p173, %p174
    %p176 = pneg %p175
    // Predicated region
    $region33: #{_lambda_.36} parent=5 // pred_check
      _
    $region34: #{_lambda_.36} parent=5 // pred_check_branch
      %178 = sbr.rel (%p175) target = $region36
    $region35: #{_lambda_.36} parent=5 // pred_region
      %s179 = ssub.s32 %s10, 1
      %s180 = smul.u32 2, %s15
      %p181 = scmp.lt.s32.totalorder %s180, 3
      %s182 = scalar_select %p181, %s180, 3
      %s183 = smul.addr %s182, 4
      %s184 = scalar_lea.vmem %s0, %s183
      %p185 = pneg %p36
      %p186 = pneg %p33
      %p187 = pneg %p57
      %p188 = pneg %p54
      %p189 = pneg %p78
      %p190 = pneg %p75
      %s191 = smul.u32 2, %s15
      %p192 = scmp.lt.s32.totalorder %s191, 3
      %s193 = scalar_select %p192, %s191, 3
      %s194 = smul.addr %s193, 4
      %s195 = scalar_lea.vmem %s3, %s194
      %p196 = pneg %p104
      %p197 = pneg %p101
      %p198 = pneg %p130
      %p199 = pneg %p127
      %s200 = smul.u32 2, %s15
      %p201 = scmp.lt.s32.totalorder %s200, 3
      %s202 = scalar_select %p201, %s200, 3
      %s203 = smul.addr %s202, 4
      %s204 = scalar_lea.vmem %s4, %s203
      %s205 = smul.u32 2, %s15
      %p206 = scmp.lt.s32.totalorder %s205, 3
      %s207 = scalar_select %p206, %s205, 3
      %s208 = smul.addr %s207, 4
      %s209 = scalar_lea.vmem %s0, %s208
      %s210 = smul.u32 2, %s15
      %s211 = smul.u32 2, %s15
      %p212 = scmp.lt.s32.totalorder %s211, 3
      %s213 = scalar_select %p212, %s211, 3
      %s214 = smul.addr %s213, 4
      %s215 = scalar_lea.vmem %s3, %s214
      %s216 = smul.u32 2, %s15
      %s217 = smul.u32 2, %s15
      %p218 = scmp.lt.s32.totalorder %s217, 3
      %s219 = scalar_select %p218, %s217, 3
      %s220 = smul.addr %s219, 4
      %s221 = scalar_lea.vmem %s4, %s220
      %s222 = smul.u32 2, %s15
      %v224 = vld [vmem:[%s209] sm:$0xf]
      %v225 = vld [vmem:[%s209 + $0x4] sm:$0xf]
      %v226 = vld [vmem:[%s1] sm:$0xf]
      %v227 = vld [vmem:[%s1 + $0x4] sm:$0xf]
      %v228 = vld [vmem:[%s1 + $0x8] sm:$0xf]
      %v229 = vld [vmem:[%s1 + $0xc] sm:$0xf]
      %v230 = vld [vmem:[%s2] sm:$0x1]
      %v232 = vlaneseq
      %v233 = vshrl.u32 %v232, 7
      %v234 = vsub.s32 0, %v233
      %v235 = vrot.slane %v230, %v234
      %v239 = vunpack.c.l.b16 %v224
      %v240 = vunpack.c.l.b16 %v225
      %v241 = vpack.c.b16 %v240, %v239
      %v246 = vunpack.c.l.b16 %v226
      %v247 = vunpack.c.l.b16 %v227
      %v248 = vunpack.c.l.b16 %v228
      %v249 = vunpack.c.l.b16 %v229
      %v250 = vpack.c.b16 %v247, %v246
      %v251 = vpack.c.b16 %v249, %v248
      %vm254 = vcmask 261120
      %v256 = vsel %vm254, %v241, 0
      %258 = vmatprep.subr.bf16.mxu0 0
      %259 = vmatpush1.bf16.msra.mxu0 %v250
      %260 = vmatprep.subr.bf16.mxu0 0
      %261 = vmatpush1.bf16.msra.mxu0 %v251
      %262 = vmatprep.subr.bf16.mxu0 0
      %263 = vmatpush1.bf16.msra.mxu0 0
      %264 = vmatprep.subr.bf16.mxu0 0
      %265 = vmatpush1.bf16.msra.mxu0 0
      %266 = vmatprep.subr.bf16.mxu0 0
      %267 = vmatpush1.bf16.msra.mxu0 0
      %268 = vmatprep.subr.bf16.mxu0 0
      %269 = vmatpush1.bf16.msra.mxu0 0
      %270 = vmatprep.subr.bf16.mxu0 0
      %271 = vmatpush1.bf16.msra.mxu0 0
      %272 = vmatprep.subr.bf16.mxu0 0
      %273 = vmatpush1.bf16.msra.mxu0 0
      %274 = vmatprep.subr.bf16.mxu0 0
      %275 = vmatpush1.bf16.msra.mxu0 0
      %276 = vmatprep.subr.bf16.mxu0 0
      %277 = vmatpush1.bf16.msra.mxu0 0
      %278 = vmatprep.subr.bf16.mxu0 0
      %279 = vmatpush1.bf16.msra.mxu0 0
      %280 = vmatprep.subr.bf16.mxu0 0
      %281 = vmatpush1.bf16.msra.mxu0 0
      %282 = vmatprep.subr.bf16.mxu0 0
      %283 = vmatpush1.bf16.msra.mxu0 0
      %284 = vmatprep.subr.bf16.mxu0 0
      %285 = vmatpush1.bf16.msra.mxu0 0
      %286 = vmatprep.subr.bf16.mxu0 0
      %287 = vmatpush1.bf16.msra.mxu0 0
      %288 = vmatprep.subr.bf16.mxu0 0
      %289 = vmatpush1.bf16.msra.mxu0 0
      %290 = vmatprep.mubr.bf16.mxu0 0
      %291 = vmatmul.mubr.bf16.gmra.mrb[0].mxu0 %v256
      %v292 = vpop.f32.mrb[0].mxu0
      %v293 = vadd.f32 %v235, %v292
      %v294 = vpop.f32.mrb[0].mxu0
      %v295 = vpop.f32.mrb[0].mxu0
      %v296 = vadd.f32 %v235, %v295
      %v297 = vpop.f32.mrb[0].mxu0
      %298 = vdwg.mxu0
      %v299 = vld [vmem:[%s215] sm:$0xf]
      %v300 = vld [vmem:[%s215 + $0x4] sm:$0xf]
      %v301 = vunpack.c.l.bf16 %v299
      %v302 = vunpack.c.l.bf16 %v300
      %v303 = vadd.f32 %v293, %v301
      %v304 = vadd.f32 %v296, %v302
      %v305 = vpack.c.bf16 %v304, %v303
      %v307 = vunpack.c.l.b16 %v305
      %v308 = vunpack.c.h.b16 %v305
      %v309 = vpack.c.b16 %v307, %v307
      %v310 = vpack.c.b16 %v308, %v308
      %vm313 = vcmask 257024
      %314 = vst.msk [vmem:[%s221] sm:$0xf] %vm313, %v309
      %315 = vst.msk [vmem:[%s221 + $0x4] sm:$0xf] %vm313, %v310
      %s316 = smul.u32 2, %s15
      %p317 = scmp.lt.s32.totalorder %s316, 3
      %s318 = scalar_select %p317, %s316, 3
      %s319 = smul.addr %s318, 4
      %s320 = scalar_lea.vmem %s4, %s319
      // Predicated region
      $region37: #{_lambda_.36} parent=35 // pred_check
        %p321 = pneg %p127
      $region38: #{_lambda_.36} parent=35 // pred_check_branch
        %323 = sbr.rel (%p321) target = $region40
      $region39: #{_lambda_.36} parent=35 // pred_region
        %s324 = smul.u32 2, %s15
      $region40: #{_lambda_.36} parent=35 // pred_fallthru
        _
    $region36: #{_lambda_.36} parent=5 // pred_fallthru
      _
    %p325 = scmp.le.s32.totalorder 2, %s10
    // Predicated region
    $region41: #{_lambda_.36} parent=5 // pred_check
      %p326 = pneg %p325
    $region42: #{_lambda_.36} parent=5 // pred_check_branch
      %328 = sbr.rel (%p326) target = $region44
    $region43: #{_lambda_.36} parent=5 // pred_region
      %s329 = ssub.s32 %s10, 2
      // Predicated region
      $region45: #{_lambda_.36} parent=43 // pred_check
        %p330 = pneg %p133
      $region46: #{_lambda_.36} parent=43 // pred_check_branch
        %332 = sbr.rel (%p330) target = $region48
      $region47: #{_lambda_.36} parent=43 // pred_region
        %s333 = smul.u32 2, %s16
        %p334 = scmp.lt.s32.totalorder %s333, 3
        %s335 = scalar_select %p334, %s333, 3
        %s336 = smul.addr %s335, 4
        %s337 = scalar_lea.vmem %s4, %s336
      $region48: #{_lambda_.36} parent=43 // pred_fallthru
        _
    $region44: #{_lambda_.36} parent=5 // pred_fallthru
      _
  $region6: #{_lambda_.36} parent=0 // loop_footer
    %s14 = sadd.s32 1, %s10
  $region7: #{_lambda_.36} parent=0 // loop_footer_branch
    %9 = sbr.rel target = $region3
  $region8: #{_lambda_.36} parent=0 // loop_exit
    _

// kernel: _lambda_.38
$region0: #{_lambda_.38}
  #allocation0 [shape = 'u32[]', space=smem, size = 0x4, offset = 0x4, fixed_abs, tag = 'smem constant byte address 0x4 - core index']
  #allocation1 [shape = 'u32[144,128]{1,0:T(1,128)}', space=vmem, size = 0x12000, scoped, tag = 'internal scratch']
  %s0 = inlined_call_operand.vmem [shape: bf16[2,6,6,32], index: 0, kind: input, shape index: {}]
  %s1 = inlined_call_operand.vmem [shape: bf16[2,16,32], index: 1, kind: input, shape index: {}]
  %s2 = inlined_call_operand.vmem [shape: f32[2,9,32], index: 2, kind: input, shape index: {}]
  %s3 = inlined_call_operand.vmem [shape: f32[2,32], index: 3, kind: input, shape index: {}]
  %s4 = inlined_call_operand.vmem [shape: bf16[2,32,32], index: 4, kind: input, shape index: {}]
  %s5 = inlined_call_operand.vmem [shape: f32[1,32], index: 5, kind: input, shape index: {}]
  %s6 = inlined_call_operand.vmem [shape: bf16[2,16,32], index: 6, kind: output, shape index: {}]
  %s7 = sld [smem:[#allocation0]]
  $region57: #{_lambda_.38} parent=0
    _
  %s9 = ssub.s32 1, %s7
  %s10 = scalar_select 0, %s9, %s7
  loop: start=0, step=1, limit=4
  $region2: #{_lambda_.38} parent=0 // loop_pre_header
    _
  $region3: #{_lambda_.38} parent=0 // loop_header
    %s12 = sphi 0, %s16
    %p13 = scmp.ge.s32.totalorder %s12, 4
    %s22 = sphi 0, %s24
    %s25 = sphi 0, %s22
    %s26 = sphi 0, %s25
    %s42 = sphi 0, %s26
    %s48 = sphi 0, %s50
    %s51 = sphi 0, %s48
    %s52 = sphi 0, %s51
    %s68 = sphi 0, %s52
    %s72 = sphi 0, %s72
    %s74 = sphi 0, %s72
    %s75 = sphi 0, %s74
    %s89 = sphi 0, %s75
    %s93 = sphi 0, %s93
    %s95 = sphi 0, %s93
    %s96 = sphi 0, %s95
    %s110 = sphi 0, %s96
    %s114 = sphi 0, %s114
    %s116 = sphi 0, %s114
    %s117 = sphi 0, %s116
    %s131 = sphi 0, %s117
    %s135 = sphi 0, %s135
    %s137 = sphi 0, %s135
    %s138 = sphi 0, %s137
    %s152 = sphi 0, %s138
    %s158 = sphi 0, %s160
    %s161 = sphi 0, %s158
    %s162 = sphi 0, %s161
    %s178 = sphi 0, %s162
  $region4: #{_lambda_.38} parent=0 // loop_header_branch
    %15 = sbr.rel (%p13) target = $region8
  $region5: #{_lambda_.38} parent=0 // loop_body
    %s17 = ssub.s32 %s12, 1
    %s18 = ssub.s32 %s12, 2
    %s19 = sadd.s32 %s12, 1
    %s20 = ssub.s32 %s12, %s19
    %p21 = scmp.eq.s32.totalorder %s20, 0
    %s23 = sadd.s32 %s22, 1
    %s24 = scalar_select %p21, %s22, %s23
    %p27 = pneg %p21
    %p28 = scmp.eq.s32.totalorder %s12, 1
    %p29 = por %p27, %p28
    %p30 = scmp.ne.s32.totalorder %s22, %s25
    %p31 = scmp.eq.s32.totalorder %s12, 0
    %p32 = por %p30, %p31
    %p33 = scmp.ne.s32.totalorder %s22, %s25
    %p34 = scmp.eq.s32.totalorder %s17, 1
    %p35 = por %p33, %p34
    %p36 = scmp.ne.s32.totalorder %s25, %s26
    %p37 = scmp.eq.s32.totalorder %s17, 0
    %p38 = por %p36, %p37
    %p39 = scmp.ne.s32.totalorder %s25, %s26
    %p40 = scmp.eq.s32.totalorder %s18, 1
    %p41 = por %p39, %p40
    %p43 = scmp.ne.s32.totalorder %s26, %s42
    %p44 = scmp.eq.s32.totalorder %s18, 0
    %p45 = por %p43, %p44
    %s46 = ssub.s32 %s12, %s19
    %p47 = scmp.eq.s32.totalorder %s46, 0
    %s49 = sadd.s32 %s48, 1
    %s50 = scalar_select %p47, %s48, %s49
    %p53 = pneg %p47
    %p54 = scmp.eq.s32.totalorder %s12, 1
    %p55 = por %p53, %p54
    %p56 = scmp.ne.s32.totalorder %s48, %s51
    %p57 = scmp.eq.s32.totalorder %s12, 0
    %p58 = por %p56, %p57
    %p59 = scmp.ne.s32.totalorder %s48, %s51
    %p60 = scmp.eq.s32.totalorder %s17, 1
    %p61 = por %p59, %p60
    %p62 = scmp.ne.s32.totalorder %s51, %s52
    %p63 = scmp.eq.s32.totalorder %s17, 0
    %p64 = por %p62, %p63
    %p65 = scmp.ne.s32.totalorder %s51, %s52
    %p66 = scmp.eq.s32.totalorder %s18, 1
    %p67 = por %p65, %p66
    %p69 = scmp.ne.s32.totalorder %s52, %s68
    %p70 = scmp.eq.s32.totalorder %s18, 0
    %p71 = por %p69, %p70
    %s73 = sadd.s32 %s72, 1
    %p76 = scmp.eq.s32.totalorder %s12, 1
    %p77 = scmp.ne.s32.totalorder %s72, %s74
    %p78 = scmp.eq.s32.totalorder %s12, 0
    %p79 = por %p77, %p78
    %p80 = scmp.ne.s32.totalorder %s72, %s74
    %p81 = scmp.eq.s32.totalorder %s17, 1
    %p82 = por %p80, %p81
    %p83 = scmp.ne.s32.totalorder %s74, %s75
    %p84 = scmp.eq.s32.totalorder %s17, 0
    %p85 = por %p83, %p84
    %p86 = scmp.ne.s32.totalorder %s74, %s75
    %p87 = scmp.eq.s32.totalorder %s18, 1
    %p88 = por %p86, %p87
    %p90 = scmp.ne.s32.totalorder %s75, %s89
    %p91 = scmp.eq.s32.totalorder %s18, 0
    %p92 = por %p90, %p91
    %s94 = sadd.s32 %s93, 1
    %p97 = scmp.eq.s32.totalorder %s12, 1
    %p98 = scmp.ne.s32.totalorder %s93, %s95
    %p99 = scmp.eq.s32.totalorder %s12, 0
    %p100 = por %p98, %p99
    %p101 = scmp.ne.s32.totalorder %s93, %s95
    %p102 = scmp.eq.s32.totalorder %s17, 1
    %p103 = por %p101, %p102
    %p104 = scmp.ne.s32.totalorder %s95, %s96
    %p105 = scmp.eq.s32.totalorder %s17, 0
    %p106 = por %p104, %p105
    %p107 = scmp.ne.s32.totalorder %s95, %s96
    %p108 = scmp.eq.s32.totalorder %s18, 1
    %p109 = por %p107, %p108
    %p111 = scmp.ne.s32.totalorder %s96, %s110
    %p112 = scmp.eq.s32.totalorder %s18, 0
    %p113 = por %p111, %p112
    %s115 = sadd.s32 %s114, 1
    %p118 = scmp.eq.s32.totalorder %s12, 1
    %p119 = scmp.ne.s32.totalorder %s114, %s116
    %p120 = scmp.eq.s32.totalorder %s12, 0
    %p121 = por %p119, %p120
    %p122 = scmp.ne.s32.totalorder %s114, %s116
    %p123 = scmp.eq.s32.totalorder %s17, 1
    %p124 = por %p122, %p123
    %p125 = scmp.ne.s32.totalorder %s116, %s117
    %p126 = scmp.eq.s32.totalorder %s17, 0
    %p127 = por %p125, %p126
    %p128 = scmp.ne.s32.totalorder %s116, %s117
    %p129 = scmp.eq.s32.totalorder %s18, 1
    %p130 = por %p128, %p129
    %p132 = scmp.ne.s32.totalorder %s117, %s131
    %p133 = scmp.eq.s32.totalorder %s18, 0
    %p134 = por %p132, %p133
    %s136 = sadd.s32 %s135, 1
    %p139 = scmp.eq.s32.totalorder %s12, 1
    %p140 = scmp.ne.s32.totalorder %s135, %s137
    %p141 = scmp.eq.s32.totalorder %s12, 0
    %p142 = por %p140, %p141
    %p143 = scmp.ne.s32.totalorder %s135, %s137
    %p144 = scmp.eq.s32.totalorder %s17, 1
    %p145 = por %p143, %p144
    %p146 = scmp.ne.s32.totalorder %s137, %s138
    %p147 = scmp.eq.s32.totalorder %s17, 0
    %p148 = por %p146, %p147
    %p149 = scmp.ne.s32.totalorder %s137, %s138
    %p150 = scmp.eq.s32.totalorder %s18, 1
    %p151 = por %p149, %p150
    %p153 = scmp.ne.s32.totalorder %s138, %s152
    %p154 = scmp.eq.s32.totalorder %s18, 0
    %p155 = por %p153, %p154
    %s156 = ssub.s32 %s12, %s19
    %p157 = scmp.eq.s32.totalorder %s156, 0
    %s159 = sadd.s32 %s158, 1
    %s160 = scalar_select %p157, %s158, %s159
    %p163 = pneg %p157
    %p164 = scmp.eq.s32.totalorder %s12, 1
    %p165 = por %p163, %p164
    %p166 = scmp.ne.s32.totalorder %s158, %s161
    %p167 = scmp.eq.s32.totalorder %s12, 0
    %p168 = por %p166, %p167
    %p169 = scmp.ne.s32.totalorder %s158, %s161
    %p170 = scmp.eq.s32.totalorder %s17, 1
    %p171 = por %p169, %p170
    %p172 = scmp.ne.s32.totalorder %s161, %s162
    %p173 = scmp.eq.s32.totalorder %s17, 0
    %p174 = por %p172, %p173
    %p175 = scmp.ne.s32.totalorder %s161, %s162
    %p176 = scmp.eq.s32.totalorder %s18, 1
    %p177 = por %p175, %p176
    %p179 = scmp.ne.s32.totalorder %s162, %s178
    %p180 = scmp.eq.s32.totalorder %s18, 0
    %p181 = por %p179, %p180
    %p182 = scmp.le.s32.totalorder 1, %s12
    %p183 = scmp.lt.s32.totalorder %s12, 3
    %p184 = pnand %p182, %p183
    %p185 = pneg %p184
    // Predicated region
    $region9: #{_lambda_.38} parent=5 // pred_check
      _
    $region10: #{_lambda_.38} parent=5 // pred_check_branch
      %187 = sbr.rel (%p184) target = $region12
    $region11: #{_lambda_.38} parent=5 // pred_region
      %s188 = ssub.s32 %s12, 1
      // Predicated region
      $region13: #{_lambda_.38} parent=11 // pred_check
        %p189 = pneg %p85
      $region14: #{_lambda_.38} parent=11 // pred_check_branch
        %191 = sbr.rel (%p189) target = $region16
      $region15: #{_lambda_.38} parent=11 // pred_region
        _
      $region16: #{_lambda_.38} parent=11 // pred_fallthru
        _
      // Predicated region
      $region17: #{_lambda_.38} parent=11 // pred_check
        %p192 = pneg %p106
      $region18: #{_lambda_.38} parent=11 // pred_check_branch
        %194 = sbr.rel (%p192) target = $region20
      $region19: #{_lambda_.38} parent=11 // pred_region
        _
      $region20: #{_lambda_.38} parent=11 // pred_fallthru
        _
      // Predicated region
      $region21: #{_lambda_.38} parent=11 // pred_check
        %p195 = pneg %p127
      $region22: #{_lambda_.38} parent=11 // pred_check_branch
        %197 = sbr.rel (%p195) target = $region24
      $region23: #{_lambda_.38} parent=11 // pred_region
        _
      $region24: #{_lambda_.38} parent=11 // pred_fallthru
        _
      // Predicated region
      $region25: #{_lambda_.38} parent=11 // pred_check
        %p198 = pneg %p148
      $region26: #{_lambda_.38} parent=11 // pred_check_branch
        %200 = sbr.rel (%p198) target = $region28
      $region27: #{_lambda_.38} parent=11 // pred_region
        _
      $region28: #{_lambda_.38} parent=11 // pred_fallthru
        _
    $region12: #{_lambda_.38} parent=5 // pred_fallthru
      _
    %p201 = scmp.lt.s32.totalorder %s12, 2
    // Predicated region
    $region29: #{_lambda_.38} parent=5 // pred_check
      %p202 = pneg %p201
    $region30: #{_lambda_.38} parent=5 // pred_check_branch
      %204 = sbr.rel (%p202) target = $region32
    $region31: #{_lambda_.38} parent=5 // pred_region
      // Predicated region
      $region33: #{_lambda_.38} parent=31 // pred_check
        %p205 = pneg %p32
      $region34: #{_lambda_.38} parent=31 // pred_check_branch
        %207 = sbr.rel (%p205) target = $region36
      $region35: #{_lambda_.38} parent=31 // pred_region
        %p208 = scmp.lt.s32.totalorder %s12, 1
        %s209 = scalar_select %p208, %s12, 1
        %s210 = smul.addr %s209, 6
        %s211 = smul.addr %s210, 4
        %s212 = scalar_lea.vmem %s0, %s211
      $region36: #{_lambda_.38} parent=31 // pred_fallthru
        _
      // Predicated region
      $region37: #{_lambda_.38} parent=31 // pred_check
        %p213 = pneg %p58
      $region38: #{_lambda_.38} parent=31 // pred_check_branch
        %215 = sbr.rel (%p213) target = $region40
      $region39: #{_lambda_.38} parent=31 // pred_region
        %p216 = scmp.lt.s32.totalorder %s12, 1
        %s217 = scalar_select %p216, %s12, 1
        %s218 = smul.addr %s217, 2
        %s219 = smul.addr %s218, 4
        %s220 = scalar_lea.vmem %s1, %s219
      $region40: #{_lambda_.38} parent=31 // pred_fallthru
        _
    $region32: #{_lambda_.38} parent=5 // pred_fallthru
      _
    %p221 = scmp.le.s32.totalorder 1, %s12
    %p222 = scmp.lt.s32.totalorder %s12, 3
    %p223 = pnand %p221, %p222
    %p224 = pneg %p223
    // Predicated region
    $region41: #{_lambda_.38} parent=5 // pred_check
      _
    $region42: #{_lambda_.38} parent=5 // pred_check_branch
      %226 = sbr.rel (%p223) target = $region44
    $region43: #{_lambda_.38} parent=5 // pred_region
      %s227 = ssub.s32 %s12, 1
      %p228 = scmp.lt.s32.totalorder %s17, 1
      %s229 = scalar_select %p228, %s17, 1
      %s230 = smul.addr %s229, 6
      %s231 = smul.addr %s230, 4
      %s232 = scalar_lea.vmem %s0, %s231
      %p233 = pneg %p38
      %p234 = pneg %p35
      %p235 = scmp.lt.s32.totalorder %s17, 1
      %s236 = scalar_select %p235, %s17, 1
      %s237 = smul.addr %s236, 2
      %s238 = smul.addr %s237, 4
      %s239 = scalar_lea.vmem %s1, %s238
      %p240 = pneg %p64
      %p241 = pneg %p61
      %p242 = pneg %p85
      %p243 = pneg %p82
      %p244 = pneg %p106
      %p245 = pneg %p103
      %p246 = pneg %p127
      %p247 = pneg %p124
      %p248 = pneg %p148
      %p249 = pneg %p145
      %p250 = pneg %p174
      %p251 = pneg %p171
      %p252 = scmp.lt.s32.totalorder %s17, 1
      %s253 = scalar_select %p252, %s17, 1
      %s254 = smul.addr %s253, 2
      %s255 = smul.addr %s254, 4
      %s256 = scalar_lea.vmem %s6, %s255
      %p257 = scmp.lt.s32.totalorder %s17, 1
      %s258 = scalar_select %p257, %s17, 1
      %s259 = smul.addr %s258, 6
      %s260 = smul.addr %s259, 4
      %s261 = scalar_lea.vmem %s0, %s260
      %p262 = scmp.lt.s32.totalorder %s17, 1
      %s263 = scalar_select %p262, %s17, 1
      %s264 = smul.addr %s263, 2
      %s265 = smul.addr %s264, 4
      %s266 = scalar_lea.vmem %s1, %s265
      %p267 = scmp.lt.s32.totalorder %s17, 1
      %s268 = scalar_select %p267, %s17, 1
      %s269 = smul.addr %s268, 2
      %s270 = smul.addr %s269, 4
      %s271 = scalar_lea.vmem %s6, %s270
      %v273 = vld [vmem:[%s2] sm:$0xff]
      %v274 = vld [vmem:[%s2 + $0x8] sm:$0x1]
      %v275 = vld [vmem:[%s2 + $0x10] sm:$0xff]
      %v276 = vld [vmem:[%s2 + $0x18] sm:$0x1]
      %v277 = vld [vmem:[%s3] sm:$0x3]
      %v278 = vld [vmem:[%s4] sm:$0xf]
      %v279 = vld [vmem:[%s4 + $0x4] sm:$0xf]
      %v280 = vld [vmem:[%s4 + $0x8] sm:$0xf]
      %v281 = vld [vmem:[%s4 + $0xc] sm:$0xf]
      %v282 = vld [vmem:[%s4 + $0x10] sm:$0xf]
      %v283 = vld [vmem:[%s4 + $0x14] sm:$0xf]
      %v284 = vld [vmem:[%s4 + $0x18] sm:$0xf]
      %v285 = vld [vmem:[%s4 + $0x1c] sm:$0xf]
      %v286 = vld [vmem:[%s266] sm:$0xf]
      %v287 = vld [vmem:[%s266 + $0x4] sm:$0xf]
      %v288 = vunpack.c.l.bf16 %v286
      %v289 = vunpack.c.l.bf16 %v287
      %v290 = vld [vmem:[%s5] sm:$0x1]
      %v292 = vlaneseq
      %v293 = vshrl.u32 %v292, 7
      %v294 = vsub.s32 0, %v293
      %v295 = vrot.slane %v290, %v294
      %v297 = vadd.f32 %v288, %v295
      %v298 = vadd.f32 %v289, %v295
      %v299 = vlaneseq
      %v300 = vshrl.u32 %v299, 7
      %v301 = vsub.s32 0, %v300
      %v302 = vrot.slane %v277, %v301
      %v303 = vadd.f32 %v302, 0.0
      %v304 = vld [vmem:[%s261] sm:$0x3]
      %v305 = vld [vmem:[%s261 + $0x4] sm:$0x3]
      %v306 = vld [vmem:[%s261 + $0x8] sm:$0x3]
      %v307 = vld [vmem:[%s261 + $0xc] sm:$0x3]
      %v308 = vunpack.c.l.bf16 %v304
      %v309 = vunpack.c.l.bf16 %v305
      %v310 = vunpack.c.l.bf16 %v306
      %v311 = vunpack.c.l.bf16 %v307
      %v312 = vlaneseq
      %v313 = vshrl.u32 %v312, 7
      %v314 = vsub.s32 0, %v313
      %v315 = vrot.slane %v273, %v314
      %v316 = vmul.f32 %v308, %v315
      %v317 = vmul.f32 %v309, %v315
      %v318 = vmul.f32 %v310, %v315
      %v319 = vmul.f32 %v311, %v315
      %v320 = vadd.f32 %v303, %v316
      %v321 = vadd.f32 %v303, %v317
      %v322 = vadd.f32 %v303, %v318
      %v323 = vadd.f32 %v303, %v319
      %v324 = vld [vmem:[%s261] sm:$0x7]
      %v325 = vld [vmem:[%s261 + $0x4] sm:$0x7]
      %v326 = vld [vmem:[%s261 + $0x8] sm:$0x7]
      %v327 = vld [vmem:[%s261 + $0xc] sm:$0x7]
      %v328 = vunpack.c.l.bf16 %v324
      %v329 = vunpack.c.l.bf16 %v325
      %v330 = vunpack.c.l.bf16 %v326
      %v331 = vunpack.c.l.bf16 %v327
      %v332 = vlaneseq
      %v333 = vshrl.u32 %v332, 7
      %v334 = vsub.s32 1, %v333
      %v335 = vrot.slane %v273, %v334
      %v336 = vmul.f32 %v328, %v335
      %v337 = vmul.f32 %v329, %v335
      %v338 = vmul.f32 %v330, %v335
      %v339 = vmul.f32 %v331, %v335
      %v344 = vrot.slane %v336, 1
      %v345 = vrot.slane %v337, 1
      %v346 = vrot.slane %v338, 1
      %v347 = vrot.slane %v339, 1
      %v352 = vadd.f32 %v320, %v344
      %v353 = vadd.f32 %v321, %v345
      %v354 = vadd.f32 %v322, %v346
      %v355 = vadd.f32 %v323, %v347
      %v356 = vld [vmem:[%s261] sm:$0x6]
      %v357 = vld [vmem:[%s261 + $0x4] sm:$0x6]
      %v358 = vld [vmem:[%s261 + $0x8] sm:$0x6]
      %v359 = vld [vmem:[%s261 + $0xc] sm:$0x6]
      %v360 = vunpack.c.l.bf16 %v356
      %v361 = vunpack.c.l.bf16 %v357
      %v362 = vunpack.c.l.bf16 %v358
      %v363 = vunpack.c.l.bf16 %v359
      %v364 = vlaneseq
      %v365 = vshrl.u32 %v364, 7
      %v366 = vsub.s32 2, %v365
      %v367 = vrot.slane %v273, %v366
      %v368 = vmul.f32 %v360, %v367
      %v369 = vmul.f32 %v361, %v367
      %v370 = vmul.f32 %v362, %v367
      %v371 = vmul.f32 %v363, %v367
      %v376 = vrot.slane %v368, 2
      %v377 = vrot.slane %v369, 2
      %v378 = vrot.slane %v370, 2
      %v379 = vrot.slane %v371, 2
      %v384 = vadd.f32 %v352, %v376
      %v385 = vadd.f32 %v353, %v377
      %v386 = vadd.f32 %v354, %v378
      %v387 = vadd.f32 %v355, %v379
      %s388 = scalar_lea.vmem %s261, 4
      %v389 = vld [vmem:[%s388] sm:$0x3]
      %v390 = vld [vmem:[%s388 + $0x4] sm:$0x3]
      %v391 = vld [vmem:[%s388 + $0x8] sm:$0x3]
      %v392 = vld [vmem:[%s388 + $0xc] sm:$0x3]
      %v393 = vunpack.c.l.bf16 %v389
      %v394 = vunpack.c.l.bf16 %v390
      %v395 = vunpack.c.l.bf16 %v391
      %v396 = vunpack.c.l.bf16 %v392
      %v397 = vlaneseq
      %v398 = vshrl.u32 %v397, 7
      %v399 = vsub.s32 3, %v398
      %v400 = vrot.slane %v273, %v399
      %v401 = vmul.f32 %v393, %v400
      %v402 = vmul.f32 %v394, %v400
      %v403 = vmul.f32 %v395, %v400
      %v404 = vmul.f32 %v396, %v400
      %v405 = vadd.f32 %v384, %v401
      %v406 = vadd.f32 %v385, %v402
      %v407 = vadd.f32 %v386, %v403
      %v408 = vadd.f32 %v387, %v404
      %v409 = vld [vmem:[%s388] sm:$0x7]
      %v410 = vld [vmem:[%s388 + $0x4] sm:$0x7]
      %v411 = vld [vmem:[%s388 + $0x8] sm:$0x7]
      %v412 = vld [vmem:[%s388 + $0xc] sm:$0x7]
      %v413 = vunpack.c.l.bf16 %v409
      %v414 = vunpack.c.l.bf16 %v410
      %v415 = vunpack.c.l.bf16 %v411
      %v416 = vunpack.c.l.bf16 %v412
      %v417 = vlaneseq
      %v418 = vshrl.u32 %v417, 7
      %v419 = vsub.s32 4, %v418
      %v420 = vrot.slane %v273, %v419
      %v421 = vmul.f32 %v413, %v420
      %v422 = vmul.f32 %v414, %v420
      %v423 = vmul.f32 %v415, %v420
      %v424 = vmul.f32 %v416, %v420
      %v429 = vrot.slane %v421, 1
      %v430 = vrot.slane %v422, 1
      %v431 = vrot.slane %v423, 1
      %v432 = vrot.slane %v424, 1
      %v437 = vadd.f32 %v405, %v429
      %v438 = vadd.f32 %v406, %v430
      %v439 = vadd.f32 %v407, %v431
      %v440 = vadd.f32 %v408, %v432
      %v441 = vld [vmem:[%s388] sm:$0x6]
      %v442 = vld [vmem:[%s388 + $0x4] sm:$0x6]
      %v443 = vld [vmem:[%s388 + $0x8] sm:$0x6]
      %v444 = vld [vmem:[%s388 + $0xc] sm:$0x6]
      %v445 = vunpack.c.l.bf16 %v441
      %v446 = vunpack.c.l.bf16 %v442
      %v447 = vunpack.c.l.bf16 %v443
      %v448 = vunpack.c.l.bf16 %v444
      %v449 = vlaneseq
      %v450 = vshrl.u32 %v449, 7
      %v451 = vsub.s32 5, %v450
      %v452 = vrot.slane %v273, %v451
      %v453 = vmul.f32 %v445, %v452
      %v454 = vmul.f32 %v446, %v452
      %v455 = vmul.f32 %v447, %v452
      %v456 = vmul.f32 %v448, %v452
      %v461 = vrot.slane %v453, 2
      %v462 = vrot.slane %v454, 2
      %v463 = vrot.slane %v455, 2
      %v464 = vrot.slane %v456, 2
      %v469 = vadd.f32 %v437, %v461
      %v470 = vadd.f32 %v438, %v462
      %v471 = vadd.f32 %v439, %v463
      %v472 = vadd.f32 %v440, %v464
      %s473 = scalar_lea.vmem %s261, 8
      %v474 = vld [vmem:[%s473] sm:$0x3]
      %v475 = vld [vmem:[%s473 + $0x4] sm:$0x3]
      %v476 = vld [vmem:[%s473 + $0x8] sm:$0x3]
      %v477 = vld [vmem:[%s473 + $0xc] sm:$0x3]
      %v478 = vunpack.c.l.bf16 %v474
      %v479 = vunpack.c.l.bf16 %v475
      %v480 = vunpack.c.l.bf16 %v476
      %v481 = vunpack.c.l.bf16 %v477
      %v482 = vlaneseq
      %v483 = vshrl.u32 %v482, 7
      %v484 = vsub.s32 6, %v483
      %v485 = vrot.slane %v273, %v484
      %v486 = vmul.f32 %v478, %v485
      %v487 = vmul.f32 %v479, %v485
      %v488 = vmul.f32 %v480, %v485
      %v489 = vmul.f32 %v481, %v485
      %v490 = vadd.f32 %v469, %v486
      %v491 = vadd.f32 %v470, %v487
      %v492 = vadd.f32 %v471, %v488
      %v493 = vadd.f32 %v472, %v489
      %v494 = vld [vmem:[%s473] sm:$0x7]
      %v495 = vld [vmem:[%s473 + $0x4] sm:$0x7]
      %v496 = vld [vmem:[%s473 + $0x8] sm:$0x7]
      %v497 = vld [vmem:[%s473 + $0xc] sm:$0x7]
      %v498 = vunpack.c.l.bf16 %v494
      %v499 = vunpack.c.l.bf16 %v495
      %v500 = vunpack.c.l.bf16 %v496
      %v501 = vunpack.c.l.bf16 %v497
      %v502 = vlaneseq
      %v503 = vshrl.u32 %v502, 7
      %v504 = vsub.s32 7, %v503
      %v505 = vrot.slane %v273, %v504
      %v506 = vmul.f32 %v498, %v505
      %v507 = vmul.f32 %v499, %v505
      %v508 = vmul.f32 %v500, %v505
      %v509 = vmul.f32 %v501, %v505
      %v514 = vrot.slane %v506, 1
      %v515 = vrot.slane %v507, 1
      %v516 = vrot.slane %v508, 1
      %v517 = vrot.slane %v509, 1
      %v522 = vadd.f32 %v490, %v514
      %v523 = vadd.f32 %v491, %v515
      %v524 = vadd.f32 %v492, %v516
      %v525 = vadd.f32 %v493, %v517
      %v526 = vld [vmem:[%s473] sm:$0x6]
      %v527 = vld [vmem:[%s473 + $0x4] sm:$0x6]
      %v528 = vld [vmem:[%s473 + $0x8] sm:$0x6]
      %v529 = vld [vmem:[%s473 + $0xc] sm:$0x6]
      %v530 = vunpack.c.l.bf16 %v526
      %v531 = vunpack.c.l.bf16 %v527
      %v532 = vunpack.c.l.bf16 %v528
      %v533 = vunpack.c.l.bf16 %v529
      %v534 = vlaneseq
      %v535 = vshrl.u32 %v534, 7
      %v536 = vsub.s32 0, %v535
      %v537 = vrot.slane %v274, %v536
      %v538 = vmul.f32 %v530, %v537
      %v539 = vmul.f32 %v531, %v537
      %v540 = vmul.f32 %v532, %v537
      %v541 = vmul.f32 %v533, %v537
      %v546 = vrot.slane %v538, 2
      %v547 = vrot.slane %v539, 2
      %v548 = vrot.slane %v540, 2
      %v549 = vrot.slane %v541, 2
      %v554 = vadd.f32 %v522, %v546
      %v555 = vadd.f32 %v523, %v547
      %v556 = vadd.f32 %v524, %v548
      %v557 = vadd.f32 %v525, %v549
      %v558 = vmul.f32 %v554, 0.5
      %v559 = vmul.f32 %v555, 0.5
      %v560 = vmul.f32 %v556, 0.5
      %v561 = vmul.f32 %v557, 0.5
      %v562 = vmul.f32 %v554, 0.044715
      %v563 = vmul.f32 %v555, 0.044715
      %v564 = vmul.f32 %v556, 0.044715
      %v565 = vmul.f32 %v557, 0.044715
      %v566 = vmul.f32 %v562, %v554
      %v567 = vmul.f32 %v563, %v555
      %v568 = vmul.f32 %v564, %v556
      %v569 = vmul.f32 %v565, %v557
      %v570 = vmul.f32 %v566, %v554
      %v571 = vmul.f32 %v567, %v555
      %v572 = vmul.f32 %v568, %v556
      %v573 = vmul.f32 %v569, %v557
      %v574 = vadd.f32 %v554, %v570
      %v575 = vadd.f32 %v555, %v571
      %v576 = vadd.f32 %v556, %v572
      %v577 = vadd.f32 %v557, %v573
      %v578 = vmul.f32 %v574, 0.7978846
      %v579 = vmul.f32 %v575, 0.7978846
      %v580 = vmul.f32 %v576, 0.7978846
      %v581 = vmul.f32 %v577, 0.7978846
      %v582 = vtanh.pop %v578
      %v583 = vtanh.pop %v579
      %v584 = vtanh.pop %v580
      %v585 = vtanh.pop %v581
      %v586 = vadd.f32 %v582, 1.0
      %v587 = vadd.f32 %v583, 1.0
      %v588 = vadd.f32 %v584, 1.0
      %v589 = vadd.f32 %v585, 1.0
      %v590 = vmul.f32 %v558, %v586
      %v591 = vmul.f32 %v559, %v587
      %v592 = vmul.f32 %v560, %v588
      %v593 = vmul.f32 %v561, %v589
      %v594 = vpack.c.bf16 %v590, %v590
      %v595 = vpack.c.bf16 %v591, %v591
      %v596 = vpack.c.bf16 %v592, %v592
      %v597 = vpack.c.bf16 %v593, %v593
      %v602 = vcombine.low %v594, %v595
      %v603 = vcombine.low %v596, %v597
      %v605 = vunpack.c.l.s4 1983009808
      %v606 = vunpack.c.0.s8 %v605
      %v607 = vlaneseq
      %v608 = vshrl.u32 %v607, 7
      %v609 = vsub.s32 %v606, %v608
      %v610 = vrot.slane %v602, %v609
      %v612 = vunpack.c.l.s4 1983009808
      %v613 = vunpack.c.0.s8 %v612
      %v614 = vlaneseq
      %v615 = vshrl.u32 %v614, 7
      %v616 = vsub.s32 %v613, %v615
      %v617 = vrot.slane %v603, %v616
      %v618 = vcombine.low %v610, %v617
      %v623 = vunpack.c.l.b16 %v278
      %v624 = vunpack.c.l.b16 %v279
      %v625 = vunpack.c.l.b16 %v280
      %v626 = vunpack.c.l.b16 %v281
      %v627 = vpack.c.b16 %v624, %v623
      %v628 = vpack.c.b16 %v626, %v625
      %vm631 = vcmask 261120
      %v633 = vsel %vm631, %v618, 0
      %635 = vmatprep.subr.bf16.mxu0 0
      %636 = vmatpush1.bf16.msra.mxu0 %v627
      %637 = vmatprep.subr.bf16.mxu0 0
      %638 = vmatpush1.bf16.msra.mxu0 %v628
      %639 = vmatprep.subr.bf16.mxu0 0
      %640 = vmatpush1.bf16.msra.mxu0 0
      %641 = vmatprep.subr.bf16.mxu0 0
      %642 = vmatpush1.bf16.msra.mxu0 0
      %643 = vmatprep.subr.bf16.mxu0 0
      %644 = vmatpush1.bf16.msra.mxu0 0
      %645 = vmatprep.subr.bf16.mxu0 0
      %646 = vmatpush1.bf16.msra.mxu0 0
      %647 = vmatprep.subr.bf16.mxu0 0
      %648 = vmatpush1.bf16.msra.mxu0 0
      %649 = vmatprep.subr.bf16.mxu0 0
      %650 = vmatpush1.bf16.msra.mxu0 0
      %651 = vmatprep.subr.bf16.mxu0 0
      %652 = vmatpush1.bf16.msra.mxu0 0
      %653 = vmatprep.subr.bf16.mxu0 0
      %654 = vmatpush1.bf16.msra.mxu0 0
      %655 = vmatprep.subr.bf16.mxu0 0
      %656 = vmatpush1.bf16.msra.mxu0 0
      %657 = vmatprep.subr.bf16.mxu0 0
      %658 = vmatpush1.bf16.msra.mxu0 0
      %659 = vmatprep.subr.bf16.mxu0 0
      %660 = vmatpush1.bf16.msra.mxu0 0
      %661 = vmatprep.subr.bf16.mxu0 0
      %662 = vmatpush1.bf16.msra.mxu0 0
      %663 = vmatprep.subr.bf16.mxu0 0
      %664 = vmatpush1.bf16.msra.mxu0 0
      %665 = vmatprep.subr.bf16.mxu0 0
      %666 = vmatpush1.bf16.msra.mxu0 0
      %667 = vmatprep.mubr.bf16.mxu0 0
      %668 = vmatmul.mubr.bf16.gmra.mrb[0].mxu0 %v633
      %v669 = vpop.f32.mrb[0].mxu0
      %v670 = vadd.f32 0.0, %v669
      %v671 = vpop.f32.mrb[0].mxu0
      %v672 = vpop.f32.mrb[0].mxu0
      %v673 = vadd.f32 0.0, %v672
      %v674 = vpop.f32.mrb[0].mxu0
      %675 = vdwg.mxu0
      %v676 = vadd.f32 %v297, %v670
      %v677 = vadd.f32 %v298, %v673
      %v678 = vlaneseq
      %v679 = vshrl.u32 %v678, 7
      %v680 = vsub.s32 1, %v679
      %v681 = vrot.slane %v277, %v680
      %v682 = vadd.f32 %v681, 0.0
      %v683 = vlaneseq
      %v684 = vshrl.u32 %v683, 7
      %v685 = vsub.s32 0, %v684
      %v686 = vrot.slane %v275, %v685
      %v687 = vmul.f32 %v308, %v686
      %v688 = vmul.f32 %v309, %v686
      %v689 = vmul.f32 %v310, %v686
      %v690 = vmul.f32 %v311, %v686
      %v691 = vadd.f32 %v682, %v687
      %v692 = vadd.f32 %v682, %v688
      %v693 = vadd.f32 %v682, %v689
      %v694 = vadd.f32 %v682, %v690
      %v695 = vlaneseq
      %v696 = vshrl.u32 %v695, 7
      %v697 = vsub.s32 1, %v696
      %v698 = vrot.slane %v275, %v697
      %v699 = vmul.f32 %v328, %v698
      %v700 = vmul.f32 %v329, %v698
      %v701 = vmul.f32 %v330, %v698
      %v702 = vmul.f32 %v331, %v698
      %v707 = vrot.slane %v699, 1
      %v708 = vrot.slane %v700, 1
      %v709 = vrot.slane %v701, 1
      %v710 = vrot.slane %v702, 1
      %v715 = vadd.f32 %v691, %v707
      %v716 = vadd.f32 %v692, %v708
      %v717 = vadd.f32 %v693, %v709
      %v718 = vadd.f32 %v694, %v710
      %v719 = vlaneseq
      %v720 = vshrl.u32 %v719, 7
      %v721 = vsub.s32 2, %v720
      %v722 = vrot.slane %v275, %v721
      %v723 = vmul.f32 %v360, %v722
      %v724 = vmul.f32 %v361, %v722
      %v725 = vmul.f32 %v362, %v722
      %v726 = vmul.f32 %v363, %v722
      %v731 = vrot.slane %v723, 2
      %v732 = vrot.slane %v724, 2
      %v733 = vrot.slane %v725, 2
      %v734 = vrot.slane %v726, 2
      %v739 = vadd.f32 %v715, %v731
      %v740 = vadd.f32 %v716, %v732
      %v741 = vadd.f32 %v717, %v733
      %v742 = vadd.f32 %v718, %v734
      %v743 = vlaneseq
      %v744 = vshrl.u32 %v743, 7
      %v745 = vsub.s32 3, %v744
      %v746 = vrot.slane %v275, %v745
      %v747 = vmul.f32 %v393, %v746
      %v748 = vmul.f32 %v394, %v746
      %v749 = vmul.f32 %v395, %v746
      %v750 = vmul.f32 %v396, %v746
      %v751 = vadd.f32 %v739, %v747
      %v752 = vadd.f32 %v740, %v748
      %v753 = vadd.f32 %v741, %v749
      %v754 = vadd.f32 %v742, %v750
      %v755 = vlaneseq
      %v756 = vshrl.u32 %v755, 7
      %v757 = vsub.s32 4, %v756
      %v758 = vrot.slane %v275, %v757
      %v759 = vmul.f32 %v413, %v758
      %v760 = vmul.f32 %v414, %v758
      %v761 = vmul.f32 %v415, %v758
      %v762 = vmul.f32 %v416, %v758
      %v767 = vrot.slane %v759, 1
      %v768 = vrot.slane %v760, 1
      %v769 = vrot.slane %v761, 1
      %v770 = vrot.slane %v762, 1
      %v775 = vadd.f32 %v751, %v767
      %v776 = vadd.f32 %v752, %v768
      %v777 = vadd.f32 %v753, %v769
      %v778 = vadd.f32 %v754, %v770
      %v779 = vlaneseq
      %v780 = vshrl.u32 %v779, 7
      %v781 = vsub.s32 5, %v780
      %v782 = vrot.slane %v275, %v781
      %v783 = vmul.f32 %v445, %v782
      %v784 = vmul.f32 %v446, %v782
      %v785 = vmul.f32 %v447, %v782
      %v786 = vmul.f32 %v448, %v782
      %v791 = vrot.slane %v783, 2
      %v792 = vrot.slane %v784, 2
      %v793 = vrot.slane %v785, 2
      %v794 = vrot.slane %v786, 2
      %v799 = vadd.f32 %v775, %v791
      %v800 = vadd.f32 %v776, %v792
      %v801 = vadd.f32 %v777, %v793
      %v802 = vadd.f32 %v778, %v794
      %v803 = vlaneseq
      %v804 = vshrl.u32 %v803, 7
      %v805 = vsub.s32 6, %v804
      %v806 = vrot.slane %v275, %v805
      %v807 = vmul.f32 %v478, %v806
      %v808 = vmul.f32 %v479, %v806
      %v809 = vmul.f32 %v480, %v806
      %v810 = vmul.f32 %v481, %v806
      %v811 = vadd.f32 %v799, %v807
      %v812 = vadd.f32 %v800, %v808
      %v813 = vadd.f32 %v801, %v809
      %v814 = vadd.f32 %v802, %v810
      %v815 = vlaneseq
      %v816 = vshrl.u32 %v815, 7
      %v817 = vsub.s32 7, %v816
      %v818 = vrot.slane %v275, %v817
      %v819 = vmul.f32 %v498, %v818
      %v820 = vmul.f32 %v499, %v818
      %v821 = vmul.f32 %v500, %v818
      %v822 = vmul.f32 %v501, %v818
      %v827 = vrot.slane %v819, 1
      %v828 = vrot.slane %v820, 1
      %v829 = vrot.slane %v821, 1
      %v830 = vrot.slane %v822, 1
      %v835 = vadd.f32 %v811, %v827
      %v836 = vadd.f32 %v812, %v828
      %v837 = vadd.f32 %v813, %v829
      %v838 = vadd.f32 %v814, %v830
      %v839 = vlaneseq
      %v840 = vshrl.u32 %v839, 7
      %v841 = vsub.s32 0, %v840
      %v842 = vrot.slane %v276, %v841
      %v843 = vmul.f32 %v530, %v842
      %v844 = vmul.f32 %v531, %v842
      %v845 = vmul.f32 %v532, %v842
      %v846 = vmul.f32 %v533, %v842
      %v851 = vrot.slane %v843, 2
      %v852 = vrot.slane %v844, 2
      %v853 = vrot.slane %v845, 2
      %v854 = vrot.slane %v846, 2
      %v859 = vadd.f32 %v835, %v851
      %v860 = vadd.f32 %v836, %v852
      %v861 = vadd.f32 %v837, %v853
      %v862 = vadd.f32 %v838, %v854
      %v863 = vmul.f32 %v859, 0.5
      %v864 = vmul.f32 %v860, 0.5
      %v865 = vmul.f32 %v861, 0.5
      %v866 = vmul.f32 %v862, 0.5
      %v867 = vmul.f32 %v859, 0.044715
      %v868 = vmul.f32 %v860, 0.044715
      %v869 = vmul.f32 %v861, 0.044715
      %v870 = vmul.f32 %v862, 0.044715
      %v871 = vmul.f32 %v867, %v859
      %v872 = vmul.f32 %v868, %v860
      %v873 = vmul.f32 %v869, %v861
      %v874 = vmul.f32 %v870, %v862
      %v875 = vmul.f32 %v871, %v859
      %v876 = vmul.f32 %v872, %v860
      %v877 = vmul.f32 %v873, %v861
      %v878 = vmul.f32 %v874, %v862
      %v879 = vadd.f32 %v859, %v875
      %v880 = vadd.f32 %v860, %v876
      %v881 = vadd.f32 %v861, %v877
      %v882 = vadd.f32 %v862, %v878
      %v883 = vmul.f32 %v879, 0.7978846
      %v884 = vmul.f32 %v880, 0.7978846
      %v885 = vmul.f32 %v881, 0.7978846
      %v886 = vmul.f32 %v882, 0.7978846
      %v887 = vtanh.pop %v883
      %v888 = vtanh.pop %v884
      %v889 = vtanh.pop %v885
      %v890 = vtanh.pop %v886
      %v891 = vadd.f32 %v887, 1.0
      %v892 = vadd.f32 %v888, 1.0
      %v893 = vadd.f32 %v889, 1.0
      %v894 = vadd.f32 %v890, 1.0
      %v895 = vmul.f32 %v863, %v891
      %v896 = vmul.f32 %v864, %v892
      %v897 = vmul.f32 %v865, %v893
      %v898 = vmul.f32 %v866, %v894
      %v899 = vpack.c.bf16 %v895, %v895
      %v900 = vpack.c.bf16 %v896, %v896
      %v901 = vpack.c.bf16 %v897, %v897
      %v902 = vpack.c.bf16 %v898, %v898
      %v907 = vcombine.low %v899, %v900
      %v908 = vcombine.low %v901, %v902
      %v910 = vunpack.c.l.s4 1983009808
      %v911 = vunpack.c.0.s8 %v910
      %v912 = vlaneseq
      %v913 = vshrl.u32 %v912, 7
      %v914 = vsub.s32 %v911, %v913
      %v915 = vrot.slane %v907, %v914
      %v917 = vunpack.c.l.s4 1983009808
      %v918 = vunpack.c.0.s8 %v917
      %v919 = vlaneseq
      %v920 = vshrl.u32 %v919, 7
      %v921 = vsub.s32 %v918, %v920
      %v922 = vrot.slane %v908, %v921
      %v923 = vcombine.low %v915, %v922
      %v928 = vunpack.c.l.b16 %v282
      %v929 = vunpack.c.l.b16 %v283
      %v930 = vunpack.c.l.b16 %v284
      %v931 = vunpack.c.l.b16 %v285
      %v932 = vpack.c.b16 %v929, %v928
      %v933 = vpack.c.b16 %v931, %v930
      %v937 = vsel %vm631, %v923, 0
      %939 = vmatprep.subr.bf16.mxu0 0
      %940 = vmatpush1.bf16.msra.mxu0 %v932
      %941 = vmatprep.subr.bf16.mxu0 0
      %942 = vmatpush1.bf16.msra.mxu0 %v933
      %943 = vmatprep.subr.bf16.mxu0 0
      %944 = vmatpush1.bf16.msra.mxu0 0
      %945 = vmatprep.subr.bf16.mxu0 0
      %946 = vmatpush1.bf16.msra.mxu0 0
      %947 = vmatprep.subr.bf16.mxu0 0
      %948 = vmatpush1.bf16.msra.mxu0 0
      %949 = vmatprep.subr.bf16.mxu0 0
      %950 = vmatpush1.bf16.msra.mxu0 0
      %951 = vmatprep.subr.bf16.mxu0 0
      %952 = vmatpush1.bf16.msra.mxu0 0
      %953 = vmatprep.subr.bf16.mxu0 0
      %954 = vmatpush1.bf16.msra.mxu0 0
      %955 = vmatprep.subr.bf16.mxu0 0
      %956 = vmatpush1.bf16.msra.mxu0 0
      %957 = vmatprep.subr.bf16.mxu0 0
      %958 = vmatpush1.bf16.msra.mxu0 0
      %959 = vmatprep.subr.bf16.mxu0 0
      %960 = vmatpush1.bf16.msra.mxu0 0
      %961 = vmatprep.subr.bf16.mxu0 0
      %962 = vmatpush1.bf16.msra.mxu0 0
      %963 = vmatprep.subr.bf16.mxu0 0
      %964 = vmatpush1.bf16.msra.mxu0 0
      %965 = vmatprep.subr.bf16.mxu0 0
      %966 = vmatpush1.bf16.msra.mxu0 0
      %967 = vmatprep.subr.bf16.mxu0 0
      %968 = vmatpush1.bf16.msra.mxu0 0
      %969 = vmatprep.subr.bf16.mxu0 0
      %970 = vmatpush1.bf16.msra.mxu0 0
      %971 = vmatprep.mubr.bf16.mxu0 0
      %972 = vmatmul.mubr.bf16.gmra.mrb[0].mxu0 %v937
      %v973 = vpop.f32.mrb[0].mxu0
      %v974 = vadd.f32 0.0, %v973
      %v975 = vpop.f32.mrb[0].mxu0
      %v976 = vpop.f32.mrb[0].mxu0
      %v977 = vadd.f32 0.0, %v976
      %v978 = vpop.f32.mrb[0].mxu0
      %979 = vdwg.mxu0
      %v980 = vadd.f32 %v676, %v974
      %v981 = vadd.f32 %v677, %v977
      %v982 = vpack.c.bf16 %v981, %v980
      %v984 = vunpack.c.l.b16 %v982
      %v985 = vunpack.c.h.b16 %v982
      %v986 = vpack.c.b16 %v984, %v984
      %v987 = vpack.c.b16 %v985, %v985
      %vm990 = vcmask 257024
      %991 = vst.msk [vmem:[%s271] sm:$0xf] %vm990, %v986
      %992 = vst.msk [vmem:[%s271 + $0x4] sm:$0xf] %vm990, %v987
      %p993 = scmp.lt.s32.totalorder %s17, 1
      %s994 = scalar_select %p993, %s17, 1
      %s995 = smul.addr %s994, 2
      %s996 = smul.addr %s995, 4
      %s997 = scalar_lea.vmem %s6, %s996
      // Predicated region
      $region45: #{_lambda_.38} parent=43 // pred_check
        %p998 = pneg %p171
      $region46: #{_lambda_.38} parent=43 // pred_check_branch
        %1000 = sbr.rel (%p998) target = $region48
      $region47: #{_lambda_.38} parent=43 // pred_region
        _
      $region48: #{_lambda_.38} parent=43 // pred_fallthru
        _
    $region44: #{_lambda_.38} parent=5 // pred_fallthru
      _
    %p1001 = scmp.le.s32.totalorder 2, %s12
    // Predicated region
    $region49: #{_lambda_.38} parent=5 // pred_check
      %p1002 = pneg %p1001
    $region50: #{_lambda_.38} parent=5 // pred_check_branch
      %1004 = sbr.rel (%p1002) target = $region52
    $region51: #{_lambda_.38} parent=5 // pred_region
      %s1005 = ssub.s32 %s12, 2
      // Predicated region
      $region53: #{_lambda_.38} parent=51 // pred_check
        %p1006 = pneg %p177
      $region54: #{_lambda_.38} parent=51 // pred_check_branch
        %1008 = sbr.rel (%p1006) target = $region56
      $region55: #{_lambda_.38} parent=51 // pred_region
        %p1009 = scmp.lt.s32.totalorder %s18, 1
        %s1010 = scalar_select %p1009, %s18, 1
        %s1011 = smul.addr %s1010, 2
        %s1012 = smul.addr %s1011, 4
        %s1013 = scalar_lea.vmem %s6, %s1012
      $region56: #{_lambda_.38} parent=51 // pred_fallthru
        _
    $region52: #{_lambda_.38} parent=5 // pred_fallthru
      _
  $region6: #{_lambda_.38} parent=0 // loop_footer
    %s16 = sadd.s32 1, %s12
  $region7: #{_lambda_.38} parent=0 // loop_footer_branch
    %11 = sbr.rel target = $region3
  $region8: #{_lambda_.38} parent=0 // loop_exit
    _

</llo_original>
